<compile_context>
chip_gen: v7x
topology: tpu7x:2x2x1
jax: 0.10.0
libtpu: 0.0.40
codegen_flags: <defaults>
</compile_context>

<pallas_src>
import functools

import jax
import jax.numpy as jnp
from jax.experimental import pallas as pl
from jax.experimental.pallas import tpu as pltpu

EPS = 1e-5  # LayerNorm eps (matches the PyTorch module)


def _layernorm(x, g, b):
    # Matches the custom PyTorch LayerNorm: biased variance over channels and
    # (x - mean) / (sqrt(var) + eps) * g + b   (std + eps, NOT sqrt(var + eps)).
    mean = jnp.mean(x, axis=-1, keepdims=True)
    var = jnp.mean((x - mean) ** 2, axis=-1, keepdims=True)
    return (x - mean) / (jnp.sqrt(var) + EPS) * g + b


# --------------------------- fused Transformer kernel -----------------------
def _transformer_kernel(
    x_ref, dpe_w_ref, dpe_b_ref, attn_g_ref, attn_b_ref, wqkv_ref, wout_ref,
    bout_ref, ff_g_ref, ff_b_ref, w1_ref, b1_ref, w2_ref, b2_ref,
    y_ref, attn_ref,
    *, depth, B, H, W, C, heads, dim_head):
    N = H * W
    BN = B * N
    inner = heads * dim_head

    cur = x_ref[...]                                  # (BN, C): lives in VMEM/vregs whole pass

    # Spatial coordinates for the conv border masks (constant across layers).
    h_pos = jax.lax.broadcasted_iota(jnp.int32, (B, H, W, C), 1)
    w_pos = jax.lax.broadcasted_iota(jnp.int32, (B, H, W, C), 2)

    for l in range(depth):                            # depth=2: static unroll, weights resident
        # ---------- DPE: dense 3x3 conv, padding=1 (+ residual) ----------
        # nn.Conv2d(dim, dim, 3, padding=1).  Tap t = (dy+1)*3 + (dx+1) reads
        # x[h+dy, w+dx] (zero outside).  Taps are built as VALUES (roll + mask,
        # no scratch stores), concatenated along lanes and contracted in one
        # (BN, 9C) x (9C, C) MXU matmul (K = 9C keeps the MXU busy).
        xhw = cur.reshape(B, H, W, C)                 # layout-preserving split of the row dim
        taps = []
        for t in range(9):
            dy, dx = t // 3 - 1, t % 3 - 1
            s = xhw
            if dx != 0:
                s = jnp.roll(s, -dx, axis=2)          # shift along W (static -> slice+concat)
            if dy != 0:
                s = jnp.roll(s, -dy, axis=1)          # shift along H (leading-dim tile move)
            conds = []
            if dy < 0:
                conds.append(h_pos + dy >= 0)
            if dy > 0:
                conds.append(h_pos + dy <= H - 1)
            if dx < 0:
                conds.append(w_pos + dx >= 0)
            if dx > 0:
                conds.append(w_pos + dx <= W - 1)
            if conds:
                valid = conds[0]
                for cnd in conds[1:]:
                    valid = jnp.logical_and(valid, cnd)
                s = jnp.where(valid, s, 0.0)          # zero padding at the image border
            taps.append(s.reshape(BN, C))
        col = jnp.concatenate(taps, axis=-1)          # (BN, 9C), value-level (no masked stores)
        conv = jnp.dot(col, dpe_w_ref[l],
                       preferred_element_type=jnp.float32) + dpe_b_ref[l]
        cur = conv + cur                              # x = dpe(x) + x

        # ---------- GlobalMHRA attention (+ residual) ----------
        xn = _layernorm(cur, attn_g_ref[l], attn_b_ref[l])
        # Fused QKV projection over ALL batch rows: (BN, C) x (C, 3*inner).
        # The softmax scale (dim_head ** -0.5) is folded into the q columns at init.
        qkv = jnp.dot(xn, wqkv_ref[l], preferred_element_type=jnp.float32)
        qkv3 = qkv.reshape(B, N, 3 * inner)           # layout-preserving split of the row dim
        head_outs = []
        for hh in range(heads):
            q = qkv3[:, :, hh * dim_head:(hh + 1) * dim_head]                        # (B, N, d)
            k = qkv3[:, :, inner + hh * dim_head:inner + (hh + 1) * dim_head]
            v = qkv3[:, :, 2 * inner + hh * dim_head:2 * inner + (hh + 1) * dim_head]
            # Batched over B: sim[b,i,j] = sum_d q[b,i,d] k[b,j,d]
            sim = jax.lax.dot_general(q, k, (((2,), (2,)), ((0,), (0,))),
                                      preferred_element_type=jnp.float32)            # (B, N, N)
            sim = sim - jnp.max(sim, axis=-1, keepdims=True)
            p = jnp.exp(sim)
            # Normalize AFTER the value matmul: scale the (B, N, d) result, not (B, N, N).
            o = jax.lax.dot_general(p, v, (((2,), (1,)), ((0,), (0,))),
                                    preferred_element_type=jnp.float32)              # (B, N, d)
            denom = jnp.sum(p, axis=-1, keepdims=True)
            head_outs.append(o * pl.reciprocal(denom, approx=False))  # exact for parity (EUP)
        # Concatenate heads along lanes (value-level) -> one output-projection matmul.
        ho = jnp.concatenate(head_outs, axis=-1).reshape(BN, inner)
        proj = jnp.dot(ho, wout_ref[l],
                       preferred_element_type=jnp.float32) + bout_ref[l]
        if l == depth - 1:
            attn_ref[...] = proj      # attnMap = attn(x) of the last layer (pre-residual)
        cur = proj + cur              # x = attn(x) + x   (attn(x) is deterministic)

        # ---------- FeedForward (+ residual) ----------
        xn2 = _layernorm(cur, ff_g_ref[l], ff_b_ref[l])
        hid = jnp.dot(xn2, w1_ref[l], preferred_element_type=jnp.float32) + b1_ref[l]
        # TODO(synk): nn.GELU() defaults to the exact erf form; erf has no guaranteed
        # Mosaic lowering, so the tanh approximation is used (~1e-3 deviation).
        cgelu = 0.7978845608028654  # sqrt(2/pi)
        hg = 0.5 * hid * (1.0 + jnp.tanh(cgelu * (hid + 0.044715 * hid * hid * hid)))
        # Dropout(p=0.0) is the identity -> omitted.
        ffo = jnp.dot(hg, w2_ref[l], preferred_element_type=jnp.float32) + b2_ref[l]
        cur = ffo + cur               # x = ff(x) + x

    y_ref[...] = cur


# ------------------------------- parameter setup ----------------------------
def init_params(key, depth, dim, heads, dim_head, ff_mult):
    inner = heads * dim_head
    hidden = dim * ff_mult
    ks = jax.random.split(key, 8)
    s = 0.02
    scale = dim_head ** -0.5
    normal = jax.random.normal
    # Fused QKV weight columns: [q | k | v], each head-major (h*dim_head + d),
    # i.e. to_qkv.weight[:, :, 0].T with the q columns pre-scaled by dim_head**-0.5.
    wq = s * normal(ks[2], (depth, dim, inner), jnp.float32) * scale
    wk = s * normal(ks[3], (depth, dim, inner), jnp.float32)
    wv = s * normal(ks[4], (depth, dim, inner), jnp.float32)
    return dict(
        # DPE weights in im2col layout (9*C_in, C_out): from a PyTorch Conv2d weight
        # w (C_out, C_in, 3, 3) this is w.permute(2, 3, 1, 0).reshape(9*C_in, C_out).
        dpe_w=s * normal(ks[0], (depth, 9 * dim, dim), jnp.float32),
        dpe_b=s * normal(ks[1], (depth, 1, dim), jnp.float32),
        attn_g=jnp.ones((depth, 1, dim), jnp.float32),     # LayerNorm g init
        attn_b=jnp.zeros((depth, 1, dim), jnp.float32),    # LayerNorm b init
        wqkv=jnp.concatenate([wq, wk, wv], axis=-1),       # (depth, dim, 3*inner)
        wout=s * normal(ks[5], (depth, inner, dim), jnp.float32),
        bout=jnp.zeros((depth, 1, dim), jnp.float32),
        ff_g=jnp.ones((depth, 1, dim), jnp.float32),
        ff_b=jnp.zeros((depth, 1, dim), jnp.float32),
        w1=s * normal(ks[6], (depth, dim, hidden), jnp.float32),
        b1=jnp.zeros((depth, 1, hidden), jnp.float32),
        w2=s * normal(ks[7], (depth, hidden, dim), jnp.float32),
        b2=jnp.zeros((depth, 1, dim), jnp.float32),
    )


# ------------------------------ Transformer forward -------------------------
def transformer_forward(x_nchw, params, *, heads, dim_head):
    B, C, H, W = x_nchw.shape
    N = H * W
    BN = B * N
    depth = params["dpe_w"].shape[0]
    inner = heads * dim_head
    hidden = params["w1"].shape[-1]

    xf = jnp.transpose(x_nchw, (0, 2, 3, 1)).reshape(BN, C)   # NCHW -> (B*N, C)

    kernel = functools.partial(_transformer_kernel, depth=depth, B=B, H=H, W=W,
                               C=C, heads=heads, dim_head=dim_head)

    # Advisory cost hint so XLA schedules around the kernel.
    flops = 2 * depth * (
        BN * (9 * C) * C                    # DPE im2col matmul
        + BN * C * (3 * inner)              # fused QKV
        + B * heads * 2 * N * N * dim_head  # sim + attn @ v
        + BN * inner * C                    # output projection
        + 2 * BN * C * hidden)              # FF up + down projections
    transcendentals = depth * (B * heads * N * N + BN * hidden)
    weight_bytes = sum(int(v.size) * 4 for v in params.values())
    bytes_accessed = int(xf.size) * 4 + weight_bytes + 2 * BN * C * 4

    def full_spec(shape):
        nd = len(shape)
        return pl.BlockSpec(shape, lambda i: (0,) * nd)   # whole array, DMA'd once

    y, attn = pl.pallas_call(
        kernel,
        out_shape=(jax.ShapeDtypeStruct((BN, C), jnp.float32),
                   jax.ShapeDtypeStruct((BN, C), jnp.float32)),
        grid=(1,),                                          # single step: batch folded into M
        in_specs=[
            full_spec((BN, C)),                             # x (all batch rows)
            full_spec((depth, 9 * C, C)),                   # dpe_w (im2col layout)
            full_spec((depth, 1, C)),                       # dpe_b
            full_spec((depth, 1, C)),                       # attn LayerNorm g
            full_spec((depth, 1, C)),                       # attn LayerNorm b
            full_spec((depth, C, 3 * inner)),               # fused wqkv (q pre-scaled)
            full_spec((depth, inner, C)),                   # wout
            full_spec((depth, 1, C)),                       # bout
            full_spec((depth, 1, C)),                       # ff LayerNorm g
            full_spec((depth, 1, C)),                       # ff LayerNorm b
            full_spec((depth, C, hidden)),                  # w1
            full_spec((depth, 1, hidden)),                  # b1
            full_spec((depth, hidden, C)),                  # w2
            full_spec((depth, 1, C)),                       # b2
        ],
        out_specs=(full_spec((BN, C)), full_spec((BN, C))),
        compiler_params=pltpu.CompilerParams(dimension_semantics=("arbitrary",)),
        cost_estimate=pl.CostEstimate(flops=flops, transcendentals=transcendentals,
                                      bytes_accessed=bytes_accessed),
    )(xf, params["dpe_w"], params["dpe_b"], params["attn_g"], params["attn_b"],
      params["wqkv"], params["wout"], params["bout"], params["ff_g"],
      params["ff_b"], params["w1"], params["b1"], params["w2"], params["b2"])

    out = jnp.transpose(y.reshape(B, H, W, C), (0, 3, 1, 2))        # back to NCHW
    attn_out = jnp.transpose(attn.reshape(B, H, W, C), (0, 3, 1, 2))
    return out, attn_out


if __name__ == "__main__":
    # Small shapes consistent with Transformer(dim=32, depth=2, heads=2,
    # dim_head=16, mhsa_type='g', ff_mult=4), input (B, dim, H, W).
    B, dim, H, W = 2, 32, 8, 8
    heads, dim_head, depth, ff_mult = 2, 16, 2, 4

    key = jax.random.PRNGKey(0)
    kx, kp = jax.random.split(key)
    x = jax.random.normal(kx, (B, dim, H, W), jnp.float32)
    params = init_params(kp, depth, dim, heads, dim_head, ff_mult)

    out, attn_map = transformer_forward(x, params, heads=heads, dim_head=dim_head)
    out = jax.block_until_ready(out)
    attn_map = jax.block_until_ready(attn_map)

    assert out.shape == (B, dim, H, W)
    assert attn_map.shape == (B, dim, H, W)
    assert jnp.all(jnp.isfinite(out)) and jnp.all(jnp.isfinite(attn_map))
    print("KERNEL_OK")
</pallas_src>

<mosaic_0001>
module attributes {stable_mosaic.version = 11 : i64} {
  func.func @_transformer_kernel(%arg0: i32, %arg1: memref<128x32xf32, #tpu.memory_space<vmem>>, %arg2: memref<2x288x32xf32, #tpu.memory_space<vmem>>, %arg3: memref<2x1x32xf32, #tpu.memory_space<vmem>>, %arg4: memref<2x1x32xf32, #tpu.memory_space<vmem>>, %arg5: memref<2x1x32xf32, #tpu.memory_space<vmem>>, %arg6: memref<2x32x96xf32, #tpu.memory_space<vmem>>, %arg7: memref<2x32x32xf32, #tpu.memory_space<vmem>>, %arg8: memref<2x1x32xf32, #tpu.memory_space<vmem>>, %arg9: memref<2x1x32xf32, #tpu.memory_space<vmem>>, %arg10: memref<2x1x32xf32, #tpu.memory_space<vmem>>, %arg11: memref<2x32x128xf32, #tpu.memory_space<vmem>>, %arg12: memref<2x1x128xf32, #tpu.memory_space<vmem>>, %arg13: memref<2x128x32xf32, #tpu.memory_space<vmem>>, %arg14: memref<2x1x32xf32, #tpu.memory_space<vmem>>, %arg15: memref<128x32xf32, #tpu.memory_space<vmem>>, %arg16: memref<128x32xf32, #tpu.memory_space<vmem>>) attributes {dimension_semantics = [#tpu.dimension_semantics<arbitrary>], iteration_bounds = array<i64: 1>, scalar_prefetch = 0 : i64, scratch_operands = 0 : i64, tpu.core_type = #tpu.core_type<tc>, window_params = [{pipeline_mode = #tpu.pipeline_mode<synchronous>, transform_indices = @transform_0, window_bounds = array<i64: 128, 32>}, {pipeline_mode = #tpu.pipeline_mode<synchronous>, transform_indices = @transform_1, window_bounds = array<i64: 2, 288, 32>}, {pipeline_mode = #tpu.pipeline_mode<synchronous>, transform_indices = @transform_2, window_bounds = array<i64: 2, 1, 32>}, {pipeline_mode = #tpu.pipeline_mode<synchronous>, transform_indices = @transform_3, window_bounds = array<i64: 2, 1, 32>}, {pipeline_mode = #tpu.pipeline_mode<synchronous>, transform_indices = @transform_4, window_bounds = array<i64: 2, 1, 32>}, {pipeline_mode = #tpu.pipeline_mode<synchronous>, transform_indices = @transform_5, window_bounds = array<i64: 2, 32, 96>}, {pipeline_mode = #tpu.pipeline_mode<synchronous>, transform_indices = @transform_6, window_bounds = array<i64: 2, 32, 32>}, {pipeline_mode = #tpu.pipeline_mode<synchronous>, transform_indices = @transform_7, window_bounds = array<i64: 2, 1, 32>}, {pipeline_mode = #tpu.pipeline_mode<synchronous>, transform_indices = @transform_8, window_bounds = array<i64: 2, 1, 32>}, {pipeline_mode = #tpu.pipeline_mode<synchronous>, transform_indices = @transform_9, window_bounds = array<i64: 2, 1, 32>}, {pipeline_mode = #tpu.pipeline_mode<synchronous>, transform_indices = @transform_10, window_bounds = array<i64: 2, 32, 128>}, {pipeline_mode = #tpu.pipeline_mode<synchronous>, transform_indices = @transform_11, window_bounds = array<i64: 2, 1, 128>}, {pipeline_mode = #tpu.pipeline_mode<synchronous>, transform_indices = @transform_12, window_bounds = array<i64: 2, 128, 32>}, {pipeline_mode = #tpu.pipeline_mode<synchronous>, transform_indices = @transform_13, window_bounds = array<i64: 2, 1, 32>}, {pipeline_mode = #tpu.pipeline_mode<synchronous>, transform_indices = @transform_14, window_bounds = array<i64: 128, 32>}, {pipeline_mode = #tpu.pipeline_mode<synchronous>, transform_indices = @transform_15, window_bounds = array<i64: 128, 32>}]} {
    %c0 = arith.constant 0 : index
    %c0_0 = arith.constant 0 : index
    %0 = vector.load %arg1[%c0, %c0_0] : memref<128x32xf32, #tpu.memory_space<vmem>>, vector<128x32xf32>
    %1 = tpu.iota {dimensions = array<i32: 1>} : vector<2x8x8x32xi32>
    %2 = tpu.iota {dimensions = array<i32: 2>} : vector<2x8x8x32xi32>
    %3 = vector.shape_cast %0 : vector<128x32xf32> to vector<2x8x8x32xf32>
    %4 = vector.extract_strided_slice %3 {offsets = [0, 0, 7, 0], sizes = [2, 8, 1, 32], strides = [1, 1, 1, 1]} : vector<2x8x8x32xf32> to vector<2x8x1x32xf32>
    %5 = vector.extract_strided_slice %3 {offsets = [0, 0, 0, 0], sizes = [2, 8, 7, 32], strides = [1, 1, 1, 1]} : vector<2x8x8x32xf32> to vector<2x8x7x32xf32>
    %6 = tpu.concatenate %4, %5 in 2 : vector<2x8x1x32xf32>, vector<2x8x7x32xf32> -> vector<2x8x8x32xf32>
    %7 = vector.extract_strided_slice %6 {offsets = [0, 7, 0, 0], sizes = [2, 1, 8, 32], strides = [1, 1, 1, 1]} : vector<2x8x8x32xf32> to vector<2x1x8x32xf32>
    %8 = vector.extract_strided_slice %6 {offsets = [0, 0, 0, 0], sizes = [2, 7, 8, 32], strides = [1, 1, 1, 1]} : vector<2x8x8x32xf32> to vector<2x7x8x32xf32>
    %9 = tpu.concatenate %7, %8 in 1 : vector<2x1x8x32xf32>, vector<2x7x8x32xf32> -> vector<2x8x8x32xf32>
    %c-1_i32 = arith.constant -1 : i32
    %10 = vector.broadcast %c-1_i32 : i32 to vector<2x8x8x32xi32>
    %11 = arith.addi %1, %10 : vector<2x8x8x32xi32>
    %c0_i32 = arith.constant 0 : i32
    %12 = vector.broadcast %c0_i32 : i32 to vector<2x8x8x32xi32>
    %13 = arith.cmpi sge, %11, %12 : vector<2x8x8x32xi32>
    %c-1_i32_1 = arith.constant -1 : i32
    %14 = vector.broadcast %c-1_i32_1 : i32 to vector<2x8x8x32xi32>
    %15 = arith.addi %2, %14 : vector<2x8x8x32xi32>
    %c0_i32_2 = arith.constant 0 : i32
    %16 = vector.broadcast %c0_i32_2 : i32 to vector<2x8x8x32xi32>
    %17 = arith.cmpi sge, %15, %16 : vector<2x8x8x32xi32>
    %18 = arith.andi %13, %17 : vector<2x8x8x32xi1>
    %cst = arith.constant 0.000000e+00 : f32
    %19 = vector.broadcast %cst : f32 to vector<2x8x8x32xf32>
    %20 = arith.select %18, %9, %19 : vector<2x8x8x32xi1>, vector<2x8x8x32xf32>
    %21 = vector.shape_cast %20 : vector<2x8x8x32xf32> to vector<128x32xf32>
    %22 = vector.extract_strided_slice %3 {offsets = [0, 7, 0, 0], sizes = [2, 1, 8, 32], strides = [1, 1, 1, 1]} : vector<2x8x8x32xf32> to vector<2x1x8x32xf32>
    %23 = vector.extract_strided_slice %3 {offsets = [0, 0, 0, 0], sizes = [2, 7, 8, 32], strides = [1, 1, 1, 1]} : vector<2x8x8x32xf32> to vector<2x7x8x32xf32>
    %24 = tpu.concatenate %22, %23 in 1 : vector<2x1x8x32xf32>, vector<2x7x8x32xf32> -> vector<2x8x8x32xf32>
    %c-1_i32_3 = arith.constant -1 : i32
    %25 = vector.broadcast %c-1_i32_3 : i32 to vector<2x8x8x32xi32>
    %26 = arith.addi %1, %25 : vector<2x8x8x32xi32>
    %c0_i32_4 = arith.constant 0 : i32
    %27 = vector.broadcast %c0_i32_4 : i32 to vector<2x8x8x32xi32>
    %28 = arith.cmpi sge, %26, %27 : vector<2x8x8x32xi32>
    %cst_5 = arith.constant 0.000000e+00 : f32
    %29 = vector.broadcast %cst_5 : f32 to vector<2x8x8x32xf32>
    %30 = arith.select %28, %24, %29 : vector<2x8x8x32xi1>, vector<2x8x8x32xf32>
    %31 = vector.shape_cast %30 : vector<2x8x8x32xf32> to vector<128x32xf32>
    %32 = vector.extract_strided_slice %3 {offsets = [0, 0, 1, 0], sizes = [2, 8, 7, 32], strides = [1, 1, 1, 1]} : vector<2x8x8x32xf32> to vector<2x8x7x32xf32>
    %33 = vector.extract_strided_slice %3 {offsets = [0, 0, 0, 0], sizes = [2, 8, 1, 32], strides = [1, 1, 1, 1]} : vector<2x8x8x32xf32> to vector<2x8x1x32xf32>
    %34 = tpu.concatenate %32, %33 in 2 : vector<2x8x7x32xf32>, vector<2x8x1x32xf32> -> vector<2x8x8x32xf32>
    %35 = vector.extract_strided_slice %34 {offsets = [0, 7, 0, 0], sizes = [2, 1, 8, 32], strides = [1, 1, 1, 1]} : vector<2x8x8x32xf32> to vector<2x1x8x32xf32>
    %36 = vector.extract_strided_slice %34 {offsets = [0, 0, 0, 0], sizes = [2, 7, 8, 32], strides = [1, 1, 1, 1]} : vector<2x8x8x32xf32> to vector<2x7x8x32xf32>
    %37 = tpu.concatenate %35, %36 in 1 : vector<2x1x8x32xf32>, vector<2x7x8x32xf32> -> vector<2x8x8x32xf32>
    %c-1_i32_6 = arith.constant -1 : i32
    %38 = vector.broadcast %c-1_i32_6 : i32 to vector<2x8x8x32xi32>
    %39 = arith.addi %1, %38 : vector<2x8x8x32xi32>
    %c0_i32_7 = arith.constant 0 : i32
    %40 = vector.broadcast %c0_i32_7 : i32 to vector<2x8x8x32xi32>
    %41 = arith.cmpi sge, %39, %40 : vector<2x8x8x32xi32>
    %c1_i32 = arith.constant 1 : i32
    %42 = vector.broadcast %c1_i32 : i32 to vector<2x8x8x32xi32>
    %43 = arith.addi %2, %42 : vector<2x8x8x32xi32>
    %c7_i32 = arith.constant 7 : i32
    %44 = vector.broadcast %c7_i32 : i32 to vector<2x8x8x32xi32>
    %45 = arith.cmpi sle, %43, %44 : vector<2x8x8x32xi32>
    %46 = arith.andi %41, %45 : vector<2x8x8x32xi1>
    %cst_8 = arith.constant 0.000000e+00 : f32
    %47 = vector.broadcast %cst_8 : f32 to vector<2x8x8x32xf32>
    %48 = arith.select %46, %37, %47 : vector<2x8x8x32xi1>, vector<2x8x8x32xf32>
    %49 = vector.shape_cast %48 : vector<2x8x8x32xf32> to vector<128x32xf32>
    %50 = vector.extract_strided_slice %3 {offsets = [0, 0, 7, 0], sizes = [2, 8, 1, 32], strides = [1, 1, 1, 1]} : vector<2x8x8x32xf32> to vector<2x8x1x32xf32>
    %51 = vector.extract_strided_slice %3 {offsets = [0, 0, 0, 0], sizes = [2, 8, 7, 32], strides = [1, 1, 1, 1]} : vector<2x8x8x32xf32> to vector<2x8x7x32xf32>
    %52 = tpu.concatenate %50, %51 in 2 : vector<2x8x1x32xf32>, vector<2x8x7x32xf32> -> vector<2x8x8x32xf32>
    %c-1_i32_9 = arith.constant -1 : i32
    %53 = vector.broadcast %c-1_i32_9 : i32 to vector<2x8x8x32xi32>
    %54 = arith.addi %2, %53 : vector<2x8x8x32xi32>
    %c0_i32_10 = arith.constant 0 : i32
    %55 = vector.broadcast %c0_i32_10 : i32 to vector<2x8x8x32xi32>
    %56 = arith.cmpi sge, %54, %55 : vector<2x8x8x32xi32>
    %cst_11 = arith.constant 0.000000e+00 : f32
    %57 = vector.broadcast %cst_11 : f32 to vector<2x8x8x32xf32>
    %58 = arith.select %56, %52, %57 : vector<2x8x8x32xi1>, vector<2x8x8x32xf32>
    %59 = vector.shape_cast %58 : vector<2x8x8x32xf32> to vector<128x32xf32>
    %60 = vector.shape_cast %3 : vector<2x8x8x32xf32> to vector<128x32xf32>
    %61 = vector.extract_strided_slice %3 {offsets = [0, 0, 1, 0], sizes = [2, 8, 7, 32], strides = [1, 1, 1, 1]} : vector<2x8x8x32xf32> to vector<2x8x7x32xf32>
    %62 = vector.extract_strided_slice %3 {offsets = [0, 0, 0, 0], sizes = [2, 8, 1, 32], strides = [1, 1, 1, 1]} : vector<2x8x8x32xf32> to vector<2x8x1x32xf32>
    %63 = tpu.concatenate %61, %62 in 2 : vector<2x8x7x32xf32>, vector<2x8x1x32xf32> -> vector<2x8x8x32xf32>
    %c1_i32_12 = arith.constant 1 : i32
    %64 = vector.broadcast %c1_i32_12 : i32 to vector<2x8x8x32xi32>
    %65 = arith.addi %2, %64 : vector<2x8x8x32xi32>
    %c7_i32_13 = arith.constant 7 : i32
    %66 = vector.broadcast %c7_i32_13 : i32 to vector<2x8x8x32xi32>
    %67 = arith.cmpi sle, %65, %66 : vector<2x8x8x32xi32>
    %cst_14 = arith.constant 0.000000e+00 : f32
    %68 = vector.broadcast %cst_14 : f32 to vector<2x8x8x32xf32>
    %69 = arith.select %67, %63, %68 : vector<2x8x8x32xi1>, vector<2x8x8x32xf32>
    %70 = vector.shape_cast %69 : vector<2x8x8x32xf32> to vector<128x32xf32>
    %71 = vector.extract_strided_slice %3 {offsets = [0, 0, 7, 0], sizes = [2, 8, 1, 32], strides = [1, 1, 1, 1]} : vector<2x8x8x32xf32> to vector<2x8x1x32xf32>
    %72 = vector.extract_strided_slice %3 {offsets = [0, 0, 0, 0], sizes = [2, 8, 7, 32], strides = [1, 1, 1, 1]} : vector<2x8x8x32xf32> to vector<2x8x7x32xf32>
    %73 = tpu.concatenate %71, %72 in 2 : vector<2x8x1x32xf32>, vector<2x8x7x32xf32> -> vector<2x8x8x32xf32>
    %74 = vector.extract_strided_slice %73 {offsets = [0, 1, 0, 0], sizes = [2, 7, 8, 32], strides = [1, 1, 1, 1]} : vector<2x8x8x32xf32> to vector<2x7x8x32xf32>
    %75 = vector.extract_strided_slice %73 {offsets = [0, 0, 0, 0], sizes = [2, 1, 8, 32], strides = [1, 1, 1, 1]} : vector<2x8x8x32xf32> to vector<2x1x8x32xf32>
    %76 = tpu.concatenate %74, %75 in 1 : vector<2x7x8x32xf32>, vector<2x1x8x32xf32> -> vector<2x8x8x32xf32>
    %c1_i32_15 = arith.constant 1 : i32
    %77 = vector.broadcast %c1_i32_15 : i32 to vector<2x8x8x32xi32>
    %78 = arith.addi %1, %77 : vector<2x8x8x32xi32>
    %c7_i32_16 = arith.constant 7 : i32
    %79 = vector.broadcast %c7_i32_16 : i32 to vector<2x8x8x32xi32>
    %80 = arith.cmpi sle, %78, %79 : vector<2x8x8x32xi32>
    %c-1_i32_17 = arith.constant -1 : i32
    %81 = vector.broadcast %c-1_i32_17 : i32 to vector<2x8x8x32xi32>
    %82 = arith.addi %2, %81 : vector<2x8x8x32xi32>
    %c0_i32_18 = arith.constant 0 : i32
    %83 = vector.broadcast %c0_i32_18 : i32 to vector<2x8x8x32xi32>
    %84 = arith.cmpi sge, %82, %83 : vector<2x8x8x32xi32>
    %85 = arith.andi %80, %84 : vector<2x8x8x32xi1>
    %cst_19 = arith.constant 0.000000e+00 : f32
    %86 = vector.broadcast %cst_19 : f32 to vector<2x8x8x32xf32>
    %87 = arith.select %85, %76, %86 : vector<2x8x8x32xi1>, vector<2x8x8x32xf32>
    %88 = vector.shape_cast %87 : vector<2x8x8x32xf32> to vector<128x32xf32>
    %89 = vector.extract_strided_slice %3 {offsets = [0, 1, 0, 0], sizes = [2, 7, 8, 32], strides = [1, 1, 1, 1]} : vector<2x8x8x32xf32> to vector<2x7x8x32xf32>
    %90 = vector.extract_strided_slice %3 {offsets = [0, 0, 0, 0], sizes = [2, 1, 8, 32], strides = [1, 1, 1, 1]} : vector<2x8x8x32xf32> to vector<2x1x8x32xf32>
    %91 = tpu.concatenate %89, %90 in 1 : vector<2x7x8x32xf32>, vector<2x1x8x32xf32> -> vector<2x8x8x32xf32>
    %c1_i32_20 = arith.constant 1 : i32
    %92 = vector.broadcast %c1_i32_20 : i32 to vector<2x8x8x32xi32>
    %93 = arith.addi %1, %92 : vector<2x8x8x32xi32>
    %c7_i32_21 = arith.constant 7 : i32
    %94 = vector.broadcast %c7_i32_21 : i32 to vector<2x8x8x32xi32>
    %95 = arith.cmpi sle, %93, %94 : vector<2x8x8x32xi32>
    %cst_22 = arith.constant 0.000000e+00 : f32
    %96 = vector.broadcast %cst_22 : f32 to vector<2x8x8x32xf32>
    %97 = arith.select %95, %91, %96 : vector<2x8x8x32xi1>, vector<2x8x8x32xf32>
    %98 = vector.shape_cast %97 : vector<2x8x8x32xf32> to vector<128x32xf32>
    %99 = vector.extract_strided_slice %3 {offsets = [0, 0, 1, 0], sizes = [2, 8, 7, 32], strides = [1, 1, 1, 1]} : vector<2x8x8x32xf32> to vector<2x8x7x32xf32>
    %100 = vector.extract_strided_slice %3 {offsets = [0, 0, 0, 0], sizes = [2, 8, 1, 32], strides = [1, 1, 1, 1]} : vector<2x8x8x32xf32> to vector<2x8x1x32xf32>
    %101 = tpu.concatenate %99, %100 in 2 : vector<2x8x7x32xf32>, vector<2x8x1x32xf32> -> vector<2x8x8x32xf32>
    %102 = vector.extract_strided_slice %101 {offsets = [0, 1, 0, 0], sizes = [2, 7, 8, 32], strides = [1, 1, 1, 1]} : vector<2x8x8x32xf32> to vector<2x7x8x32xf32>
    %103 = vector.extract_strided_slice %101 {offsets = [0, 0, 0, 0], sizes = [2, 1, 8, 32], strides = [1, 1, 1, 1]} : vector<2x8x8x32xf32> to vector<2x1x8x32xf32>
    %104 = tpu.concatenate %102, %103 in 1 : vector<2x7x8x32xf32>, vector<2x1x8x32xf32> -> vector<2x8x8x32xf32>
    %c1_i32_23 = arith.constant 1 : i32
    %105 = vector.broadcast %c1_i32_23 : i32 to vector<2x8x8x32xi32>
    %106 = arith.addi %1, %105 : vector<2x8x8x32xi32>
    %c7_i32_24 = arith.constant 7 : i32
    %107 = vector.broadcast %c7_i32_24 : i32 to vector<2x8x8x32xi32>
    %108 = arith.cmpi sle, %106, %107 : vector<2x8x8x32xi32>
    %c1_i32_25 = arith.constant 1 : i32
    %109 = vector.broadcast %c1_i32_25 : i32 to vector<2x8x8x32xi32>
    %110 = arith.addi %2, %109 : vector<2x8x8x32xi32>
    %c7_i32_26 = arith.constant 7 : i32
    %111 = vector.broadcast %c7_i32_26 : i32 to vector<2x8x8x32xi32>
    %112 = arith.cmpi sle, %110, %111 : vector<2x8x8x32xi32>
    %113 = arith.andi %108, %112 : vector<2x8x8x32xi1>
    %cst_27 = arith.constant 0.000000e+00 : f32
    %114 = vector.broadcast %cst_27 : f32 to vector<2x8x8x32xf32>
    %115 = arith.select %113, %104, %114 : vector<2x8x8x32xi1>, vector<2x8x8x32xf32>
    %116 = vector.shape_cast %115 : vector<2x8x8x32xf32> to vector<128x32xf32>
    %117 = tpu.concatenate %21, %31, %49, %59, %60, %70, %88, %98, %116 in 1 : vector<128x32xf32>, vector<128x32xf32>, vector<128x32xf32>, vector<128x32xf32>, vector<128x32xf32>, vector<128x32xf32>, vector<128x32xf32>, vector<128x32xf32>, vector<128x32xf32> -> vector<128x288xf32>
    %c0_28 = arith.constant 0 : index
    %c0_29 = arith.constant 0 : index
    %c0_30 = arith.constant 0 : index
    %118 = vector.load %arg2[%c0_28, %c0_29, %c0_30] : memref<2x288x32xf32, #tpu.memory_space<vmem>>, vector<1x288x32xf32>
    %119 = vector.shape_cast %118 : vector<1x288x32xf32> to vector<288x32xf32>
    %cst_31 = arith.constant dense<0.000000e+00> : vector<128x32xf32>
    %120 = tpu.matmul %117, %119, %cst_31 {dimension_numbers = #tpu.dot_dimension_numbers<[1], [0], [0], [1], [0, 0, 1, 1], [], []>} : vector<128x288xf32>, vector<288x32xf32>, vector<128x32xf32> -> vector<128x32xf32>
    %c0_32 = arith.constant 0 : index
    %c0_33 = arith.constant 0 : index
    %c0_34 = arith.constant 0 : index
    %121 = vector.load %arg3[%c0_32, %c0_33, %c0_34] : memref<2x1x32xf32, #tpu.memory_space<vmem>>, vector<1x1x32xf32>
    %122 = vector.shape_cast %121 : vector<1x1x32xf32> to vector<1x32xf32>
    %123 = vector.broadcast %122 : vector<1x32xf32> to vector<128x32xf32>
    %124 = arith.addf %120, %123 : vector<128x32xf32>
    %125 = arith.addf %124, %0 : vector<128x32xf32>
    %c0_35 = arith.constant 0 : index
    %c0_36 = arith.constant 0 : index
    %c0_37 = arith.constant 0 : index
    %126 = vector.load %arg4[%c0_35, %c0_36, %c0_37] : memref<2x1x32xf32, #tpu.memory_space<vmem>>, vector<1x1x32xf32>
    %127 = vector.shape_cast %126 : vector<1x1x32xf32> to vector<1x32xf32>
    %c0_38 = arith.constant 0 : index
    %c0_39 = arith.constant 0 : index
    %c0_40 = arith.constant 0 : index
    %128 = vector.load %arg5[%c0_38, %c0_39, %c0_40] : memref<2x1x32xf32, #tpu.memory_space<vmem>>, vector<1x1x32xf32>
    %129 = vector.shape_cast %128 : vector<1x1x32xf32> to vector<1x32xf32>
    %cst_41 = arith.constant dense<0.000000e+00> : vector<128xf32>
    %130 = vector.multi_reduction <add>, %125, %cst_41 [1] : vector<128x32xf32> to vector<128xf32>
    %131 = vector.shape_cast %130 : vector<128xf32> to vector<128x1xf32>
    %cst_42 = arith.constant 3.200000e+01 : f32
    %132 = vector.broadcast %cst_42 : f32 to vector<128x1xf32>
    %133 = arith.divf %131, %132 : vector<128x1xf32>
    %134 = vector.broadcast %133 : vector<128x1xf32> to vector<128x32xf32>
    %135 = arith.subf %125, %134 : vector<128x32xf32>
    %136 = arith.mulf %135, %135 : vector<128x32xf32>
    %cst_43 = arith.constant dense<0.000000e+00> : vector<128xf32>
    %137 = vector.multi_reduction <add>, %136, %cst_43 [1] : vector<128x32xf32> to vector<128xf32>
    %138 = vector.shape_cast %137 : vector<128xf32> to vector<128x1xf32>
    %cst_44 = arith.constant 3.200000e+01 : f32
    %139 = vector.broadcast %cst_44 : f32 to vector<128x1xf32>
    %140 = arith.divf %138, %139 : vector<128x1xf32>
    %141 = vector.broadcast %133 : vector<128x1xf32> to vector<128x32xf32>
    %142 = arith.subf %125, %141 : vector<128x32xf32>
    %143 = math.sqrt %140 : vector<128x1xf32>
    %cst_45 = arith.constant 9.99999974E-6 : f32
    %144 = vector.broadcast %cst_45 : f32 to vector<128x1xf32>
    %145 = arith.addf %143, %144 : vector<128x1xf32>
    %146 = vector.broadcast %145 : vector<128x1xf32> to vector<128x32xf32>
    %147 = arith.divf %142, %146 : vector<128x32xf32>
    %148 = vector.broadcast %127 : vector<1x32xf32> to vector<128x32xf32>
    %149 = arith.mulf %147, %148 : vector<128x32xf32>
    %150 = vector.broadcast %129 : vector<1x32xf32> to vector<128x32xf32>
    %151 = arith.addf %149, %150 : vector<128x32xf32>
    %c0_46 = arith.constant 0 : index
    %c0_47 = arith.constant 0 : index
    %c0_48 = arith.constant 0 : index
    %152 = vector.load %arg6[%c0_46, %c0_47, %c0_48] : memref<2x32x96xf32, #tpu.memory_space<vmem>>, vector<1x32x96xf32>
    %153 = vector.shape_cast %152 : vector<1x32x96xf32> to vector<32x96xf32>
    %cst_49 = arith.constant dense<0.000000e+00> : vector<128x96xf32>
    %154 = tpu.matmul %151, %153, %cst_49 {dimension_numbers = #tpu.dot_dimension_numbers<[1], [0], [0], [1], [0, 0, 1, 1], [], []>} : vector<128x32xf32>, vector<32x96xf32>, vector<128x96xf32> -> vector<128x96xf32>
    %155 = vector.shape_cast %154 : vector<128x96xf32> to vector<2x64x96xf32>
    %156 = vector.extract_strided_slice %155 {offsets = [0, 0, 0], sizes = [2, 64, 16], strides = [1, 1, 1]} : vector<2x64x96xf32> to vector<2x64x16xf32>
    %157 = vector.extract_strided_slice %155 {offsets = [0, 0, 32], sizes = [2, 64, 16], strides = [1, 1, 1]} : vector<2x64x96xf32> to vector<2x64x16xf32>
    %158 = vector.extract_strided_slice %155 {offsets = [0, 0, 64], sizes = [2, 64, 16], strides = [1, 1, 1]} : vector<2x64x96xf32> to vector<2x64x16xf32>
    %cst_50 = arith.constant dense<0.000000e+00> : vector<2x64x64xf32>
    %159 = tpu.matmul %156, %157, %cst_50 {dimension_numbers = #tpu.dot_dimension_numbers<[2], [2], [1], [1], [0, 0, 0, 1, 1, 1], [0], [0]>} : vector<2x64x16xf32>, vector<2x64x16xf32>, vector<2x64x64xf32> -> vector<2x64x64xf32>
    %cst_51 = arith.constant dense<0xFF800000> : vector<2x64xf32>
    %160 = vector.multi_reduction <maximumf>, %159, %cst_51 [2] : vector<2x64x64xf32> to vector<2x64xf32>
    %161 = vector.shape_cast %160 : vector<2x64xf32> to vector<2x64x1xf32>
    %162 = vector.broadcast %161 : vector<2x64x1xf32> to vector<2x64x64xf32>
    %163 = arith.subf %159, %162 : vector<2x64x64xf32>
    %164 = math.exp %163 : vector<2x64x64xf32>
    %cst_52 = arith.constant dense<0.000000e+00> : vector<2x64x16xf32>
    %165 = tpu.matmul %164, %158, %cst_52 {dimension_numbers = #tpu.dot_dimension_numbers<[2], [1], [1], [2], [0, 0, 0, 1, 1, 2], [0], [0]>} : vector<2x64x64xf32>, vector<2x64x16xf32>, vector<2x64x16xf32> -> vector<2x64x16xf32>
    %cst_53 = arith.constant dense<0.000000e+00> : vector<2x64xf32>
    %166 = vector.multi_reduction <add>, %164, %cst_53 [2] : vector<2x64x64xf32> to vector<2x64xf32>
    %167 = vector.shape_cast %166 : vector<2x64xf32> to vector<2x64x1xf32>
    %168 = tpu.reciprocal %167 : vector<2x64x1xf32> -> vector<2x64x1xf32>
    %169 = vector.broadcast %168 : vector<2x64x1xf32> to vector<2x64x16xf32>
    %170 = arith.mulf %165, %169 : vector<2x64x16xf32>
    %171 = vector.extract_strided_slice %155 {offsets = [0, 0, 16], sizes = [2, 64, 16], strides = [1, 1, 1]} : vector<2x64x96xf32> to vector<2x64x16xf32>
    %172 = vector.extract_strided_slice %155 {offsets = [0, 0, 48], sizes = [2, 64, 16], strides = [1, 1, 1]} : vector<2x64x96xf32> to vector<2x64x16xf32>
    %173 = vector.extract_strided_slice %155 {offsets = [0, 0, 80], sizes = [2, 64, 16], strides = [1, 1, 1]} : vector<2x64x96xf32> to vector<2x64x16xf32>
    %cst_54 = arith.constant dense<0.000000e+00> : vector<2x64x64xf32>
    %174 = tpu.matmul %171, %172, %cst_54 {dimension_numbers = #tpu.dot_dimension_numbers<[2], [2], [1], [1], [0, 0, 0, 1, 1, 1], [0], [0]>} : vector<2x64x16xf32>, vector<2x64x16xf32>, vector<2x64x64xf32> -> vector<2x64x64xf32>
    %cst_55 = arith.constant dense<0xFF800000> : vector<2x64xf32>
    %175 = vector.multi_reduction <maximumf>, %174, %cst_55 [2] : vector<2x64x64xf32> to vector<2x64xf32>
    %176 = vector.shape_cast %175 : vector<2x64xf32> to vector<2x64x1xf32>
    %177 = vector.broadcast %176 : vector<2x64x1xf32> to vector<2x64x64xf32>
    %178 = arith.subf %174, %177 : vector<2x64x64xf32>
    %179 = math.exp %178 : vector<2x64x64xf32>
    %cst_56 = arith.constant dense<0.000000e+00> : vector<2x64x16xf32>
    %180 = tpu.matmul %179, %173, %cst_56 {dimension_numbers = #tpu.dot_dimension_numbers<[2], [1], [1], [2], [0, 0, 0, 1, 1, 2], [0], [0]>} : vector<2x64x64xf32>, vector<2x64x16xf32>, vector<2x64x16xf32> -> vector<2x64x16xf32>
    %cst_57 = arith.constant dense<0.000000e+00> : vector<2x64xf32>
    %181 = vector.multi_reduction <add>, %179, %cst_57 [2] : vector<2x64x64xf32> to vector<2x64xf32>
    %182 = vector.shape_cast %181 : vector<2x64xf32> to vector<2x64x1xf32>
    %183 = tpu.reciprocal %182 : vector<2x64x1xf32> -> vector<2x64x1xf32>
    %184 = vector.broadcast %183 : vector<2x64x1xf32> to vector<2x64x16xf32>
    %185 = arith.mulf %180, %184 : vector<2x64x16xf32>
    %186 = tpu.concatenate %170, %185 in 2 : vector<2x64x16xf32>, vector<2x64x16xf32> -> vector<2x64x32xf32>
    %187 = vector.shape_cast %186 : vector<2x64x32xf32> to vector<128x32xf32>
    %c0_58 = arith.constant 0 : index
    %c0_59 = arith.constant 0 : index
    %c0_60 = arith.constant 0 : index
    %188 = vector.load %arg7[%c0_58, %c0_59, %c0_60] : memref<2x32x32xf32, #tpu.memory_space<vmem>>, vector<1x32x32xf32>
    %189 = vector.shape_cast %188 : vector<1x32x32xf32> to vector<32x32xf32>
    %cst_61 = arith.constant dense<0.000000e+00> : vector<128x32xf32>
    %190 = tpu.matmul %187, %189, %cst_61 {dimension_numbers = #tpu.dot_dimension_numbers<[1], [0], [0], [1], [0, 0, 1, 1], [], []>} : vector<128x32xf32>, vector<32x32xf32>, vector<128x32xf32> -> vector<128x32xf32>
    %c0_62 = arith.constant 0 : index
    %c0_63 = arith.constant 0 : index
    %c0_64 = arith.constant 0 : index
    %191 = vector.load %arg8[%c0_62, %c0_63, %c0_64] : memref<2x1x32xf32, #tpu.memory_space<vmem>>, vector<1x1x32xf32>
    %192 = vector.shape_cast %191 : vector<1x1x32xf32> to vector<1x32xf32>
    %193 = vector.broadcast %192 : vector<1x32xf32> to vector<128x32xf32>
    %194 = arith.addf %190, %193 : vector<128x32xf32>
    %195 = arith.addf %194, %125 : vector<128x32xf32>
    %c0_65 = arith.constant 0 : index
    %c0_66 = arith.constant 0 : index
    %c0_67 = arith.constant 0 : index
    %196 = vector.load %arg9[%c0_65, %c0_66, %c0_67] : memref<2x1x32xf32, #tpu.memory_space<vmem>>, vector<1x1x32xf32>
    %197 = vector.shape_cast %196 : vector<1x1x32xf32> to vector<1x32xf32>
    %c0_68 = arith.constant 0 : index
    %c0_69 = arith.constant 0 : index
    %c0_70 = arith.constant 0 : index
    %198 = vector.load %arg10[%c0_68, %c0_69, %c0_70] : memref<2x1x32xf32, #tpu.memory_space<vmem>>, vector<1x1x32xf32>
    %199 = vector.shape_cast %198 : vector<1x1x32xf32> to vector<1x32xf32>
    %cst_71 = arith.constant dense<0.000000e+00> : vector<128xf32>
    %200 = vector.multi_reduction <add>, %195, %cst_71 [1] : vector<128x32xf32> to vector<128xf32>
    %201 = vector.shape_cast %200 : vector<128xf32> to vector<128x1xf32>
    %cst_72 = arith.constant 3.200000e+01 : f32
    %202 = vector.broadcast %cst_72 : f32 to vector<128x1xf32>
    %203 = arith.divf %201, %202 : vector<128x1xf32>
    %204 = vector.broadcast %203 : vector<128x1xf32> to vector<128x32xf32>
    %205 = arith.subf %195, %204 : vector<128x32xf32>
    %206 = arith.mulf %205, %205 : vector<128x32xf32>
    %cst_73 = arith.constant dense<0.000000e+00> : vector<128xf32>
    %207 = vector.multi_reduction <add>, %206, %cst_73 [1] : vector<128x32xf32> to vector<128xf32>
    %208 = vector.shape_cast %207 : vector<128xf32> to vector<128x1xf32>
    %cst_74 = arith.constant 3.200000e+01 : f32
    %209 = vector.broadcast %cst_74 : f32 to vector<128x1xf32>
    %210 = arith.divf %208, %209 : vector<128x1xf32>
    %211 = vector.broadcast %203 : vector<128x1xf32> to vector<128x32xf32>
    %212 = arith.subf %195, %211 : vector<128x32xf32>
    %213 = math.sqrt %210 : vector<128x1xf32>
    %cst_75 = arith.constant 9.99999974E-6 : f32
    %214 = vector.broadcast %cst_75 : f32 to vector<128x1xf32>
    %215 = arith.addf %213, %214 : vector<128x1xf32>
    %216 = vector.broadcast %215 : vector<128x1xf32> to vector<128x32xf32>
    %217 = arith.divf %212, %216 : vector<128x32xf32>
    %218 = vector.broadcast %197 : vector<1x32xf32> to vector<128x32xf32>
    %219 = arith.mulf %217, %218 : vector<128x32xf32>
    %220 = vector.broadcast %199 : vector<1x32xf32> to vector<128x32xf32>
    %221 = arith.addf %219, %220 : vector<128x32xf32>
    %c0_76 = arith.constant 0 : index
    %c0_77 = arith.constant 0 : index
    %c0_78 = arith.constant 0 : index
    %222 = vector.load %arg11[%c0_76, %c0_77, %c0_78] : memref<2x32x128xf32, #tpu.memory_space<vmem>>, vector<1x32x128xf32>
    %223 = vector.shape_cast %222 : vector<1x32x128xf32> to vector<32x128xf32>
    %cst_79 = arith.constant dense<0.000000e+00> : vector<128x128xf32>
    %224 = tpu.matmul %221, %223, %cst_79 {dimension_numbers = #tpu.dot_dimension_numbers<[1], [0], [0], [1], [0, 0, 1, 1], [], []>} : vector<128x32xf32>, vector<32x128xf32>, vector<128x128xf32> -> vector<128x128xf32>
    %c0_80 = arith.constant 0 : index
    %c0_81 = arith.constant 0 : index
    %c0_82 = arith.constant 0 : index
    %225 = vector.load %arg12[%c0_80, %c0_81, %c0_82] : memref<2x1x128xf32, #tpu.memory_space<vmem>>, vector<1x1x128xf32>
    %226 = vector.shape_cast %225 : vector<1x1x128xf32> to vector<1x128xf32>
    %227 = vector.broadcast %226 : vector<1x128xf32> to vector<128x128xf32>
    %228 = arith.addf %224, %227 : vector<128x128xf32>
    %cst_83 = arith.constant 5.000000e-01 : f32
    %229 = vector.broadcast %cst_83 : f32 to vector<128x128xf32>
    %230 = arith.mulf %229, %228 : vector<128x128xf32>
    %cst_84 = arith.constant 4.471500e-02 : f32
    %231 = vector.broadcast %cst_84 : f32 to vector<128x128xf32>
    %232 = arith.mulf %231, %228 : vector<128x128xf32>
    %233 = arith.mulf %232, %228 : vector<128x128xf32>
    %234 = arith.mulf %233, %228 : vector<128x128xf32>
    %235 = arith.addf %228, %234 : vector<128x128xf32>
    %cst_85 = arith.constant 0.797884583 : f32
    %236 = vector.broadcast %cst_85 : f32 to vector<128x128xf32>
    %237 = arith.mulf %236, %235 : vector<128x128xf32>
    %238 = math.tanh %237 : vector<128x128xf32>
    %cst_86 = arith.constant 1.000000e+00 : f32
    %239 = vector.broadcast %cst_86 : f32 to vector<128x128xf32>
    %240 = arith.addf %239, %238 : vector<128x128xf32>
    %241 = arith.mulf %230, %240 : vector<128x128xf32>
    %c0_87 = arith.constant 0 : index
    %c0_88 = arith.constant 0 : index
    %c0_89 = arith.constant 0 : index
    %242 = vector.load %arg13[%c0_87, %c0_88, %c0_89] : memref<2x128x32xf32, #tpu.memory_space<vmem>>, vector<1x128x32xf32>
    %243 = vector.shape_cast %242 : vector<1x128x32xf32> to vector<128x32xf32>
    %cst_90 = arith.constant dense<0.000000e+00> : vector<128x32xf32>
    %244 = tpu.matmul %241, %243, %cst_90 {dimension_numbers = #tpu.dot_dimension_numbers<[1], [0], [0], [1], [0, 0, 1, 1], [], []>} : vector<128x128xf32>, vector<128x32xf32>, vector<128x32xf32> -> vector<128x32xf32>
    %c0_91 = arith.constant 0 : index
    %c0_92 = arith.constant 0 : index
    %c0_93 = arith.constant 0 : index
    %245 = vector.load %arg14[%c0_91, %c0_92, %c0_93] : memref<2x1x32xf32, #tpu.memory_space<vmem>>, vector<1x1x32xf32>
    %246 = vector.shape_cast %245 : vector<1x1x32xf32> to vector<1x32xf32>
    %247 = vector.broadcast %246 : vector<1x32xf32> to vector<128x32xf32>
    %248 = arith.addf %244, %247 : vector<128x32xf32>
    %249 = arith.addf %248, %195 : vector<128x32xf32>
    %250 = vector.shape_cast %249 : vector<128x32xf32> to vector<2x8x8x32xf32>
    %251 = vector.extract_strided_slice %250 {offsets = [0, 0, 7, 0], sizes = [2, 8, 1, 32], strides = [1, 1, 1, 1]} : vector<2x8x8x32xf32> to vector<2x8x1x32xf32>
    %252 = vector.extract_strided_slice %250 {offsets = [0, 0, 0, 0], sizes = [2, 8, 7, 32], strides = [1, 1, 1, 1]} : vector<2x8x8x32xf32> to vector<2x8x7x32xf32>
    %253 = tpu.concatenate %251, %252 in 2 : vector<2x8x1x32xf32>, vector<2x8x7x32xf32> -> vector<2x8x8x32xf32>
    %254 = vector.extract_strided_slice %253 {offsets = [0, 7, 0, 0], sizes = [2, 1, 8, 32], strides = [1, 1, 1, 1]} : vector<2x8x8x32xf32> to vector<2x1x8x32xf32>
    %255 = vector.extract_strided_slice %253 {offsets = [0, 0, 0, 0], sizes = [2, 7, 8, 32], strides = [1, 1, 1, 1]} : vector<2x8x8x32xf32> to vector<2x7x8x32xf32>
    %256 = tpu.concatenate %254, %255 in 1 : vector<2x1x8x32xf32>, vector<2x7x8x32xf32> -> vector<2x8x8x32xf32>
    %c-1_i32_94 = arith.constant -1 : i32
    %257 = vector.broadcast %c-1_i32_94 : i32 to vector<2x8x8x32xi32>
    %258 = arith.addi %1, %257 : vector<2x8x8x32xi32>
    %c0_i32_95 = arith.constant 0 : i32
    %259 = vector.broadcast %c0_i32_95 : i32 to vector<2x8x8x32xi32>
    %260 = arith.cmpi sge, %258, %259 : vector<2x8x8x32xi32>
    %c-1_i32_96 = arith.constant -1 : i32
    %261 = vector.broadcast %c-1_i32_96 : i32 to vector<2x8x8x32xi32>
    %262 = arith.addi %2, %261 : vector<2x8x8x32xi32>
    %c0_i32_97 = arith.constant 0 : i32
    %263 = vector.broadcast %c0_i32_97 : i32 to vector<2x8x8x32xi32>
    %264 = arith.cmpi sge, %262, %263 : vector<2x8x8x32xi32>
    %265 = arith.andi %260, %264 : vector<2x8x8x32xi1>
    %cst_98 = arith.constant 0.000000e+00 : f32
    %266 = vector.broadcast %cst_98 : f32 to vector<2x8x8x32xf32>
    %267 = arith.select %265, %256, %266 : vector<2x8x8x32xi1>, vector<2x8x8x32xf32>
    %268 = vector.shape_cast %267 : vector<2x8x8x32xf32> to vector<128x32xf32>
    %269 = vector.extract_strided_slice %250 {offsets = [0, 7, 0, 0], sizes = [2, 1, 8, 32], strides = [1, 1, 1, 1]} : vector<2x8x8x32xf32> to vector<2x1x8x32xf32>
    %270 = vector.extract_strided_slice %250 {offsets = [0, 0, 0, 0], sizes = [2, 7, 8, 32], strides = [1, 1, 1, 1]} : vector<2x8x8x32xf32> to vector<2x7x8x32xf32>
    %271 = tpu.concatenate %269, %270 in 1 : vector<2x1x8x32xf32>, vector<2x7x8x32xf32> -> vector<2x8x8x32xf32>
    %c-1_i32_99 = arith.constant -1 : i32
    %272 = vector.broadcast %c-1_i32_99 : i32 to vector<2x8x8x32xi32>
    %273 = arith.addi %1, %272 : vector<2x8x8x32xi32>
    %c0_i32_100 = arith.constant 0 : i32
    %274 = vector.broadcast %c0_i32_100 : i32 to vector<2x8x8x32xi32>
    %275 = arith.cmpi sge, %273, %274 : vector<2x8x8x32xi32>
    %cst_101 = arith.constant 0.000000e+00 : f32
    %276 = vector.broadcast %cst_101 : f32 to vector<2x8x8x32xf32>
    %277 = arith.select %275, %271, %276 : vector<2x8x8x32xi1>, vector<2x8x8x32xf32>
    %278 = vector.shape_cast %277 : vector<2x8x8x32xf32> to vector<128x32xf32>
    %279 = vector.extract_strided_slice %250 {offsets = [0, 0, 1, 0], sizes = [2, 8, 7, 32], strides = [1, 1, 1, 1]} : vector<2x8x8x32xf32> to vector<2x8x7x32xf32>
    %280 = vector.extract_strided_slice %250 {offsets = [0, 0, 0, 0], sizes = [2, 8, 1, 32], strides = [1, 1, 1, 1]} : vector<2x8x8x32xf32> to vector<2x8x1x32xf32>
    %281 = tpu.concatenate %279, %280 in 2 : vector<2x8x7x32xf32>, vector<2x8x1x32xf32> -> vector<2x8x8x32xf32>
    %282 = vector.extract_strided_slice %281 {offsets = [0, 7, 0, 0], sizes = [2, 1, 8, 32], strides = [1, 1, 1, 1]} : vector<2x8x8x32xf32> to vector<2x1x8x32xf32>
    %283 = vector.extract_strided_slice %281 {offsets = [0, 0, 0, 0], sizes = [2, 7, 8, 32], strides = [1, 1, 1, 1]} : vector<2x8x8x32xf32> to vector<2x7x8x32xf32>
    %284 = tpu.concatenate %282, %283 in 1 : vector<2x1x8x32xf32>, vector<2x7x8x32xf32> -> vector<2x8x8x32xf32>
    %c-1_i32_102 = arith.constant -1 : i32
    %285 = vector.broadcast %c-1_i32_102 : i32 to vector<2x8x8x32xi32>
    %286 = arith.addi %1, %285 : vector<2x8x8x32xi32>
    %c0_i32_103 = arith.constant 0 : i32
    %287 = vector.broadcast %c0_i32_103 : i32 to vector<2x8x8x32xi32>
    %288 = arith.cmpi sge, %286, %287 : vector<2x8x8x32xi32>
    %c1_i32_104 = arith.constant 1 : i32
    %289 = vector.broadcast %c1_i32_104 : i32 to vector<2x8x8x32xi32>
    %290 = arith.addi %2, %289 : vector<2x8x8x32xi32>
    %c7_i32_105 = arith.constant 7 : i32
    %291 = vector.broadcast %c7_i32_105 : i32 to vector<2x8x8x32xi32>
    %292 = arith.cmpi sle, %290, %291 : vector<2x8x8x32xi32>
    %293 = arith.andi %288, %292 : vector<2x8x8x32xi1>
    %cst_106 = arith.constant 0.000000e+00 : f32
    %294 = vector.broadcast %cst_106 : f32 to vector<2x8x8x32xf32>
    %295 = arith.select %293, %284, %294 : vector<2x8x8x32xi1>, vector<2x8x8x32xf32>
    %296 = vector.shape_cast %295 : vector<2x8x8x32xf32> to vector<128x32xf32>
    %297 = vector.extract_strided_slice %250 {offsets = [0, 0, 7, 0], sizes = [2, 8, 1, 32], strides = [1, 1, 1, 1]} : vector<2x8x8x32xf32> to vector<2x8x1x32xf32>
    %298 = vector.extract_strided_slice %250 {offsets = [0, 0, 0, 0], sizes = [2, 8, 7, 32], strides = [1, 1, 1, 1]} : vector<2x8x8x32xf32> to vector<2x8x7x32xf32>
    %299 = tpu.concatenate %297, %298 in 2 : vector<2x8x1x32xf32>, vector<2x8x7x32xf32> -> vector<2x8x8x32xf32>
    %c-1_i32_107 = arith.constant -1 : i32
    %300 = vector.broadcast %c-1_i32_107 : i32 to vector<2x8x8x32xi32>
    %301 = arith.addi %2, %300 : vector<2x8x8x32xi32>
    %c0_i32_108 = arith.constant 0 : i32
    %302 = vector.broadcast %c0_i32_108 : i32 to vector<2x8x8x32xi32>
    %303 = arith.cmpi sge, %301, %302 : vector<2x8x8x32xi32>
    %cst_109 = arith.constant 0.000000e+00 : f32
    %304 = vector.broadcast %cst_109 : f32 to vector<2x8x8x32xf32>
    %305 = arith.select %303, %299, %304 : vector<2x8x8x32xi1>, vector<2x8x8x32xf32>
    %306 = vector.shape_cast %305 : vector<2x8x8x32xf32> to vector<128x32xf32>
    %307 = vector.shape_cast %250 : vector<2x8x8x32xf32> to vector<128x32xf32>
    %308 = vector.extract_strided_slice %250 {offsets = [0, 0, 1, 0], sizes = [2, 8, 7, 32], strides = [1, 1, 1, 1]} : vector<2x8x8x32xf32> to vector<2x8x7x32xf32>
    %309 = vector.extract_strided_slice %250 {offsets = [0, 0, 0, 0], sizes = [2, 8, 1, 32], strides = [1, 1, 1, 1]} : vector<2x8x8x32xf32> to vector<2x8x1x32xf32>
    %310 = tpu.concatenate %308, %309 in 2 : vector<2x8x7x32xf32>, vector<2x8x1x32xf32> -> vector<2x8x8x32xf32>
    %c1_i32_110 = arith.constant 1 : i32
    %311 = vector.broadcast %c1_i32_110 : i32 to vector<2x8x8x32xi32>
    %312 = arith.addi %2, %311 : vector<2x8x8x32xi32>
    %c7_i32_111 = arith.constant 7 : i32
    %313 = vector.broadcast %c7_i32_111 : i32 to vector<2x8x8x32xi32>
    %314 = arith.cmpi sle, %312, %313 : vector<2x8x8x32xi32>
    %cst_112 = arith.constant 0.000000e+00 : f32
    %315 = vector.broadcast %cst_112 : f32 to vector<2x8x8x32xf32>
    %316 = arith.select %314, %310, %315 : vector<2x8x8x32xi1>, vector<2x8x8x32xf32>
    %317 = vector.shape_cast %316 : vector<2x8x8x32xf32> to vector<128x32xf32>
    %318 = vector.extract_strided_slice %250 {offsets = [0, 0, 7, 0], sizes = [2, 8, 1, 32], strides = [1, 1, 1, 1]} : vector<2x8x8x32xf32> to vector<2x8x1x32xf32>
    %319 = vector.extract_strided_slice %250 {offsets = [0, 0, 0, 0], sizes = [2, 8, 7, 32], strides = [1, 1, 1, 1]} : vector<2x8x8x32xf32> to vector<2x8x7x32xf32>
    %320 = tpu.concatenate %318, %319 in 2 : vector<2x8x1x32xf32>, vector<2x8x7x32xf32> -> vector<2x8x8x32xf32>
    %321 = vector.extract_strided_slice %320 {offsets = [0, 1, 0, 0], sizes = [2, 7, 8, 32], strides = [1, 1, 1, 1]} : vector<2x8x8x32xf32> to vector<2x7x8x32xf32>
    %322 = vector.extract_strided_slice %320 {offsets = [0, 0, 0, 0], sizes = [2, 1, 8, 32], strides = [1, 1, 1, 1]} : vector<2x8x8x32xf32> to vector<2x1x8x32xf32>
    %323 = tpu.concatenate %321, %322 in 1 : vector<2x7x8x32xf32>, vector<2x1x8x32xf32> -> vector<2x8x8x32xf32>
    %c1_i32_113 = arith.constant 1 : i32
    %324 = vector.broadcast %c1_i32_113 : i32 to vector<2x8x8x32xi32>
    %325 = arith.addi %1, %324 : vector<2x8x8x32xi32>
    %c7_i32_114 = arith.constant 7 : i32
    %326 = vector.broadcast %c7_i32_114 : i32 to vector<2x8x8x32xi32>
    %327 = arith.cmpi sle, %325, %326 : vector<2x8x8x32xi32>
    %c-1_i32_115 = arith.constant -1 : i32
    %328 = vector.broadcast %c-1_i32_115 : i32 to vector<2x8x8x32xi32>
    %329 = arith.addi %2, %328 : vector<2x8x8x32xi32>
    %c0_i32_116 = arith.constant 0 : i32
    %330 = vector.broadcast %c0_i32_116 : i32 to vector<2x8x8x32xi32>
    %331 = arith.cmpi sge, %329, %330 : vector<2x8x8x32xi32>
    %332 = arith.andi %327, %331 : vector<2x8x8x32xi1>
    %cst_117 = arith.constant 0.000000e+00 : f32
    %333 = vector.broadcast %cst_117 : f32 to vector<2x8x8x32xf32>
    %334 = arith.select %332, %323, %333 : vector<2x8x8x32xi1>, vector<2x8x8x32xf32>
    %335 = vector.shape_cast %334 : vector<2x8x8x32xf32> to vector<128x32xf32>
    %336 = vector.extract_strided_slice %250 {offsets = [0, 1, 0, 0], sizes = [2, 7, 8, 32], strides = [1, 1, 1, 1]} : vector<2x8x8x32xf32> to vector<2x7x8x32xf32>
    %337 = vector.extract_strided_slice %250 {offsets = [0, 0, 0, 0], sizes = [2, 1, 8, 32], strides = [1, 1, 1, 1]} : vector<2x8x8x32xf32> to vector<2x1x8x32xf32>
    %338 = tpu.concatenate %336, %337 in 1 : vector<2x7x8x32xf32>, vector<2x1x8x32xf32> -> vector<2x8x8x32xf32>
    %c1_i32_118 = arith.constant 1 : i32
    %339 = vector.broadcast %c1_i32_118 : i32 to vector<2x8x8x32xi32>
    %340 = arith.addi %1, %339 : vector<2x8x8x32xi32>
    %c7_i32_119 = arith.constant 7 : i32
    %341 = vector.broadcast %c7_i32_119 : i32 to vector<2x8x8x32xi32>
    %342 = arith.cmpi sle, %340, %341 : vector<2x8x8x32xi32>
    %cst_120 = arith.constant 0.000000e+00 : f32
    %343 = vector.broadcast %cst_120 : f32 to vector<2x8x8x32xf32>
    %344 = arith.select %342, %338, %343 : vector<2x8x8x32xi1>, vector<2x8x8x32xf32>
    %345 = vector.shape_cast %344 : vector<2x8x8x32xf32> to vector<128x32xf32>
    %346 = vector.extract_strided_slice %250 {offsets = [0, 0, 1, 0], sizes = [2, 8, 7, 32], strides = [1, 1, 1, 1]} : vector<2x8x8x32xf32> to vector<2x8x7x32xf32>
    %347 = vector.extract_strided_slice %250 {offsets = [0, 0, 0, 0], sizes = [2, 8, 1, 32], strides = [1, 1, 1, 1]} : vector<2x8x8x32xf32> to vector<2x8x1x32xf32>
    %348 = tpu.concatenate %346, %347 in 2 : vector<2x8x7x32xf32>, vector<2x8x1x32xf32> -> vector<2x8x8x32xf32>
    %349 = vector.extract_strided_slice %348 {offsets = [0, 1, 0, 0], sizes = [2, 7, 8, 32], strides = [1, 1, 1, 1]} : vector<2x8x8x32xf32> to vector<2x7x8x32xf32>
    %350 = vector.extract_strided_slice %348 {offsets = [0, 0, 0, 0], sizes = [2, 1, 8, 32], strides = [1, 1, 1, 1]} : vector<2x8x8x32xf32> to vector<2x1x8x32xf32>
    %351 = tpu.concatenate %349, %350 in 1 : vector<2x7x8x32xf32>, vector<2x1x8x32xf32> -> vector<2x8x8x32xf32>
    %c1_i32_121 = arith.constant 1 : i32
    %352 = vector.broadcast %c1_i32_121 : i32 to vector<2x8x8x32xi32>
    %353 = arith.addi %1, %352 : vector<2x8x8x32xi32>
    %c7_i32_122 = arith.constant 7 : i32
    %354 = vector.broadcast %c7_i32_122 : i32 to vector<2x8x8x32xi32>
    %355 = arith.cmpi sle, %353, %354 : vector<2x8x8x32xi32>
    %c1_i32_123 = arith.constant 1 : i32
    %356 = vector.broadcast %c1_i32_123 : i32 to vector<2x8x8x32xi32>
    %357 = arith.addi %2, %356 : vector<2x8x8x32xi32>
    %c7_i32_124 = arith.constant 7 : i32
    %358 = vector.broadcast %c7_i32_124 : i32 to vector<2x8x8x32xi32>
    %359 = arith.cmpi sle, %357, %358 : vector<2x8x8x32xi32>
    %360 = arith.andi %355, %359 : vector<2x8x8x32xi1>
    %cst_125 = arith.constant 0.000000e+00 : f32
    %361 = vector.broadcast %cst_125 : f32 to vector<2x8x8x32xf32>
    %362 = arith.select %360, %351, %361 : vector<2x8x8x32xi1>, vector<2x8x8x32xf32>
    %363 = vector.shape_cast %362 : vector<2x8x8x32xf32> to vector<128x32xf32>
    %364 = tpu.concatenate %268, %278, %296, %306, %307, %317, %335, %345, %363 in 1 : vector<128x32xf32>, vector<128x32xf32>, vector<128x32xf32>, vector<128x32xf32>, vector<128x32xf32>, vector<128x32xf32>, vector<128x32xf32>, vector<128x32xf32>, vector<128x32xf32> -> vector<128x288xf32>
    %c1 = arith.constant 1 : index
    %c0_126 = arith.constant 0 : index
    %c0_127 = arith.constant 0 : index
    %365 = vector.load %arg2[%c1, %c0_126, %c0_127] : memref<2x288x32xf32, #tpu.memory_space<vmem>>, vector<1x288x32xf32>
    %366 = vector.shape_cast %365 : vector<1x288x32xf32> to vector<288x32xf32>
    %cst_128 = arith.constant dense<0.000000e+00> : vector<128x32xf32>
    %367 = tpu.matmul %364, %366, %cst_128 {dimension_numbers = #tpu.dot_dimension_numbers<[1], [0], [0], [1], [0, 0, 1, 1], [], []>} : vector<128x288xf32>, vector<288x32xf32>, vector<128x32xf32> -> vector<128x32xf32>
    %c1_129 = arith.constant 1 : index
    %c0_130 = arith.constant 0 : index
    %c0_131 = arith.constant 0 : index
    %368 = vector.load %arg3[%c1_129, %c0_130, %c0_131] : memref<2x1x32xf32, #tpu.memory_space<vmem>>, vector<1x1x32xf32>
    %369 = vector.shape_cast %368 : vector<1x1x32xf32> to vector<1x32xf32>
    %370 = vector.broadcast %369 : vector<1x32xf32> to vector<128x32xf32>
    %371 = arith.addf %367, %370 : vector<128x32xf32>
    %372 = arith.addf %371, %249 : vector<128x32xf32>
    %c1_132 = arith.constant 1 : index
    %c0_133 = arith.constant 0 : index
    %c0_134 = arith.constant 0 : index
    %373 = vector.load %arg4[%c1_132, %c0_133, %c0_134] : memref<2x1x32xf32, #tpu.memory_space<vmem>>, vector<1x1x32xf32>
    %374 = vector.shape_cast %373 : vector<1x1x32xf32> to vector<1x32xf32>
    %c1_135 = arith.constant 1 : index
    %c0_136 = arith.constant 0 : index
    %c0_137 = arith.constant 0 : index
    %375 = vector.load %arg5[%c1_135, %c0_136, %c0_137] : memref<2x1x32xf32, #tpu.memory_space<vmem>>, vector<1x1x32xf32>
    %376 = vector.shape_cast %375 : vector<1x1x32xf32> to vector<1x32xf32>
    %cst_138 = arith.constant dense<0.000000e+00> : vector<128xf32>
    %377 = vector.multi_reduction <add>, %372, %cst_138 [1] : vector<128x32xf32> to vector<128xf32>
    %378 = vector.shape_cast %377 : vector<128xf32> to vector<128x1xf32>
    %cst_139 = arith.constant 3.200000e+01 : f32
    %379 = vector.broadcast %cst_139 : f32 to vector<128x1xf32>
    %380 = arith.divf %378, %379 : vector<128x1xf32>
    %381 = vector.broadcast %380 : vector<128x1xf32> to vector<128x32xf32>
    %382 = arith.subf %372, %381 : vector<128x32xf32>
    %383 = arith.mulf %382, %382 : vector<128x32xf32>
    %cst_140 = arith.constant dense<0.000000e+00> : vector<128xf32>
    %384 = vector.multi_reduction <add>, %383, %cst_140 [1] : vector<128x32xf32> to vector<128xf32>
    %385 = vector.shape_cast %384 : vector<128xf32> to vector<128x1xf32>
    %cst_141 = arith.constant 3.200000e+01 : f32
    %386 = vector.broadcast %cst_141 : f32 to vector<128x1xf32>
    %387 = arith.divf %385, %386 : vector<128x1xf32>
    %388 = vector.broadcast %380 : vector<128x1xf32> to vector<128x32xf32>
    %389 = arith.subf %372, %388 : vector<128x32xf32>
    %390 = math.sqrt %387 : vector<128x1xf32>
    %cst_142 = arith.constant 9.99999974E-6 : f32
    %391 = vector.broadcast %cst_142 : f32 to vector<128x1xf32>
    %392 = arith.addf %390, %391 : vector<128x1xf32>
    %393 = vector.broadcast %392 : vector<128x1xf32> to vector<128x32xf32>
    %394 = arith.divf %389, %393 : vector<128x32xf32>
    %395 = vector.broadcast %374 : vector<1x32xf32> to vector<128x32xf32>
    %396 = arith.mulf %394, %395 : vector<128x32xf32>
    %397 = vector.broadcast %376 : vector<1x32xf32> to vector<128x32xf32>
    %398 = arith.addf %396, %397 : vector<128x32xf32>
    %c1_143 = arith.constant 1 : index
    %c0_144 = arith.constant 0 : index
    %c0_145 = arith.constant 0 : index
    %399 = vector.load %arg6[%c1_143, %c0_144, %c0_145] : memref<2x32x96xf32, #tpu.memory_space<vmem>>, vector<1x32x96xf32>
    %400 = vector.shape_cast %399 : vector<1x32x96xf32> to vector<32x96xf32>
    %cst_146 = arith.constant dense<0.000000e+00> : vector<128x96xf32>
    %401 = tpu.matmul %398, %400, %cst_146 {dimension_numbers = #tpu.dot_dimension_numbers<[1], [0], [0], [1], [0, 0, 1, 1], [], []>} : vector<128x32xf32>, vector<32x96xf32>, vector<128x96xf32> -> vector<128x96xf32>
    %402 = vector.shape_cast %401 : vector<128x96xf32> to vector<2x64x96xf32>
    %403 = vector.extract_strided_slice %402 {offsets = [0, 0, 0], sizes = [2, 64, 16], strides = [1, 1, 1]} : vector<2x64x96xf32> to vector<2x64x16xf32>
    %404 = vector.extract_strided_slice %402 {offsets = [0, 0, 32], sizes = [2, 64, 16], strides = [1, 1, 1]} : vector<2x64x96xf32> to vector<2x64x16xf32>
    %405 = vector.extract_strided_slice %402 {offsets = [0, 0, 64], sizes = [2, 64, 16], strides = [1, 1, 1]} : vector<2x64x96xf32> to vector<2x64x16xf32>
    %cst_147 = arith.constant dense<0.000000e+00> : vector<2x64x64xf32>
    %406 = tpu.matmul %403, %404, %cst_147 {dimension_numbers = #tpu.dot_dimension_numbers<[2], [2], [1], [1], [0, 0, 0, 1, 1, 1], [0], [0]>} : vector<2x64x16xf32>, vector<2x64x16xf32>, vector<2x64x64xf32> -> vector<2x64x64xf32>
    %cst_148 = arith.constant dense<0xFF800000> : vector<2x64xf32>
    %407 = vector.multi_reduction <maximumf>, %406, %cst_148 [2] : vector<2x64x64xf32> to vector<2x64xf32>
    %408 = vector.shape_cast %407 : vector<2x64xf32> to vector<2x64x1xf32>
    %409 = vector.broadcast %408 : vector<2x64x1xf32> to vector<2x64x64xf32>
    %410 = arith.subf %406, %409 : vector<2x64x64xf32>
    %411 = math.exp %410 : vector<2x64x64xf32>
    %cst_149 = arith.constant dense<0.000000e+00> : vector<2x64x16xf32>
    %412 = tpu.matmul %411, %405, %cst_149 {dimension_numbers = #tpu.dot_dimension_numbers<[2], [1], [1], [2], [0, 0, 0, 1, 1, 2], [0], [0]>} : vector<2x64x64xf32>, vector<2x64x16xf32>, vector<2x64x16xf32> -> vector<2x64x16xf32>
    %cst_150 = arith.constant dense<0.000000e+00> : vector<2x64xf32>
    %413 = vector.multi_reduction <add>, %411, %cst_150 [2] : vector<2x64x64xf32> to vector<2x64xf32>
    %414 = vector.shape_cast %413 : vector<2x64xf32> to vector<2x64x1xf32>
    %415 = tpu.reciprocal %414 : vector<2x64x1xf32> -> vector<2x64x1xf32>
    %416 = vector.broadcast %415 : vector<2x64x1xf32> to vector<2x64x16xf32>
    %417 = arith.mulf %412, %416 : vector<2x64x16xf32>
    %418 = vector.extract_strided_slice %402 {offsets = [0, 0, 16], sizes = [2, 64, 16], strides = [1, 1, 1]} : vector<2x64x96xf32> to vector<2x64x16xf32>
    %419 = vector.extract_strided_slice %402 {offsets = [0, 0, 48], sizes = [2, 64, 16], strides = [1, 1, 1]} : vector<2x64x96xf32> to vector<2x64x16xf32>
    %420 = vector.extract_strided_slice %402 {offsets = [0, 0, 80], sizes = [2, 64, 16], strides = [1, 1, 1]} : vector<2x64x96xf32> to vector<2x64x16xf32>
    %cst_151 = arith.constant dense<0.000000e+00> : vector<2x64x64xf32>
    %421 = tpu.matmul %418, %419, %cst_151 {dimension_numbers = #tpu.dot_dimension_numbers<[2], [2], [1], [1], [0, 0, 0, 1, 1, 1], [0], [0]>} : vector<2x64x16xf32>, vector<2x64x16xf32>, vector<2x64x64xf32> -> vector<2x64x64xf32>
    %cst_152 = arith.constant dense<0xFF800000> : vector<2x64xf32>
    %422 = vector.multi_reduction <maximumf>, %421, %cst_152 [2] : vector<2x64x64xf32> to vector<2x64xf32>
    %423 = vector.shape_cast %422 : vector<2x64xf32> to vector<2x64x1xf32>
    %424 = vector.broadcast %423 : vector<2x64x1xf32> to vector<2x64x64xf32>
    %425 = arith.subf %421, %424 : vector<2x64x64xf32>
    %426 = math.exp %425 : vector<2x64x64xf32>
    %cst_153 = arith.constant dense<0.000000e+00> : vector<2x64x16xf32>
    %427 = tpu.matmul %426, %420, %cst_153 {dimension_numbers = #tpu.dot_dimension_numbers<[2], [1], [1], [2], [0, 0, 0, 1, 1, 2], [0], [0]>} : vector<2x64x64xf32>, vector<2x64x16xf32>, vector<2x64x16xf32> -> vector<2x64x16xf32>
    %cst_154 = arith.constant dense<0.000000e+00> : vector<2x64xf32>
    %428 = vector.multi_reduction <add>, %426, %cst_154 [2] : vector<2x64x64xf32> to vector<2x64xf32>
    %429 = vector.shape_cast %428 : vector<2x64xf32> to vector<2x64x1xf32>
    %430 = tpu.reciprocal %429 : vector<2x64x1xf32> -> vector<2x64x1xf32>
    %431 = vector.broadcast %430 : vector<2x64x1xf32> to vector<2x64x16xf32>
    %432 = arith.mulf %427, %431 : vector<2x64x16xf32>
    %433 = tpu.concatenate %417, %432 in 2 : vector<2x64x16xf32>, vector<2x64x16xf32> -> vector<2x64x32xf32>
    %434 = vector.shape_cast %433 : vector<2x64x32xf32> to vector<128x32xf32>
    %c1_155 = arith.constant 1 : index
    %c0_156 = arith.constant 0 : index
    %c0_157 = arith.constant 0 : index
    %435 = vector.load %arg7[%c1_155, %c0_156, %c0_157] : memref<2x32x32xf32, #tpu.memory_space<vmem>>, vector<1x32x32xf32>
    %436 = vector.shape_cast %435 : vector<1x32x32xf32> to vector<32x32xf32>
    %cst_158 = arith.constant dense<0.000000e+00> : vector<128x32xf32>
    %437 = tpu.matmul %434, %436, %cst_158 {dimension_numbers = #tpu.dot_dimension_numbers<[1], [0], [0], [1], [0, 0, 1, 1], [], []>} : vector<128x32xf32>, vector<32x32xf32>, vector<128x32xf32> -> vector<128x32xf32>
    %c1_159 = arith.constant 1 : index
    %c0_160 = arith.constant 0 : index
    %c0_161 = arith.constant 0 : index
    %438 = vector.load %arg8[%c1_159, %c0_160, %c0_161] : memref<2x1x32xf32, #tpu.memory_space<vmem>>, vector<1x1x32xf32>
    %439 = vector.shape_cast %438 : vector<1x1x32xf32> to vector<1x32xf32>
    %440 = vector.broadcast %439 : vector<1x32xf32> to vector<128x32xf32>
    %441 = arith.addf %437, %440 : vector<128x32xf32>
    %c0_162 = arith.constant 0 : index
    %c0_163 = arith.constant 0 : index
    %442 = vector.load %arg16[%c0_162, %c0_163] : memref<128x32xf32, #tpu.memory_space<vmem>>, vector<128x32xf32>
    tpu.vector_store %arg16[%c0_162, %c0_163], %441 {strides = array<i32>} : memref<128x32xf32, #tpu.memory_space<vmem>>, vector<128x32xf32>,
    %443 = arith.addf %441, %372 : vector<128x32xf32>
    %c1_164 = arith.constant 1 : index
    %c0_165 = arith.constant 0 : index
    %c0_166 = arith.constant 0 : index
    %444 = vector.load %arg9[%c1_164, %c0_165, %c0_166] : memref<2x1x32xf32, #tpu.memory_space<vmem>>, vector<1x1x32xf32>
    %445 = vector.shape_cast %444 : vector<1x1x32xf32> to vector<1x32xf32>
    %c1_167 = arith.constant 1 : index
    %c0_168 = arith.constant 0 : index
    %c0_169 = arith.constant 0 : index
    %446 = vector.load %arg10[%c1_167, %c0_168, %c0_169] : memref<2x1x32xf32, #tpu.memory_space<vmem>>, vector<1x1x32xf32>
    %447 = vector.shape_cast %446 : vector<1x1x32xf32> to vector<1x32xf32>
    %cst_170 = arith.constant dense<0.000000e+00> : vector<128xf32>
    %448 = vector.multi_reduction <add>, %443, %cst_170 [1] : vector<128x32xf32> to vector<128xf32>
    %449 = vector.shape_cast %448 : vector<128xf32> to vector<128x1xf32>
    %cst_171 = arith.constant 3.200000e+01 : f32
    %450 = vector.broadcast %cst_171 : f32 to vector<128x1xf32>
    %451 = arith.divf %449, %450 : vector<128x1xf32>
    %452 = vector.broadcast %451 : vector<128x1xf32> to vector<128x32xf32>
    %453 = arith.subf %443, %452 : vector<128x32xf32>
    %454 = arith.mulf %453, %453 : vector<128x32xf32>
    %cst_172 = arith.constant dense<0.000000e+00> : vector<128xf32>
    %455 = vector.multi_reduction <add>, %454, %cst_172 [1] : vector<128x32xf32> to vector<128xf32>
    %456 = vector.shape_cast %455 : vector<128xf32> to vector<128x1xf32>
    %cst_173 = arith.constant 3.200000e+01 : f32
    %457 = vector.broadcast %cst_173 : f32 to vector<128x1xf32>
    %458 = arith.divf %456, %457 : vector<128x1xf32>
    %459 = vector.broadcast %451 : vector<128x1xf32> to vector<128x32xf32>
    %460 = arith.subf %443, %459 : vector<128x32xf32>
    %461 = math.sqrt %458 : vector<128x1xf32>
    %cst_174 = arith.constant 9.99999974E-6 : f32
    %462 = vector.broadcast %cst_174 : f32 to vector<128x1xf32>
    %463 = arith.addf %461, %462 : vector<128x1xf32>
    %464 = vector.broadcast %463 : vector<128x1xf32> to vector<128x32xf32>
    %465 = arith.divf %460, %464 : vector<128x32xf32>
    %466 = vector.broadcast %445 : vector<1x32xf32> to vector<128x32xf32>
    %467 = arith.mulf %465, %466 : vector<128x32xf32>
    %468 = vector.broadcast %447 : vector<1x32xf32> to vector<128x32xf32>
    %469 = arith.addf %467, %468 : vector<128x32xf32>
    %c1_175 = arith.constant 1 : index
    %c0_176 = arith.constant 0 : index
    %c0_177 = arith.constant 0 : index
    %470 = vector.load %arg11[%c1_175, %c0_176, %c0_177] : memref<2x32x128xf32, #tpu.memory_space<vmem>>, vector<1x32x128xf32>
    %471 = vector.shape_cast %470 : vector<1x32x128xf32> to vector<32x128xf32>
    %cst_178 = arith.constant dense<0.000000e+00> : vector<128x128xf32>
    %472 = tpu.matmul %469, %471, %cst_178 {dimension_numbers = #tpu.dot_dimension_numbers<[1], [0], [0], [1], [0, 0, 1, 1], [], []>} : vector<128x32xf32>, vector<32x128xf32>, vector<128x128xf32> -> vector<128x128xf32>
    %c1_179 = arith.constant 1 : index
    %c0_180 = arith.constant 0 : index
    %c0_181 = arith.constant 0 : index
    %473 = vector.load %arg12[%c1_179, %c0_180, %c0_181] : memref<2x1x128xf32, #tpu.memory_space<vmem>>, vector<1x1x128xf32>
    %474 = vector.shape_cast %473 : vector<1x1x128xf32> to vector<1x128xf32>
    %475 = vector.broadcast %474 : vector<1x128xf32> to vector<128x128xf32>
    %476 = arith.addf %472, %475 : vector<128x128xf32>
    %cst_182 = arith.constant 5.000000e-01 : f32
    %477 = vector.broadcast %cst_182 : f32 to vector<128x128xf32>
    %478 = arith.mulf %477, %476 : vector<128x128xf32>
    %cst_183 = arith.constant 4.471500e-02 : f32
    %479 = vector.broadcast %cst_183 : f32 to vector<128x128xf32>
    %480 = arith.mulf %479, %476 : vector<128x128xf32>
    %481 = arith.mulf %480, %476 : vector<128x128xf32>
    %482 = arith.mulf %481, %476 : vector<128x128xf32>
    %483 = arith.addf %476, %482 : vector<128x128xf32>
    %cst_184 = arith.constant 0.797884583 : f32
    %484 = vector.broadcast %cst_184 : f32 to vector<128x128xf32>
    %485 = arith.mulf %484, %483 : vector<128x128xf32>
    %486 = math.tanh %485 : vector<128x128xf32>
    %cst_185 = arith.constant 1.000000e+00 : f32
    %487 = vector.broadcast %cst_185 : f32 to vector<128x128xf32>
    %488 = arith.addf %487, %486 : vector<128x128xf32>
    %489 = arith.mulf %478, %488 : vector<128x128xf32>
    %c1_186 = arith.constant 1 : index
    %c0_187 = arith.constant 0 : index
    %c0_188 = arith.constant 0 : index
    %490 = vector.load %arg13[%c1_186, %c0_187, %c0_188] : memref<2x128x32xf32, #tpu.memory_space<vmem>>, vector<1x128x32xf32>
    %491 = vector.shape_cast %490 : vector<1x128x32xf32> to vector<128x32xf32>
    %cst_189 = arith.constant dense<0.000000e+00> : vector<128x32xf32>
    %492 = tpu.matmul %489, %491, %cst_189 {dimension_numbers = #tpu.dot_dimension_numbers<[1], [0], [0], [1], [0, 0, 1, 1], [], []>} : vector<128x128xf32>, vector<128x32xf32>, vector<128x32xf32> -> vector<128x32xf32>
    %c1_190 = arith.constant 1 : index
    %c0_191 = arith.constant 0 : index
    %c0_192 = arith.constant 0 : index
    %493 = vector.load %arg14[%c1_190, %c0_191, %c0_192] : memref<2x1x32xf32, #tpu.memory_space<vmem>>, vector<1x1x32xf32>
    %494 = vector.shape_cast %493 : vector<1x1x32xf32> to vector<1x32xf32>
    %495 = vector.broadcast %494 : vector<1x32xf32> to vector<128x32xf32>
    %496 = arith.addf %492, %495 : vector<128x32xf32>
    %497 = arith.addf %496, %443 : vector<128x32xf32>
    %c0_193 = arith.constant 0 : index
    %c0_194 = arith.constant 0 : index
    %498 = vector.load %arg15[%c0_193, %c0_194] : memref<128x32xf32, #tpu.memory_space<vmem>>, vector<128x32xf32>
    tpu.vector_store %arg15[%c0_193, %c0_194], %497 {strides = array<i32>} : memref<128x32xf32, #tpu.memory_space<vmem>>, vector<128x32xf32>,
    return
  }
  func.func @transform_0(%arg0: i32) -> (i32, i32) {
    %c0_i32 = arith.constant 0 : i32
    %c0_i32_0 = arith.constant 0 : i32
    %c0_i32_1 = arith.constant 0 : i32
    return %c0_i32, %c0_i32_0 : i32, i32
  }
  func.func @transform_1(%arg0: i32) -> (i32, i32, i32) {
    %c0_i32 = arith.constant 0 : i32
    %c0_i32_0 = arith.constant 0 : i32
    %c0_i32_1 = arith.constant 0 : i32
    %c0_i32_2 = arith.constant 0 : i32
    return %c0_i32, %c0_i32_0, %c0_i32_1 : i32, i32, i32
  }
  func.func @transform_2(%arg0: i32) -> (i32, i32, i32) {
    %c0_i32 = arith.constant 0 : i32
    %c0_i32_0 = arith.constant 0 : i32
    %c0_i32_1 = arith.constant 0 : i32
    %c0_i32_2 = arith.constant 0 : i32
    return %c0_i32, %c0_i32_0, %c0_i32_1 : i32, i32, i32
  }
  func.func @transform_3(%arg0: i32) -> (i32, i32, i32) {
    %c0_i32 = arith.constant 0 : i32
    %c0_i32_0 = arith.constant 0 : i32
    %c0_i32_1 = arith.constant 0 : i32
    %c0_i32_2 = arith.constant 0 : i32
    return %c0_i32, %c0_i32_0, %c0_i32_1 : i32, i32, i32
  }
  func.func @transform_4(%arg0: i32) -> (i32, i32, i32) {
    %c0_i32 = arith.constant 0 : i32
    %c0_i32_0 = arith.constant 0 : i32
    %c0_i32_1 = arith.constant 0 : i32
    %c0_i32_2 = arith.constant 0 : i32
    return %c0_i32, %c0_i32_0, %c0_i32_1 : i32, i32, i32
  }
  func.func @transform_5(%arg0: i32) -> (i32, i32, i32) {
    %c0_i32 = arith.constant 0 : i32
    %c0_i32_0 = arith.constant 0 : i32
    %c0_i32_1 = arith.constant 0 : i32
    %c0_i32_2 = arith.constant 0 : i32
    return %c0_i32, %c0_i32_0, %c0_i32_1 : i32, i32, i32
  }
  func.func @transform_6(%arg0: i32) -> (i32, i32, i32) {
    %c0_i32 = arith.constant 0 : i32
    %c0_i32_0 = arith.constant 0 : i32
    %c0_i32_1 = arith.constant 0 : i32
    %c0_i32_2 = arith.constant 0 : i32
    return %c0_i32, %c0_i32_0, %c0_i32_1 : i32, i32, i32
  }
  func.func @transform_7(%arg0: i32) -> (i32, i32, i32) {
    %c0_i32 = arith.constant 0 : i32
    %c0_i32_0 = arith.constant 0 : i32
    %c0_i32_1 = arith.constant 0 : i32
    %c0_i32_2 = arith.constant 0 : i32
    return %c0_i32, %c0_i32_0, %c0_i32_1 : i32, i32, i32
  }
  func.func @transform_8(%arg0: i32) -> (i32, i32, i32) {
    %c0_i32 = arith.constant 0 : i32
    %c0_i32_0 = arith.constant 0 : i32
    %c0_i32_1 = arith.constant 0 : i32
    %c0_i32_2 = arith.constant 0 : i32
    return %c0_i32, %c0_i32_0, %c0_i32_1 : i32, i32, i32
  }
  func.func @transform_9(%arg0: i32) -> (i32, i32, i32) {
    %c0_i32 = arith.constant 0 : i32
    %c0_i32_0 = arith.constant 0 : i32
    %c0_i32_1 = arith.constant 0 : i32
    %c0_i32_2 = arith.constant 0 : i32
    return %c0_i32, %c0_i32_0, %c0_i32_1 : i32, i32, i32
  }
  func.func @transform_10(%arg0: i32) -> (i32, i32, i32) {
    %c0_i32 = arith.constant 0 : i32
    %c0_i32_0 = arith.constant 0 : i32
    %c0_i32_1 = arith.constant 0 : i32
    %c0_i32_2 = arith.constant 0 : i32
    return %c0_i32, %c0_i32_0, %c0_i32_1 : i32, i32, i32
  }
  func.func @transform_11(%arg0: i32) -> (i32, i32, i32) {
    %c0_i32 = arith.constant 0 : i32
    %c0_i32_0 = arith.constant 0 : i32
    %c0_i32_1 = arith.constant 0 : i32
    %c0_i32_2 = arith.constant 0 : i32
    return %c0_i32, %c0_i32_0, %c0_i32_1 : i32, i32, i32
  }
  func.func @transform_12(%arg0: i32) -> (i32, i32, i32) {
    %c0_i32 = arith.constant 0 : i32
    %c0_i32_0 = arith.constant 0 : i32
    %c0_i32_1 = arith.constant 0 : i32
    %c0_i32_2 = arith.constant 0 : i32
    return %c0_i32, %c0_i32_0, %c0_i32_1 : i32, i32, i32
  }
  func.func @transform_13(%arg0: i32) -> (i32, i32, i32) {
    %c0_i32 = arith.constant 0 : i32
    %c0_i32_0 = arith.constant 0 : i32
    %c0_i32_1 = arith.constant 0 : i32
    %c0_i32_2 = arith.constant 0 : i32
    return %c0_i32, %c0_i32_0, %c0_i32_1 : i32, i32, i32
  }
  func.func @transform_14(%arg0: i32) -> (i32, i32) {
    %c0_i32 = arith.constant 0 : i32
    %c0_i32_0 = arith.constant 0 : i32
    %c0_i32_1 = arith.constant 0 : i32
    return %c0_i32, %c0_i32_0 : i32, i32
  }
  func.func @transform_15(%arg0: i32) -> (i32, i32) {
    %c0_i32 = arith.constant 0 : i32
    %c0_i32_0 = arith.constant 0 : i32
    %c0_i32_1 = arith.constant 0 : i32
    return %c0_i32, %c0_i32_0 : i32, i32
  }
}

</mosaic_0001>

<llo_original>
// kernel: tpu_custom_call.1
$region0: #{tpu_custom_call.1}
  #allocation0 [shape = 'u32[]', space=smem, size = 0x4, offset = 0x4, fixed_abs, tag = 'smem constant byte address 0x4 - core index']
  #allocation1 [shape = 'u32[144,128]{1,0:T(1,128)}', space=vmem, size = 0x12000, scoped, tag = 'internal scratch']
  %s0 = inlined_call_operand.vmem [shape: f32[128,32], index: 0, kind: input, shape index: {}]
  %s1 = inlined_call_operand.vmem [shape: f32[2,288,32], index: 1, kind: input, shape index: {}]
  %s2 = inlined_call_operand.vmem [shape: f32[2,1,32], index: 2, kind: input, shape index: {}]
  %s3 = inlined_call_operand.vmem [shape: f32[2,1,32], index: 3, kind: input, shape index: {}]
  %s4 = inlined_call_operand.vmem [shape: f32[2,1,32], index: 4, kind: input, shape index: {}]
  %s5 = inlined_call_operand.vmem [shape: f32[2,32,96], index: 5, kind: input, shape index: {}]
  %s6 = inlined_call_operand.vmem [shape: f32[2,32,32], index: 6, kind: input, shape index: {}]
  %s7 = inlined_call_operand.vmem [shape: f32[2,1,32], index: 7, kind: input, shape index: {}]
  %s8 = inlined_call_operand.vmem [shape: f32[2,1,32], index: 8, kind: input, shape index: {}]
  %s9 = inlined_call_operand.vmem [shape: f32[2,1,32], index: 9, kind: input, shape index: {}]
  %s10 = inlined_call_operand.vmem [shape: f32[2,32,128], index: 10, kind: input, shape index: {}]
  %s11 = inlined_call_operand.vmem [shape: f32[2,1,128], index: 11, kind: input, shape index: {}]
  %s12 = inlined_call_operand.vmem [shape: f32[2,128,32], index: 12, kind: input, shape index: {}]
  %s13 = inlined_call_operand.vmem [shape: f32[2,1,32], index: 13, kind: input, shape index: {}]
  %s14 = inlined_call_operand.vmem [shape: f32[128,32], index: 14, kind: output, shape index: {0}]
  %s15 = inlined_call_operand.vmem [shape: f32[128,32], index: 15, kind: output, shape index: {1}]
  %16 = xla_tuple %s14, %s15
  %s17 = sld [smem:[#allocation0]]
  $region74: #{tpu_custom_call.1} parent=0
    _
  %s19 = ssub.s32 1, %s17
  %s20 = scalar_select 0, %s19, %s17
  // Predicated region
  $region2: #{tpu_custom_call.1} parent=0 // pred_check
    _
  $region3: #{tpu_custom_call.1} parent=0 // pred_check_branch
    %22 = sbr.rel (0) target = $region5
  $region4: #{tpu_custom_call.1} parent=0 // pred_region
    _
  $region5: #{tpu_custom_call.1} parent=0 // pred_fallthru
    _
  // Predicated region
  $region6: #{tpu_custom_call.1} parent=0 // pred_check
    _
  $region7: #{tpu_custom_call.1} parent=0 // pred_check_branch
    %24 = sbr.rel (0) target = $region9
  $region8: #{tpu_custom_call.1} parent=0 // pred_region
    _
  $region9: #{tpu_custom_call.1} parent=0 // pred_fallthru
    _
  // Predicated region
  $region10: #{tpu_custom_call.1} parent=0 // pred_check
    _
  $region11: #{tpu_custom_call.1} parent=0 // pred_check_branch
    %26 = sbr.rel (0) target = $region13
  $region12: #{tpu_custom_call.1} parent=0 // pred_region
    _
  $region13: #{tpu_custom_call.1} parent=0 // pred_fallthru
    _
  // Predicated region
  $region14: #{tpu_custom_call.1} parent=0 // pred_check
    _
  $region15: #{tpu_custom_call.1} parent=0 // pred_check_branch
    %28 = sbr.rel (0) target = $region17
  $region16: #{tpu_custom_call.1} parent=0 // pred_region
    _
  $region17: #{tpu_custom_call.1} parent=0 // pred_fallthru
    _
  // Predicated region
  $region18: #{tpu_custom_call.1} parent=0 // pred_check
    _
  $region19: #{tpu_custom_call.1} parent=0 // pred_check_branch
    %30 = sbr.rel (0) target = $region21
  $region20: #{tpu_custom_call.1} parent=0 // pred_region
    _
  $region21: #{tpu_custom_call.1} parent=0 // pred_fallthru
    _
  // Predicated region
  $region22: #{tpu_custom_call.1} parent=0 // pred_check
    _
  $region23: #{tpu_custom_call.1} parent=0 // pred_check_branch
    %32 = sbr.rel (0) target = $region25
  $region24: #{tpu_custom_call.1} parent=0 // pred_region
    _
  $region25: #{tpu_custom_call.1} parent=0 // pred_fallthru
    _
  // Predicated region
  $region26: #{tpu_custom_call.1} parent=0 // pred_check
    _
  $region27: #{tpu_custom_call.1} parent=0 // pred_check_branch
    %34 = sbr.rel (0) target = $region29
  $region28: #{tpu_custom_call.1} parent=0 // pred_region
    _
  $region29: #{tpu_custom_call.1} parent=0 // pred_fallthru
    _
  // Predicated region
  $region30: #{tpu_custom_call.1} parent=0 // pred_check
    _
  $region31: #{tpu_custom_call.1} parent=0 // pred_check_branch
    %36 = sbr.rel (0) target = $region33
  $region32: #{tpu_custom_call.1} parent=0 // pred_region
    _
  $region33: #{tpu_custom_call.1} parent=0 // pred_fallthru
    _
  // Predicated region
  $region34: #{tpu_custom_call.1} parent=0 // pred_check
    _
  $region35: #{tpu_custom_call.1} parent=0 // pred_check_branch
    %38 = sbr.rel (0) target = $region37
  $region36: #{tpu_custom_call.1} parent=0 // pred_region
    _
  $region37: #{tpu_custom_call.1} parent=0 // pred_fallthru
    _
  // Predicated region
  $region38: #{tpu_custom_call.1} parent=0 // pred_check
    _
  $region39: #{tpu_custom_call.1} parent=0 // pred_check_branch
    %40 = sbr.rel (0) target = $region41
  $region40: #{tpu_custom_call.1} parent=0 // pred_region
    _
  $region41: #{tpu_custom_call.1} parent=0 // pred_fallthru
    _
  // Predicated region
  $region42: #{tpu_custom_call.1} parent=0 // pred_check
    _
  $region43: #{tpu_custom_call.1} parent=0 // pred_check_branch
    %42 = sbr.rel (0) target = $region45
  $region44: #{tpu_custom_call.1} parent=0 // pred_region
    _
  $region45: #{tpu_custom_call.1} parent=0 // pred_fallthru
    _
  // Predicated region
  $region46: #{tpu_custom_call.1} parent=0 // pred_check
    _
  $region47: #{tpu_custom_call.1} parent=0 // pred_check_branch
    %44 = sbr.rel (0) target = $region49
  $region48: #{tpu_custom_call.1} parent=0 // pred_region
    _
  $region49: #{tpu_custom_call.1} parent=0 // pred_fallthru
    _
  // Predicated region
  $region50: #{tpu_custom_call.1} parent=0 // pred_check
    _
  $region51: #{tpu_custom_call.1} parent=0 // pred_check_branch
    %46 = sbr.rel (0) target = $region53
  $region52: #{tpu_custom_call.1} parent=0 // pred_region
    _
  $region53: #{tpu_custom_call.1} parent=0 // pred_fallthru
    _
  // Predicated region
  $region54: #{tpu_custom_call.1} parent=0 // pred_check
    _
  $region55: #{tpu_custom_call.1} parent=0 // pred_check_branch
    %48 = sbr.rel (0) target = $region57
  $region56: #{tpu_custom_call.1} parent=0 // pred_region
    _
  $region57: #{tpu_custom_call.1} parent=0 // pred_fallthru
    _
  %v49 = vld [vmem:[%s0] sm:$0xff]
  %v50 = vld [vmem:[%s0 + $0x8] sm:$0xff]
  %v51 = vld [vmem:[%s0 + $0x10] sm:$0xff]
  %v52 = vld [vmem:[%s0 + $0x18] sm:$0xff]
  %v53 = vld [vmem:[%s0 + $0x20] sm:$0xff]
  %v54 = vld [vmem:[%s0 + $0x28] sm:$0xff]
  %v55 = vld [vmem:[%s0 + $0x30] sm:$0xff]
  %v56 = vld [vmem:[%s0 + $0x38] sm:$0xff]
  %v57 = vld [vmem:[%s0 + $0x40] sm:$0xff]
  %v58 = vld [vmem:[%s0 + $0x48] sm:$0xff]
  %v59 = vld [vmem:[%s0 + $0x50] sm:$0xff]
  %v60 = vld [vmem:[%s0 + $0x58] sm:$0xff]
  %v61 = vld [vmem:[%s0 + $0x60] sm:$0xff]
  %v62 = vld [vmem:[%s0 + $0x68] sm:$0xff]
  %v63 = vld [vmem:[%s0 + $0x70] sm:$0xff]
  %v64 = vld [vmem:[%s0 + $0x78] sm:$0xff]
  %v65 = vlaneseq
  %v66 = vshrl.u32 %v65, 7
  %v83 = vrot.slane %v49, 7
  %v84 = vrot.slane %v50, 7
  %v85 = vrot.slane %v51, 7
  %v86 = vrot.slane %v52, 7
  %v87 = vrot.slane %v53, 7
  %v88 = vrot.slane %v54, 7
  %v89 = vrot.slane %v55, 7
  %v90 = vrot.slane %v56, 7
  %v91 = vrot.slane %v57, 7
  %v92 = vrot.slane %v58, 7
  %v93 = vrot.slane %v59, 7
  %v94 = vrot.slane %v60, 7
  %v95 = vrot.slane %v61, 7
  %v96 = vrot.slane %v62, 7
  %v97 = vrot.slane %v63, 7
  %v98 = vrot.slane %v64, 7
  %vm115 = vcmask 1040384
  %v116 = vsel %vm115, %v83, %v83
  %v117 = vsel %vm115, %v84, %v84
  %v118 = vsel %vm115, %v85, %v85
  %v119 = vsel %vm115, %v86, %v86
  %v120 = vsel %vm115, %v87, %v87
  %v121 = vsel %vm115, %v88, %v88
  %v122 = vsel %vm115, %v89, %v89
  %v123 = vsel %vm115, %v90, %v90
  %v124 = vsel %vm115, %v91, %v91
  %v125 = vsel %vm115, %v92, %v92
  %v126 = vsel %vm115, %v93, %v93
  %v127 = vsel %vm115, %v94, %v94
  %v128 = vsel %vm115, %v95, %v95
  %v129 = vsel %vm115, %v96, %v96
  %v130 = vsel %vm115, %v97, %v97
  %v131 = vsel %vm115, %v98, %v98
  %v132 = vadd.s32 %v66, 4294967295
  %vm133 = vcmp.ge.s32.totalorder %v132, 0
  %vm134 = vmand 0, %vm133
  %vm135 = vmand 1, %vm133
  %v136 = vsel %vm134, %v123, 0.0
  %v137 = vsel %vm135, %v116, 0.0
  %v138 = vsel %vm135, %v117, 0.0
  %v139 = vsel %vm135, %v118, 0.0
  %v140 = vsel %vm135, %v119, 0.0
  %v141 = vsel %vm135, %v120, 0.0
  %v142 = vsel %vm135, %v121, 0.0
  %v143 = vsel %vm135, %v122, 0.0
  %v144 = vsel %vm134, %v131, 0.0
  %v145 = vsel %vm135, %v124, 0.0
  %v146 = vsel %vm135, %v125, 0.0
  %v147 = vsel %vm135, %v126, 0.0
  %v148 = vsel %vm135, %v127, 0.0
  %v149 = vsel %vm135, %v128, 0.0
  %v150 = vsel %vm135, %v129, 0.0
  %v151 = vsel %vm135, %v130, 0.0
  %v152 = vsel 0, %v56, 0.0
  %v153 = vsel 1, %v49, 0.0
  %v154 = vsel 1, %v50, 0.0
  %v155 = vsel 1, %v51, 0.0
  %v156 = vsel 1, %v52, 0.0
  %v157 = vsel 1, %v53, 0.0
  %v158 = vsel 1, %v54, 0.0
  %v159 = vsel 1, %v55, 0.0
  %v160 = vsel 0, %v64, 0.0
  %v161 = vsel 1, %v57, 0.0
  %v162 = vsel 1, %v58, 0.0
  %v163 = vsel 1, %v59, 0.0
  %v164 = vsel 1, %v60, 0.0
  %v165 = vsel 1, %v61, 0.0
  %v166 = vsel 1, %v62, 0.0
  %v167 = vsel 1, %v63, 0.0
  %v168 = vrot.slane %v49, 1
  %v169 = vrot.slane %v50, 1
  %v170 = vrot.slane %v51, 1
  %v171 = vrot.slane %v52, 1
  %v172 = vrot.slane %v53, 1
  %v173 = vrot.slane %v54, 1
  %v174 = vrot.slane %v55, 1
  %v175 = vrot.slane %v56, 1
  %v176 = vrot.slane %v57, 1
  %v177 = vrot.slane %v58, 1
  %v178 = vrot.slane %v59, 1
  %v179 = vrot.slane %v60, 1
  %v180 = vrot.slane %v61, 1
  %v181 = vrot.slane %v62, 1
  %v182 = vrot.slane %v63, 1
  %v183 = vrot.slane %v64, 1
  %vm200 = vcmask 1046528
  %v201 = vsel %vm200, %v168, %v168
  %v202 = vsel %vm200, %v169, %v169
  %v203 = vsel %vm200, %v170, %v170
  %v204 = vsel %vm200, %v171, %v171
  %v205 = vsel %vm200, %v172, %v172
  %v206 = vsel %vm200, %v173, %v173
  %v207 = vsel %vm200, %v174, %v174
  %v208 = vsel %vm200, %v175, %v175
  %v209 = vsel %vm200, %v176, %v176
  %v210 = vsel %vm200, %v177, %v177
  %v211 = vsel %vm200, %v178, %v178
  %v212 = vsel %vm200, %v179, %v179
  %v213 = vsel %vm200, %v180, %v180
  %v214 = vsel %vm200, %v181, %v181
  %v215 = vsel %vm200, %v182, %v182
  %v216 = vsel %vm200, %v183, %v183
  %v217 = vadd.s32 %v66, 1
  %vm218 = vcmp.le.s32.totalorder %v217, 7
  %vm219 = vmand 0, %vm218
  %vm220 = vmand 1, %vm218
  %v221 = vsel %vm219, %v208, 0.0
  %v222 = vsel %vm220, %v201, 0.0
  %v223 = vsel %vm220, %v202, 0.0
  %v224 = vsel %vm220, %v203, 0.0
  %v225 = vsel %vm220, %v204, 0.0
  %v226 = vsel %vm220, %v205, 0.0
  %v227 = vsel %vm220, %v206, 0.0
  %v228 = vsel %vm220, %v207, 0.0
  %v229 = vsel %vm219, %v216, 0.0
  %v230 = vsel %vm220, %v209, 0.0
  %v231 = vsel %vm220, %v210, 0.0
  %v232 = vsel %vm220, %v211, 0.0
  %v233 = vsel %vm220, %v212, 0.0
  %v234 = vsel %vm220, %v213, 0.0
  %v235 = vsel %vm220, %v214, 0.0
  %v236 = vsel %vm220, %v215, 0.0
  %v237 = vsel %vm133, %v116, 0.0
  %v238 = vsel %vm133, %v117, 0.0
  %v239 = vsel %vm133, %v118, 0.0
  %v240 = vsel %vm133, %v119, 0.0
  %v241 = vsel %vm133, %v120, 0.0
  %v242 = vsel %vm133, %v121, 0.0
  %v243 = vsel %vm133, %v122, 0.0
  %v244 = vsel %vm133, %v123, 0.0
  %v245 = vsel %vm133, %v124, 0.0
  %v246 = vsel %vm133, %v125, 0.0
  %v247 = vsel %vm133, %v126, 0.0
  %v248 = vsel %vm133, %v127, 0.0
  %v249 = vsel %vm133, %v128, 0.0
  %v250 = vsel %vm133, %v129, 0.0
  %v251 = vsel %vm133, %v130, 0.0
  %v252 = vsel %vm133, %v131, 0.0
  %v253 = vsel %vm218, %v201, 0.0
  %v254 = vsel %vm218, %v202, 0.0
  %v255 = vsel %vm218, %v203, 0.0
  %v256 = vsel %vm218, %v204, 0.0
  %v257 = vsel %vm218, %v205, 0.0
  %v258 = vsel %vm218, %v206, 0.0
  %v259 = vsel %vm218, %v207, 0.0
  %v260 = vsel %vm218, %v208, 0.0
  %v261 = vsel %vm218, %v209, 0.0
  %v262 = vsel %vm218, %v210, 0.0
  %v263 = vsel %vm218, %v211, 0.0
  %v264 = vsel %vm218, %v212, 0.0
  %v265 = vsel %vm218, %v213, 0.0
  %v266 = vsel %vm218, %v214, 0.0
  %v267 = vsel %vm218, %v215, 0.0
  %v268 = vsel %vm218, %v216, 0.0
  %v269 = vsel %vm135, %v123, 0.0
  %v270 = vsel %vm134, %v116, 0.0
  %v271 = vsel %vm135, %v131, 0.0
  %v272 = vsel %vm134, %v124, 0.0
  %v273 = vsel 1, %v56, 0.0
  %v274 = vsel 0, %v49, 0.0
  %v275 = vsel 1, %v64, 0.0
  %v276 = vsel 0, %v57, 0.0
  %v277 = vsel %vm220, %v208, 0.0
  %v278 = vsel %vm219, %v201, 0.0
  %v279 = vsel %vm220, %v216, 0.0
  %v280 = vsel %vm219, %v209, 0.0
  %297 = vrot.lane.b32.xlu0 %v152, 32
  %v298 = vpop.permute.xlu0 %297
  %299 = vrot.lane.b32.xlu0 %v153, 32
  %v300 = vpop.permute.xlu0 %299
  %301 = vrot.lane.b32.xlu0 %v154, 32
  %v302 = vpop.permute.xlu0 %301
  %303 = vrot.lane.b32.xlu0 %v155, 32
  %v304 = vpop.permute.xlu0 %303
  %305 = vrot.lane.b32.xlu0 %v156, 32
  %v306 = vpop.permute.xlu0 %305
  %307 = vrot.lane.b32.xlu0 %v157, 32
  %v308 = vpop.permute.xlu0 %307
  %309 = vrot.lane.b32.xlu0 %v158, 32
  %v310 = vpop.permute.xlu0 %309
  %311 = vrot.lane.b32.xlu0 %v159, 32
  %v312 = vpop.permute.xlu0 %311
  %313 = vrot.lane.b32.xlu0 %v160, 32
  %v314 = vpop.permute.xlu0 %313
  %315 = vrot.lane.b32.xlu0 %v161, 32
  %v316 = vpop.permute.xlu0 %315
  %317 = vrot.lane.b32.xlu0 %v162, 32
  %v318 = vpop.permute.xlu0 %317
  %319 = vrot.lane.b32.xlu0 %v163, 32
  %v320 = vpop.permute.xlu0 %319
  %321 = vrot.lane.b32.xlu0 %v164, 32
  %v322 = vpop.permute.xlu0 %321
  %323 = vrot.lane.b32.xlu0 %v165, 32
  %v324 = vpop.permute.xlu0 %323
  %325 = vrot.lane.b32.xlu0 %v166, 32
  %v326 = vpop.permute.xlu0 %325
  %327 = vrot.lane.b32.xlu0 %v167, 32
  %v328 = vpop.permute.xlu0 %327
  %361 = vrot.lane.b32.xlu0 %v221, 64
  %v362 = vpop.permute.xlu0 %361
  %363 = vrot.lane.b32.xlu0 %v222, 64
  %v364 = vpop.permute.xlu0 %363
  %365 = vrot.lane.b32.xlu0 %v223, 64
  %v366 = vpop.permute.xlu0 %365
  %367 = vrot.lane.b32.xlu0 %v224, 64
  %v368 = vpop.permute.xlu0 %367
  %369 = vrot.lane.b32.xlu0 %v225, 64
  %v370 = vpop.permute.xlu0 %369
  %371 = vrot.lane.b32.xlu0 %v226, 64
  %v372 = vpop.permute.xlu0 %371
  %373 = vrot.lane.b32.xlu0 %v227, 64
  %v374 = vpop.permute.xlu0 %373
  %375 = vrot.lane.b32.xlu0 %v228, 64
  %v376 = vpop.permute.xlu0 %375
  %377 = vrot.lane.b32.xlu0 %v229, 64
  %v378 = vpop.permute.xlu0 %377
  %379 = vrot.lane.b32.xlu0 %v230, 64
  %v380 = vpop.permute.xlu0 %379
  %381 = vrot.lane.b32.xlu0 %v231, 64
  %v382 = vpop.permute.xlu0 %381
  %383 = vrot.lane.b32.xlu0 %v232, 64
  %v384 = vpop.permute.xlu0 %383
  %385 = vrot.lane.b32.xlu0 %v233, 64
  %v386 = vpop.permute.xlu0 %385
  %387 = vrot.lane.b32.xlu0 %v234, 64
  %v388 = vpop.permute.xlu0 %387
  %389 = vrot.lane.b32.xlu0 %v235, 64
  %v390 = vpop.permute.xlu0 %389
  %391 = vrot.lane.b32.xlu0 %v236, 64
  %v392 = vpop.permute.xlu0 %391
  %425 = vrot.lane.b32.xlu0 %v237, 96
  %v426 = vpop.permute.xlu0 %425
  %427 = vrot.lane.b32.xlu0 %v238, 96
  %v428 = vpop.permute.xlu0 %427
  %429 = vrot.lane.b32.xlu0 %v239, 96
  %v430 = vpop.permute.xlu0 %429
  %431 = vrot.lane.b32.xlu0 %v240, 96
  %v432 = vpop.permute.xlu0 %431
  %433 = vrot.lane.b32.xlu0 %v241, 96
  %v434 = vpop.permute.xlu0 %433
  %435 = vrot.lane.b32.xlu0 %v242, 96
  %v436 = vpop.permute.xlu0 %435
  %437 = vrot.lane.b32.xlu0 %v243, 96
  %v438 = vpop.permute.xlu0 %437
  %439 = vrot.lane.b32.xlu0 %v244, 96
  %v440 = vpop.permute.xlu0 %439
  %441 = vrot.lane.b32.xlu0 %v245, 96
  %v442 = vpop.permute.xlu0 %441
  %443 = vrot.lane.b32.xlu0 %v246, 96
  %v444 = vpop.permute.xlu0 %443
  %445 = vrot.lane.b32.xlu0 %v247, 96
  %v446 = vpop.permute.xlu0 %445
  %447 = vrot.lane.b32.xlu0 %v248, 96
  %v448 = vpop.permute.xlu0 %447
  %449 = vrot.lane.b32.xlu0 %v249, 96
  %v450 = vpop.permute.xlu0 %449
  %451 = vrot.lane.b32.xlu0 %v250, 96
  %v452 = vpop.permute.xlu0 %451
  %453 = vrot.lane.b32.xlu0 %v251, 96
  %v454 = vpop.permute.xlu0 %453
  %455 = vrot.lane.b32.xlu0 %v252, 96
  %v456 = vpop.permute.xlu0 %455
  %489 = vrot.lane.b32.xlu0 %v253, 32
  %v490 = vpop.permute.xlu0 %489
  %491 = vrot.lane.b32.xlu0 %v254, 32
  %v492 = vpop.permute.xlu0 %491
  %493 = vrot.lane.b32.xlu0 %v255, 32
  %v494 = vpop.permute.xlu0 %493
  %495 = vrot.lane.b32.xlu0 %v256, 32
  %v496 = vpop.permute.xlu0 %495
  %497 = vrot.lane.b32.xlu0 %v257, 32
  %v498 = vpop.permute.xlu0 %497
  %499 = vrot.lane.b32.xlu0 %v258, 32
  %v500 = vpop.permute.xlu0 %499
  %501 = vrot.lane.b32.xlu0 %v259, 32
  %v502 = vpop.permute.xlu0 %501
  %503 = vrot.lane.b32.xlu0 %v260, 32
  %v504 = vpop.permute.xlu0 %503
  %505 = vrot.lane.b32.xlu0 %v261, 32
  %v506 = vpop.permute.xlu0 %505
  %507 = vrot.lane.b32.xlu0 %v262, 32
  %v508 = vpop.permute.xlu0 %507
  %509 = vrot.lane.b32.xlu0 %v263, 32
  %v510 = vpop.permute.xlu0 %509
  %511 = vrot.lane.b32.xlu0 %v264, 32
  %v512 = vpop.permute.xlu0 %511
  %513 = vrot.lane.b32.xlu0 %v265, 32
  %v514 = vpop.permute.xlu0 %513
  %515 = vrot.lane.b32.xlu0 %v266, 32
  %v516 = vpop.permute.xlu0 %515
  %517 = vrot.lane.b32.xlu0 %v267, 32
  %v518 = vpop.permute.xlu0 %517
  %519 = vrot.lane.b32.xlu0 %v268, 32
  %v520 = vpop.permute.xlu0 %519
  %553 = vrot.lane.b32.xlu0 %v138, 64
  %v554 = vpop.permute.xlu0 %553
  %555 = vrot.lane.b32.xlu0 %v139, 64
  %v556 = vpop.permute.xlu0 %555
  %557 = vrot.lane.b32.xlu0 %v140, 64
  %v558 = vpop.permute.xlu0 %557
  %559 = vrot.lane.b32.xlu0 %v141, 64
  %v560 = vpop.permute.xlu0 %559
  %561 = vrot.lane.b32.xlu0 %v142, 64
  %v562 = vpop.permute.xlu0 %561
  %563 = vrot.lane.b32.xlu0 %v143, 64
  %v564 = vpop.permute.xlu0 %563
  %565 = vrot.lane.b32.xlu0 %v269, 64
  %v566 = vpop.permute.xlu0 %565
  %567 = vrot.lane.b32.xlu0 %v270, 64
  %v568 = vpop.permute.xlu0 %567
  %569 = vrot.lane.b32.xlu0 %v146, 64
  %v570 = vpop.permute.xlu0 %569
  %571 = vrot.lane.b32.xlu0 %v147, 64
  %v572 = vpop.permute.xlu0 %571
  %573 = vrot.lane.b32.xlu0 %v148, 64
  %v574 = vpop.permute.xlu0 %573
  %575 = vrot.lane.b32.xlu0 %v149, 64
  %v576 = vpop.permute.xlu0 %575
  %577 = vrot.lane.b32.xlu0 %v150, 64
  %v578 = vpop.permute.xlu0 %577
  %579 = vrot.lane.b32.xlu0 %v151, 64
  %v580 = vpop.permute.xlu0 %579
  %581 = vrot.lane.b32.xlu0 %v271, 64
  %v582 = vpop.permute.xlu0 %581
  %583 = vrot.lane.b32.xlu0 %v272, 64
  %v584 = vpop.permute.xlu0 %583
  %605 = vrot.lane.b32.xlu0 %v154, 96
  %v606 = vpop.permute.xlu0 %605
  %607 = vrot.lane.b32.xlu0 %v155, 96
  %v608 = vpop.permute.xlu0 %607
  %609 = vrot.lane.b32.xlu0 %v156, 96
  %v610 = vpop.permute.xlu0 %609
  %611 = vrot.lane.b32.xlu0 %v157, 96
  %v612 = vpop.permute.xlu0 %611
  %613 = vrot.lane.b32.xlu0 %v158, 96
  %v614 = vpop.permute.xlu0 %613
  %615 = vrot.lane.b32.xlu0 %v159, 96
  %v616 = vpop.permute.xlu0 %615
  %617 = vrot.lane.b32.xlu0 %v273, 96
  %v618 = vpop.permute.xlu0 %617
  %619 = vrot.lane.b32.xlu0 %v274, 96
  %v620 = vpop.permute.xlu0 %619
  %621 = vrot.lane.b32.xlu0 %v162, 96
  %v622 = vpop.permute.xlu0 %621
  %623 = vrot.lane.b32.xlu0 %v163, 96
  %v624 = vpop.permute.xlu0 %623
  %625 = vrot.lane.b32.xlu0 %v164, 96
  %v626 = vpop.permute.xlu0 %625
  %627 = vrot.lane.b32.xlu0 %v165, 96
  %v628 = vpop.permute.xlu0 %627
  %629 = vrot.lane.b32.xlu0 %v166, 96
  %v630 = vpop.permute.xlu0 %629
  %631 = vrot.lane.b32.xlu0 %v167, 96
  %v632 = vpop.permute.xlu0 %631
  %633 = vrot.lane.b32.xlu0 %v275, 96
  %v634 = vpop.permute.xlu0 %633
  %635 = vrot.lane.b32.xlu0 %v276, 96
  %v636 = vpop.permute.xlu0 %635
  %vm653 = vcmask 261120
  %v654 = vsel %vm653, %v136, %v298
  %v655 = vsel %vm653, %v137, %v300
  %v656 = vsel %vm653, %v138, %v302
  %v657 = vsel %vm653, %v139, %v304
  %v658 = vsel %vm653, %v140, %v306
  %v659 = vsel %vm653, %v141, %v308
  %v660 = vsel %vm653, %v142, %v310
  %v661 = vsel %vm653, %v143, %v312
  %v662 = vsel %vm653, %v144, %v314
  %v663 = vsel %vm653, %v145, %v316
  %v664 = vsel %vm653, %v146, %v318
  %v665 = vsel %vm653, %v147, %v320
  %v666 = vsel %vm653, %v148, %v322
  %v667 = vsel %vm653, %v149, %v324
  %v668 = vsel %vm653, %v150, %v326
  %v669 = vsel %vm653, %v151, %v328
  %vm670 = vcmask 523264
  %v671 = vsel %vm670, %v654, %v362
  %v672 = vsel %vm670, %v655, %v364
  %v673 = vsel %vm670, %v656, %v366
  %v674 = vsel %vm670, %v657, %v368
  %v675 = vsel %vm670, %v658, %v370
  %v676 = vsel %vm670, %v659, %v372
  %v677 = vsel %vm670, %v660, %v374
  %v678 = vsel %vm670, %v661, %v376
  %v679 = vsel %vm670, %v662, %v378
  %v680 = vsel %vm670, %v663, %v380
  %v681 = vsel %vm670, %v664, %v382
  %v682 = vsel %vm670, %v665, %v384
  %v683 = vsel %vm670, %v666, %v386
  %v684 = vsel %vm670, %v667, %v388
  %v685 = vsel %vm670, %v668, %v390
  %v686 = vsel %vm670, %v669, %v392
  %vm687 = vcmask 785408
  %v688 = vsel %vm687, %v671, %v426
  %v689 = vsel %vm687, %v672, %v428
  %v690 = vsel %vm687, %v673, %v430
  %v691 = vsel %vm687, %v674, %v432
  %v692 = vsel %vm687, %v675, %v434
  %v693 = vsel %vm687, %v676, %v436
  %v694 = vsel %vm687, %v677, %v438
  %v695 = vsel %vm687, %v678, %v440
  %v696 = vsel %vm687, %v679, %v442
  %v697 = vsel %vm687, %v680, %v444
  %v698 = vsel %vm687, %v681, %v446
  %v699 = vsel %vm687, %v682, %v448
  %v700 = vsel %vm687, %v683, %v450
  %v701 = vsel %vm687, %v684, %v452
  %v702 = vsel %vm687, %v685, %v454
  %v703 = vsel %vm687, %v686, %v456
  %v704 = vsel %vm653, %v49, %v490
  %v705 = vsel %vm653, %v50, %v492
  %v706 = vsel %vm653, %v51, %v494
  %v707 = vsel %vm653, %v52, %v496
  %v708 = vsel %vm653, %v53, %v498
  %v709 = vsel %vm653, %v54, %v500
  %v710 = vsel %vm653, %v55, %v502
  %v711 = vsel %vm653, %v56, %v504
  %v712 = vsel %vm653, %v57, %v506
  %v713 = vsel %vm653, %v58, %v508
  %v714 = vsel %vm653, %v59, %v510
  %v715 = vsel %vm653, %v60, %v512
  %v716 = vsel %vm653, %v61, %v514
  %v717 = vsel %vm653, %v62, %v516
  %v718 = vsel %vm653, %v63, %v518
  %v719 = vsel %vm653, %v64, %v520
  %v720 = vsel %vm670, %v704, %v554
  %v721 = vsel %vm670, %v705, %v556
  %v722 = vsel %vm670, %v706, %v558
  %v723 = vsel %vm670, %v707, %v560
  %v724 = vsel %vm670, %v708, %v562
  %v725 = vsel %vm670, %v709, %v564
  %v726 = vsel %vm670, %v710, %v566
  %v727 = vsel %vm670, %v711, %v568
  %v728 = vsel %vm670, %v712, %v570
  %v729 = vsel %vm670, %v713, %v572
  %v730 = vsel %vm670, %v714, %v574
  %v731 = vsel %vm670, %v715, %v576
  %v732 = vsel %vm670, %v716, %v578
  %v733 = vsel %vm670, %v717, %v580
  %v734 = vsel %vm670, %v718, %v582
  %v735 = vsel %vm670, %v719, %v584
  %v736 = vsel %vm687, %v720, %v606
  %v737 = vsel %vm687, %v721, %v608
  %v738 = vsel %vm687, %v722, %v610
  %v739 = vsel %vm687, %v723, %v612
  %v740 = vsel %vm687, %v724, %v614
  %v741 = vsel %vm687, %v725, %v616
  %v742 = vsel %vm687, %v726, %v618
  %v743 = vsel %vm687, %v727, %v620
  %v744 = vsel %vm687, %v728, %v622
  %v745 = vsel %vm687, %v729, %v624
  %v746 = vsel %vm687, %v730, %v626
  %v747 = vsel %vm687, %v731, %v628
  %v748 = vsel %vm687, %v732, %v630
  %v749 = vsel %vm687, %v733, %v632
  %v750 = vsel %vm687, %v734, %v634
  %v751 = vsel %vm687, %v735, %v636
  %v752 = vld [vmem:[%s1] sm:$0xff]
  %v753 = vld [vmem:[%s1 + $0x8] sm:$0xff]
  %v754 = vld [vmem:[%s1 + $0x10] sm:$0xff]
  %v755 = vld [vmem:[%s1 + $0x18] sm:$0xff]
  %v756 = vld [vmem:[%s1 + $0x20] sm:$0xff]
  %v757 = vld [vmem:[%s1 + $0x28] sm:$0xff]
  %v758 = vld [vmem:[%s1 + $0x30] sm:$0xff]
  %v759 = vld [vmem:[%s1 + $0x38] sm:$0xff]
  %v760 = vld [vmem:[%s1 + $0x40] sm:$0xff]
  %v761 = vld [vmem:[%s1 + $0x48] sm:$0xff]
  %v762 = vld [vmem:[%s1 + $0x50] sm:$0xff]
  %v763 = vld [vmem:[%s1 + $0x58] sm:$0xff]
  %v764 = vld [vmem:[%s1 + $0x60] sm:$0xff]
  %v765 = vld [vmem:[%s1 + $0x68] sm:$0xff]
  %v766 = vld [vmem:[%s1 + $0x70] sm:$0xff]
  %v767 = vld [vmem:[%s1 + $0x78] sm:$0xff]
  %v768 = vld [vmem:[%s1 + $0x80] sm:$0xff]
  %v769 = vld [vmem:[%s1 + $0x88] sm:$0xff]
  %v770 = vld [vmem:[%s1 + $0x90] sm:$0xff]
  %v771 = vld [vmem:[%s1 + $0x98] sm:$0xff]
  %v772 = vld [vmem:[%s1 + $0xa0] sm:$0xff]
  %v773 = vld [vmem:[%s1 + $0xa8] sm:$0xff]
  %v774 = vld [vmem:[%s1 + $0xb0] sm:$0xff]
  %v775 = vld [vmem:[%s1 + $0xb8] sm:$0xff]
  %v776 = vld [vmem:[%s1 + $0xc0] sm:$0xff]
  %v777 = vld [vmem:[%s1 + $0xc8] sm:$0xff]
  %v778 = vld [vmem:[%s1 + $0xd0] sm:$0xff]
  %v779 = vld [vmem:[%s1 + $0xd8] sm:$0xff]
  %v780 = vld [vmem:[%s1 + $0xe0] sm:$0xff]
  %v781 = vld [vmem:[%s1 + $0xe8] sm:$0xff]
  %v782 = vld [vmem:[%s1 + $0xf0] sm:$0xff]
  %v783 = vld [vmem:[%s1 + $0xf8] sm:$0xff]
  %v784 = vld [vmem:[%s1 + $0x100] sm:$0xff]
  %v785 = vld [vmem:[%s1 + $0x108] sm:$0xff]
  %v786 = vld [vmem:[%s1 + $0x110] sm:$0xff]
  %v787 = vld [vmem:[%s1 + $0x118] sm:$0xff]
  %v788 = vld [vmem:[%s2] sm:$0x1]
  %v790 = vlaneseq
  %v791 = vshrl.u32 %v790, 7
  %v792 = vsub.s32 0, %v791
  %v793 = vrot.slane %v788, %v792
  %v795 = vsel %vm653, %v223, 0
  %v797 = vsel %vm653, %v224, 0
  %v799 = vsel %vm653, %v225, 0
  %v801 = vsel %vm653, %v226, 0
  %v803 = vsel %vm653, %v227, 0
  %v805 = vsel %vm653, %v228, 0
  %v808 = vsel %vm653, %v277, 0
  %v811 = vsel %vm653, %v278, 0
  %v813 = vsel %vm653, %v231, 0
  %v815 = vsel %vm653, %v232, 0
  %v817 = vsel %vm653, %v233, 0
  %v819 = vsel %vm653, %v234, 0
  %v821 = vsel %vm653, %v235, 0
  %v823 = vsel %vm653, %v236, 0
  %v826 = vsel %vm653, %v279, 0
  %v829 = vsel %vm653, %v280, 0
  %831 = vmatprep.subr.mxu0 0.0
  %832 = vmatpush1.msra.mxu0 %v752
  %833 = vmatprep.subr.mxu0 0.0
  %834 = vmatpush1.msra.mxu0 %v753
  %835 = vmatprep.subr.mxu0 0.0
  %836 = vmatpush1.msra.mxu0 %v754
  %837 = vmatprep.subr.mxu0 0.0
  %838 = vmatpush1.msra.mxu0 %v755
  %839 = vmatprep.subr.mxu0 0.0
  %840 = vmatpush1.msra.mxu0 %v756
  %841 = vmatprep.subr.mxu0 0.0
  %842 = vmatpush1.msra.mxu0 %v757
  %843 = vmatprep.subr.mxu0 0.0
  %844 = vmatpush1.msra.mxu0 %v758
  %845 = vmatprep.subr.mxu0 0.0
  %846 = vmatpush1.msra.mxu0 %v759
  %847 = vmatprep.subr.mxu0 0.0
  %848 = vmatpush1.msra.mxu0 %v760
  %849 = vmatprep.subr.mxu0 0.0
  %850 = vmatpush1.msra.mxu0 %v761
  %851 = vmatprep.subr.mxu0 0.0
  %852 = vmatpush1.msra.mxu0 %v762
  %853 = vmatprep.subr.mxu0 0.0
  %854 = vmatpush1.msra.mxu0 %v763
  %855 = vmatprep.subr.mxu0 0.0
  %856 = vmatpush1.msra.mxu0 %v764
  %857 = vmatprep.subr.mxu0 0.0
  %858 = vmatpush1.msra.mxu0 %v765
  %859 = vmatprep.subr.mxu0 0.0
  %860 = vmatpush1.msra.mxu0 %v766
  %861 = vmatprep.subr.mxu0 0.0
  %862 = vmatpush1.msra.mxu0 %v767
  %863 = vmatprep.subr.mxu0 0.0
  %864 = vmatpush1.msra.mxu0 %v768
  %865 = vmatprep.subr.mxu0 0.0
  %866 = vmatpush1.msra.mxu0 %v769
  %867 = vmatprep.subr.mxu0 0.0
  %868 = vmatpush1.msra.mxu0 %v770
  %869 = vmatprep.subr.mxu0 0.0
  %870 = vmatpush1.msra.mxu0 %v771
  %871 = vmatprep.subr.mxu0 0.0
  %872 = vmatpush1.msra.mxu0 %v772
  %873 = vmatprep.subr.mxu0 0.0
  %874 = vmatpush1.msra.mxu0 %v773
  %875 = vmatprep.subr.mxu0 0.0
  %876 = vmatpush1.msra.mxu0 %v774
  %877 = vmatprep.subr.mxu0 0.0
  %878 = vmatpush1.msra.mxu0 %v775
  %879 = vmatprep.subr.mxu0 0.0
  %880 = vmatpush1.msra.mxu0 %v776
  %881 = vmatprep.subr.mxu0 0.0
  %882 = vmatpush1.msra.mxu0 %v777
  %883 = vmatprep.subr.mxu0 0.0
  %884 = vmatpush1.msra.mxu0 %v778
  %885 = vmatprep.subr.mxu0 0.0
  %886 = vmatpush1.msra.mxu0 %v779
  %887 = vmatprep.subr.mxu0 0.0
  %888 = vmatpush1.msra.mxu0 %v780
  %889 = vmatprep.subr.mxu0 0.0
  %890 = vmatpush1.msra.mxu0 %v781
  %891 = vmatprep.subr.mxu0 0.0
  %892 = vmatpush1.msra.mxu0 %v782
  %893 = vmatprep.subr.mxu0 0.0
  %894 = vmatpush1.msra.mxu0 %v783
  %895 = vmatprep.mubr.f32.mxu0 %v736
  %896 = vmatmul.mubr.f32.gmra.mrb[0].mxu0 %v688
  %v897 = vpop.f32.mrb[0].mxu0
  %v898 = vadd.f32 %v793, %v897
  %v899 = vpop.f32.mrb[0].mxu0
  %900 = vmatprep.mubr.f32.mxu0 %v737
  %901 = vmatmul.mubr.f32.gmra.mrb[0].mxu0 %v689
  %v902 = vpop.f32.mrb[0].mxu0
  %v903 = vadd.f32 %v793, %v902
  %v904 = vpop.f32.mrb[0].mxu0
  %905 = vmatprep.mubr.f32.mxu0 %v738
  %906 = vmatmul.mubr.f32.gmra.mrb[0].mxu0 %v690
  %v907 = vpop.f32.mrb[0].mxu0
  %v908 = vadd.f32 %v793, %v907
  %v909 = vpop.f32.mrb[0].mxu0
  %910 = vmatprep.mubr.f32.mxu0 %v739
  %911 = vmatmul.mubr.f32.gmra.mrb[0].mxu0 %v691
  %v912 = vpop.f32.mrb[0].mxu0
  %v913 = vadd.f32 %v793, %v912
  %v914 = vpop.f32.mrb[0].mxu0
  %915 = vmatprep.mubr.f32.mxu0 %v740
  %916 = vmatmul.mubr.f32.gmra.mrb[0].mxu0 %v692
  %v917 = vpop.f32.mrb[0].mxu0
  %v918 = vadd.f32 %v793, %v917
  %v919 = vpop.f32.mrb[0].mxu0
  %920 = vmatprep.mubr.f32.mxu0 %v741
  %921 = vmatmul.mubr.f32.gmra.mrb[0].mxu0 %v693
  %v922 = vpop.f32.mrb[0].mxu0
  %v923 = vadd.f32 %v793, %v922
  %v924 = vpop.f32.mrb[0].mxu0
  %925 = vmatprep.mubr.f32.mxu0 %v742
  %926 = vmatmul.mubr.f32.gmra.mrb[0].mxu0 %v694
  %v927 = vpop.f32.mrb[0].mxu0
  %v928 = vadd.f32 %v793, %v927
  %v929 = vpop.f32.mrb[0].mxu0
  %930 = vmatprep.mubr.f32.mxu0 %v743
  %931 = vmatmul.mubr.f32.gmra.mrb[0].mxu0 %v695
  %v932 = vpop.f32.mrb[0].mxu0
  %v933 = vadd.f32 %v793, %v932
  %v934 = vpop.f32.mrb[0].mxu0
  %935 = vmatprep.mubr.f32.mxu0 %v744
  %936 = vmatmul.mubr.f32.gmra.mrb[0].mxu0 %v696
  %v937 = vpop.f32.mrb[0].mxu0
  %v938 = vadd.f32 %v793, %v937
  %v939 = vpop.f32.mrb[0].mxu0
  %940 = vmatprep.mubr.f32.mxu0 %v745
  %941 = vmatmul.mubr.f32.gmra.mrb[0].mxu0 %v697
  %v942 = vpop.f32.mrb[0].mxu0
  %v943 = vadd.f32 %v793, %v942
  %v944 = vpop.f32.mrb[0].mxu0
  %945 = vmatprep.mubr.f32.mxu0 %v746
  %946 = vmatmul.mubr.f32.gmra.mrb[0].mxu0 %v698
  %v947 = vpop.f32.mrb[0].mxu0
  %v948 = vadd.f32 %v793, %v947
  %v949 = vpop.f32.mrb[0].mxu0
  %950 = vmatprep.mubr.f32.mxu0 %v747
  %951 = vmatmul.mubr.f32.gmra.mrb[0].mxu0 %v699
  %v952 = vpop.f32.mrb[0].mxu0
  %v953 = vadd.f32 %v793, %v952
  %v954 = vpop.f32.mrb[0].mxu0
  %955 = vmatprep.mubr.f32.mxu0 %v748
  %956 = vmatmul.mubr.f32.gmra.mrb[0].mxu0 %v700
  %v957 = vpop.f32.mrb[0].mxu0
  %v958 = vadd.f32 %v793, %v957
  %v959 = vpop.f32.mrb[0].mxu0
  %960 = vmatprep.mubr.f32.mxu0 %v749
  %961 = vmatmul.mubr.f32.gmra.mrb[0].mxu0 %v701
  %v962 = vpop.f32.mrb[0].mxu0
  %v963 = vadd.f32 %v793, %v962
  %v964 = vpop.f32.mrb[0].mxu0
  %965 = vmatprep.mubr.f32.mxu0 %v750
  %966 = vmatmul.mubr.f32.gmra.mrb[0].mxu0 %v702
  %v967 = vpop.f32.mrb[0].mxu0
  %v968 = vadd.f32 %v793, %v967
  %v969 = vpop.f32.mrb[0].mxu0
  %970 = vmatprep.mubr.f32.mxu0 %v751
  %971 = vmatmul.mubr.f32.gmra.mrb[0].mxu0 %v703
  %v972 = vpop.f32.mrb[0].mxu0
  %v973 = vadd.f32 %v793, %v972
  %v974 = vpop.f32.mrb[0].mxu0
  %975 = vdwg.mxu0
  %976 = vmatprep.subr.mxu0 0.0
  %977 = vmatpush1.msra.mxu0 %v784
  %978 = vmatprep.subr.mxu0 0.0
  %979 = vmatpush1.msra.mxu0 %v785
  %980 = vmatprep.subr.mxu0 0.0
  %981 = vmatpush1.msra.mxu0 %v786
  %982 = vmatprep.subr.mxu0 0.0
  %983 = vmatpush1.msra.mxu0 %v787
  %984 = vmatprep.subr.mxu0 0.0
  %985 = vmatpush1.msra.mxu0 0.0
  %986 = vmatprep.subr.mxu0 0.0
  %987 = vmatpush1.msra.mxu0 0.0
  %988 = vmatprep.subr.mxu0 0.0
  %989 = vmatpush1.msra.mxu0 0.0
  %990 = vmatprep.subr.mxu0 0.0
  %991 = vmatpush1.msra.mxu0 0.0
  %992 = vmatprep.subr.mxu0 0.0
  %993 = vmatpush1.msra.mxu0 0.0
  %994 = vmatprep.subr.mxu0 0.0
  %995 = vmatpush1.msra.mxu0 0.0
  %996 = vmatprep.subr.mxu0 0.0
  %997 = vmatpush1.msra.mxu0 0.0
  %998 = vmatprep.subr.mxu0 0.0
  %999 = vmatpush1.msra.mxu0 0.0
  %1000 = vmatprep.subr.mxu0 0.0
  %1001 = vmatpush1.msra.mxu0 0.0
  %1002 = vmatprep.subr.mxu0 0.0
  %1003 = vmatpush1.msra.mxu0 0.0
  %1004 = vmatprep.subr.mxu0 0.0
  %1005 = vmatpush1.msra.mxu0 0.0
  %1006 = vmatprep.subr.mxu0 0.0
  %1007 = vmatpush1.msra.mxu0 0.0
  %1008 = vmatprep.subr.mxu0 0.0
  %1009 = vmatpush1.msra.mxu0 0.0
  %1010 = vmatprep.subr.mxu0 0.0
  %1011 = vmatpush1.msra.mxu0 0.0
  %1012 = vmatprep.subr.mxu0 0.0
  %1013 = vmatpush1.msra.mxu0 0.0
  %1014 = vmatprep.subr.mxu0 0.0
  %1015 = vmatpush1.msra.mxu0 0.0
  %1016 = vmatprep.subr.mxu0 0.0
  %1017 = vmatpush1.msra.mxu0 0.0
  %1018 = vmatprep.subr.mxu0 0.0
  %1019 = vmatpush1.msra.mxu0 0.0
  %1020 = vmatprep.subr.mxu0 0.0
  %1021 = vmatpush1.msra.mxu0 0.0
  %1022 = vmatprep.subr.mxu0 0.0
  %1023 = vmatpush1.msra.mxu0 0.0
  %1024 = vmatprep.subr.mxu0 0.0
  %1025 = vmatpush1.msra.mxu0 0.0
  %1026 = vmatprep.subr.mxu0 0.0
  %1027 = vmatpush1.msra.mxu0 0.0
  %1028 = vmatprep.subr.mxu0 0.0
  %1029 = vmatpush1.msra.mxu0 0.0
  %1030 = vmatprep.subr.mxu0 0.0
  %1031 = vmatpush1.msra.mxu0 0.0
  %1032 = vmatprep.subr.mxu0 0.0
  %1033 = vmatpush1.msra.mxu0 0.0
  %1034 = vmatprep.subr.mxu0 0.0
  %1035 = vmatpush1.msra.mxu0 0.0
  %1036 = vmatprep.subr.mxu0 0.0
  %1037 = vmatpush1.msra.mxu0 0.0
  %1038 = vmatprep.subr.mxu0 0.0
  %1039 = vmatpush1.msra.mxu0 0.0
  %1040 = vmatprep.mubr.f32.mxu0 0.0
  %1041 = vmatmul.mubr.f32.gmra.mrb[0].mxu0 %v795
  %v1042 = vpop.f32.mrb[0].mxu0
  %v1043 = vadd.f32 %v898, %v1042
  %v1044 = vpop.f32.mrb[0].mxu0
  %1045 = vmatprep.mubr.f32.mxu0 0.0
  %1046 = vmatmul.mubr.f32.gmra.mrb[0].mxu0 %v797
  %v1047 = vpop.f32.mrb[0].mxu0
  %v1048 = vadd.f32 %v903, %v1047
  %v1049 = vpop.f32.mrb[0].mxu0
  %1050 = vmatprep.mubr.f32.mxu0 0.0
  %1051 = vmatmul.mubr.f32.gmra.mrb[0].mxu0 %v799
  %v1052 = vpop.f32.mrb[0].mxu0
  %v1053 = vadd.f32 %v908, %v1052
  %v1054 = vpop.f32.mrb[0].mxu0
  %1055 = vmatprep.mubr.f32.mxu0 0.0
  %1056 = vmatmul.mubr.f32.gmra.mrb[0].mxu0 %v801
  %v1057 = vpop.f32.mrb[0].mxu0
  %v1058 = vadd.f32 %v913, %v1057
  %v1059 = vpop.f32.mrb[0].mxu0
  %1060 = vmatprep.mubr.f32.mxu0 0.0
  %1061 = vmatmul.mubr.f32.gmra.mrb[0].mxu0 %v803
  %v1062 = vpop.f32.mrb[0].mxu0
  %v1063 = vadd.f32 %v918, %v1062
  %v1064 = vpop.f32.mrb[0].mxu0
  %1065 = vmatprep.mubr.f32.mxu0 0.0
  %1066 = vmatmul.mubr.f32.gmra.mrb[0].mxu0 %v805
  %v1067 = vpop.f32.mrb[0].mxu0
  %v1068 = vadd.f32 %v923, %v1067
  %v1069 = vpop.f32.mrb[0].mxu0
  %1070 = vmatprep.mubr.f32.mxu0 0.0
  %1071 = vmatmul.mubr.f32.gmra.mrb[0].mxu0 %v808
  %v1072 = vpop.f32.mrb[0].mxu0
  %v1073 = vadd.f32 %v928, %v1072
  %v1074 = vpop.f32.mrb[0].mxu0
  %1075 = vmatprep.mubr.f32.mxu0 0.0
  %1076 = vmatmul.mubr.f32.gmra.mrb[0].mxu0 %v811
  %v1077 = vpop.f32.mrb[0].mxu0
  %v1078 = vadd.f32 %v933, %v1077
  %v1079 = vpop.f32.mrb[0].mxu0
  %1080 = vmatprep.mubr.f32.mxu0 0.0
  %1081 = vmatmul.mubr.f32.gmra.mrb[0].mxu0 %v813
  %v1082 = vpop.f32.mrb[0].mxu0
  %v1083 = vadd.f32 %v938, %v1082
  %v1084 = vpop.f32.mrb[0].mxu0
  %1085 = vmatprep.mubr.f32.mxu0 0.0
  %1086 = vmatmul.mubr.f32.gmra.mrb[0].mxu0 %v815
  %v1087 = vpop.f32.mrb[0].mxu0
  %v1088 = vadd.f32 %v943, %v1087
  %v1089 = vpop.f32.mrb[0].mxu0
  %1090 = vmatprep.mubr.f32.mxu0 0.0
  %1091 = vmatmul.mubr.f32.gmra.mrb[0].mxu0 %v817
  %v1092 = vpop.f32.mrb[0].mxu0
  %v1093 = vadd.f32 %v948, %v1092
  %v1094 = vpop.f32.mrb[0].mxu0
  %1095 = vmatprep.mubr.f32.mxu0 0.0
  %1096 = vmatmul.mubr.f32.gmra.mrb[0].mxu0 %v819
  %v1097 = vpop.f32.mrb[0].mxu0
  %v1098 = vadd.f32 %v953, %v1097
  %v1099 = vpop.f32.mrb[0].mxu0
  %1100 = vmatprep.mubr.f32.mxu0 0.0
  %1101 = vmatmul.mubr.f32.gmra.mrb[0].mxu0 %v821
  %v1102 = vpop.f32.mrb[0].mxu0
  %v1103 = vadd.f32 %v958, %v1102
  %v1104 = vpop.f32.mrb[0].mxu0
  %1105 = vmatprep.mubr.f32.mxu0 0.0
  %1106 = vmatmul.mubr.f32.gmra.mrb[0].mxu0 %v823
  %v1107 = vpop.f32.mrb[0].mxu0
  %v1108 = vadd.f32 %v963, %v1107
  %v1109 = vpop.f32.mrb[0].mxu0
  %1110 = vmatprep.mubr.f32.mxu0 0.0
  %1111 = vmatmul.mubr.f32.gmra.mrb[0].mxu0 %v826
  %v1112 = vpop.f32.mrb[0].mxu0
  %v1113 = vadd.f32 %v968, %v1112
  %v1114 = vpop.f32.mrb[0].mxu0
  %1115 = vmatprep.mubr.f32.mxu0 0.0
  %1116 = vmatmul.mubr.f32.gmra.mrb[0].mxu0 %v829
  %v1117 = vpop.f32.mrb[0].mxu0
  %v1118 = vadd.f32 %v973, %v1117
  %v1119 = vpop.f32.mrb[0].mxu0
  %1120 = vdwg.mxu0
  %v1121 = vadd.f32 %v1043, %v49
  %v1122 = vadd.f32 %v1048, %v50
  %v1123 = vadd.f32 %v1053, %v51
  %v1124 = vadd.f32 %v1058, %v52
  %v1125 = vadd.f32 %v1063, %v53
  %v1126 = vadd.f32 %v1068, %v54
  %v1127 = vadd.f32 %v1073, %v55
  %v1128 = vadd.f32 %v1078, %v56
  %v1129 = vadd.f32 %v1083, %v57
  %v1130 = vadd.f32 %v1088, %v58
  %v1131 = vadd.f32 %v1093, %v59
  %v1132 = vadd.f32 %v1098, %v60
  %v1133 = vadd.f32 %v1103, %v61
  %v1134 = vadd.f32 %v1108, %v62
  %v1135 = vadd.f32 %v1113, %v63
  %v1136 = vadd.f32 %v1118, %v64
  %v1137 = vld [vmem:[%s3] sm:$0x1]
  %v1138 = vld [vmem:[%s4] sm:$0x1]
  %v1139 = vsel %vm653, %v1121, 0.0
  %1140 = vadd.xlane.f32.xlu0 %v1139
  %v1141 = vpop.xlane.xlu0 %1140
  %v1142 = vsel %vm653, %v1122, 0.0
  %1143 = vadd.xlane.f32.xlu0 %v1142
  %v1144 = vpop.xlane.xlu0 %1143
  %v1145 = vsel %vm653, %v1123, 0.0
  %1146 = vadd.xlane.f32.xlu0 %v1145
  %v1147 = vpop.xlane.xlu0 %1146
  %v1148 = vsel %vm653, %v1124, 0.0
  %1149 = vadd.xlane.f32.xlu0 %v1148
  %v1150 = vpop.xlane.xlu0 %1149
  %v1151 = vsel %vm653, %v1125, 0.0
  %1152 = vadd.xlane.f32.xlu0 %v1151
  %v1153 = vpop.xlane.xlu0 %1152
  %v1154 = vsel %vm653, %v1126, 0.0
  %1155 = vadd.xlane.f32.xlu0 %v1154
  %v1156 = vpop.xlane.xlu0 %1155
  %v1157 = vsel %vm653, %v1127, 0.0
  %1158 = vadd.xlane.f32.xlu0 %v1157
  %v1159 = vpop.xlane.xlu0 %1158
  %v1160 = vsel %vm653, %v1128, 0.0
  %1161 = vadd.xlane.f32.xlu0 %v1160
  %v1162 = vpop.xlane.xlu0 %1161
  %v1163 = vsel %vm653, %v1129, 0.0
  %1164 = vadd.xlane.f32.xlu0 %v1163
  %v1165 = vpop.xlane.xlu0 %1164
  %v1166 = vsel %vm653, %v1130, 0.0
  %1167 = vadd.xlane.f32.xlu0 %v1166
  %v1168 = vpop.xlane.xlu0 %1167
  %v1169 = vsel %vm653, %v1131, 0.0
  %1170 = vadd.xlane.f32.xlu0 %v1169
  %v1171 = vpop.xlane.xlu0 %1170
  %v1172 = vsel %vm653, %v1132, 0.0
  %1173 = vadd.xlane.f32.xlu0 %v1172
  %v1174 = vpop.xlane.xlu0 %1173
  %v1175 = vsel %vm653, %v1133, 0.0
  %1176 = vadd.xlane.f32.xlu0 %v1175
  %v1177 = vpop.xlane.xlu0 %1176
  %v1178 = vsel %vm653, %v1134, 0.0
  %1179 = vadd.xlane.f32.xlu0 %v1178
  %v1180 = vpop.xlane.xlu0 %1179
  %v1181 = vsel %vm653, %v1135, 0.0
  %1182 = vadd.xlane.f32.xlu0 %v1181
  %v1183 = vpop.xlane.xlu0 %1182
  %v1184 = vsel %vm653, %v1136, 0.0
  %1185 = vadd.xlane.f32.xlu0 %v1184
  %v1186 = vpop.xlane.xlu0 %1185
  %v1187 = vrcp.pop 32.0
  %v1188 = vmul.f32 %v1141, %v1187
  %v1189 = vmul.f32 %v1144, %v1187
  %v1190 = vmul.f32 %v1147, %v1187
  %v1191 = vmul.f32 %v1150, %v1187
  %v1192 = vmul.f32 %v1153, %v1187
  %v1193 = vmul.f32 %v1156, %v1187
  %v1194 = vmul.f32 %v1159, %v1187
  %v1195 = vmul.f32 %v1162, %v1187
  %v1196 = vmul.f32 %v1165, %v1187
  %v1197 = vmul.f32 %v1168, %v1187
  %v1198 = vmul.f32 %v1171, %v1187
  %v1199 = vmul.f32 %v1174, %v1187
  %v1200 = vmul.f32 %v1177, %v1187
  %v1201 = vmul.f32 %v1180, %v1187
  %v1202 = vmul.f32 %v1183, %v1187
  %v1203 = vmul.f32 %v1186, %v1187
  %v1204 = vsub.f32 %v1121, %v1188
  %v1205 = vsub.f32 %v1122, %v1189
  %v1206 = vsub.f32 %v1123, %v1190
  %v1207 = vsub.f32 %v1124, %v1191
  %v1208 = vsub.f32 %v1125, %v1192
  %v1209 = vsub.f32 %v1126, %v1193
  %v1210 = vsub.f32 %v1127, %v1194
  %v1211 = vsub.f32 %v1128, %v1195
  %v1212 = vsub.f32 %v1129, %v1196
  %v1213 = vsub.f32 %v1130, %v1197
  %v1214 = vsub.f32 %v1131, %v1198
  %v1215 = vsub.f32 %v1132, %v1199
  %v1216 = vsub.f32 %v1133, %v1200
  %v1217 = vsub.f32 %v1134, %v1201
  %v1218 = vsub.f32 %v1135, %v1202
  %v1219 = vsub.f32 %v1136, %v1203
  %v1220 = vmul.f32 %v1204, %v1204
  %v1221 = vmul.f32 %v1205, %v1205
  %v1222 = vmul.f32 %v1206, %v1206
  %v1223 = vmul.f32 %v1207, %v1207
  %v1224 = vmul.f32 %v1208, %v1208
  %v1225 = vmul.f32 %v1209, %v1209
  %v1226 = vmul.f32 %v1210, %v1210
  %v1227 = vmul.f32 %v1211, %v1211
  %v1228 = vmul.f32 %v1212, %v1212
  %v1229 = vmul.f32 %v1213, %v1213
  %v1230 = vmul.f32 %v1214, %v1214
  %v1231 = vmul.f32 %v1215, %v1215
  %v1232 = vmul.f32 %v1216, %v1216
  %v1233 = vmul.f32 %v1217, %v1217
  %v1234 = vmul.f32 %v1218, %v1218
  %v1235 = vmul.f32 %v1219, %v1219
  %v1236 = vsel %vm653, %v1220, 0.0
  %1237 = vadd.xlane.f32.xlu0 %v1236
  %v1238 = vpop.xlane.xlu0 %1237
  %v1239 = vsel %vm653, %v1221, 0.0
  %1240 = vadd.xlane.f32.xlu0 %v1239
  %v1241 = vpop.xlane.xlu0 %1240
  %v1242 = vsel %vm653, %v1222, 0.0
  %1243 = vadd.xlane.f32.xlu0 %v1242
  %v1244 = vpop.xlane.xlu0 %1243
  %v1245 = vsel %vm653, %v1223, 0.0
  %1246 = vadd.xlane.f32.xlu0 %v1245
  %v1247 = vpop.xlane.xlu0 %1246
  %v1248 = vsel %vm653, %v1224, 0.0
  %1249 = vadd.xlane.f32.xlu0 %v1248
  %v1250 = vpop.xlane.xlu0 %1249
  %v1251 = vsel %vm653, %v1225, 0.0
  %1252 = vadd.xlane.f32.xlu0 %v1251
  %v1253 = vpop.xlane.xlu0 %1252
  %v1254 = vsel %vm653, %v1226, 0.0
  %1255 = vadd.xlane.f32.xlu0 %v1254
  %v1256 = vpop.xlane.xlu0 %1255
  %v1257 = vsel %vm653, %v1227, 0.0
  %1258 = vadd.xlane.f32.xlu0 %v1257
  %v1259 = vpop.xlane.xlu0 %1258
  %v1260 = vsel %vm653, %v1228, 0.0
  %1261 = vadd.xlane.f32.xlu0 %v1260
  %v1262 = vpop.xlane.xlu0 %1261
  %v1263 = vsel %vm653, %v1229, 0.0
  %1264 = vadd.xlane.f32.xlu0 %v1263
  %v1265 = vpop.xlane.xlu0 %1264
  %v1266 = vsel %vm653, %v1230, 0.0
  %1267 = vadd.xlane.f32.xlu0 %v1266
  %v1268 = vpop.xlane.xlu0 %1267
  %v1269 = vsel %vm653, %v1231, 0.0
  %1270 = vadd.xlane.f32.xlu0 %v1269
  %v1271 = vpop.xlane.xlu0 %1270
  %v1272 = vsel %vm653, %v1232, 0.0
  %1273 = vadd.xlane.f32.xlu0 %v1272
  %v1274 = vpop.xlane.xlu0 %1273
  %v1275 = vsel %vm653, %v1233, 0.0
  %1276 = vadd.xlane.f32.xlu0 %v1275
  %v1277 = vpop.xlane.xlu0 %1276
  %v1278 = vsel %vm653, %v1234, 0.0
  %1279 = vadd.xlane.f32.xlu0 %v1278
  %v1280 = vpop.xlane.xlu0 %1279
  %v1281 = vsel %vm653, %v1235, 0.0
  %1282 = vadd.xlane.f32.xlu0 %v1281
  %v1283 = vpop.xlane.xlu0 %1282
  %v1284 = vmul.f32 %v1238, %v1187
  %v1285 = vmul.f32 %v1241, %v1187
  %v1286 = vmul.f32 %v1244, %v1187
  %v1287 = vmul.f32 %v1247, %v1187
  %v1288 = vmul.f32 %v1250, %v1187
  %v1289 = vmul.f32 %v1253, %v1187
  %v1290 = vmul.f32 %v1256, %v1187
  %v1291 = vmul.f32 %v1259, %v1187
  %v1292 = vmul.f32 %v1262, %v1187
  %v1293 = vmul.f32 %v1265, %v1187
  %v1294 = vmul.f32 %v1268, %v1187
  %v1295 = vmul.f32 %v1271, %v1187
  %v1296 = vmul.f32 %v1274, %v1187
  %v1297 = vmul.f32 %v1277, %v1187
  %v1298 = vmul.f32 %v1280, %v1187
  %v1299 = vmul.f32 %v1283, %v1187
  %v1300 = vrsqrt.pop %v1284
  %v1301 = vmul.f32 %v1284, %v1300
  %vm1302 = vcmp.eq.f32.partialorder %v1284, inf
  %v1303 = vsel %vm1302, %v1284, %v1301
  %vm1304 = vcmp.eq.f32.partialorder %v1284, 0.0
  %v1305 = vand.u32 %v1284, 2147483648
  %v1306 = vsel %vm1304, %v1305, %v1303
  %v1307 = vrsqrt.pop %v1285
  %v1308 = vmul.f32 %v1285, %v1307
  %vm1309 = vcmp.eq.f32.partialorder %v1285, inf
  %v1310 = vsel %vm1309, %v1285, %v1308
  %vm1311 = vcmp.eq.f32.partialorder %v1285, 0.0
  %v1312 = vand.u32 %v1285, 2147483648
  %v1313 = vsel %vm1311, %v1312, %v1310
  %v1314 = vrsqrt.pop %v1286
  %v1315 = vmul.f32 %v1286, %v1314
  %vm1316 = vcmp.eq.f32.partialorder %v1286, inf
  %v1317 = vsel %vm1316, %v1286, %v1315
  %vm1318 = vcmp.eq.f32.partialorder %v1286, 0.0
  %v1319 = vand.u32 %v1286, 2147483648
  %v1320 = vsel %vm1318, %v1319, %v1317
  %v1321 = vrsqrt.pop %v1287
  %v1322 = vmul.f32 %v1287, %v1321
  %vm1323 = vcmp.eq.f32.partialorder %v1287, inf
  %v1324 = vsel %vm1323, %v1287, %v1322
  %vm1325 = vcmp.eq.f32.partialorder %v1287, 0.0
  %v1326 = vand.u32 %v1287, 2147483648
  %v1327 = vsel %vm1325, %v1326, %v1324
  %v1328 = vrsqrt.pop %v1288
  %v1329 = vmul.f32 %v1288, %v1328
  %vm1330 = vcmp.eq.f32.partialorder %v1288, inf
  %v1331 = vsel %vm1330, %v1288, %v1329
  %vm1332 = vcmp.eq.f32.partialorder %v1288, 0.0
  %v1333 = vand.u32 %v1288, 2147483648
  %v1334 = vsel %vm1332, %v1333, %v1331
  %v1335 = vrsqrt.pop %v1289
  %v1336 = vmul.f32 %v1289, %v1335
  %vm1337 = vcmp.eq.f32.partialorder %v1289, inf
  %v1338 = vsel %vm1337, %v1289, %v1336
  %vm1339 = vcmp.eq.f32.partialorder %v1289, 0.0
  %v1340 = vand.u32 %v1289, 2147483648
  %v1341 = vsel %vm1339, %v1340, %v1338
  %v1342 = vrsqrt.pop %v1290
  %v1343 = vmul.f32 %v1290, %v1342
  %vm1344 = vcmp.eq.f32.partialorder %v1290, inf
  %v1345 = vsel %vm1344, %v1290, %v1343
  %vm1346 = vcmp.eq.f32.partialorder %v1290, 0.0
  %v1347 = vand.u32 %v1290, 2147483648
  %v1348 = vsel %vm1346, %v1347, %v1345
  %v1349 = vrsqrt.pop %v1291
  %v1350 = vmul.f32 %v1291, %v1349
  %vm1351 = vcmp.eq.f32.partialorder %v1291, inf
  %v1352 = vsel %vm1351, %v1291, %v1350
  %vm1353 = vcmp.eq.f32.partialorder %v1291, 0.0
  %v1354 = vand.u32 %v1291, 2147483648
  %v1355 = vsel %vm1353, %v1354, %v1352
  %v1356 = vrsqrt.pop %v1292
  %v1357 = vmul.f32 %v1292, %v1356
  %vm1358 = vcmp.eq.f32.partialorder %v1292, inf
  %v1359 = vsel %vm1358, %v1292, %v1357
  %vm1360 = vcmp.eq.f32.partialorder %v1292, 0.0
  %v1361 = vand.u32 %v1292, 2147483648
  %v1362 = vsel %vm1360, %v1361, %v1359
  %v1363 = vrsqrt.pop %v1293
  %v1364 = vmul.f32 %v1293, %v1363
  %vm1365 = vcmp.eq.f32.partialorder %v1293, inf
  %v1366 = vsel %vm1365, %v1293, %v1364
  %vm1367 = vcmp.eq.f32.partialorder %v1293, 0.0
  %v1368 = vand.u32 %v1293, 2147483648
  %v1369 = vsel %vm1367, %v1368, %v1366
  %v1370 = vrsqrt.pop %v1294
  %v1371 = vmul.f32 %v1294, %v1370
  %vm1372 = vcmp.eq.f32.partialorder %v1294, inf
  %v1373 = vsel %vm1372, %v1294, %v1371
  %vm1374 = vcmp.eq.f32.partialorder %v1294, 0.0
  %v1375 = vand.u32 %v1294, 2147483648
  %v1376 = vsel %vm1374, %v1375, %v1373
  %v1377 = vrsqrt.pop %v1295
  %v1378 = vmul.f32 %v1295, %v1377
  %vm1379 = vcmp.eq.f32.partialorder %v1295, inf
  %v1380 = vsel %vm1379, %v1295, %v1378
  %vm1381 = vcmp.eq.f32.partialorder %v1295, 0.0
  %v1382 = vand.u32 %v1295, 2147483648
  %v1383 = vsel %vm1381, %v1382, %v1380
  %v1384 = vrsqrt.pop %v1296
  %v1385 = vmul.f32 %v1296, %v1384
  %vm1386 = vcmp.eq.f32.partialorder %v1296, inf
  %v1387 = vsel %vm1386, %v1296, %v1385
  %vm1388 = vcmp.eq.f32.partialorder %v1296, 0.0
  %v1389 = vand.u32 %v1296, 2147483648
  %v1390 = vsel %vm1388, %v1389, %v1387
  %v1391 = vrsqrt.pop %v1297
  %v1392 = vmul.f32 %v1297, %v1391
  %vm1393 = vcmp.eq.f32.partialorder %v1297, inf
  %v1394 = vsel %vm1393, %v1297, %v1392
  %vm1395 = vcmp.eq.f32.partialorder %v1297, 0.0
  %v1396 = vand.u32 %v1297, 2147483648
  %v1397 = vsel %vm1395, %v1396, %v1394
  %v1398 = vrsqrt.pop %v1298
  %v1399 = vmul.f32 %v1298, %v1398
  %vm1400 = vcmp.eq.f32.partialorder %v1298, inf
  %v1401 = vsel %vm1400, %v1298, %v1399
  %vm1402 = vcmp.eq.f32.partialorder %v1298, 0.0
  %v1403 = vand.u32 %v1298, 2147483648
  %v1404 = vsel %vm1402, %v1403, %v1401
  %v1405 = vrsqrt.pop %v1299
  %v1406 = vmul.f32 %v1299, %v1405
  %vm1407 = vcmp.eq.f32.partialorder %v1299, inf
  %v1408 = vsel %vm1407, %v1299, %v1406
  %vm1409 = vcmp.eq.f32.partialorder %v1299, 0.0
  %v1410 = vand.u32 %v1299, 2147483648
  %v1411 = vsel %vm1409, %v1410, %v1408
  %v1412 = vadd.f32 %v1306, 1e-05
  %v1413 = vadd.f32 %v1313, 1e-05
  %v1414 = vadd.f32 %v1320, 1e-05
  %v1415 = vadd.f32 %v1327, 1e-05
  %v1416 = vadd.f32 %v1334, 1e-05
  %v1417 = vadd.f32 %v1341, 1e-05
  %v1418 = vadd.f32 %v1348, 1e-05
  %v1419 = vadd.f32 %v1355, 1e-05
  %v1420 = vadd.f32 %v1362, 1e-05
  %v1421 = vadd.f32 %v1369, 1e-05
  %v1422 = vadd.f32 %v1376, 1e-05
  %v1423 = vadd.f32 %v1383, 1e-05
  %v1424 = vadd.f32 %v1390, 1e-05
  %v1425 = vadd.f32 %v1397, 1e-05
  %v1426 = vadd.f32 %v1404, 1e-05
  %v1427 = vadd.f32 %v1411, 1e-05
  %v1428 = vrcp.pop %v1412
  %v1429 = vmul.f32 %v1204, %v1428
  %v1430 = vrcp.pop %v1413
  %v1431 = vmul.f32 %v1205, %v1430
  %v1432 = vrcp.pop %v1414
  %v1433 = vmul.f32 %v1206, %v1432
  %v1434 = vrcp.pop %v1415
  %v1435 = vmul.f32 %v1207, %v1434
  %v1436 = vrcp.pop %v1416
  %v1437 = vmul.f32 %v1208, %v1436
  %v1438 = vrcp.pop %v1417
  %v1439 = vmul.f32 %v1209, %v1438
  %v1440 = vrcp.pop %v1418
  %v1441 = vmul.f32 %v1210, %v1440
  %v1442 = vrcp.pop %v1419
  %v1443 = vmul.f32 %v1211, %v1442
  %v1444 = vrcp.pop %v1420
  %v1445 = vmul.f32 %v1212, %v1444
  %v1446 = vrcp.pop %v1421
  %v1447 = vmul.f32 %v1213, %v1446
  %v1448 = vrcp.pop %v1422
  %v1449 = vmul.f32 %v1214, %v1448
  %v1450 = vrcp.pop %v1423
  %v1451 = vmul.f32 %v1215, %v1450
  %v1452 = vrcp.pop %v1424
  %v1453 = vmul.f32 %v1216, %v1452
  %v1454 = vrcp.pop %v1425
  %v1455 = vmul.f32 %v1217, %v1454
  %v1456 = vrcp.pop %v1426
  %v1457 = vmul.f32 %v1218, %v1456
  %v1458 = vrcp.pop %v1427
  %v1459 = vmul.f32 %v1219, %v1458
  %v1461 = vlaneseq
  %v1462 = vshrl.u32 %v1461, 7
  %v1463 = vsub.s32 0, %v1462
  %v1464 = vrot.slane %v1137, %v1463
  %v1466 = vmul.f32 %v1429, %v1464
  %v1467 = vmul.f32 %v1431, %v1464
  %v1468 = vmul.f32 %v1433, %v1464
  %v1469 = vmul.f32 %v1435, %v1464
  %v1470 = vmul.f32 %v1437, %v1464
  %v1471 = vmul.f32 %v1439, %v1464
  %v1472 = vmul.f32 %v1441, %v1464
  %v1473 = vmul.f32 %v1443, %v1464
  %v1474 = vmul.f32 %v1445, %v1464
  %v1475 = vmul.f32 %v1447, %v1464
  %v1476 = vmul.f32 %v1449, %v1464
  %v1477 = vmul.f32 %v1451, %v1464
  %v1478 = vmul.f32 %v1453, %v1464
  %v1479 = vmul.f32 %v1455, %v1464
  %v1480 = vmul.f32 %v1457, %v1464
  %v1481 = vmul.f32 %v1459, %v1464
  %v1483 = vlaneseq
  %v1484 = vshrl.u32 %v1483, 7
  %v1485 = vsub.s32 0, %v1484
  %v1486 = vrot.slane %v1138, %v1485
  %v1488 = vadd.f32 %v1466, %v1486
  %v1489 = vadd.f32 %v1467, %v1486
  %v1490 = vadd.f32 %v1468, %v1486
  %v1491 = vadd.f32 %v1469, %v1486
  %v1492 = vadd.f32 %v1470, %v1486
  %v1493 = vadd.f32 %v1471, %v1486
  %v1494 = vadd.f32 %v1472, %v1486
  %v1495 = vadd.f32 %v1473, %v1486
  %v1496 = vadd.f32 %v1474, %v1486
  %v1497 = vadd.f32 %v1475, %v1486
  %v1498 = vadd.f32 %v1476, %v1486
  %v1499 = vadd.f32 %v1477, %v1486
  %v1500 = vadd.f32 %v1478, %v1486
  %v1501 = vadd.f32 %v1479, %v1486
  %v1502 = vadd.f32 %v1480, %v1486
  %v1503 = vadd.f32 %v1481, %v1486
  %v1504 = vld [vmem:[%s5] sm:$0xff]
  %v1505 = vld [vmem:[%s5 + $0x8] sm:$0xff]
  %v1506 = vld [vmem:[%s5 + $0x10] sm:$0xff]
  %v1507 = vld [vmem:[%s5 + $0x18] sm:$0xff]
  %v1509 = vsel %vm653, %v1488, 0
  %v1512 = vsel %vm653, %v1489, 0
  %v1515 = vsel %vm653, %v1490, 0
  %v1518 = vsel %vm653, %v1491, 0
  %v1521 = vsel %vm653, %v1492, 0
  %v1524 = vsel %vm653, %v1493, 0
  %v1527 = vsel %vm653, %v1494, 0
  %v1530 = vsel %vm653, %v1495, 0
  %v1533 = vsel %vm653, %v1496, 0
  %v1536 = vsel %vm653, %v1497, 0
  %v1539 = vsel %vm653, %v1498, 0
  %v1542 = vsel %vm653, %v1499, 0
  %v1545 = vsel %vm653, %v1500, 0
  %v1548 = vsel %vm653, %v1501, 0
  %v1551 = vsel %vm653, %v1502, 0
  %v1554 = vsel %vm653, %v1503, 0
  %1556 = vmatprep.subr.mxu0 0.0
  %1557 = vmatpush1.msra.mxu0 %v1504
  %1558 = vmatprep.subr.mxu0 0.0
  %1559 = vmatpush1.msra.mxu0 %v1505
  %1560 = vmatprep.subr.mxu0 0.0
  %1561 = vmatpush1.msra.mxu0 %v1506
  %1562 = vmatprep.subr.mxu0 0.0
  %1563 = vmatpush1.msra.mxu0 %v1507
  %1564 = vmatprep.subr.mxu0 0.0
  %1565 = vmatpush1.msra.mxu0 0.0
  %1566 = vmatprep.subr.mxu0 0.0
  %1567 = vmatpush1.msra.mxu0 0.0
  %1568 = vmatprep.subr.mxu0 0.0
  %1569 = vmatpush1.msra.mxu0 0.0
  %1570 = vmatprep.subr.mxu0 0.0
  %1571 = vmatpush1.msra.mxu0 0.0
  %1572 = vmatprep.subr.mxu0 0.0
  %1573 = vmatpush1.msra.mxu0 0.0
  %1574 = vmatprep.subr.mxu0 0.0
  %1575 = vmatpush1.msra.mxu0 0.0
  %1576 = vmatprep.subr.mxu0 0.0
  %1577 = vmatpush1.msra.mxu0 0.0
  %1578 = vmatprep.subr.mxu0 0.0
  %1579 = vmatpush1.msra.mxu0 0.0
  %1580 = vmatprep.subr.mxu0 0.0
  %1581 = vmatpush1.msra.mxu0 0.0
  %1582 = vmatprep.subr.mxu0 0.0
  %1583 = vmatpush1.msra.mxu0 0.0
  %1584 = vmatprep.subr.mxu0 0.0
  %1585 = vmatpush1.msra.mxu0 0.0
  %1586 = vmatprep.subr.mxu0 0.0
  %1587 = vmatpush1.msra.mxu0 0.0
  %1588 = vmatprep.subr.mxu0 0.0
  %1589 = vmatpush1.msra.mxu0 0.0
  %1590 = vmatprep.subr.mxu0 0.0
  %1591 = vmatpush1.msra.mxu0 0.0
  %1592 = vmatprep.subr.mxu0 0.0
  %1593 = vmatpush1.msra.mxu0 0.0
  %1594 = vmatprep.subr.mxu0 0.0
  %1595 = vmatpush1.msra.mxu0 0.0
  %1596 = vmatprep.subr.mxu0 0.0
  %1597 = vmatpush1.msra.mxu0 0.0
  %1598 = vmatprep.subr.mxu0 0.0
  %1599 = vmatpush1.msra.mxu0 0.0
  %1600 = vmatprep.subr.mxu0 0.0
  %1601 = vmatpush1.msra.mxu0 0.0
  %1602 = vmatprep.subr.mxu0 0.0
  %1603 = vmatpush1.msra.mxu0 0.0
  %1604 = vmatprep.subr.mxu0 0.0
  %1605 = vmatpush1.msra.mxu0 0.0
  %1606 = vmatprep.subr.mxu0 0.0
  %1607 = vmatpush1.msra.mxu0 0.0
  %1608 = vmatprep.subr.mxu0 0.0
  %1609 = vmatpush1.msra.mxu0 0.0
  %1610 = vmatprep.subr.mxu0 0.0
  %1611 = vmatpush1.msra.mxu0 0.0
  %1612 = vmatprep.subr.mxu0 0.0
  %1613 = vmatpush1.msra.mxu0 0.0
  %1614 = vmatprep.subr.mxu0 0.0
  %1615 = vmatpush1.msra.mxu0 0.0
  %1616 = vmatprep.subr.mxu0 0.0
  %1617 = vmatpush1.msra.mxu0 0.0
  %1618 = vmatprep.subr.mxu0 0.0
  %1619 = vmatpush1.msra.mxu0 0.0
  %1620 = vmatprep.mubr.f32.mxu0 0.0
  %1621 = vmatmul.mubr.f32.gmra.mrb[0].mxu0 %v1509
  %v1622 = vpop.f32.mrb[0].mxu0
  %v1623 = vadd.f32 0.0, %v1622
  %v1624 = vpop.f32.mrb[0].mxu0
  %1625 = vmatprep.mubr.f32.mxu0 0.0
  %1626 = vmatmul.mubr.f32.gmra.mrb[0].mxu0 %v1512
  %v1627 = vpop.f32.mrb[0].mxu0
  %v1628 = vadd.f32 0.0, %v1627
  %v1629 = vpop.f32.mrb[0].mxu0
  %1630 = vmatprep.mubr.f32.mxu0 0.0
  %1631 = vmatmul.mubr.f32.gmra.mrb[0].mxu0 %v1515
  %v1632 = vpop.f32.mrb[0].mxu0
  %v1633 = vadd.f32 0.0, %v1632
  %v1634 = vpop.f32.mrb[0].mxu0
  %1635 = vmatprep.mubr.f32.mxu0 0.0
  %1636 = vmatmul.mubr.f32.gmra.mrb[0].mxu0 %v1518
  %v1637 = vpop.f32.mrb[0].mxu0
  %v1638 = vadd.f32 0.0, %v1637
  %v1639 = vpop.f32.mrb[0].mxu0
  %1640 = vmatprep.mubr.f32.mxu0 0.0
  %1641 = vmatmul.mubr.f32.gmra.mrb[0].mxu0 %v1521
  %v1642 = vpop.f32.mrb[0].mxu0
  %v1643 = vadd.f32 0.0, %v1642
  %v1644 = vpop.f32.mrb[0].mxu0
  %1645 = vmatprep.mubr.f32.mxu0 0.0
  %1646 = vmatmul.mubr.f32.gmra.mrb[0].mxu0 %v1524
  %v1647 = vpop.f32.mrb[0].mxu0
  %v1648 = vadd.f32 0.0, %v1647
  %v1649 = vpop.f32.mrb[0].mxu0
  %1650 = vmatprep.mubr.f32.mxu0 0.0
  %1651 = vmatmul.mubr.f32.gmra.mrb[0].mxu0 %v1527
  %v1652 = vpop.f32.mrb[0].mxu0
  %v1653 = vadd.f32 0.0, %v1652
  %v1654 = vpop.f32.mrb[0].mxu0
  %1655 = vmatprep.mubr.f32.mxu0 0.0
  %1656 = vmatmul.mubr.f32.gmra.mrb[0].mxu0 %v1530
  %v1657 = vpop.f32.mrb[0].mxu0
  %v1658 = vadd.f32 0.0, %v1657
  %v1659 = vpop.f32.mrb[0].mxu0
  %1660 = vmatprep.mubr.f32.mxu0 0.0
  %1661 = vmatmul.mubr.f32.gmra.mrb[0].mxu0 %v1533
  %v1662 = vpop.f32.mrb[0].mxu0
  %v1663 = vadd.f32 0.0, %v1662
  %v1664 = vpop.f32.mrb[0].mxu0
  %1665 = vmatprep.mubr.f32.mxu0 0.0
  %1666 = vmatmul.mubr.f32.gmra.mrb[0].mxu0 %v1536
  %v1667 = vpop.f32.mrb[0].mxu0
  %v1668 = vadd.f32 0.0, %v1667
  %v1669 = vpop.f32.mrb[0].mxu0
  %1670 = vmatprep.mubr.f32.mxu0 0.0
  %1671 = vmatmul.mubr.f32.gmra.mrb[0].mxu0 %v1539
  %v1672 = vpop.f32.mrb[0].mxu0
  %v1673 = vadd.f32 0.0, %v1672
  %v1674 = vpop.f32.mrb[0].mxu0
  %1675 = vmatprep.mubr.f32.mxu0 0.0
  %1676 = vmatmul.mubr.f32.gmra.mrb[0].mxu0 %v1542
  %v1677 = vpop.f32.mrb[0].mxu0
  %v1678 = vadd.f32 0.0, %v1677
  %v1679 = vpop.f32.mrb[0].mxu0
  %1680 = vmatprep.mubr.f32.mxu0 0.0
  %1681 = vmatmul.mubr.f32.gmra.mrb[0].mxu0 %v1545
  %v1682 = vpop.f32.mrb[0].mxu0
  %v1683 = vadd.f32 0.0, %v1682
  %v1684 = vpop.f32.mrb[0].mxu0
  %1685 = vmatprep.mubr.f32.mxu0 0.0
  %1686 = vmatmul.mubr.f32.gmra.mrb[0].mxu0 %v1548
  %v1687 = vpop.f32.mrb[0].mxu0
  %v1688 = vadd.f32 0.0, %v1687
  %v1689 = vpop.f32.mrb[0].mxu0
  %1690 = vmatprep.mubr.f32.mxu0 0.0
  %1691 = vmatmul.mubr.f32.gmra.mrb[0].mxu0 %v1551
  %v1692 = vpop.f32.mrb[0].mxu0
  %v1693 = vadd.f32 0.0, %v1692
  %v1694 = vpop.f32.mrb[0].mxu0
  %1695 = vmatprep.mubr.f32.mxu0 0.0
  %1696 = vmatmul.mubr.f32.gmra.mrb[0].mxu0 %v1554
  %v1697 = vpop.f32.mrb[0].mxu0
  %v1698 = vadd.f32 0.0, %v1697
  %v1699 = vpop.f32.mrb[0].mxu0
  %1700 = vdwg.mxu0
  %1709 = vrot.lane.b32.xlu0 %v1623, 96
  %v1710 = vpop.permute.xlu0 %1709
  %1711 = vrot.lane.b32.xlu0 %v1628, 96
  %v1712 = vpop.permute.xlu0 %1711
  %1713 = vrot.lane.b32.xlu0 %v1633, 96
  %v1714 = vpop.permute.xlu0 %1713
  %1715 = vrot.lane.b32.xlu0 %v1638, 96
  %v1716 = vpop.permute.xlu0 %1715
  %1717 = vrot.lane.b32.xlu0 %v1643, 96
  %v1718 = vpop.permute.xlu0 %1717
  %1719 = vrot.lane.b32.xlu0 %v1648, 96
  %v1720 = vpop.permute.xlu0 %1719
  %1721 = vrot.lane.b32.xlu0 %v1653, 96
  %v1722 = vpop.permute.xlu0 %1721
  %1723 = vrot.lane.b32.xlu0 %v1658, 96
  %v1724 = vpop.permute.xlu0 %1723
  %vm1725 = vcmask 130048
  %v1726 = vsel %vm1725, %v1623, 0
  %v1728 = vsel %vm1725, %v1628, 0
  %v1730 = vsel %vm1725, %v1633, 0
  %v1732 = vsel %vm1725, %v1638, 0
  %v1734 = vsel %vm1725, %v1643, 0
  %v1736 = vsel %vm1725, %v1648, 0
  %v1738 = vsel %vm1725, %v1653, 0
  %v1740 = vsel %vm1725, %v1658, 0
  %v1742 = vsel %vm1725, %v1710, 0
  %v1744 = vsel %vm1725, %v1712, 0
  %v1746 = vsel %vm1725, %v1714, 0
  %v1748 = vsel %vm1725, %v1716, 0
  %v1750 = vsel %vm1725, %v1718, 0
  %v1752 = vsel %vm1725, %v1720, 0
  %v1754 = vsel %vm1725, %v1722, 0
  %v1756 = vsel %vm1725, %v1724, 0
  %1758 = vmatprep.subr.mxu0 0.0
  %1759 = vmatpush1.xpose.msra.mxu0 %v1742
  %1760 = vmatprep.subr.mxu0 0.0
  %1761 = vmatpush1.xpose.msra.mxu0 %v1744
  %1762 = vmatprep.subr.mxu0 0.0
  %1763 = vmatpush1.xpose.msra.mxu0 %v1746
  %1764 = vmatprep.subr.mxu0 0.0
  %1765 = vmatpush1.xpose.msra.mxu0 %v1748
  %1766 = vmatprep.subr.mxu0 0.0
  %1767 = vmatpush1.xpose.msra.mxu0 %v1750
  %1768 = vmatprep.subr.mxu0 0.0
  %1769 = vmatpush1.xpose.msra.mxu0 %v1752
  %1770 = vmatprep.subr.mxu0 0.0
  %1771 = vmatpush1.xpose.msra.mxu0 %v1754
  %1772 = vmatprep.subr.mxu0 0.0
  %1773 = vmatpush1.xpose.msra.mxu0 %v1756
  %1774 = vmatprep.subr.mxu0 0.0
  %1775 = vmatpush1.xpose.msra.mxu0 0.0
  %1776 = vmatprep.subr.mxu0 0.0
  %1777 = vmatpush1.xpose.msra.mxu0 0.0
  %1778 = vmatprep.subr.mxu0 0.0
  %1779 = vmatpush1.xpose.msra.mxu0 0.0
  %1780 = vmatprep.subr.mxu0 0.0
  %1781 = vmatpush1.xpose.msra.mxu0 0.0
  %1782 = vmatprep.subr.mxu0 0.0
  %1783 = vmatpush1.xpose.msra.mxu0 0.0
  %1784 = vmatprep.subr.mxu0 0.0
  %1785 = vmatpush1.xpose.msra.mxu0 0.0
  %1786 = vmatprep.subr.mxu0 0.0
  %1787 = vmatpush1.xpose.msra.mxu0 0.0
  %1788 = vmatprep.subr.mxu0 0.0
  %1789 = vmatpush1.xpose.msra.mxu0 0.0
  %1790 = vmatprep.subr.mxu0 0.0
  %1791 = vmatpush1.xpose.msra.mxu0 0.0
  %1792 = vmatprep.subr.mxu0 0.0
  %1793 = vmatpush1.xpose.msra.mxu0 0.0
  %1794 = vmatprep.subr.mxu0 0.0
  %1795 = vmatpush1.xpose.msra.mxu0 0.0
  %1796 = vmatprep.subr.mxu0 0.0
  %1797 = vmatpush1.xpose.msra.mxu0 0.0
  %1798 = vmatprep.subr.mxu0 0.0
  %1799 = vmatpush1.xpose.msra.mxu0 0.0
  %1800 = vmatprep.subr.mxu0 0.0
  %1801 = vmatpush1.xpose.msra.mxu0 0.0
  %1802 = vmatprep.subr.mxu0 0.0
  %1803 = vmatpush1.xpose.msra.mxu0 0.0
  %1804 = vmatprep.subr.mxu0 0.0
  %1805 = vmatpush1.xpose.msra.mxu0 0.0
  %1806 = vmatprep.subr.mxu0 0.0
  %1807 = vmatpush1.xpose.msra.mxu0 0.0
  %1808 = vmatprep.subr.mxu0 0.0
  %1809 = vmatpush1.xpose.msra.mxu0 0.0
  %1810 = vmatprep.subr.mxu0 0.0
  %1811 = vmatpush1.xpose.msra.mxu0 0.0
  %1812 = vmatprep.subr.mxu0 0.0
  %1813 = vmatpush1.xpose.msra.mxu0 0.0
  %1814 = vmatprep.subr.mxu0 0.0
  %1815 = vmatpush1.xpose.msra.mxu0 0.0
  %1816 = vmatprep.subr.mxu0 0.0
  %1817 = vmatpush1.xpose.msra.mxu0 0.0
  %1818 = vmatprep.subr.mxu0 0.0
  %1819 = vmatpush1.xpose.msra.mxu0 0.0
  %1820 = vmatprep.subr.mxu0 0.0
  %1821 = vmatpush1.xpose.msra.mxu0 0.0
  %1822 = vmatprep.mubr.f32.mxu0 0.0
  %1823 = vmatmul.mubr.f32.gmra.mrb[0].mxu0 %v1726
  %v1824 = vpop.f32.mrb[0].mxu0
  %v1825 = vadd.f32 0.0, %v1824
  %v1826 = vpop.f32.mrb[0].mxu0
  %1827 = vmatprep.mubr.f32.mxu0 0.0
  %1828 = vmatmul.mubr.f32.gmra.mrb[0].mxu0 %v1728
  %v1829 = vpop.f32.mrb[0].mxu0
  %v1830 = vadd.f32 0.0, %v1829
  %v1831 = vpop.f32.mrb[0].mxu0
  %1832 = vmatprep.mubr.f32.mxu0 0.0
  %1833 = vmatmul.mubr.f32.gmra.mrb[0].mxu0 %v1730
  %v1834 = vpop.f32.mrb[0].mxu0
  %v1835 = vadd.f32 0.0, %v1834
  %v1836 = vpop.f32.mrb[0].mxu0
  %1837 = vmatprep.mubr.f32.mxu0 0.0
  %1838 = vmatmul.mubr.f32.gmra.mrb[0].mxu0 %v1732
  %v1839 = vpop.f32.mrb[0].mxu0
  %v1840 = vadd.f32 0.0, %v1839
  %v1841 = vpop.f32.mrb[0].mxu0
  %1842 = vmatprep.mubr.f32.mxu0 0.0
  %1843 = vmatmul.mubr.f32.gmra.mrb[0].mxu0 %v1734
  %v1844 = vpop.f32.mrb[0].mxu0
  %v1845 = vadd.f32 0.0, %v1844
  %v1846 = vpop.f32.mrb[0].mxu0
  %1847 = vmatprep.mubr.f32.mxu0 0.0
  %1848 = vmatmul.mubr.f32.gmra.mrb[0].mxu0 %v1736
  %v1849 = vpop.f32.mrb[0].mxu0
  %v1850 = vadd.f32 0.0, %v1849
  %v1851 = vpop.f32.mrb[0].mxu0
  %1852 = vmatprep.mubr.f32.mxu0 0.0
  %1853 = vmatmul.mubr.f32.gmra.mrb[0].mxu0 %v1738
  %v1854 = vpop.f32.mrb[0].mxu0
  %v1855 = vadd.f32 0.0, %v1854
  %v1856 = vpop.f32.mrb[0].mxu0
  %1857 = vmatprep.mubr.f32.mxu0 0.0
  %1858 = vmatmul.mubr.f32.gmra.mrb[0].mxu0 %v1740
  %v1859 = vpop.f32.mrb[0].mxu0
  %v1860 = vadd.f32 0.0, %v1859
  %v1861 = vpop.f32.mrb[0].mxu0
  %1862 = vdwg.mxu0
  %1871 = vrot.lane.b32.xlu0 %v1663, 96
  %v1872 = vpop.permute.xlu0 %1871
  %1873 = vrot.lane.b32.xlu0 %v1668, 96
  %v1874 = vpop.permute.xlu0 %1873
  %1875 = vrot.lane.b32.xlu0 %v1673, 96
  %v1876 = vpop.permute.xlu0 %1875
  %1877 = vrot.lane.b32.xlu0 %v1678, 96
  %v1878 = vpop.permute.xlu0 %1877
  %1879 = vrot.lane.b32.xlu0 %v1683, 96
  %v1880 = vpop.permute.xlu0 %1879
  %1881 = vrot.lane.b32.xlu0 %v1688, 96
  %v1882 = vpop.permute.xlu0 %1881
  %1883 = vrot.lane.b32.xlu0 %v1693, 96
  %v1884 = vpop.permute.xlu0 %1883
  %1885 = vrot.lane.b32.xlu0 %v1698, 96
  %v1886 = vpop.permute.xlu0 %1885
  %v1887 = vsel %vm1725, %v1663, 0
  %v1889 = vsel %vm1725, %v1668, 0
  %v1891 = vsel %vm1725, %v1673, 0
  %v1893 = vsel %vm1725, %v1678, 0
  %v1895 = vsel %vm1725, %v1683, 0
  %v1897 = vsel %vm1725, %v1688, 0
  %v1899 = vsel %vm1725, %v1693, 0
  %v1901 = vsel %vm1725, %v1698, 0
  %v1903 = vsel %vm1725, %v1872, 0
  %v1905 = vsel %vm1725, %v1874, 0
  %v1907 = vsel %vm1725, %v1876, 0
  %v1909 = vsel %vm1725, %v1878, 0
  %v1911 = vsel %vm1725, %v1880, 0
  %v1913 = vsel %vm1725, %v1882, 0
  %v1915 = vsel %vm1725, %v1884, 0
  %v1917 = vsel %vm1725, %v1886, 0
  %1919 = vmatprep.subr.mxu0 0.0
  %1920 = vmatpush1.xpose.msra.mxu0 %v1903
  %1921 = vmatprep.subr.mxu0 0.0
  %1922 = vmatpush1.xpose.msra.mxu0 %v1905
  %1923 = vmatprep.subr.mxu0 0.0
  %1924 = vmatpush1.xpose.msra.mxu0 %v1907
  %1925 = vmatprep.subr.mxu0 0.0
  %1926 = vmatpush1.xpose.msra.mxu0 %v1909
  %1927 = vmatprep.subr.mxu0 0.0
  %1928 = vmatpush1.xpose.msra.mxu0 %v1911
  %1929 = vmatprep.subr.mxu0 0.0
  %1930 = vmatpush1.xpose.msra.mxu0 %v1913
  %1931 = vmatprep.subr.mxu0 0.0
  %1932 = vmatpush1.xpose.msra.mxu0 %v1915
  %1933 = vmatprep.subr.mxu0 0.0
  %1934 = vmatpush1.xpose.msra.mxu0 %v1917
  %1935 = vmatprep.subr.mxu0 0.0
  %1936 = vmatpush1.xpose.msra.mxu0 0.0
  %1937 = vmatprep.subr.mxu0 0.0
  %1938 = vmatpush1.xpose.msra.mxu0 0.0
  %1939 = vmatprep.subr.mxu0 0.0
  %1940 = vmatpush1.xpose.msra.mxu0 0.0
  %1941 = vmatprep.subr.mxu0 0.0
  %1942 = vmatpush1.xpose.msra.mxu0 0.0
  %1943 = vmatprep.subr.mxu0 0.0
  %1944 = vmatpush1.xpose.msra.mxu0 0.0
  %1945 = vmatprep.subr.mxu0 0.0
  %1946 = vmatpush1.xpose.msra.mxu0 0.0
  %1947 = vmatprep.subr.mxu0 0.0
  %1948 = vmatpush1.xpose.msra.mxu0 0.0
  %1949 = vmatprep.subr.mxu0 0.0
  %1950 = vmatpush1.xpose.msra.mxu0 0.0
  %1951 = vmatprep.subr.mxu0 0.0
  %1952 = vmatpush1.xpose.msra.mxu0 0.0
  %1953 = vmatprep.subr.mxu0 0.0
  %1954 = vmatpush1.xpose.msra.mxu0 0.0
  %1955 = vmatprep.subr.mxu0 0.0
  %1956 = vmatpush1.xpose.msra.mxu0 0.0
  %1957 = vmatprep.subr.mxu0 0.0
  %1958 = vmatpush1.xpose.msra.mxu0 0.0
  %1959 = vmatprep.subr.mxu0 0.0
  %1960 = vmatpush1.xpose.msra.mxu0 0.0
  %1961 = vmatprep.subr.mxu0 0.0
  %1962 = vmatpush1.xpose.msra.mxu0 0.0
  %1963 = vmatprep.subr.mxu0 0.0
  %1964 = vmatpush1.xpose.msra.mxu0 0.0
  %1965 = vmatprep.subr.mxu0 0.0
  %1966 = vmatpush1.xpose.msra.mxu0 0.0
  %1967 = vmatprep.subr.mxu0 0.0
  %1968 = vmatpush1.xpose.msra.mxu0 0.0
  %1969 = vmatprep.subr.mxu0 0.0
  %1970 = vmatpush1.xpose.msra.mxu0 0.0
  %1971 = vmatprep.subr.mxu0 0.0
  %1972 = vmatpush1.xpose.msra.mxu0 0.0
  %1973 = vmatprep.subr.mxu0 0.0
  %1974 = vmatpush1.xpose.msra.mxu0 0.0
  %1975 = vmatprep.subr.mxu0 0.0
  %1976 = vmatpush1.xpose.msra.mxu0 0.0
  %1977 = vmatprep.subr.mxu0 0.0
  %1978 = vmatpush1.xpose.msra.mxu0 0.0
  %1979 = vmatprep.subr.mxu0 0.0
  %1980 = vmatpush1.xpose.msra.mxu0 0.0
  %1981 = vmatprep.subr.mxu0 0.0
  %1982 = vmatpush1.xpose.msra.mxu0 0.0
  %1983 = vmatprep.mubr.f32.mxu0 0.0
  %1984 = vmatmul.mubr.f32.gmra.mrb[0].mxu0 %v1887
  %v1985 = vpop.f32.mrb[0].mxu0
  %v1986 = vadd.f32 0.0, %v1985
  %v1987 = vpop.f32.mrb[0].mxu0
  %1988 = vmatprep.mubr.f32.mxu0 0.0
  %1989 = vmatmul.mubr.f32.gmra.mrb[0].mxu0 %v1889
  %v1990 = vpop.f32.mrb[0].mxu0
  %v1991 = vadd.f32 0.0, %v1990
  %v1992 = vpop.f32.mrb[0].mxu0
  %1993 = vmatprep.mubr.f32.mxu0 0.0
  %1994 = vmatmul.mubr.f32.gmra.mrb[0].mxu0 %v1891
  %v1995 = vpop.f32.mrb[0].mxu0
  %v1996 = vadd.f32 0.0, %v1995
  %v1997 = vpop.f32.mrb[0].mxu0
  %1998 = vmatprep.mubr.f32.mxu0 0.0
  %1999 = vmatmul.mubr.f32.gmra.mrb[0].mxu0 %v1893
  %v2000 = vpop.f32.mrb[0].mxu0
  %v2001 = vadd.f32 0.0, %v2000
  %v2002 = vpop.f32.mrb[0].mxu0
  %2003 = vmatprep.mubr.f32.mxu0 0.0
  %2004 = vmatmul.mubr.f32.gmra.mrb[0].mxu0 %v1895
  %v2005 = vpop.f32.mrb[0].mxu0
  %v2006 = vadd.f32 0.0, %v2005
  %v2007 = vpop.f32.mrb[0].mxu0
  %2008 = vmatprep.mubr.f32.mxu0 0.0
  %2009 = vmatmul.mubr.f32.gmra.mrb[0].mxu0 %v1897
  %v2010 = vpop.f32.mrb[0].mxu0
  %v2011 = vadd.f32 0.0, %v2010
  %v2012 = vpop.f32.mrb[0].mxu0
  %2013 = vmatprep.mubr.f32.mxu0 0.0
  %2014 = vmatmul.mubr.f32.gmra.mrb[0].mxu0 %v1899
  %v2015 = vpop.f32.mrb[0].mxu0
  %v2016 = vadd.f32 0.0, %v2015
  %v2017 = vpop.f32.mrb[0].mxu0
  %2018 = vmatprep.mubr.f32.mxu0 0.0
  %2019 = vmatmul.mubr.f32.gmra.mrb[0].mxu0 %v1901
  %v2020 = vpop.f32.mrb[0].mxu0
  %v2021 = vadd.f32 0.0, %v2020
  %v2022 = vpop.f32.mrb[0].mxu0
  %2023 = vdwg.mxu0
  %v2024 = vsel %vm670, %v1825, -inf
  %2025 = vmax.xlane.f32.xlu0 %v2024
  %v2026 = vpop.xlane.xlu0 %2025
  %v2027 = vsel %vm670, %v1830, -inf
  %2028 = vmax.xlane.f32.xlu0 %v2027
  %v2029 = vpop.xlane.xlu0 %2028
  %v2030 = vsel %vm670, %v1835, -inf
  %2031 = vmax.xlane.f32.xlu0 %v2030
  %v2032 = vpop.xlane.xlu0 %2031
  %v2033 = vsel %vm670, %v1840, -inf
  %2034 = vmax.xlane.f32.xlu0 %v2033
  %v2035 = vpop.xlane.xlu0 %2034
  %v2036 = vsel %vm670, %v1845, -inf
  %2037 = vmax.xlane.f32.xlu0 %v2036
  %v2038 = vpop.xlane.xlu0 %2037
  %v2039 = vsel %vm670, %v1850, -inf
  %2040 = vmax.xlane.f32.xlu0 %v2039
  %v2041 = vpop.xlane.xlu0 %2040
  %v2042 = vsel %vm670, %v1855, -inf
  %2043 = vmax.xlane.f32.xlu0 %v2042
  %v2044 = vpop.xlane.xlu0 %2043
  %v2045 = vsel %vm670, %v1860, -inf
  %2046 = vmax.xlane.f32.xlu0 %v2045
  %v2047 = vpop.xlane.xlu0 %2046
  %v2048 = vsel %vm670, %v1986, -inf
  %2049 = vmax.xlane.f32.xlu0 %v2048
  %v2050 = vpop.xlane.xlu0 %2049
  %v2051 = vsel %vm670, %v1991, -inf
  %2052 = vmax.xlane.f32.xlu0 %v2051
  %v2053 = vpop.xlane.xlu0 %2052
  %v2054 = vsel %vm670, %v1996, -inf
  %2055 = vmax.xlane.f32.xlu0 %v2054
  %v2056 = vpop.xlane.xlu0 %2055
  %v2057 = vsel %vm670, %v2001, -inf
  %2058 = vmax.xlane.f32.xlu0 %v2057
  %v2059 = vpop.xlane.xlu0 %2058
  %v2060 = vsel %vm670, %v2006, -inf
  %2061 = vmax.xlane.f32.xlu0 %v2060
  %v2062 = vpop.xlane.xlu0 %2061
  %v2063 = vsel %vm670, %v2011, -inf
  %2064 = vmax.xlane.f32.xlu0 %v2063
  %v2065 = vpop.xlane.xlu0 %2064
  %v2066 = vsel %vm670, %v2016, -inf
  %2067 = vmax.xlane.f32.xlu0 %v2066
  %v2068 = vpop.xlane.xlu0 %2067
  %v2069 = vsel %vm670, %v2021, -inf
  %2070 = vmax.xlane.f32.xlu0 %v2069
  %v2071 = vpop.xlane.xlu0 %2070
  %v2072 = vsub.f32 %v1825, %v2026
  %v2073 = vsub.f32 %v1830, %v2029
  %v2074 = vsub.f32 %v1835, %v2032
  %v2075 = vsub.f32 %v1840, %v2035
  %v2076 = vsub.f32 %v1845, %v2038
  %v2077 = vsub.f32 %v1850, %v2041
  %v2078 = vsub.f32 %v1855, %v2044
  %v2079 = vsub.f32 %v1860, %v2047
  %v2080 = vsub.f32 %v1986, %v2050
  %v2081 = vsub.f32 %v1991, %v2053
  %v2082 = vsub.f32 %v1996, %v2056
  %v2083 = vsub.f32 %v2001, %v2059
  %v2084 = vsub.f32 %v2006, %v2062
  %v2085 = vsub.f32 %v2011, %v2065
  %v2086 = vsub.f32 %v2016, %v2068
  %v2087 = vsub.f32 %v2021, %v2071
  %v2088 = vmul.f32 %v2072, 1.442695
  %v2089 = vpow.pop %v2088
  %v2090 = vmul.f32 %v2073, 1.442695
  %v2091 = vpow.pop %v2090
  %v2092 = vmul.f32 %v2074, 1.442695
  %v2093 = vpow.pop %v2092
  %v2094 = vmul.f32 %v2075, 1.442695
  %v2095 = vpow.pop %v2094
  %v2096 = vmul.f32 %v2076, 1.442695
  %v2097 = vpow.pop %v2096
  %v2098 = vmul.f32 %v2077, 1.442695
  %v2099 = vpow.pop %v2098
  %v2100 = vmul.f32 %v2078, 1.442695
  %v2101 = vpow.pop %v2100
  %v2102 = vmul.f32 %v2079, 1.442695
  %v2103 = vpow.pop %v2102
  %v2104 = vmul.f32 %v2080, 1.442695
  %v2105 = vpow.pop %v2104
  %v2106 = vmul.f32 %v2081, 1.442695
  %v2107 = vpow.pop %v2106
  %v2108 = vmul.f32 %v2082, 1.442695
  %v2109 = vpow.pop %v2108
  %v2110 = vmul.f32 %v2083, 1.442695
  %v2111 = vpow.pop %v2110
  %v2112 = vmul.f32 %v2084, 1.442695
  %v2113 = vpow.pop %v2112
  %v2114 = vmul.f32 %v2085, 1.442695
  %v2115 = vpow.pop %v2114
  %v2116 = vmul.f32 %v2086, 1.442695
  %v2117 = vpow.pop %v2116
  %v2118 = vmul.f32 %v2087, 1.442695
  %v2119 = vpow.pop %v2118
  %2120 = vrot.lane.b32.xlu0 %v1623, 64
  %v2121 = vpop.permute.xlu0 %2120
  %2122 = vrot.lane.b32.xlu0 %v1628, 64
  %v2123 = vpop.permute.xlu0 %2122
  %2124 = vrot.lane.b32.xlu0 %v1633, 64
  %v2125 = vpop.permute.xlu0 %2124
  %2126 = vrot.lane.b32.xlu0 %v1638, 64
  %v2127 = vpop.permute.xlu0 %2126
  %2128 = vrot.lane.b32.xlu0 %v1643, 64
  %v2129 = vpop.permute.xlu0 %2128
  %2130 = vrot.lane.b32.xlu0 %v1648, 64
  %v2131 = vpop.permute.xlu0 %2130
  %2132 = vrot.lane.b32.xlu0 %v1653, 64
  %v2133 = vpop.permute.xlu0 %2132
  %2134 = vrot.lane.b32.xlu0 %v1658, 64
  %v2135 = vpop.permute.xlu0 %2134
  %v2145 = vsel %vm670, %v2089, 0
  %v2148 = vsel %vm670, %v2091, 0
  %v2151 = vsel %vm670, %v2093, 0
  %v2154 = vsel %vm670, %v2095, 0
  %v2157 = vsel %vm670, %v2097, 0
  %v2160 = vsel %vm670, %v2099, 0
  %v2163 = vsel %vm670, %v2101, 0
  %v2166 = vsel %vm670, %v2103, 0
  %2168 = vmatprep.subr.mxu0 0.0
  %2169 = vmatpush1.msra.mxu0 %v2121
  %2170 = vmatprep.subr.mxu0 0.0
  %2171 = vmatpush1.msra.mxu0 %v2123
  %2172 = vmatprep.subr.mxu0 0.0
  %2173 = vmatpush1.msra.mxu0 %v2125
  %2174 = vmatprep.subr.mxu0 0.0
  %2175 = vmatpush1.msra.mxu0 %v2127
  %2176 = vmatprep.subr.mxu0 0.0
  %2177 = vmatpush1.msra.mxu0 %v2129
  %2178 = vmatprep.subr.mxu0 0.0
  %2179 = vmatpush1.msra.mxu0 %v2131
  %2180 = vmatprep.subr.mxu0 0.0
  %2181 = vmatpush1.msra.mxu0 %v2133
  %2182 = vmatprep.subr.mxu0 0.0
  %2183 = vmatpush1.msra.mxu0 %v2135
  %2184 = vmatprep.subr.mxu0 0.0
  %2185 = vmatpush1.msra.mxu0 0.0
  %2186 = vmatprep.subr.mxu0 0.0
  %2187 = vmatpush1.msra.mxu0 0.0
  %2188 = vmatprep.subr.mxu0 0.0
  %2189 = vmatpush1.msra.mxu0 0.0
  %2190 = vmatprep.subr.mxu0 0.0
  %2191 = vmatpush1.msra.mxu0 0.0
  %2192 = vmatprep.subr.mxu0 0.0
  %2193 = vmatpush1.msra.mxu0 0.0
  %2194 = vmatprep.subr.mxu0 0.0
  %2195 = vmatpush1.msra.mxu0 0.0
  %2196 = vmatprep.subr.mxu0 0.0
  %2197 = vmatpush1.msra.mxu0 0.0
  %2198 = vmatprep.subr.mxu0 0.0
  %2199 = vmatpush1.msra.mxu0 0.0
  %2200 = vmatprep.subr.mxu0 0.0
  %2201 = vmatpush1.msra.mxu0 0.0
  %2202 = vmatprep.subr.mxu0 0.0
  %2203 = vmatpush1.msra.mxu0 0.0
  %2204 = vmatprep.subr.mxu0 0.0
  %2205 = vmatpush1.msra.mxu0 0.0
  %2206 = vmatprep.subr.mxu0 0.0
  %2207 = vmatpush1.msra.mxu0 0.0
  %2208 = vmatprep.subr.mxu0 0.0
  %2209 = vmatpush1.msra.mxu0 0.0
  %2210 = vmatprep.subr.mxu0 0.0
  %2211 = vmatpush1.msra.mxu0 0.0
  %2212 = vmatprep.subr.mxu0 0.0
  %2213 = vmatpush1.msra.mxu0 0.0
  %2214 = vmatprep.subr.mxu0 0.0
  %2215 = vmatpush1.msra.mxu0 0.0
  %2216 = vmatprep.subr.mxu0 0.0
  %2217 = vmatpush1.msra.mxu0 0.0
  %2218 = vmatprep.subr.mxu0 0.0
  %2219 = vmatpush1.msra.mxu0 0.0
  %2220 = vmatprep.subr.mxu0 0.0
  %2221 = vmatpush1.msra.mxu0 0.0
  %2222 = vmatprep.subr.mxu0 0.0
  %2223 = vmatpush1.msra.mxu0 0.0
  %2224 = vmatprep.subr.mxu0 0.0
  %2225 = vmatpush1.msra.mxu0 0.0
  %2226 = vmatprep.subr.mxu0 0.0
  %2227 = vmatpush1.msra.mxu0 0.0
  %2228 = vmatprep.subr.mxu0 0.0
  %2229 = vmatpush1.msra.mxu0 0.0
  %2230 = vmatprep.subr.mxu0 0.0
  %2231 = vmatpush1.msra.mxu0 0.0
  %2232 = vmatprep.mubr.f32.mxu0 0.0
  %2233 = vmatmul.mubr.f32.gmra.mrb[0].mxu0 %v2145
  %v2234 = vpop.f32.mrb[0].mxu0
  %v2235 = vadd.f32 0.0, %v2234
  %v2236 = vpop.f32.mrb[0].mxu0
  %2237 = vmatprep.mubr.f32.mxu0 0.0
  %2238 = vmatmul.mubr.f32.gmra.mrb[0].mxu0 %v2148
  %v2239 = vpop.f32.mrb[0].mxu0
  %v2240 = vadd.f32 0.0, %v2239
  %v2241 = vpop.f32.mrb[0].mxu0
  %2242 = vmatprep.mubr.f32.mxu0 0.0
  %2243 = vmatmul.mubr.f32.gmra.mrb[0].mxu0 %v2151
  %v2244 = vpop.f32.mrb[0].mxu0
  %v2245 = vadd.f32 0.0, %v2244
  %v2246 = vpop.f32.mrb[0].mxu0
  %2247 = vmatprep.mubr.f32.mxu0 0.0
  %2248 = vmatmul.mubr.f32.gmra.mrb[0].mxu0 %v2154
  %v2249 = vpop.f32.mrb[0].mxu0
  %v2250 = vadd.f32 0.0, %v2249
  %v2251 = vpop.f32.mrb[0].mxu0
  %2252 = vmatprep.mubr.f32.mxu0 0.0
  %2253 = vmatmul.mubr.f32.gmra.mrb[0].mxu0 %v2157
  %v2254 = vpop.f32.mrb[0].mxu0
  %v2255 = vadd.f32 0.0, %v2254
  %v2256 = vpop.f32.mrb[0].mxu0
  %2257 = vmatprep.mubr.f32.mxu0 0.0
  %2258 = vmatmul.mubr.f32.gmra.mrb[0].mxu0 %v2160
  %v2259 = vpop.f32.mrb[0].mxu0
  %v2260 = vadd.f32 0.0, %v2259
  %v2261 = vpop.f32.mrb[0].mxu0
  %2262 = vmatprep.mubr.f32.mxu0 0.0
  %2263 = vmatmul.mubr.f32.gmra.mrb[0].mxu0 %v2163
  %v2264 = vpop.f32.mrb[0].mxu0
  %v2265 = vadd.f32 0.0, %v2264
  %v2266 = vpop.f32.mrb[0].mxu0
  %2267 = vmatprep.mubr.f32.mxu0 0.0
  %2268 = vmatmul.mubr.f32.gmra.mrb[0].mxu0 %v2166
  %v2269 = vpop.f32.mrb[0].mxu0
  %v2270 = vadd.f32 0.0, %v2269
  %v2271 = vpop.f32.mrb[0].mxu0
  %2272 = vdwg.mxu0
  %2273 = vrot.lane.b32.xlu0 %v1663, 64
  %v2274 = vpop.permute.xlu0 %2273
  %2275 = vrot.lane.b32.xlu0 %v1668, 64
  %v2276 = vpop.permute.xlu0 %2275
  %2277 = vrot.lane.b32.xlu0 %v1673, 64
  %v2278 = vpop.permute.xlu0 %2277
  %2279 = vrot.lane.b32.xlu0 %v1678, 64
  %v2280 = vpop.permute.xlu0 %2279
  %2281 = vrot.lane.b32.xlu0 %v1683, 64
  %v2282 = vpop.permute.xlu0 %2281
  %2283 = vrot.lane.b32.xlu0 %v1688, 64
  %v2284 = vpop.permute.xlu0 %2283
  %2285 = vrot.lane.b32.xlu0 %v1693, 64
  %v2286 = vpop.permute.xlu0 %2285
  %2287 = vrot.lane.b32.xlu0 %v1698, 64
  %v2288 = vpop.permute.xlu0 %2287
  %v2298 = vsel %vm670, %v2105, 0
  %v2301 = vsel %vm670, %v2107, 0
  %v2304 = vsel %vm670, %v2109, 0
  %v2307 = vsel %vm670, %v2111, 0
  %v2310 = vsel %vm670, %v2113, 0
  %v2313 = vsel %vm670, %v2115, 0
  %v2316 = vsel %vm670, %v2117, 0
  %v2319 = vsel %vm670, %v2119, 0
  %2321 = vmatprep.subr.mxu0 0.0
  %2322 = vmatpush1.msra.mxu0 %v2274
  %2323 = vmatprep.subr.mxu0 0.0
  %2324 = vmatpush1.msra.mxu0 %v2276
  %2325 = vmatprep.subr.mxu0 0.0
  %2326 = vmatpush1.msra.mxu0 %v2278
  %2327 = vmatprep.subr.mxu0 0.0
  %2328 = vmatpush1.msra.mxu0 %v2280
  %2329 = vmatprep.subr.mxu0 0.0
  %2330 = vmatpush1.msra.mxu0 %v2282
  %2331 = vmatprep.subr.mxu0 0.0
  %2332 = vmatpush1.msra.mxu0 %v2284
  %2333 = vmatprep.subr.mxu0 0.0
  %2334 = vmatpush1.msra.mxu0 %v2286
  %2335 = vmatprep.subr.mxu0 0.0
  %2336 = vmatpush1.msra.mxu0 %v2288
  %2337 = vmatprep.subr.mxu0 0.0
  %2338 = vmatpush1.msra.mxu0 0.0
  %2339 = vmatprep.subr.mxu0 0.0
  %2340 = vmatpush1.msra.mxu0 0.0
  %2341 = vmatprep.subr.mxu0 0.0
  %2342 = vmatpush1.msra.mxu0 0.0
  %2343 = vmatprep.subr.mxu0 0.0
  %2344 = vmatpush1.msra.mxu0 0.0
  %2345 = vmatprep.subr.mxu0 0.0
  %2346 = vmatpush1.msra.mxu0 0.0
  %2347 = vmatprep.subr.mxu0 0.0
  %2348 = vmatpush1.msra.mxu0 0.0
  %2349 = vmatprep.subr.mxu0 0.0
  %2350 = vmatpush1.msra.mxu0 0.0
  %2351 = vmatprep.subr.mxu0 0.0
  %2352 = vmatpush1.msra.mxu0 0.0
  %2353 = vmatprep.subr.mxu0 0.0
  %2354 = vmatpush1.msra.mxu0 0.0
  %2355 = vmatprep.subr.mxu0 0.0
  %2356 = vmatpush1.msra.mxu0 0.0
  %2357 = vmatprep.subr.mxu0 0.0
  %2358 = vmatpush1.msra.mxu0 0.0
  %2359 = vmatprep.subr.mxu0 0.0
  %2360 = vmatpush1.msra.mxu0 0.0
  %2361 = vmatprep.subr.mxu0 0.0
  %2362 = vmatpush1.msra.mxu0 0.0
  %2363 = vmatprep.subr.mxu0 0.0
  %2364 = vmatpush1.msra.mxu0 0.0
  %2365 = vmatprep.subr.mxu0 0.0
  %2366 = vmatpush1.msra.mxu0 0.0
  %2367 = vmatprep.subr.mxu0 0.0
  %2368 = vmatpush1.msra.mxu0 0.0
  %2369 = vmatprep.subr.mxu0 0.0
  %2370 = vmatpush1.msra.mxu0 0.0
  %2371 = vmatprep.subr.mxu0 0.0
  %2372 = vmatpush1.msra.mxu0 0.0
  %2373 = vmatprep.subr.mxu0 0.0
  %2374 = vmatpush1.msra.mxu0 0.0
  %2375 = vmatprep.subr.mxu0 0.0
  %2376 = vmatpush1.msra.mxu0 0.0
  %2377 = vmatprep.subr.mxu0 0.0
  %2378 = vmatpush1.msra.mxu0 0.0
  %2379 = vmatprep.subr.mxu0 0.0
  %2380 = vmatpush1.msra.mxu0 0.0
  %2381 = vmatprep.subr.mxu0 0.0
  %2382 = vmatpush1.msra.mxu0 0.0
  %2383 = vmatprep.subr.mxu0 0.0
  %2384 = vmatpush1.msra.mxu0 0.0
  %2385 = vmatprep.mubr.f32.mxu0 0.0
  %2386 = vmatmul.mubr.f32.gmra.mrb[0].mxu0 %v2298
  %v2387 = vpop.f32.mrb[0].mxu0
  %v2388 = vadd.f32 0.0, %v2387
  %v2389 = vpop.f32.mrb[0].mxu0
  %2390 = vmatprep.mubr.f32.mxu0 0.0
  %2391 = vmatmul.mubr.f32.gmra.mrb[0].mxu0 %v2301
  %v2392 = vpop.f32.mrb[0].mxu0
  %v2393 = vadd.f32 0.0, %v2392
  %v2394 = vpop.f32.mrb[0].mxu0
  %2395 = vmatprep.mubr.f32.mxu0 0.0
  %2396 = vmatmul.mubr.f32.gmra.mrb[0].mxu0 %v2304
  %v2397 = vpop.f32.mrb[0].mxu0
  %v2398 = vadd.f32 0.0, %v2397
  %v2399 = vpop.f32.mrb[0].mxu0
  %2400 = vmatprep.mubr.f32.mxu0 0.0
  %2401 = vmatmul.mubr.f32.gmra.mrb[0].mxu0 %v2307
  %v2402 = vpop.f32.mrb[0].mxu0
  %v2403 = vadd.f32 0.0, %v2402
  %v2404 = vpop.f32.mrb[0].mxu0
  %2405 = vmatprep.mubr.f32.mxu0 0.0
  %2406 = vmatmul.mubr.f32.gmra.mrb[0].mxu0 %v2310
  %v2407 = vpop.f32.mrb[0].mxu0
  %v2408 = vadd.f32 0.0, %v2407
  %v2409 = vpop.f32.mrb[0].mxu0
  %2410 = vmatprep.mubr.f32.mxu0 0.0
  %2411 = vmatmul.mubr.f32.gmra.mrb[0].mxu0 %v2313
  %v2412 = vpop.f32.mrb[0].mxu0
  %v2413 = vadd.f32 0.0, %v2412
  %v2414 = vpop.f32.mrb[0].mxu0
  %2415 = vmatprep.mubr.f32.mxu0 0.0
  %2416 = vmatmul.mubr.f32.gmra.mrb[0].mxu0 %v2316
  %v2417 = vpop.f32.mrb[0].mxu0
  %v2418 = vadd.f32 0.0, %v2417
  %v2419 = vpop.f32.mrb[0].mxu0
  %2420 = vmatprep.mubr.f32.mxu0 0.0
  %2421 = vmatmul.mubr.f32.gmra.mrb[0].mxu0 %v2319
  %v2422 = vpop.f32.mrb[0].mxu0
  %v2423 = vadd.f32 0.0, %v2422
  %v2424 = vpop.f32.mrb[0].mxu0
  %2425 = vdwg.mxu0
  %v2426 = vsel %vm670, %v2089, 0.0
  %2427 = vadd.xlane.f32.xlu0 %v2426
  %v2428 = vpop.xlane.xlu0 %2427
  %v2429 = vsel %vm670, %v2091, 0.0
  %2430 = vadd.xlane.f32.xlu0 %v2429
  %v2431 = vpop.xlane.xlu0 %2430
  %v2432 = vsel %vm670, %v2093, 0.0
  %2433 = vadd.xlane.f32.xlu0 %v2432
  %v2434 = vpop.xlane.xlu0 %2433
  %v2435 = vsel %vm670, %v2095, 0.0
  %2436 = vadd.xlane.f32.xlu0 %v2435
  %v2437 = vpop.xlane.xlu0 %2436
  %v2438 = vsel %vm670, %v2097, 0.0
  %2439 = vadd.xlane.f32.xlu0 %v2438
  %v2440 = vpop.xlane.xlu0 %2439
  %v2441 = vsel %vm670, %v2099, 0.0
  %2442 = vadd.xlane.f32.xlu0 %v2441
  %v2443 = vpop.xlane.xlu0 %2442
  %v2444 = vsel %vm670, %v2101, 0.0
  %2445 = vadd.xlane.f32.xlu0 %v2444
  %v2446 = vpop.xlane.xlu0 %2445
  %v2447 = vsel %vm670, %v2103, 0.0
  %2448 = vadd.xlane.f32.xlu0 %v2447
  %v2449 = vpop.xlane.xlu0 %2448
  %v2450 = vsel %vm670, %v2105, 0.0
  %2451 = vadd.xlane.f32.xlu0 %v2450
  %v2452 = vpop.xlane.xlu0 %2451
  %v2453 = vsel %vm670, %v2107, 0.0
  %2454 = vadd.xlane.f32.xlu0 %v2453
  %v2455 = vpop.xlane.xlu0 %2454
  %v2456 = vsel %vm670, %v2109, 0.0
  %2457 = vadd.xlane.f32.xlu0 %v2456
  %v2458 = vpop.xlane.xlu0 %2457
  %v2459 = vsel %vm670, %v2111, 0.0
  %2460 = vadd.xlane.f32.xlu0 %v2459
  %v2461 = vpop.xlane.xlu0 %2460
  %v2462 = vsel %vm670, %v2113, 0.0
  %2463 = vadd.xlane.f32.xlu0 %v2462
  %v2464 = vpop.xlane.xlu0 %2463
  %v2465 = vsel %vm670, %v2115, 0.0
  %2466 = vadd.xlane.f32.xlu0 %v2465
  %v2467 = vpop.xlane.xlu0 %2466
  %v2468 = vsel %vm670, %v2117, 0.0
  %2469 = vadd.xlane.f32.xlu0 %v2468
  %v2470 = vpop.xlane.xlu0 %2469
  %v2471 = vsel %vm670, %v2119, 0.0
  %2472 = vadd.xlane.f32.xlu0 %v2471
  %v2473 = vpop.xlane.xlu0 %2472
  %v2474 = vrcp.pop %v2428
  %v2475 = vrcp.pop %v2431
  %v2476 = vrcp.pop %v2434
  %v2477 = vrcp.pop %v2437
  %v2478 = vrcp.pop %v2440
  %v2479 = vrcp.pop %v2443
  %v2480 = vrcp.pop %v2446
  %v2481 = vrcp.pop %v2449
  %v2482 = vrcp.pop %v2452
  %v2483 = vrcp.pop %v2455
  %v2484 = vrcp.pop %v2458
  %v2485 = vrcp.pop %v2461
  %v2486 = vrcp.pop %v2464
  %v2487 = vrcp.pop %v2467
  %v2488 = vrcp.pop %v2470
  %v2489 = vrcp.pop %v2473
  %v2490 = vmul.f32 %v2235, %v2474
  %v2491 = vmul.f32 %v2240, %v2475
  %v2492 = vmul.f32 %v2245, %v2476
  %v2493 = vmul.f32 %v2250, %v2477
  %v2494 = vmul.f32 %v2255, %v2478
  %v2495 = vmul.f32 %v2260, %v2479
  %v2496 = vmul.f32 %v2265, %v2480
  %v2497 = vmul.f32 %v2270, %v2481
  %v2498 = vmul.f32 %v2388, %v2482
  %v2499 = vmul.f32 %v2393, %v2483
  %v2500 = vmul.f32 %v2398, %v2484
  %v2501 = vmul.f32 %v2403, %v2485
  %v2502 = vmul.f32 %v2408, %v2486
  %v2503 = vmul.f32 %v2413, %v2487
  %v2504 = vmul.f32 %v2418, %v2488
  %v2505 = vmul.f32 %v2423, %v2489
  %2506 = vrot.lane.b32.xlu0 %v1623, 112
  %v2507 = vpop.permute.xlu0 %2506
  %2508 = vrot.lane.b32.xlu0 %v1628, 112
  %v2509 = vpop.permute.xlu0 %2508
  %2510 = vrot.lane.b32.xlu0 %v1633, 112
  %v2511 = vpop.permute.xlu0 %2510
  %2512 = vrot.lane.b32.xlu0 %v1638, 112
  %v2513 = vpop.permute.xlu0 %2512
  %2514 = vrot.lane.b32.xlu0 %v1643, 112
  %v2515 = vpop.permute.xlu0 %2514
  %2516 = vrot.lane.b32.xlu0 %v1648, 112
  %v2517 = vpop.permute.xlu0 %2516
  %2518 = vrot.lane.b32.xlu0 %v1653, 112
  %v2519 = vpop.permute.xlu0 %2518
  %2520 = vrot.lane.b32.xlu0 %v1658, 112
  %v2521 = vpop.permute.xlu0 %2520
  %2522 = vrot.lane.b32.xlu0 %v1623, 80
  %v2523 = vpop.permute.xlu0 %2522
  %2524 = vrot.lane.b32.xlu0 %v1628, 80
  %v2525 = vpop.permute.xlu0 %2524
  %2526 = vrot.lane.b32.xlu0 %v1633, 80
  %v2527 = vpop.permute.xlu0 %2526
  %2528 = vrot.lane.b32.xlu0 %v1638, 80
  %v2529 = vpop.permute.xlu0 %2528
  %2530 = vrot.lane.b32.xlu0 %v1643, 80
  %v2531 = vpop.permute.xlu0 %2530
  %2532 = vrot.lane.b32.xlu0 %v1648, 80
  %v2533 = vpop.permute.xlu0 %2532
  %2534 = vrot.lane.b32.xlu0 %v1653, 80
  %v2535 = vpop.permute.xlu0 %2534
  %2536 = vrot.lane.b32.xlu0 %v1658, 80
  %v2537 = vpop.permute.xlu0 %2536
  %v2538 = vsel %vm1725, %v2507, 0
  %v2540 = vsel %vm1725, %v2509, 0
  %v2542 = vsel %vm1725, %v2511, 0
  %v2544 = vsel %vm1725, %v2513, 0
  %v2546 = vsel %vm1725, %v2515, 0
  %v2548 = vsel %vm1725, %v2517, 0
  %v2550 = vsel %vm1725, %v2519, 0
  %v2552 = vsel %vm1725, %v2521, 0
  %v2554 = vsel %vm1725, %v2523, 0
  %v2556 = vsel %vm1725, %v2525, 0
  %v2558 = vsel %vm1725, %v2527, 0
  %v2560 = vsel %vm1725, %v2529, 0
  %v2562 = vsel %vm1725, %v2531, 0
  %v2564 = vsel %vm1725, %v2533, 0
  %v2566 = vsel %vm1725, %v2535, 0
  %v2568 = vsel %vm1725, %v2537, 0
  %2570 = vmatprep.subr.mxu0 0.0
  %2571 = vmatpush1.xpose.msra.mxu0 %v2554
  %2572 = vmatprep.subr.mxu0 0.0
  %2573 = vmatpush1.xpose.msra.mxu0 %v2556
  %2574 = vmatprep.subr.mxu0 0.0
  %2575 = vmatpush1.xpose.msra.mxu0 %v2558
  %2576 = vmatprep.subr.mxu0 0.0
  %2577 = vmatpush1.xpose.msra.mxu0 %v2560
  %2578 = vmatprep.subr.mxu0 0.0
  %2579 = vmatpush1.xpose.msra.mxu0 %v2562
  %2580 = vmatprep.subr.mxu0 0.0
  %2581 = vmatpush1.xpose.msra.mxu0 %v2564
  %2582 = vmatprep.subr.mxu0 0.0
  %2583 = vmatpush1.xpose.msra.mxu0 %v2566
  %2584 = vmatprep.subr.mxu0 0.0
  %2585 = vmatpush1.xpose.msra.mxu0 %v2568
  %2586 = vmatprep.subr.mxu0 0.0
  %2587 = vmatpush1.xpose.msra.mxu0 0.0
  %2588 = vmatprep.subr.mxu0 0.0
  %2589 = vmatpush1.xpose.msra.mxu0 0.0
  %2590 = vmatprep.subr.mxu0 0.0
  %2591 = vmatpush1.xpose.msra.mxu0 0.0
  %2592 = vmatprep.subr.mxu0 0.0
  %2593 = vmatpush1.xpose.msra.mxu0 0.0
  %2594 = vmatprep.subr.mxu0 0.0
  %2595 = vmatpush1.xpose.msra.mxu0 0.0
  %2596 = vmatprep.subr.mxu0 0.0
  %2597 = vmatpush1.xpose.msra.mxu0 0.0
  %2598 = vmatprep.subr.mxu0 0.0
  %2599 = vmatpush1.xpose.msra.mxu0 0.0
  %2600 = vmatprep.subr.mxu0 0.0
  %2601 = vmatpush1.xpose.msra.mxu0 0.0
  %2602 = vmatprep.subr.mxu0 0.0
  %2603 = vmatpush1.xpose.msra.mxu0 0.0
  %2604 = vmatprep.subr.mxu0 0.0
  %2605 = vmatpush1.xpose.msra.mxu0 0.0
  %2606 = vmatprep.subr.mxu0 0.0
  %2607 = vmatpush1.xpose.msra.mxu0 0.0
  %2608 = vmatprep.subr.mxu0 0.0
  %2609 = vmatpush1.xpose.msra.mxu0 0.0
  %2610 = vmatprep.subr.mxu0 0.0
  %2611 = vmatpush1.xpose.msra.mxu0 0.0
  %2612 = vmatprep.subr.mxu0 0.0
  %2613 = vmatpush1.xpose.msra.mxu0 0.0
  %2614 = vmatprep.subr.mxu0 0.0
  %2615 = vmatpush1.xpose.msra.mxu0 0.0
  %2616 = vmatprep.subr.mxu0 0.0
  %2617 = vmatpush1.xpose.msra.mxu0 0.0
  %2618 = vmatprep.subr.mxu0 0.0
  %2619 = vmatpush1.xpose.msra.mxu0 0.0
  %2620 = vmatprep.subr.mxu0 0.0
  %2621 = vmatpush1.xpose.msra.mxu0 0.0
  %2622 = vmatprep.subr.mxu0 0.0
  %2623 = vmatpush1.xpose.msra.mxu0 0.0
  %2624 = vmatprep.subr.mxu0 0.0
  %2625 = vmatpush1.xpose.msra.mxu0 0.0
  %2626 = vmatprep.subr.mxu0 0.0
  %2627 = vmatpush1.xpose.msra.mxu0 0.0
  %2628 = vmatprep.subr.mxu0 0.0
  %2629 = vmatpush1.xpose.msra.mxu0 0.0
  %2630 = vmatprep.subr.mxu0 0.0
  %2631 = vmatpush1.xpose.msra.mxu0 0.0
  %2632 = vmatprep.subr.mxu0 0.0
  %2633 = vmatpush1.xpose.msra.mxu0 0.0
  %2634 = vmatprep.mubr.f32.mxu0 0.0
  %2635 = vmatmul.mubr.f32.gmra.mrb[0].mxu0 %v2538
  %v2636 = vpop.f32.mrb[0].mxu0
  %v2637 = vadd.f32 0.0, %v2636
  %v2638 = vpop.f32.mrb[0].mxu0
  %2639 = vmatprep.mubr.f32.mxu0 0.0
  %2640 = vmatmul.mubr.f32.gmra.mrb[0].mxu0 %v2540
  %v2641 = vpop.f32.mrb[0].mxu0
  %v2642 = vadd.f32 0.0, %v2641
  %v2643 = vpop.f32.mrb[0].mxu0
  %2644 = vmatprep.mubr.f32.mxu0 0.0
  %2645 = vmatmul.mubr.f32.gmra.mrb[0].mxu0 %v2542
  %v2646 = vpop.f32.mrb[0].mxu0
  %v2647 = vadd.f32 0.0, %v2646
  %v2648 = vpop.f32.mrb[0].mxu0
  %2649 = vmatprep.mubr.f32.mxu0 0.0
  %2650 = vmatmul.mubr.f32.gmra.mrb[0].mxu0 %v2544
  %v2651 = vpop.f32.mrb[0].mxu0
  %v2652 = vadd.f32 0.0, %v2651
  %v2653 = vpop.f32.mrb[0].mxu0
  %2654 = vmatprep.mubr.f32.mxu0 0.0
  %2655 = vmatmul.mubr.f32.gmra.mrb[0].mxu0 %v2546
  %v2656 = vpop.f32.mrb[0].mxu0
  %v2657 = vadd.f32 0.0, %v2656
  %v2658 = vpop.f32.mrb[0].mxu0
  %2659 = vmatprep.mubr.f32.mxu0 0.0
  %2660 = vmatmul.mubr.f32.gmra.mrb[0].mxu0 %v2548
  %v2661 = vpop.f32.mrb[0].mxu0
  %v2662 = vadd.f32 0.0, %v2661
  %v2663 = vpop.f32.mrb[0].mxu0
  %2664 = vmatprep.mubr.f32.mxu0 0.0
  %2665 = vmatmul.mubr.f32.gmra.mrb[0].mxu0 %v2550
  %v2666 = vpop.f32.mrb[0].mxu0
  %v2667 = vadd.f32 0.0, %v2666
  %v2668 = vpop.f32.mrb[0].mxu0
  %2669 = vmatprep.mubr.f32.mxu0 0.0
  %2670 = vmatmul.mubr.f32.gmra.mrb[0].mxu0 %v2552
  %v2671 = vpop.f32.mrb[0].mxu0
  %v2672 = vadd.f32 0.0, %v2671
  %v2673 = vpop.f32.mrb[0].mxu0
  %2674 = vdwg.mxu0
  %2675 = vrot.lane.b32.xlu0 %v1663, 112
  %v2676 = vpop.permute.xlu0 %2675
  %2677 = vrot.lane.b32.xlu0 %v1668, 112
  %v2678 = vpop.permute.xlu0 %2677
  %2679 = vrot.lane.b32.xlu0 %v1673, 112
  %v2680 = vpop.permute.xlu0 %2679
  %2681 = vrot.lane.b32.xlu0 %v1678, 112
  %v2682 = vpop.permute.xlu0 %2681
  %2683 = vrot.lane.b32.xlu0 %v1683, 112
  %v2684 = vpop.permute.xlu0 %2683
  %2685 = vrot.lane.b32.xlu0 %v1688, 112
  %v2686 = vpop.permute.xlu0 %2685
  %2687 = vrot.lane.b32.xlu0 %v1693, 112
  %v2688 = vpop.permute.xlu0 %2687
  %2689 = vrot.lane.b32.xlu0 %v1698, 112
  %v2690 = vpop.permute.xlu0 %2689
  %2691 = vrot.lane.b32.xlu0 %v1663, 80
  %v2692 = vpop.permute.xlu0 %2691
  %2693 = vrot.lane.b32.xlu0 %v1668, 80
  %v2694 = vpop.permute.xlu0 %2693
  %2695 = vrot.lane.b32.xlu0 %v1673, 80
  %v2696 = vpop.permute.xlu0 %2695
  %2697 = vrot.lane.b32.xlu0 %v1678, 80
  %v2698 = vpop.permute.xlu0 %2697
  %2699 = vrot.lane.b32.xlu0 %v1683, 80
  %v2700 = vpop.permute.xlu0 %2699
  %2701 = vrot.lane.b32.xlu0 %v1688, 80
  %v2702 = vpop.permute.xlu0 %2701
  %2703 = vrot.lane.b32.xlu0 %v1693, 80
  %v2704 = vpop.permute.xlu0 %2703
  %2705 = vrot.lane.b32.xlu0 %v1698, 80
  %v2706 = vpop.permute.xlu0 %2705
  %v2707 = vsel %vm1725, %v2676, 0
  %v2709 = vsel %vm1725, %v2678, 0
  %v2711 = vsel %vm1725, %v2680, 0
  %v2713 = vsel %vm1725, %v2682, 0
  %v2715 = vsel %vm1725, %v2684, 0
  %v2717 = vsel %vm1725, %v2686, 0
  %v2719 = vsel %vm1725, %v2688, 0
  %v2721 = vsel %vm1725, %v2690, 0
  %v2723 = vsel %vm1725, %v2692, 0
  %v2725 = vsel %vm1725, %v2694, 0
  %v2727 = vsel %vm1725, %v2696, 0
  %v2729 = vsel %vm1725, %v2698, 0
  %v2731 = vsel %vm1725, %v2700, 0
  %v2733 = vsel %vm1725, %v2702, 0
  %v2735 = vsel %vm1725, %v2704, 0
  %v2737 = vsel %vm1725, %v2706, 0
  %2739 = vmatprep.subr.mxu0 0.0
  %2740 = vmatpush1.xpose.msra.mxu0 %v2723
  %2741 = vmatprep.subr.mxu0 0.0
  %2742 = vmatpush1.xpose.msra.mxu0 %v2725
  %2743 = vmatprep.subr.mxu0 0.0
  %2744 = vmatpush1.xpose.msra.mxu0 %v2727
  %2745 = vmatprep.subr.mxu0 0.0
  %2746 = vmatpush1.xpose.msra.mxu0 %v2729
  %2747 = vmatprep.subr.mxu0 0.0
  %2748 = vmatpush1.xpose.msra.mxu0 %v2731
  %2749 = vmatprep.subr.mxu0 0.0
  %2750 = vmatpush1.xpose.msra.mxu0 %v2733
  %2751 = vmatprep.subr.mxu0 0.0
  %2752 = vmatpush1.xpose.msra.mxu0 %v2735
  %2753 = vmatprep.subr.mxu0 0.0
  %2754 = vmatpush1.xpose.msra.mxu0 %v2737
  %2755 = vmatprep.subr.mxu0 0.0
  %2756 = vmatpush1.xpose.msra.mxu0 0.0
  %2757 = vmatprep.subr.mxu0 0.0
  %2758 = vmatpush1.xpose.msra.mxu0 0.0
  %2759 = vmatprep.subr.mxu0 0.0
  %2760 = vmatpush1.xpose.msra.mxu0 0.0
  %2761 = vmatprep.subr.mxu0 0.0
  %2762 = vmatpush1.xpose.msra.mxu0 0.0
  %2763 = vmatprep.subr.mxu0 0.0
  %2764 = vmatpush1.xpose.msra.mxu0 0.0
  %2765 = vmatprep.subr.mxu0 0.0
  %2766 = vmatpush1.xpose.msra.mxu0 0.0
  %2767 = vmatprep.subr.mxu0 0.0
  %2768 = vmatpush1.xpose.msra.mxu0 0.0
  %2769 = vmatprep.subr.mxu0 0.0
  %2770 = vmatpush1.xpose.msra.mxu0 0.0
  %2771 = vmatprep.subr.mxu0 0.0
  %2772 = vmatpush1.xpose.msra.mxu0 0.0
  %2773 = vmatprep.subr.mxu0 0.0
  %2774 = vmatpush1.xpose.msra.mxu0 0.0
  %2775 = vmatprep.subr.mxu0 0.0
  %2776 = vmatpush1.xpose.msra.mxu0 0.0
  %2777 = vmatprep.subr.mxu0 0.0
  %2778 = vmatpush1.xpose.msra.mxu0 0.0
  %2779 = vmatprep.subr.mxu0 0.0
  %2780 = vmatpush1.xpose.msra.mxu0 0.0
  %2781 = vmatprep.subr.mxu0 0.0
  %2782 = vmatpush1.xpose.msra.mxu0 0.0
  %2783 = vmatprep.subr.mxu0 0.0
  %2784 = vmatpush1.xpose.msra.mxu0 0.0
  %2785 = vmatprep.subr.mxu0 0.0
  %2786 = vmatpush1.xpose.msra.mxu0 0.0
  %2787 = vmatprep.subr.mxu0 0.0
  %2788 = vmatpush1.xpose.msra.mxu0 0.0
  %2789 = vmatprep.subr.mxu0 0.0
  %2790 = vmatpush1.xpose.msra.mxu0 0.0
  %2791 = vmatprep.subr.mxu0 0.0
  %2792 = vmatpush1.xpose.msra.mxu0 0.0
  %2793 = vmatprep.subr.mxu0 0.0
  %2794 = vmatpush1.xpose.msra.mxu0 0.0
  %2795 = vmatprep.subr.mxu0 0.0
  %2796 = vmatpush1.xpose.msra.mxu0 0.0
  %2797 = vmatprep.subr.mxu0 0.0
  %2798 = vmatpush1.xpose.msra.mxu0 0.0
  %2799 = vmatprep.subr.mxu0 0.0
  %2800 = vmatpush1.xpose.msra.mxu0 0.0
  %2801 = vmatprep.subr.mxu0 0.0
  %2802 = vmatpush1.xpose.msra.mxu0 0.0
  %2803 = vmatprep.mubr.f32.mxu0 0.0
  %2804 = vmatmul.mubr.f32.gmra.mrb[0].mxu0 %v2707
  %v2805 = vpop.f32.mrb[0].mxu0
  %v2806 = vadd.f32 0.0, %v2805
  %v2807 = vpop.f32.mrb[0].mxu0
  %2808 = vmatprep.mubr.f32.mxu0 0.0
  %2809 = vmatmul.mubr.f32.gmra.mrb[0].mxu0 %v2709
  %v2810 = vpop.f32.mrb[0].mxu0
  %v2811 = vadd.f32 0.0, %v2810
  %v2812 = vpop.f32.mrb[0].mxu0
  %2813 = vmatprep.mubr.f32.mxu0 0.0
  %2814 = vmatmul.mubr.f32.gmra.mrb[0].mxu0 %v2711
  %v2815 = vpop.f32.mrb[0].mxu0
  %v2816 = vadd.f32 0.0, %v2815
  %v2817 = vpop.f32.mrb[0].mxu0
  %2818 = vmatprep.mubr.f32.mxu0 0.0
  %2819 = vmatmul.mubr.f32.gmra.mrb[0].mxu0 %v2713
  %v2820 = vpop.f32.mrb[0].mxu0
  %v2821 = vadd.f32 0.0, %v2820
  %v2822 = vpop.f32.mrb[0].mxu0
  %2823 = vmatprep.mubr.f32.mxu0 0.0
  %2824 = vmatmul.mubr.f32.gmra.mrb[0].mxu0 %v2715
  %v2825 = vpop.f32.mrb[0].mxu0
  %v2826 = vadd.f32 0.0, %v2825
  %v2827 = vpop.f32.mrb[0].mxu0
  %2828 = vmatprep.mubr.f32.mxu0 0.0
  %2829 = vmatmul.mubr.f32.gmra.mrb[0].mxu0 %v2717
  %v2830 = vpop.f32.mrb[0].mxu0
  %v2831 = vadd.f32 0.0, %v2830
  %v2832 = vpop.f32.mrb[0].mxu0
  %2833 = vmatprep.mubr.f32.mxu0 0.0
  %2834 = vmatmul.mubr.f32.gmra.mrb[0].mxu0 %v2719
  %v2835 = vpop.f32.mrb[0].mxu0
  %v2836 = vadd.f32 0.0, %v2835
  %v2837 = vpop.f32.mrb[0].mxu0
  %2838 = vmatprep.mubr.f32.mxu0 0.0
  %2839 = vmatmul.mubr.f32.gmra.mrb[0].mxu0 %v2721
  %v2840 = vpop.f32.mrb[0].mxu0
  %v2841 = vadd.f32 0.0, %v2840
  %v2842 = vpop.f32.mrb[0].mxu0
  %2843 = vdwg.mxu0
  %v2844 = vsel %vm670, %v2637, -inf
  %2845 = vmax.xlane.f32.xlu0 %v2844
  %v2846 = vpop.xlane.xlu0 %2845
  %v2847 = vsel %vm670, %v2642, -inf
  %2848 = vmax.xlane.f32.xlu0 %v2847
  %v2849 = vpop.xlane.xlu0 %2848
  %v2850 = vsel %vm670, %v2647, -inf
  %2851 = vmax.xlane.f32.xlu0 %v2850
  %v2852 = vpop.xlane.xlu0 %2851
  %v2853 = vsel %vm670, %v2652, -inf
  %2854 = vmax.xlane.f32.xlu0 %v2853
  %v2855 = vpop.xlane.xlu0 %2854
  %v2856 = vsel %vm670, %v2657, -inf
  %2857 = vmax.xlane.f32.xlu0 %v2856
  %v2858 = vpop.xlane.xlu0 %2857
  %v2859 = vsel %vm670, %v2662, -inf
  %2860 = vmax.xlane.f32.xlu0 %v2859
  %v2861 = vpop.xlane.xlu0 %2860
  %v2862 = vsel %vm670, %v2667, -inf
  %2863 = vmax.xlane.f32.xlu0 %v2862
  %v2864 = vpop.xlane.xlu0 %2863
  %v2865 = vsel %vm670, %v2672, -inf
  %2866 = vmax.xlane.f32.xlu0 %v2865
  %v2867 = vpop.xlane.xlu0 %2866
  %v2868 = vsel %vm670, %v2806, -inf
  %2869 = vmax.xlane.f32.xlu0 %v2868
  %v2870 = vpop.xlane.xlu0 %2869
  %v2871 = vsel %vm670, %v2811, -inf
  %2872 = vmax.xlane.f32.xlu0 %v2871
  %v2873 = vpop.xlane.xlu0 %2872
  %v2874 = vsel %vm670, %v2816, -inf
  %2875 = vmax.xlane.f32.xlu0 %v2874
  %v2876 = vpop.xlane.xlu0 %2875
  %v2877 = vsel %vm670, %v2821, -inf
  %2878 = vmax.xlane.f32.xlu0 %v2877
  %v2879 = vpop.xlane.xlu0 %2878
  %v2880 = vsel %vm670, %v2826, -inf
  %2881 = vmax.xlane.f32.xlu0 %v2880
  %v2882 = vpop.xlane.xlu0 %2881
  %v2883 = vsel %vm670, %v2831, -inf
  %2884 = vmax.xlane.f32.xlu0 %v2883
  %v2885 = vpop.xlane.xlu0 %2884
  %v2886 = vsel %vm670, %v2836, -inf
  %2887 = vmax.xlane.f32.xlu0 %v2886
  %v2888 = vpop.xlane.xlu0 %2887
  %v2889 = vsel %vm670, %v2841, -inf
  %2890 = vmax.xlane.f32.xlu0 %v2889
  %v2891 = vpop.xlane.xlu0 %2890
  %v2892 = vsub.f32 %v2637, %v2846
  %v2893 = vsub.f32 %v2642, %v2849
  %v2894 = vsub.f32 %v2647, %v2852
  %v2895 = vsub.f32 %v2652, %v2855
  %v2896 = vsub.f32 %v2657, %v2858
  %v2897 = vsub.f32 %v2662, %v2861
  %v2898 = vsub.f32 %v2667, %v2864
  %v2899 = vsub.f32 %v2672, %v2867
  %v2900 = vsub.f32 %v2806, %v2870
  %v2901 = vsub.f32 %v2811, %v2873
  %v2902 = vsub.f32 %v2816, %v2876
  %v2903 = vsub.f32 %v2821, %v2879
  %v2904 = vsub.f32 %v2826, %v2882
  %v2905 = vsub.f32 %v2831, %v2885
  %v2906 = vsub.f32 %v2836, %v2888
  %v2907 = vsub.f32 %v2841, %v2891
  %v2908 = vmul.f32 %v2892, 1.442695
  %v2909 = vpow.pop %v2908
  %v2910 = vmul.f32 %v2893, 1.442695
  %v2911 = vpow.pop %v2910
  %v2912 = vmul.f32 %v2894, 1.442695
  %v2913 = vpow.pop %v2912
  %v2914 = vmul.f32 %v2895, 1.442695
  %v2915 = vpow.pop %v2914
  %v2916 = vmul.f32 %v2896, 1.442695
  %v2917 = vpow.pop %v2916
  %v2918 = vmul.f32 %v2897, 1.442695
  %v2919 = vpow.pop %v2918
  %v2920 = vmul.f32 %v2898, 1.442695
  %v2921 = vpow.pop %v2920
  %v2922 = vmul.f32 %v2899, 1.442695
  %v2923 = vpow.pop %v2922
  %v2924 = vmul.f32 %v2900, 1.442695
  %v2925 = vpow.pop %v2924
  %v2926 = vmul.f32 %v2901, 1.442695
  %v2927 = vpow.pop %v2926
  %v2928 = vmul.f32 %v2902, 1.442695
  %v2929 = vpow.pop %v2928
  %v2930 = vmul.f32 %v2903, 1.442695
  %v2931 = vpow.pop %v2930
  %v2932 = vmul.f32 %v2904, 1.442695
  %v2933 = vpow.pop %v2932
  %v2934 = vmul.f32 %v2905, 1.442695
  %v2935 = vpow.pop %v2934
  %v2936 = vmul.f32 %v2906, 1.442695
  %v2937 = vpow.pop %v2936
  %v2938 = vmul.f32 %v2907, 1.442695
  %v2939 = vpow.pop %v2938
  %2940 = vrot.lane.b32.xlu0 %v1623, 48
  %v2941 = vpop.permute.xlu0 %2940
  %2942 = vrot.lane.b32.xlu0 %v1628, 48
  %v2943 = vpop.permute.xlu0 %2942
  %2944 = vrot.lane.b32.xlu0 %v1633, 48
  %v2945 = vpop.permute.xlu0 %2944
  %2946 = vrot.lane.b32.xlu0 %v1638, 48
  %v2947 = vpop.permute.xlu0 %2946
  %2948 = vrot.lane.b32.xlu0 %v1643, 48
  %v2949 = vpop.permute.xlu0 %2948
  %2950 = vrot.lane.b32.xlu0 %v1648, 48
  %v2951 = vpop.permute.xlu0 %2950
  %2952 = vrot.lane.b32.xlu0 %v1653, 48
  %v2953 = vpop.permute.xlu0 %2952
  %2954 = vrot.lane.b32.xlu0 %v1658, 48
  %v2955 = vpop.permute.xlu0 %2954
  %v2965 = vsel %vm670, %v2909, 0
  %v2968 = vsel %vm670, %v2911, 0
  %v2971 = vsel %vm670, %v2913, 0
  %v2974 = vsel %vm670, %v2915, 0
  %v2977 = vsel %vm670, %v2917, 0
  %v2980 = vsel %vm670, %v2919, 0
  %v2983 = vsel %vm670, %v2921, 0
  %v2986 = vsel %vm670, %v2923, 0
  %2988 = vmatprep.subr.mxu0 0.0
  %2989 = vmatpush1.msra.mxu0 %v2941
  %2990 = vmatprep.subr.mxu0 0.0
  %2991 = vmatpush1.msra.mxu0 %v2943
  %2992 = vmatprep.subr.mxu0 0.0
  %2993 = vmatpush1.msra.mxu0 %v2945
  %2994 = vmatprep.subr.mxu0 0.0
  %2995 = vmatpush1.msra.mxu0 %v2947
  %2996 = vmatprep.subr.mxu0 0.0
  %2997 = vmatpush1.msra.mxu0 %v2949
  %2998 = vmatprep.subr.mxu0 0.0
  %2999 = vmatpush1.msra.mxu0 %v2951
  %3000 = vmatprep.subr.mxu0 0.0
  %3001 = vmatpush1.msra.mxu0 %v2953
  %3002 = vmatprep.subr.mxu0 0.0
  %3003 = vmatpush1.msra.mxu0 %v2955
  %3004 = vmatprep.subr.mxu0 0.0
  %3005 = vmatpush1.msra.mxu0 0.0
  %3006 = vmatprep.subr.mxu0 0.0
  %3007 = vmatpush1.msra.mxu0 0.0
  %3008 = vmatprep.subr.mxu0 0.0
  %3009 = vmatpush1.msra.mxu0 0.0
  %3010 = vmatprep.subr.mxu0 0.0
  %3011 = vmatpush1.msra.mxu0 0.0
  %3012 = vmatprep.subr.mxu0 0.0
  %3013 = vmatpush1.msra.mxu0 0.0
  %3014 = vmatprep.subr.mxu0 0.0
  %3015 = vmatpush1.msra.mxu0 0.0
  %3016 = vmatprep.subr.mxu0 0.0
  %3017 = vmatpush1.msra.mxu0 0.0
  %3018 = vmatprep.subr.mxu0 0.0
  %3019 = vmatpush1.msra.mxu0 0.0
  %3020 = vmatprep.subr.mxu0 0.0
  %3021 = vmatpush1.msra.mxu0 0.0
  %3022 = vmatprep.subr.mxu0 0.0
  %3023 = vmatpush1.msra.mxu0 0.0
  %3024 = vmatprep.subr.mxu0 0.0
  %3025 = vmatpush1.msra.mxu0 0.0
  %3026 = vmatprep.subr.mxu0 0.0
  %3027 = vmatpush1.msra.mxu0 0.0
  %3028 = vmatprep.subr.mxu0 0.0
  %3029 = vmatpush1.msra.mxu0 0.0
  %3030 = vmatprep.subr.mxu0 0.0
  %3031 = vmatpush1.msra.mxu0 0.0
  %3032 = vmatprep.subr.mxu0 0.0
  %3033 = vmatpush1.msra.mxu0 0.0
  %3034 = vmatprep.subr.mxu0 0.0
  %3035 = vmatpush1.msra.mxu0 0.0
  %3036 = vmatprep.subr.mxu0 0.0
  %3037 = vmatpush1.msra.mxu0 0.0
  %3038 = vmatprep.subr.mxu0 0.0
  %3039 = vmatpush1.msra.mxu0 0.0
  %3040 = vmatprep.subr.mxu0 0.0
  %3041 = vmatpush1.msra.mxu0 0.0
  %3042 = vmatprep.subr.mxu0 0.0
  %3043 = vmatpush1.msra.mxu0 0.0
  %3044 = vmatprep.subr.mxu0 0.0
  %3045 = vmatpush1.msra.mxu0 0.0
  %3046 = vmatprep.subr.mxu0 0.0
  %3047 = vmatpush1.msra.mxu0 0.0
  %3048 = vmatprep.subr.mxu0 0.0
  %3049 = vmatpush1.msra.mxu0 0.0
  %3050 = vmatprep.subr.mxu0 0.0
  %3051 = vmatpush1.msra.mxu0 0.0
  %3052 = vmatprep.mubr.f32.mxu0 0.0
  %3053 = vmatmul.mubr.f32.gmra.mrb[0].mxu0 %v2965
  %v3054 = vpop.f32.mrb[0].mxu0
  %v3055 = vadd.f32 0.0, %v3054
  %v3056 = vpop.f32.mrb[0].mxu0
  %3057 = vmatprep.mubr.f32.mxu0 0.0
  %3058 = vmatmul.mubr.f32.gmra.mrb[0].mxu0 %v2968
  %v3059 = vpop.f32.mrb[0].mxu0
  %v3060 = vadd.f32 0.0, %v3059
  %v3061 = vpop.f32.mrb[0].mxu0
  %3062 = vmatprep.mubr.f32.mxu0 0.0
  %3063 = vmatmul.mubr.f32.gmra.mrb[0].mxu0 %v2971
  %v3064 = vpop.f32.mrb[0].mxu0
  %v3065 = vadd.f32 0.0, %v3064
  %v3066 = vpop.f32.mrb[0].mxu0
  %3067 = vmatprep.mubr.f32.mxu0 0.0
  %3068 = vmatmul.mubr.f32.gmra.mrb[0].mxu0 %v2974
  %v3069 = vpop.f32.mrb[0].mxu0
  %v3070 = vadd.f32 0.0, %v3069
  %v3071 = vpop.f32.mrb[0].mxu0
  %3072 = vmatprep.mubr.f32.mxu0 0.0
  %3073 = vmatmul.mubr.f32.gmra.mrb[0].mxu0 %v2977
  %v3074 = vpop.f32.mrb[0].mxu0
  %v3075 = vadd.f32 0.0, %v3074
  %v3076 = vpop.f32.mrb[0].mxu0
  %3077 = vmatprep.mubr.f32.mxu0 0.0
  %3078 = vmatmul.mubr.f32.gmra.mrb[0].mxu0 %v2980
  %v3079 = vpop.f32.mrb[0].mxu0
  %v3080 = vadd.f32 0.0, %v3079
  %v3081 = vpop.f32.mrb[0].mxu0
  %3082 = vmatprep.mubr.f32.mxu0 0.0
  %3083 = vmatmul.mubr.f32.gmra.mrb[0].mxu0 %v2983
  %v3084 = vpop.f32.mrb[0].mxu0
  %v3085 = vadd.f32 0.0, %v3084
  %v3086 = vpop.f32.mrb[0].mxu0
  %3087 = vmatprep.mubr.f32.mxu0 0.0
  %3088 = vmatmul.mubr.f32.gmra.mrb[0].mxu0 %v2986
  %v3089 = vpop.f32.mrb[0].mxu0
  %v3090 = vadd.f32 0.0, %v3089
  %v3091 = vpop.f32.mrb[0].mxu0
  %3092 = vdwg.mxu0
  %3093 = vrot.lane.b32.xlu0 %v1663, 48
  %v3094 = vpop.permute.xlu0 %3093
  %3095 = vrot.lane.b32.xlu0 %v1668, 48
  %v3096 = vpop.permute.xlu0 %3095
  %3097 = vrot.lane.b32.xlu0 %v1673, 48
  %v3098 = vpop.permute.xlu0 %3097
  %3099 = vrot.lane.b32.xlu0 %v1678, 48
  %v3100 = vpop.permute.xlu0 %3099
  %3101 = vrot.lane.b32.xlu0 %v1683, 48
  %v3102 = vpop.permute.xlu0 %3101
  %3103 = vrot.lane.b32.xlu0 %v1688, 48
  %v3104 = vpop.permute.xlu0 %3103
  %3105 = vrot.lane.b32.xlu0 %v1693, 48
  %v3106 = vpop.permute.xlu0 %3105
  %3107 = vrot.lane.b32.xlu0 %v1698, 48
  %v3108 = vpop.permute.xlu0 %3107
  %v3118 = vsel %vm670, %v2925, 0
  %v3121 = vsel %vm670, %v2927, 0
  %v3124 = vsel %vm670, %v2929, 0
  %v3127 = vsel %vm670, %v2931, 0
  %v3130 = vsel %vm670, %v2933, 0
  %v3133 = vsel %vm670, %v2935, 0
  %v3136 = vsel %vm670, %v2937, 0
  %v3139 = vsel %vm670, %v2939, 0
  %3141 = vmatprep.subr.mxu0 0.0
  %3142 = vmatpush1.msra.mxu0 %v3094
  %3143 = vmatprep.subr.mxu0 0.0
  %3144 = vmatpush1.msra.mxu0 %v3096
  %3145 = vmatprep.subr.mxu0 0.0
  %3146 = vmatpush1.msra.mxu0 %v3098
  %3147 = vmatprep.subr.mxu0 0.0
  %3148 = vmatpush1.msra.mxu0 %v3100
  %3149 = vmatprep.subr.mxu0 0.0
  %3150 = vmatpush1.msra.mxu0 %v3102
  %3151 = vmatprep.subr.mxu0 0.0
  %3152 = vmatpush1.msra.mxu0 %v3104
  %3153 = vmatprep.subr.mxu0 0.0
  %3154 = vmatpush1.msra.mxu0 %v3106
  %3155 = vmatprep.subr.mxu0 0.0
  %3156 = vmatpush1.msra.mxu0 %v3108
  %3157 = vmatprep.subr.mxu0 0.0
  %3158 = vmatpush1.msra.mxu0 0.0
  %3159 = vmatprep.subr.mxu0 0.0
  %3160 = vmatpush1.msra.mxu0 0.0
  %3161 = vmatprep.subr.mxu0 0.0
  %3162 = vmatpush1.msra.mxu0 0.0
  %3163 = vmatprep.subr.mxu0 0.0
  %3164 = vmatpush1.msra.mxu0 0.0
  %3165 = vmatprep.subr.mxu0 0.0
  %3166 = vmatpush1.msra.mxu0 0.0
  %3167 = vmatprep.subr.mxu0 0.0
  %3168 = vmatpush1.msra.mxu0 0.0
  %3169 = vmatprep.subr.mxu0 0.0
  %3170 = vmatpush1.msra.mxu0 0.0
  %3171 = vmatprep.subr.mxu0 0.0
  %3172 = vmatpush1.msra.mxu0 0.0
  %3173 = vmatprep.subr.mxu0 0.0
  %3174 = vmatpush1.msra.mxu0 0.0
  %3175 = vmatprep.subr.mxu0 0.0
  %3176 = vmatpush1.msra.mxu0 0.0
  %3177 = vmatprep.subr.mxu0 0.0
  %3178 = vmatpush1.msra.mxu0 0.0
  %3179 = vmatprep.subr.mxu0 0.0
  %3180 = vmatpush1.msra.mxu0 0.0
  %3181 = vmatprep.subr.mxu0 0.0
  %3182 = vmatpush1.msra.mxu0 0.0
  %3183 = vmatprep.subr.mxu0 0.0
  %3184 = vmatpush1.msra.mxu0 0.0
  %3185 = vmatprep.subr.mxu0 0.0
  %3186 = vmatpush1.msra.mxu0 0.0
  %3187 = vmatprep.subr.mxu0 0.0
  %3188 = vmatpush1.msra.mxu0 0.0
  %3189 = vmatprep.subr.mxu0 0.0
  %3190 = vmatpush1.msra.mxu0 0.0
  %3191 = vmatprep.subr.mxu0 0.0
  %3192 = vmatpush1.msra.mxu0 0.0
  %3193 = vmatprep.subr.mxu0 0.0
  %3194 = vmatpush1.msra.mxu0 0.0
  %3195 = vmatprep.subr.mxu0 0.0
  %3196 = vmatpush1.msra.mxu0 0.0
  %3197 = vmatprep.subr.mxu0 0.0
  %3198 = vmatpush1.msra.mxu0 0.0
  %3199 = vmatprep.subr.mxu0 0.0
  %3200 = vmatpush1.msra.mxu0 0.0
  %3201 = vmatprep.subr.mxu0 0.0
  %3202 = vmatpush1.msra.mxu0 0.0
  %3203 = vmatprep.subr.mxu0 0.0
  %3204 = vmatpush1.msra.mxu0 0.0
  %3205 = vmatprep.mubr.f32.mxu0 0.0
  %3206 = vmatmul.mubr.f32.gmra.mrb[0].mxu0 %v3118
  %v3207 = vpop.f32.mrb[0].mxu0
  %v3208 = vadd.f32 0.0, %v3207
  %v3209 = vpop.f32.mrb[0].mxu0
  %3210 = vmatprep.mubr.f32.mxu0 0.0
  %3211 = vmatmul.mubr.f32.gmra.mrb[0].mxu0 %v3121
  %v3212 = vpop.f32.mrb[0].mxu0
  %v3213 = vadd.f32 0.0, %v3212
  %v3214 = vpop.f32.mrb[0].mxu0
  %3215 = vmatprep.mubr.f32.mxu0 0.0
  %3216 = vmatmul.mubr.f32.gmra.mrb[0].mxu0 %v3124
  %v3217 = vpop.f32.mrb[0].mxu0
  %v3218 = vadd.f32 0.0, %v3217
  %v3219 = vpop.f32.mrb[0].mxu0
  %3220 = vmatprep.mubr.f32.mxu0 0.0
  %3221 = vmatmul.mubr.f32.gmra.mrb[0].mxu0 %v3127
  %v3222 = vpop.f32.mrb[0].mxu0
  %v3223 = vadd.f32 0.0, %v3222
  %v3224 = vpop.f32.mrb[0].mxu0
  %3225 = vmatprep.mubr.f32.mxu0 0.0
  %3226 = vmatmul.mubr.f32.gmra.mrb[0].mxu0 %v3130
  %v3227 = vpop.f32.mrb[0].mxu0
  %v3228 = vadd.f32 0.0, %v3227
  %v3229 = vpop.f32.mrb[0].mxu0
  %3230 = vmatprep.mubr.f32.mxu0 0.0
  %3231 = vmatmul.mubr.f32.gmra.mrb[0].mxu0 %v3133
  %v3232 = vpop.f32.mrb[0].mxu0
  %v3233 = vadd.f32 0.0, %v3232
  %v3234 = vpop.f32.mrb[0].mxu0
  %3235 = vmatprep.mubr.f32.mxu0 0.0
  %3236 = vmatmul.mubr.f32.gmra.mrb[0].mxu0 %v3136
  %v3237 = vpop.f32.mrb[0].mxu0
  %v3238 = vadd.f32 0.0, %v3237
  %v3239 = vpop.f32.mrb[0].mxu0
  %3240 = vmatprep.mubr.f32.mxu0 0.0
  %3241 = vmatmul.mubr.f32.gmra.mrb[0].mxu0 %v3139
  %v3242 = vpop.f32.mrb[0].mxu0
  %v3243 = vadd.f32 0.0, %v3242
  %v3244 = vpop.f32.mrb[0].mxu0
  %3245 = vdwg.mxu0
  %v3246 = vsel %vm670, %v2909, 0.0
  %3247 = vadd.xlane.f32.xlu0 %v3246
  %v3248 = vpop.xlane.xlu0 %3247
  %v3249 = vsel %vm670, %v2911, 0.0
  %3250 = vadd.xlane.f32.xlu0 %v3249
  %v3251 = vpop.xlane.xlu0 %3250
  %v3252 = vsel %vm670, %v2913, 0.0
  %3253 = vadd.xlane.f32.xlu0 %v3252
  %v3254 = vpop.xlane.xlu0 %3253
  %v3255 = vsel %vm670, %v2915, 0.0
  %3256 = vadd.xlane.f32.xlu0 %v3255
  %v3257 = vpop.xlane.xlu0 %3256
  %v3258 = vsel %vm670, %v2917, 0.0
  %3259 = vadd.xlane.f32.xlu0 %v3258
  %v3260 = vpop.xlane.xlu0 %3259
  %v3261 = vsel %vm670, %v2919, 0.0
  %3262 = vadd.xlane.f32.xlu0 %v3261
  %v3263 = vpop.xlane.xlu0 %3262
  %v3264 = vsel %vm670, %v2921, 0.0
  %3265 = vadd.xlane.f32.xlu0 %v3264
  %v3266 = vpop.xlane.xlu0 %3265
  %v3267 = vsel %vm670, %v2923, 0.0
  %3268 = vadd.xlane.f32.xlu0 %v3267
  %v3269 = vpop.xlane.xlu0 %3268
  %v3270 = vsel %vm670, %v2925, 0.0
  %3271 = vadd.xlane.f32.xlu0 %v3270
  %v3272 = vpop.xlane.xlu0 %3271
  %v3273 = vsel %vm670, %v2927, 0.0
  %3274 = vadd.xlane.f32.xlu0 %v3273
  %v3275 = vpop.xlane.xlu0 %3274
  %v3276 = vsel %vm670, %v2929, 0.0
  %3277 = vadd.xlane.f32.xlu0 %v3276
  %v3278 = vpop.xlane.xlu0 %3277
  %v3279 = vsel %vm670, %v2931, 0.0
  %3280 = vadd.xlane.f32.xlu0 %v3279
  %v3281 = vpop.xlane.xlu0 %3280
  %v3282 = vsel %vm670, %v2933, 0.0
  %3283 = vadd.xlane.f32.xlu0 %v3282
  %v3284 = vpop.xlane.xlu0 %3283
  %v3285 = vsel %vm670, %v2935, 0.0
  %3286 = vadd.xlane.f32.xlu0 %v3285
  %v3287 = vpop.xlane.xlu0 %3286
  %v3288 = vsel %vm670, %v2937, 0.0
  %3289 = vadd.xlane.f32.xlu0 %v3288
  %v3290 = vpop.xlane.xlu0 %3289
  %v3291 = vsel %vm670, %v2939, 0.0
  %3292 = vadd.xlane.f32.xlu0 %v3291
  %v3293 = vpop.xlane.xlu0 %3292
  %v3294 = vrcp.pop %v3248
  %v3295 = vrcp.pop %v3251
  %v3296 = vrcp.pop %v3254
  %v3297 = vrcp.pop %v3257
  %v3298 = vrcp.pop %v3260
  %v3299 = vrcp.pop %v3263
  %v3300 = vrcp.pop %v3266
  %v3301 = vrcp.pop %v3269
  %v3302 = vrcp.pop %v3272
  %v3303 = vrcp.pop %v3275
  %v3304 = vrcp.pop %v3278
  %v3305 = vrcp.pop %v3281
  %v3306 = vrcp.pop %v3284
  %v3307 = vrcp.pop %v3287
  %v3308 = vrcp.pop %v3290
  %v3309 = vrcp.pop %v3293
  %v3310 = vmul.f32 %v3055, %v3294
  %v3311 = vmul.f32 %v3060, %v3295
  %v3312 = vmul.f32 %v3065, %v3296
  %v3313 = vmul.f32 %v3070, %v3297
  %v3314 = vmul.f32 %v3075, %v3298
  %v3315 = vmul.f32 %v3080, %v3299
  %v3316 = vmul.f32 %v3085, %v3300
  %v3317 = vmul.f32 %v3090, %v3301
  %v3318 = vmul.f32 %v3208, %v3302
  %v3319 = vmul.f32 %v3213, %v3303
  %v3320 = vmul.f32 %v3218, %v3304
  %v3321 = vmul.f32 %v3223, %v3305
  %v3322 = vmul.f32 %v3228, %v3306
  %v3323 = vmul.f32 %v3233, %v3307
  %v3324 = vmul.f32 %v3238, %v3308
  %v3325 = vmul.f32 %v3243, %v3309
  %3342 = vrot.lane.b32.xlu0 %v3310, 16
  %v3343 = vpop.permute.xlu0 %3342
  %3344 = vrot.lane.b32.xlu0 %v3311, 16
  %v3345 = vpop.permute.xlu0 %3344
  %3346 = vrot.lane.b32.xlu0 %v3312, 16
  %v3347 = vpop.permute.xlu0 %3346
  %3348 = vrot.lane.b32.xlu0 %v3313, 16
  %v3349 = vpop.permute.xlu0 %3348
  %3350 = vrot.lane.b32.xlu0 %v3314, 16
  %v3351 = vpop.permute.xlu0 %3350
  %3352 = vrot.lane.b32.xlu0 %v3315, 16
  %v3353 = vpop.permute.xlu0 %3352
  %3354 = vrot.lane.b32.xlu0 %v3316, 16
  %v3355 = vpop.permute.xlu0 %3354
  %3356 = vrot.lane.b32.xlu0 %v3317, 16
  %v3357 = vpop.permute.xlu0 %3356
  %3358 = vrot.lane.b32.xlu0 %v3318, 16
  %v3359 = vpop.permute.xlu0 %3358
  %3360 = vrot.lane.b32.xlu0 %v3319, 16
  %v3361 = vpop.permute.xlu0 %3360
  %3362 = vrot.lane.b32.xlu0 %v3320, 16
  %v3363 = vpop.permute.xlu0 %3362
  %3364 = vrot.lane.b32.xlu0 %v3321, 16
  %v3365 = vpop.permute.xlu0 %3364
  %3366 = vrot.lane.b32.xlu0 %v3322, 16
  %v3367 = vpop.permute.xlu0 %3366
  %3368 = vrot.lane.b32.xlu0 %v3323, 16
  %v3369 = vpop.permute.xlu0 %3368
  %3370 = vrot.lane.b32.xlu0 %v3324, 16
  %v3371 = vpop.permute.xlu0 %3370
  %3372 = vrot.lane.b32.xlu0 %v3325, 16
  %v3373 = vpop.permute.xlu0 %3372
  %v3390 = vsel %vm1725, %v2490, %v3343
  %v3391 = vsel %vm1725, %v2491, %v3345
  %v3392 = vsel %vm1725, %v2492, %v3347
  %v3393 = vsel %vm1725, %v2493, %v3349
  %v3394 = vsel %vm1725, %v2494, %v3351
  %v3395 = vsel %vm1725, %v2495, %v3353
  %v3396 = vsel %vm1725, %v2496, %v3355
  %v3397 = vsel %vm1725, %v2497, %v3357
  %v3398 = vsel %vm1725, %v2498, %v3359
  %v3399 = vsel %vm1725, %v2499, %v3361
  %v3400 = vsel %vm1725, %v2500, %v3363
  %v3401 = vsel %vm1725, %v2501, %v3365
  %v3402 = vsel %vm1725, %v2502, %v3367
  %v3403 = vsel %vm1725, %v2503, %v3369
  %v3404 = vsel %vm1725, %v2504, %v3371
  %v3405 = vsel %vm1725, %v2505, %v3373
  %v3406 = vld [vmem:[%s6] sm:$0xff]
  %v3407 = vld [vmem:[%s6 + $0x8] sm:$0xff]
  %v3408 = vld [vmem:[%s6 + $0x10] sm:$0xff]
  %v3409 = vld [vmem:[%s6 + $0x18] sm:$0xff]
  %v3410 = vld [vmem:[%s7] sm:$0x1]
  %v3412 = vlaneseq
  %v3413 = vshrl.u32 %v3412, 7
  %v3414 = vsub.s32 0, %v3413
  %v3415 = vrot.slane %v3410, %v3414
  %v3418 = vsel %vm653, %v3390, 0
  %v3421 = vsel %vm653, %v3391, 0
  %v3424 = vsel %vm653, %v3392, 0
  %v3427 = vsel %vm653, %v3393, 0
  %v3430 = vsel %vm653, %v3394, 0
  %v3433 = vsel %vm653, %v3395, 0
  %v3436 = vsel %vm653, %v3396, 0
  %v3439 = vsel %vm653, %v3397, 0
  %v3442 = vsel %vm653, %v3398, 0
  %v3445 = vsel %vm653, %v3399, 0
  %v3448 = vsel %vm653, %v3400, 0
  %v3451 = vsel %vm653, %v3401, 0
  %v3454 = vsel %vm653, %v3402, 0
  %v3457 = vsel %vm653, %v3403, 0
  %v3460 = vsel %vm653, %v3404, 0
  %v3463 = vsel %vm653, %v3405, 0
  %3465 = vmatprep.subr.mxu0 0.0
  %3466 = vmatpush1.msra.mxu0 %v3406
  %3467 = vmatprep.subr.mxu0 0.0
  %3468 = vmatpush1.msra.mxu0 %v3407
  %3469 = vmatprep.subr.mxu0 0.0
  %3470 = vmatpush1.msra.mxu0 %v3408
  %3471 = vmatprep.subr.mxu0 0.0
  %3472 = vmatpush1.msra.mxu0 %v3409
  %3473 = vmatprep.subr.mxu0 0.0
  %3474 = vmatpush1.msra.mxu0 0.0
  %3475 = vmatprep.subr.mxu0 0.0
  %3476 = vmatpush1.msra.mxu0 0.0
  %3477 = vmatprep.subr.mxu0 0.0
  %3478 = vmatpush1.msra.mxu0 0.0
  %3479 = vmatprep.subr.mxu0 0.0
  %3480 = vmatpush1.msra.mxu0 0.0
  %3481 = vmatprep.subr.mxu0 0.0
  %3482 = vmatpush1.msra.mxu0 0.0
  %3483 = vmatprep.subr.mxu0 0.0
  %3484 = vmatpush1.msra.mxu0 0.0
  %3485 = vmatprep.subr.mxu0 0.0
  %3486 = vmatpush1.msra.mxu0 0.0
  %3487 = vmatprep.subr.mxu0 0.0
  %3488 = vmatpush1.msra.mxu0 0.0
  %3489 = vmatprep.subr.mxu0 0.0
  %3490 = vmatpush1.msra.mxu0 0.0
  %3491 = vmatprep.subr.mxu0 0.0
  %3492 = vmatpush1.msra.mxu0 0.0
  %3493 = vmatprep.subr.mxu0 0.0
  %3494 = vmatpush1.msra.mxu0 0.0
  %3495 = vmatprep.subr.mxu0 0.0
  %3496 = vmatpush1.msra.mxu0 0.0
  %3497 = vmatprep.subr.mxu0 0.0
  %3498 = vmatpush1.msra.mxu0 0.0
  %3499 = vmatprep.subr.mxu0 0.0
  %3500 = vmatpush1.msra.mxu0 0.0
  %3501 = vmatprep.subr.mxu0 0.0
  %3502 = vmatpush1.msra.mxu0 0.0
  %3503 = vmatprep.subr.mxu0 0.0
  %3504 = vmatpush1.msra.mxu0 0.0
  %3505 = vmatprep.subr.mxu0 0.0
  %3506 = vmatpush1.msra.mxu0 0.0
  %3507 = vmatprep.subr.mxu0 0.0
  %3508 = vmatpush1.msra.mxu0 0.0
  %3509 = vmatprep.subr.mxu0 0.0
  %3510 = vmatpush1.msra.mxu0 0.0
  %3511 = vmatprep.subr.mxu0 0.0
  %3512 = vmatpush1.msra.mxu0 0.0
  %3513 = vmatprep.subr.mxu0 0.0
  %3514 = vmatpush1.msra.mxu0 0.0
  %3515 = vmatprep.subr.mxu0 0.0
  %3516 = vmatpush1.msra.mxu0 0.0
  %3517 = vmatprep.subr.mxu0 0.0
  %3518 = vmatpush1.msra.mxu0 0.0
  %3519 = vmatprep.subr.mxu0 0.0
  %3520 = vmatpush1.msra.mxu0 0.0
  %3521 = vmatprep.subr.mxu0 0.0
  %3522 = vmatpush1.msra.mxu0 0.0
  %3523 = vmatprep.subr.mxu0 0.0
  %3524 = vmatpush1.msra.mxu0 0.0
  %3525 = vmatprep.subr.mxu0 0.0
  %3526 = vmatpush1.msra.mxu0 0.0
  %3527 = vmatprep.subr.mxu0 0.0
  %3528 = vmatpush1.msra.mxu0 0.0
  %3529 = vmatprep.mubr.f32.mxu0 0.0
  %3530 = vmatmul.mubr.f32.gmra.mrb[0].mxu0 %v3418
  %v3531 = vpop.f32.mrb[0].mxu0
  %v3532 = vadd.f32 %v3415, %v3531
  %v3533 = vpop.f32.mrb[0].mxu0
  %3534 = vmatprep.mubr.f32.mxu0 0.0
  %3535 = vmatmul.mubr.f32.gmra.mrb[0].mxu0 %v3421
  %v3536 = vpop.f32.mrb[0].mxu0
  %v3537 = vadd.f32 %v3415, %v3536
  %v3538 = vpop.f32.mrb[0].mxu0
  %3539 = vmatprep.mubr.f32.mxu0 0.0
  %3540 = vmatmul.mubr.f32.gmra.mrb[0].mxu0 %v3424
  %v3541 = vpop.f32.mrb[0].mxu0
  %v3542 = vadd.f32 %v3415, %v3541
  %v3543 = vpop.f32.mrb[0].mxu0
  %3544 = vmatprep.mubr.f32.mxu0 0.0
  %3545 = vmatmul.mubr.f32.gmra.mrb[0].mxu0 %v3427
  %v3546 = vpop.f32.mrb[0].mxu0
  %v3547 = vadd.f32 %v3415, %v3546
  %v3548 = vpop.f32.mrb[0].mxu0
  %3549 = vmatprep.mubr.f32.mxu0 0.0
  %3550 = vmatmul.mubr.f32.gmra.mrb[0].mxu0 %v3430
  %v3551 = vpop.f32.mrb[0].mxu0
  %v3552 = vadd.f32 %v3415, %v3551
  %v3553 = vpop.f32.mrb[0].mxu0
  %3554 = vmatprep.mubr.f32.mxu0 0.0
  %3555 = vmatmul.mubr.f32.gmra.mrb[0].mxu0 %v3433
  %v3556 = vpop.f32.mrb[0].mxu0
  %v3557 = vadd.f32 %v3415, %v3556
  %v3558 = vpop.f32.mrb[0].mxu0
  %3559 = vmatprep.mubr.f32.mxu0 0.0
  %3560 = vmatmul.mubr.f32.gmra.mrb[0].mxu0 %v3436
  %v3561 = vpop.f32.mrb[0].mxu0
  %v3562 = vadd.f32 %v3415, %v3561
  %v3563 = vpop.f32.mrb[0].mxu0
  %3564 = vmatprep.mubr.f32.mxu0 0.0
  %3565 = vmatmul.mubr.f32.gmra.mrb[0].mxu0 %v3439
  %v3566 = vpop.f32.mrb[0].mxu0
  %v3567 = vadd.f32 %v3415, %v3566
  %v3568 = vpop.f32.mrb[0].mxu0
  %3569 = vmatprep.mubr.f32.mxu0 0.0
  %3570 = vmatmul.mubr.f32.gmra.mrb[0].mxu0 %v3442
  %v3571 = vpop.f32.mrb[0].mxu0
  %v3572 = vadd.f32 %v3415, %v3571
  %v3573 = vpop.f32.mrb[0].mxu0
  %3574 = vmatprep.mubr.f32.mxu0 0.0
  %3575 = vmatmul.mubr.f32.gmra.mrb[0].mxu0 %v3445
  %v3576 = vpop.f32.mrb[0].mxu0
  %v3577 = vadd.f32 %v3415, %v3576
  %v3578 = vpop.f32.mrb[0].mxu0
  %3579 = vmatprep.mubr.f32.mxu0 0.0
  %3580 = vmatmul.mubr.f32.gmra.mrb[0].mxu0 %v3448
  %v3581 = vpop.f32.mrb[0].mxu0
  %v3582 = vadd.f32 %v3415, %v3581
  %v3583 = vpop.f32.mrb[0].mxu0
  %3584 = vmatprep.mubr.f32.mxu0 0.0
  %3585 = vmatmul.mubr.f32.gmra.mrb[0].mxu0 %v3451
  %v3586 = vpop.f32.mrb[0].mxu0
  %v3587 = vadd.f32 %v3415, %v3586
  %v3588 = vpop.f32.mrb[0].mxu0
  %3589 = vmatprep.mubr.f32.mxu0 0.0
  %3590 = vmatmul.mubr.f32.gmra.mrb[0].mxu0 %v3454
  %v3591 = vpop.f32.mrb[0].mxu0
  %v3592 = vadd.f32 %v3415, %v3591
  %v3593 = vpop.f32.mrb[0].mxu0
  %3594 = vmatprep.mubr.f32.mxu0 0.0
  %3595 = vmatmul.mubr.f32.gmra.mrb[0].mxu0 %v3457
  %v3596 = vpop.f32.mrb[0].mxu0
  %v3597 = vadd.f32 %v3415, %v3596
  %v3598 = vpop.f32.mrb[0].mxu0
  %3599 = vmatprep.mubr.f32.mxu0 0.0
  %3600 = vmatmul.mubr.f32.gmra.mrb[0].mxu0 %v3460
  %v3601 = vpop.f32.mrb[0].mxu0
  %v3602 = vadd.f32 %v3415, %v3601
  %v3603 = vpop.f32.mrb[0].mxu0
  %3604 = vmatprep.mubr.f32.mxu0 0.0
  %3605 = vmatmul.mubr.f32.gmra.mrb[0].mxu0 %v3463
  %v3606 = vpop.f32.mrb[0].mxu0
  %v3607 = vadd.f32 %v3415, %v3606
  %v3608 = vpop.f32.mrb[0].mxu0
  %3609 = vdwg.mxu0
  %v3610 = vadd.f32 %v3532, %v1121
  %v3611 = vadd.f32 %v3537, %v1122
  %v3612 = vadd.f32 %v3542, %v1123
  %v3613 = vadd.f32 %v3547, %v1124
  %v3614 = vadd.f32 %v3552, %v1125
  %v3615 = vadd.f32 %v3557, %v1126
  %v3616 = vadd.f32 %v3562, %v1127
  %v3617 = vadd.f32 %v3567, %v1128
  %v3618 = vadd.f32 %v3572, %v1129
  %v3619 = vadd.f32 %v3577, %v1130
  %v3620 = vadd.f32 %v3582, %v1131
  %v3621 = vadd.f32 %v3587, %v1132
  %v3622 = vadd.f32 %v3592, %v1133
  %v3623 = vadd.f32 %v3597, %v1134
  %v3624 = vadd.f32 %v3602, %v1135
  %v3625 = vadd.f32 %v3607, %v1136
  %v3626 = vld [vmem:[%s8] sm:$0x1]
  %v3627 = vld [vmem:[%s9] sm:$0x1]
  %v3628 = vsel %vm653, %v3610, 0.0
  %3629 = vadd.xlane.f32.xlu0 %v3628
  %v3630 = vpop.xlane.xlu0 %3629
  %v3631 = vsel %vm653, %v3611, 0.0
  %3632 = vadd.xlane.f32.xlu0 %v3631
  %v3633 = vpop.xlane.xlu0 %3632
  %v3634 = vsel %vm653, %v3612, 0.0
  %3635 = vadd.xlane.f32.xlu0 %v3634
  %v3636 = vpop.xlane.xlu0 %3635
  %v3637 = vsel %vm653, %v3613, 0.0
  %3638 = vadd.xlane.f32.xlu0 %v3637
  %v3639 = vpop.xlane.xlu0 %3638
  %v3640 = vsel %vm653, %v3614, 0.0
  %3641 = vadd.xlane.f32.xlu0 %v3640
  %v3642 = vpop.xlane.xlu0 %3641
  %v3643 = vsel %vm653, %v3615, 0.0
  %3644 = vadd.xlane.f32.xlu0 %v3643
  %v3645 = vpop.xlane.xlu0 %3644
  %v3646 = vsel %vm653, %v3616, 0.0
  %3647 = vadd.xlane.f32.xlu0 %v3646
  %v3648 = vpop.xlane.xlu0 %3647
  %v3649 = vsel %vm653, %v3617, 0.0
  %3650 = vadd.xlane.f32.xlu0 %v3649
  %v3651 = vpop.xlane.xlu0 %3650
  %v3652 = vsel %vm653, %v3618, 0.0
  %3653 = vadd.xlane.f32.xlu0 %v3652
  %v3654 = vpop.xlane.xlu0 %3653
  %v3655 = vsel %vm653, %v3619, 0.0
  %3656 = vadd.xlane.f32.xlu0 %v3655
  %v3657 = vpop.xlane.xlu0 %3656
  %v3658 = vsel %vm653, %v3620, 0.0
  %3659 = vadd.xlane.f32.xlu0 %v3658
  %v3660 = vpop.xlane.xlu0 %3659
  %v3661 = vsel %vm653, %v3621, 0.0
  %3662 = vadd.xlane.f32.xlu0 %v3661
  %v3663 = vpop.xlane.xlu0 %3662
  %v3664 = vsel %vm653, %v3622, 0.0
  %3665 = vadd.xlane.f32.xlu0 %v3664
  %v3666 = vpop.xlane.xlu0 %3665
  %v3667 = vsel %vm653, %v3623, 0.0
  %3668 = vadd.xlane.f32.xlu0 %v3667
  %v3669 = vpop.xlane.xlu0 %3668
  %v3670 = vsel %vm653, %v3624, 0.0
  %3671 = vadd.xlane.f32.xlu0 %v3670
  %v3672 = vpop.xlane.xlu0 %3671
  %v3673 = vsel %vm653, %v3625, 0.0
  %3674 = vadd.xlane.f32.xlu0 %v3673
  %v3675 = vpop.xlane.xlu0 %3674
  %v3676 = vmul.f32 %v3630, %v1187
  %v3677 = vmul.f32 %v3633, %v1187
  %v3678 = vmul.f32 %v3636, %v1187
  %v3679 = vmul.f32 %v3639, %v1187
  %v3680 = vmul.f32 %v3642, %v1187
  %v3681 = vmul.f32 %v3645, %v1187
  %v3682 = vmul.f32 %v3648, %v1187
  %v3683 = vmul.f32 %v3651, %v1187
  %v3684 = vmul.f32 %v3654, %v1187
  %v3685 = vmul.f32 %v3657, %v1187
  %v3686 = vmul.f32 %v3660, %v1187
  %v3687 = vmul.f32 %v3663, %v1187
  %v3688 = vmul.f32 %v3666, %v1187
  %v3689 = vmul.f32 %v3669, %v1187
  %v3690 = vmul.f32 %v3672, %v1187
  %v3691 = vmul.f32 %v3675, %v1187
  %v3692 = vsub.f32 %v3610, %v3676
  %v3693 = vsub.f32 %v3611, %v3677
  %v3694 = vsub.f32 %v3612, %v3678
  %v3695 = vsub.f32 %v3613, %v3679
  %v3696 = vsub.f32 %v3614, %v3680
  %v3697 = vsub.f32 %v3615, %v3681
  %v3698 = vsub.f32 %v3616, %v3682
  %v3699 = vsub.f32 %v3617, %v3683
  %v3700 = vsub.f32 %v3618, %v3684
  %v3701 = vsub.f32 %v3619, %v3685
  %v3702 = vsub.f32 %v3620, %v3686
  %v3703 = vsub.f32 %v3621, %v3687
  %v3704 = vsub.f32 %v3622, %v3688
  %v3705 = vsub.f32 %v3623, %v3689
  %v3706 = vsub.f32 %v3624, %v3690
  %v3707 = vsub.f32 %v3625, %v3691
  %v3708 = vmul.f32 %v3692, %v3692
  %v3709 = vmul.f32 %v3693, %v3693
  %v3710 = vmul.f32 %v3694, %v3694
  %v3711 = vmul.f32 %v3695, %v3695
  %v3712 = vmul.f32 %v3696, %v3696
  %v3713 = vmul.f32 %v3697, %v3697
  %v3714 = vmul.f32 %v3698, %v3698
  %v3715 = vmul.f32 %v3699, %v3699
  %v3716 = vmul.f32 %v3700, %v3700
  %v3717 = vmul.f32 %v3701, %v3701
  %v3718 = vmul.f32 %v3702, %v3702
  %v3719 = vmul.f32 %v3703, %v3703
  %v3720 = vmul.f32 %v3704, %v3704
  %v3721 = vmul.f32 %v3705, %v3705
  %v3722 = vmul.f32 %v3706, %v3706
  %v3723 = vmul.f32 %v3707, %v3707
  %v3724 = vsel %vm653, %v3708, 0.0
  %3725 = vadd.xlane.f32.xlu0 %v3724
  %v3726 = vpop.xlane.xlu0 %3725
  %v3727 = vsel %vm653, %v3709, 0.0
  %3728 = vadd.xlane.f32.xlu0 %v3727
  %v3729 = vpop.xlane.xlu0 %3728
  %v3730 = vsel %vm653, %v3710, 0.0
  %3731 = vadd.xlane.f32.xlu0 %v3730
  %v3732 = vpop.xlane.xlu0 %3731
  %v3733 = vsel %vm653, %v3711, 0.0
  %3734 = vadd.xlane.f32.xlu0 %v3733
  %v3735 = vpop.xlane.xlu0 %3734
  %v3736 = vsel %vm653, %v3712, 0.0
  %3737 = vadd.xlane.f32.xlu0 %v3736
  %v3738 = vpop.xlane.xlu0 %3737
  %v3739 = vsel %vm653, %v3713, 0.0
  %3740 = vadd.xlane.f32.xlu0 %v3739
  %v3741 = vpop.xlane.xlu0 %3740
  %v3742 = vsel %vm653, %v3714, 0.0
  %3743 = vadd.xlane.f32.xlu0 %v3742
  %v3744 = vpop.xlane.xlu0 %3743
  %v3745 = vsel %vm653, %v3715, 0.0
  %3746 = vadd.xlane.f32.xlu0 %v3745
  %v3747 = vpop.xlane.xlu0 %3746
  %v3748 = vsel %vm653, %v3716, 0.0
  %3749 = vadd.xlane.f32.xlu0 %v3748
  %v3750 = vpop.xlane.xlu0 %3749
  %v3751 = vsel %vm653, %v3717, 0.0
  %3752 = vadd.xlane.f32.xlu0 %v3751
  %v3753 = vpop.xlane.xlu0 %3752
  %v3754 = vsel %vm653, %v3718, 0.0
  %3755 = vadd.xlane.f32.xlu0 %v3754
  %v3756 = vpop.xlane.xlu0 %3755
  %v3757 = vsel %vm653, %v3719, 0.0
  %3758 = vadd.xlane.f32.xlu0 %v3757
  %v3759 = vpop.xlane.xlu0 %3758
  %v3760 = vsel %vm653, %v3720, 0.0
  %3761 = vadd.xlane.f32.xlu0 %v3760
  %v3762 = vpop.xlane.xlu0 %3761
  %v3763 = vsel %vm653, %v3721, 0.0
  %3764 = vadd.xlane.f32.xlu0 %v3763
  %v3765 = vpop.xlane.xlu0 %3764
  %v3766 = vsel %vm653, %v3722, 0.0
  %3767 = vadd.xlane.f32.xlu0 %v3766
  %v3768 = vpop.xlane.xlu0 %3767
  %v3769 = vsel %vm653, %v3723, 0.0
  %3770 = vadd.xlane.f32.xlu0 %v3769
  %v3771 = vpop.xlane.xlu0 %3770
  %v3772 = vmul.f32 %v3726, %v1187
  %v3773 = vmul.f32 %v3729, %v1187
  %v3774 = vmul.f32 %v3732, %v1187
  %v3775 = vmul.f32 %v3735, %v1187
  %v3776 = vmul.f32 %v3738, %v1187
  %v3777 = vmul.f32 %v3741, %v1187
  %v3778 = vmul.f32 %v3744, %v1187
  %v3779 = vmul.f32 %v3747, %v1187
  %v3780 = vmul.f32 %v3750, %v1187
  %v3781 = vmul.f32 %v3753, %v1187
  %v3782 = vmul.f32 %v3756, %v1187
  %v3783 = vmul.f32 %v3759, %v1187
  %v3784 = vmul.f32 %v3762, %v1187
  %v3785 = vmul.f32 %v3765, %v1187
  %v3786 = vmul.f32 %v3768, %v1187
  %v3787 = vmul.f32 %v3771, %v1187
  %v3788 = vrsqrt.pop %v3772
  %v3789 = vmul.f32 %v3772, %v3788
  %vm3790 = vcmp.eq.f32.partialorder %v3772, inf
  %v3791 = vsel %vm3790, %v3772, %v3789
  %vm3792 = vcmp.eq.f32.partialorder %v3772, 0.0
  %v3793 = vand.u32 %v3772, 2147483648
  %v3794 = vsel %vm3792, %v3793, %v3791
  %v3795 = vrsqrt.pop %v3773
  %v3796 = vmul.f32 %v3773, %v3795
  %vm3797 = vcmp.eq.f32.partialorder %v3773, inf
  %v3798 = vsel %vm3797, %v3773, %v3796
  %vm3799 = vcmp.eq.f32.partialorder %v3773, 0.0
  %v3800 = vand.u32 %v3773, 2147483648
  %v3801 = vsel %vm3799, %v3800, %v3798
  %v3802 = vrsqrt.pop %v3774
  %v3803 = vmul.f32 %v3774, %v3802
  %vm3804 = vcmp.eq.f32.partialorder %v3774, inf
  %v3805 = vsel %vm3804, %v3774, %v3803
  %vm3806 = vcmp.eq.f32.partialorder %v3774, 0.0
  %v3807 = vand.u32 %v3774, 2147483648
  %v3808 = vsel %vm3806, %v3807, %v3805
  %v3809 = vrsqrt.pop %v3775
  %v3810 = vmul.f32 %v3775, %v3809
  %vm3811 = vcmp.eq.f32.partialorder %v3775, inf
  %v3812 = vsel %vm3811, %v3775, %v3810
  %vm3813 = vcmp.eq.f32.partialorder %v3775, 0.0
  %v3814 = vand.u32 %v3775, 2147483648
  %v3815 = vsel %vm3813, %v3814, %v3812
  %v3816 = vrsqrt.pop %v3776
  %v3817 = vmul.f32 %v3776, %v3816
  %vm3818 = vcmp.eq.f32.partialorder %v3776, inf
  %v3819 = vsel %vm3818, %v3776, %v3817
  %vm3820 = vcmp.eq.f32.partialorder %v3776, 0.0
  %v3821 = vand.u32 %v3776, 2147483648
  %v3822 = vsel %vm3820, %v3821, %v3819
  %v3823 = vrsqrt.pop %v3777
  %v3824 = vmul.f32 %v3777, %v3823
  %vm3825 = vcmp.eq.f32.partialorder %v3777, inf
  %v3826 = vsel %vm3825, %v3777, %v3824
  %vm3827 = vcmp.eq.f32.partialorder %v3777, 0.0
  %v3828 = vand.u32 %v3777, 2147483648
  %v3829 = vsel %vm3827, %v3828, %v3826
  %v3830 = vrsqrt.pop %v3778
  %v3831 = vmul.f32 %v3778, %v3830
  %vm3832 = vcmp.eq.f32.partialorder %v3778, inf
  %v3833 = vsel %vm3832, %v3778, %v3831
  %vm3834 = vcmp.eq.f32.partialorder %v3778, 0.0
  %v3835 = vand.u32 %v3778, 2147483648
  %v3836 = vsel %vm3834, %v3835, %v3833
  %v3837 = vrsqrt.pop %v3779
  %v3838 = vmul.f32 %v3779, %v3837
  %vm3839 = vcmp.eq.f32.partialorder %v3779, inf
  %v3840 = vsel %vm3839, %v3779, %v3838
  %vm3841 = vcmp.eq.f32.partialorder %v3779, 0.0
  %v3842 = vand.u32 %v3779, 2147483648
  %v3843 = vsel %vm3841, %v3842, %v3840
  %v3844 = vrsqrt.pop %v3780
  %v3845 = vmul.f32 %v3780, %v3844
  %vm3846 = vcmp.eq.f32.partialorder %v3780, inf
  %v3847 = vsel %vm3846, %v3780, %v3845
  %vm3848 = vcmp.eq.f32.partialorder %v3780, 0.0
  %v3849 = vand.u32 %v3780, 2147483648
  %v3850 = vsel %vm3848, %v3849, %v3847
  %v3851 = vrsqrt.pop %v3781
  %v3852 = vmul.f32 %v3781, %v3851
  %vm3853 = vcmp.eq.f32.partialorder %v3781, inf
  %v3854 = vsel %vm3853, %v3781, %v3852
  %vm3855 = vcmp.eq.f32.partialorder %v3781, 0.0
  %v3856 = vand.u32 %v3781, 2147483648
  %v3857 = vsel %vm3855, %v3856, %v3854
  %v3858 = vrsqrt.pop %v3782
  %v3859 = vmul.f32 %v3782, %v3858
  %vm3860 = vcmp.eq.f32.partialorder %v3782, inf
  %v3861 = vsel %vm3860, %v3782, %v3859
  %vm3862 = vcmp.eq.f32.partialorder %v3782, 0.0
  %v3863 = vand.u32 %v3782, 2147483648
  %v3864 = vsel %vm3862, %v3863, %v3861
  %v3865 = vrsqrt.pop %v3783
  %v3866 = vmul.f32 %v3783, %v3865
  %vm3867 = vcmp.eq.f32.partialorder %v3783, inf
  %v3868 = vsel %vm3867, %v3783, %v3866
  %vm3869 = vcmp.eq.f32.partialorder %v3783, 0.0
  %v3870 = vand.u32 %v3783, 2147483648
  %v3871 = vsel %vm3869, %v3870, %v3868
  %v3872 = vrsqrt.pop %v3784
  %v3873 = vmul.f32 %v3784, %v3872
  %vm3874 = vcmp.eq.f32.partialorder %v3784, inf
  %v3875 = vsel %vm3874, %v3784, %v3873
  %vm3876 = vcmp.eq.f32.partialorder %v3784, 0.0
  %v3877 = vand.u32 %v3784, 2147483648
  %v3878 = vsel %vm3876, %v3877, %v3875
  %v3879 = vrsqrt.pop %v3785
  %v3880 = vmul.f32 %v3785, %v3879
  %vm3881 = vcmp.eq.f32.partialorder %v3785, inf
  %v3882 = vsel %vm3881, %v3785, %v3880
  %vm3883 = vcmp.eq.f32.partialorder %v3785, 0.0
  %v3884 = vand.u32 %v3785, 2147483648
  %v3885 = vsel %vm3883, %v3884, %v3882
  %v3886 = vrsqrt.pop %v3786
  %v3887 = vmul.f32 %v3786, %v3886
  %vm3888 = vcmp.eq.f32.partialorder %v3786, inf
  %v3889 = vsel %vm3888, %v3786, %v3887
  %vm3890 = vcmp.eq.f32.partialorder %v3786, 0.0
  %v3891 = vand.u32 %v3786, 2147483648
  %v3892 = vsel %vm3890, %v3891, %v3889
  %v3893 = vrsqrt.pop %v3787
  %v3894 = vmul.f32 %v3787, %v3893
  %vm3895 = vcmp.eq.f32.partialorder %v3787, inf
  %v3896 = vsel %vm3895, %v3787, %v3894
  %vm3897 = vcmp.eq.f32.partialorder %v3787, 0.0
  %v3898 = vand.u32 %v3787, 2147483648
  %v3899 = vsel %vm3897, %v3898, %v3896
  %v3900 = vadd.f32 %v3794, 1e-05
  %v3901 = vadd.f32 %v3801, 1e-05
  %v3902 = vadd.f32 %v3808, 1e-05
  %v3903 = vadd.f32 %v3815, 1e-05
  %v3904 = vadd.f32 %v3822, 1e-05
  %v3905 = vadd.f32 %v3829, 1e-05
  %v3906 = vadd.f32 %v3836, 1e-05
  %v3907 = vadd.f32 %v3843, 1e-05
  %v3908 = vadd.f32 %v3850, 1e-05
  %v3909 = vadd.f32 %v3857, 1e-05
  %v3910 = vadd.f32 %v3864, 1e-05
  %v3911 = vadd.f32 %v3871, 1e-05
  %v3912 = vadd.f32 %v3878, 1e-05
  %v3913 = vadd.f32 %v3885, 1e-05
  %v3914 = vadd.f32 %v3892, 1e-05
  %v3915 = vadd.f32 %v3899, 1e-05
  %v3916 = vrcp.pop %v3900
  %v3917 = vmul.f32 %v3692, %v3916
  %v3918 = vrcp.pop %v3901
  %v3919 = vmul.f32 %v3693, %v3918
  %v3920 = vrcp.pop %v3902
  %v3921 = vmul.f32 %v3694, %v3920
  %v3922 = vrcp.pop %v3903
  %v3923 = vmul.f32 %v3695, %v3922
  %v3924 = vrcp.pop %v3904
  %v3925 = vmul.f32 %v3696, %v3924
  %v3926 = vrcp.pop %v3905
  %v3927 = vmul.f32 %v3697, %v3926
  %v3928 = vrcp.pop %v3906
  %v3929 = vmul.f32 %v3698, %v3928
  %v3930 = vrcp.pop %v3907
  %v3931 = vmul.f32 %v3699, %v3930
  %v3932 = vrcp.pop %v3908
  %v3933 = vmul.f32 %v3700, %v3932
  %v3934 = vrcp.pop %v3909
  %v3935 = vmul.f32 %v3701, %v3934
  %v3936 = vrcp.pop %v3910
  %v3937 = vmul.f32 %v3702, %v3936
  %v3938 = vrcp.pop %v3911
  %v3939 = vmul.f32 %v3703, %v3938
  %v3940 = vrcp.pop %v3912
  %v3941 = vmul.f32 %v3704, %v3940
  %v3942 = vrcp.pop %v3913
  %v3943 = vmul.f32 %v3705, %v3942
  %v3944 = vrcp.pop %v3914
  %v3945 = vmul.f32 %v3706, %v3944
  %v3946 = vrcp.pop %v3915
  %v3947 = vmul.f32 %v3707, %v3946
  %v3949 = vlaneseq
  %v3950 = vshrl.u32 %v3949, 7
  %v3951 = vsub.s32 0, %v3950
  %v3952 = vrot.slane %v3626, %v3951
  %v3954 = vmul.f32 %v3917, %v3952
  %v3955 = vmul.f32 %v3919, %v3952
  %v3956 = vmul.f32 %v3921, %v3952
  %v3957 = vmul.f32 %v3923, %v3952
  %v3958 = vmul.f32 %v3925, %v3952
  %v3959 = vmul.f32 %v3927, %v3952
  %v3960 = vmul.f32 %v3929, %v3952
  %v3961 = vmul.f32 %v3931, %v3952
  %v3962 = vmul.f32 %v3933, %v3952
  %v3963 = vmul.f32 %v3935, %v3952
  %v3964 = vmul.f32 %v3937, %v3952
  %v3965 = vmul.f32 %v3939, %v3952
  %v3966 = vmul.f32 %v3941, %v3952
  %v3967 = vmul.f32 %v3943, %v3952
  %v3968 = vmul.f32 %v3945, %v3952
  %v3969 = vmul.f32 %v3947, %v3952
  %v3971 = vlaneseq
  %v3972 = vshrl.u32 %v3971, 7
  %v3973 = vsub.s32 0, %v3972
  %v3974 = vrot.slane %v3627, %v3973
  %v3976 = vadd.f32 %v3954, %v3974
  %v3977 = vadd.f32 %v3955, %v3974
  %v3978 = vadd.f32 %v3956, %v3974
  %v3979 = vadd.f32 %v3957, %v3974
  %v3980 = vadd.f32 %v3958, %v3974
  %v3981 = vadd.f32 %v3959, %v3974
  %v3982 = vadd.f32 %v3960, %v3974
  %v3983 = vadd.f32 %v3961, %v3974
  %v3984 = vadd.f32 %v3962, %v3974
  %v3985 = vadd.f32 %v3963, %v3974
  %v3986 = vadd.f32 %v3964, %v3974
  %v3987 = vadd.f32 %v3965, %v3974
  %v3988 = vadd.f32 %v3966, %v3974
  %v3989 = vadd.f32 %v3967, %v3974
  %v3990 = vadd.f32 %v3968, %v3974
  %v3991 = vadd.f32 %v3969, %v3974
  %v3992 = vld [vmem:[%s10] sm:$0xff]
  %v3993 = vld [vmem:[%s10 + $0x8] sm:$0xff]
  %v3994 = vld [vmem:[%s10 + $0x10] sm:$0xff]
  %v3995 = vld [vmem:[%s10 + $0x18] sm:$0xff]
  %v3996 = vld [vmem:[%s11] sm:$0x1]
  %v3998 = vlaneseq
  %v3999 = vshrl.u32 %v3998, 7
  %v4000 = vsub.s32 0, %v3999
  %v4001 = vrot.slane %v3996, %v4000
  %v4004 = vsel %vm653, %v3976, 0
  %v4007 = vsel %vm653, %v3977, 0
  %v4010 = vsel %vm653, %v3978, 0
  %v4013 = vsel %vm653, %v3979, 0
  %v4016 = vsel %vm653, %v3980, 0
  %v4019 = vsel %vm653, %v3981, 0
  %v4022 = vsel %vm653, %v3982, 0
  %v4025 = vsel %vm653, %v3983, 0
  %v4028 = vsel %vm653, %v3984, 0
  %v4031 = vsel %vm653, %v3985, 0
  %v4034 = vsel %vm653, %v3986, 0
  %v4037 = vsel %vm653, %v3987, 0
  %v4040 = vsel %vm653, %v3988, 0
  %v4043 = vsel %vm653, %v3989, 0
  %v4046 = vsel %vm653, %v3990, 0
  %v4049 = vsel %vm653, %v3991, 0
  %4051 = vmatprep.subr.mxu0 0.0
  %4052 = vmatpush1.msra.mxu0 %v3992
  %4053 = vmatprep.subr.mxu0 0.0
  %4054 = vmatpush1.msra.mxu0 %v3993
  %4055 = vmatprep.subr.mxu0 0.0
  %4056 = vmatpush1.msra.mxu0 %v3994
  %4057 = vmatprep.subr.mxu0 0.0
  %4058 = vmatpush1.msra.mxu0 %v3995
  %4059 = vmatprep.subr.mxu0 0.0
  %4060 = vmatpush1.msra.mxu0 0.0
  %4061 = vmatprep.subr.mxu0 0.0
  %4062 = vmatpush1.msra.mxu0 0.0
  %4063 = vmatprep.subr.mxu0 0.0
  %4064 = vmatpush1.msra.mxu0 0.0
  %4065 = vmatprep.subr.mxu0 0.0
  %4066 = vmatpush1.msra.mxu0 0.0
  %4067 = vmatprep.subr.mxu0 0.0
  %4068 = vmatpush1.msra.mxu0 0.0
  %4069 = vmatprep.subr.mxu0 0.0
  %4070 = vmatpush1.msra.mxu0 0.0
  %4071 = vmatprep.subr.mxu0 0.0
  %4072 = vmatpush1.msra.mxu0 0.0
  %4073 = vmatprep.subr.mxu0 0.0
  %4074 = vmatpush1.msra.mxu0 0.0
  %4075 = vmatprep.subr.mxu0 0.0
  %4076 = vmatpush1.msra.mxu0 0.0
  %4077 = vmatprep.subr.mxu0 0.0
  %4078 = vmatpush1.msra.mxu0 0.0
  %4079 = vmatprep.subr.mxu0 0.0
  %4080 = vmatpush1.msra.mxu0 0.0
  %4081 = vmatprep.subr.mxu0 0.0
  %4082 = vmatpush1.msra.mxu0 0.0
  %4083 = vmatprep.subr.mxu0 0.0
  %4084 = vmatpush1.msra.mxu0 0.0
  %4085 = vmatprep.subr.mxu0 0.0
  %4086 = vmatpush1.msra.mxu0 0.0
  %4087 = vmatprep.subr.mxu0 0.0
  %4088 = vmatpush1.msra.mxu0 0.0
  %4089 = vmatprep.subr.mxu0 0.0
  %4090 = vmatpush1.msra.mxu0 0.0
  %4091 = vmatprep.subr.mxu0 0.0
  %4092 = vmatpush1.msra.mxu0 0.0
  %4093 = vmatprep.subr.mxu0 0.0
  %4094 = vmatpush1.msra.mxu0 0.0
  %4095 = vmatprep.subr.mxu0 0.0
  %4096 = vmatpush1.msra.mxu0 0.0
  %4097 = vmatprep.subr.mxu0 0.0
  %4098 = vmatpush1.msra.mxu0 0.0
  %4099 = vmatprep.subr.mxu0 0.0
  %4100 = vmatpush1.msra.mxu0 0.0
  %4101 = vmatprep.subr.mxu0 0.0
  %4102 = vmatpush1.msra.mxu0 0.0
  %4103 = vmatprep.subr.mxu0 0.0
  %4104 = vmatpush1.msra.mxu0 0.0
  %4105 = vmatprep.subr.mxu0 0.0
  %4106 = vmatpush1.msra.mxu0 0.0
  %4107 = vmatprep.subr.mxu0 0.0
  %4108 = vmatpush1.msra.mxu0 0.0
  %4109 = vmatprep.subr.mxu0 0.0
  %4110 = vmatpush1.msra.mxu0 0.0
  %4111 = vmatprep.subr.mxu0 0.0
  %4112 = vmatpush1.msra.mxu0 0.0
  %4113 = vmatprep.subr.mxu0 0.0
  %4114 = vmatpush1.msra.mxu0 0.0
  %4115 = vmatprep.mubr.f32.mxu0 0.0
  %4116 = vmatmul.mubr.f32.gmra.mrb[0].mxu0 %v4004
  %v4117 = vpop.f32.mrb[0].mxu0
  %v4118 = vadd.f32 %v4001, %v4117
  %v4119 = vpop.f32.mrb[0].mxu0
  %4120 = vmatprep.mubr.f32.mxu0 0.0
  %4121 = vmatmul.mubr.f32.gmra.mrb[0].mxu0 %v4007
  %v4122 = vpop.f32.mrb[0].mxu0
  %v4123 = vadd.f32 %v4001, %v4122
  %v4124 = vpop.f32.mrb[0].mxu0
  %4125 = vmatprep.mubr.f32.mxu0 0.0
  %4126 = vmatmul.mubr.f32.gmra.mrb[0].mxu0 %v4010
  %v4127 = vpop.f32.mrb[0].mxu0
  %v4128 = vadd.f32 %v4001, %v4127
  %v4129 = vpop.f32.mrb[0].mxu0
  %4130 = vmatprep.mubr.f32.mxu0 0.0
  %4131 = vmatmul.mubr.f32.gmra.mrb[0].mxu0 %v4013
  %v4132 = vpop.f32.mrb[0].mxu0
  %v4133 = vadd.f32 %v4001, %v4132
  %v4134 = vpop.f32.mrb[0].mxu0
  %4135 = vmatprep.mubr.f32.mxu0 0.0
  %4136 = vmatmul.mubr.f32.gmra.mrb[0].mxu0 %v4016
  %v4137 = vpop.f32.mrb[0].mxu0
  %v4138 = vadd.f32 %v4001, %v4137
  %v4139 = vpop.f32.mrb[0].mxu0
  %4140 = vmatprep.mubr.f32.mxu0 0.0
  %4141 = vmatmul.mubr.f32.gmra.mrb[0].mxu0 %v4019
  %v4142 = vpop.f32.mrb[0].mxu0
  %v4143 = vadd.f32 %v4001, %v4142
  %v4144 = vpop.f32.mrb[0].mxu0
  %4145 = vmatprep.mubr.f32.mxu0 0.0
  %4146 = vmatmul.mubr.f32.gmra.mrb[0].mxu0 %v4022
  %v4147 = vpop.f32.mrb[0].mxu0
  %v4148 = vadd.f32 %v4001, %v4147
  %v4149 = vpop.f32.mrb[0].mxu0
  %4150 = vmatprep.mubr.f32.mxu0 0.0
  %4151 = vmatmul.mubr.f32.gmra.mrb[0].mxu0 %v4025
  %v4152 = vpop.f32.mrb[0].mxu0
  %v4153 = vadd.f32 %v4001, %v4152
  %v4154 = vpop.f32.mrb[0].mxu0
  %4155 = vmatprep.mubr.f32.mxu0 0.0
  %4156 = vmatmul.mubr.f32.gmra.mrb[0].mxu0 %v4028
  %v4157 = vpop.f32.mrb[0].mxu0
  %v4158 = vadd.f32 %v4001, %v4157
  %v4159 = vpop.f32.mrb[0].mxu0
  %4160 = vmatprep.mubr.f32.mxu0 0.0
  %4161 = vmatmul.mubr.f32.gmra.mrb[0].mxu0 %v4031
  %v4162 = vpop.f32.mrb[0].mxu0
  %v4163 = vadd.f32 %v4001, %v4162
  %v4164 = vpop.f32.mrb[0].mxu0
  %4165 = vmatprep.mubr.f32.mxu0 0.0
  %4166 = vmatmul.mubr.f32.gmra.mrb[0].mxu0 %v4034
  %v4167 = vpop.f32.mrb[0].mxu0
  %v4168 = vadd.f32 %v4001, %v4167
  %v4169 = vpop.f32.mrb[0].mxu0
  %4170 = vmatprep.mubr.f32.mxu0 0.0
  %4171 = vmatmul.mubr.f32.gmra.mrb[0].mxu0 %v4037
  %v4172 = vpop.f32.mrb[0].mxu0
  %v4173 = vadd.f32 %v4001, %v4172
  %v4174 = vpop.f32.mrb[0].mxu0
  %4175 = vmatprep.mubr.f32.mxu0 0.0
  %4176 = vmatmul.mubr.f32.gmra.mrb[0].mxu0 %v4040
  %v4177 = vpop.f32.mrb[0].mxu0
  %v4178 = vadd.f32 %v4001, %v4177
  %v4179 = vpop.f32.mrb[0].mxu0
  %4180 = vmatprep.mubr.f32.mxu0 0.0
  %4181 = vmatmul.mubr.f32.gmra.mrb[0].mxu0 %v4043
  %v4182 = vpop.f32.mrb[0].mxu0
  %v4183 = vadd.f32 %v4001, %v4182
  %v4184 = vpop.f32.mrb[0].mxu0
  %4185 = vmatprep.mubr.f32.mxu0 0.0
  %4186 = vmatmul.mubr.f32.gmra.mrb[0].mxu0 %v4046
  %v4187 = vpop.f32.mrb[0].mxu0
  %v4188 = vadd.f32 %v4001, %v4187
  %v4189 = vpop.f32.mrb[0].mxu0
  %4190 = vmatprep.mubr.f32.mxu0 0.0
  %4191 = vmatmul.mubr.f32.gmra.mrb[0].mxu0 %v4049
  %v4192 = vpop.f32.mrb[0].mxu0
  %v4193 = vadd.f32 %v4001, %v4192
  %v4194 = vpop.f32.mrb[0].mxu0
  %4195 = vdwg.mxu0
  %v4196 = vmul.f32 %v4118, 0.5
  %v4197 = vmul.f32 %v4123, 0.5
  %v4198 = vmul.f32 %v4128, 0.5
  %v4199 = vmul.f32 %v4133, 0.5
  %v4200 = vmul.f32 %v4138, 0.5
  %v4201 = vmul.f32 %v4143, 0.5
  %v4202 = vmul.f32 %v4148, 0.5
  %v4203 = vmul.f32 %v4153, 0.5
  %v4204 = vmul.f32 %v4158, 0.5
  %v4205 = vmul.f32 %v4163, 0.5
  %v4206 = vmul.f32 %v4168, 0.5
  %v4207 = vmul.f32 %v4173, 0.5
  %v4208 = vmul.f32 %v4178, 0.5
  %v4209 = vmul.f32 %v4183, 0.5
  %v4210 = vmul.f32 %v4188, 0.5
  %v4211 = vmul.f32 %v4193, 0.5
  %v4212 = vmul.f32 %v4118, 0.044715
  %v4213 = vmul.f32 %v4123, 0.044715
  %v4214 = vmul.f32 %v4128, 0.044715
  %v4215 = vmul.f32 %v4133, 0.044715
  %v4216 = vmul.f32 %v4138, 0.044715
  %v4217 = vmul.f32 %v4143, 0.044715
  %v4218 = vmul.f32 %v4148, 0.044715
  %v4219 = vmul.f32 %v4153, 0.044715
  %v4220 = vmul.f32 %v4158, 0.044715
  %v4221 = vmul.f32 %v4163, 0.044715
  %v4222 = vmul.f32 %v4168, 0.044715
  %v4223 = vmul.f32 %v4173, 0.044715
  %v4224 = vmul.f32 %v4178, 0.044715
  %v4225 = vmul.f32 %v4183, 0.044715
  %v4226 = vmul.f32 %v4188, 0.044715
  %v4227 = vmul.f32 %v4193, 0.044715
  %v4228 = vmul.f32 %v4212, %v4118
  %v4229 = vmul.f32 %v4213, %v4123
  %v4230 = vmul.f32 %v4214, %v4128
  %v4231 = vmul.f32 %v4215, %v4133
  %v4232 = vmul.f32 %v4216, %v4138
  %v4233 = vmul.f32 %v4217, %v4143
  %v4234 = vmul.f32 %v4218, %v4148
  %v4235 = vmul.f32 %v4219, %v4153
  %v4236 = vmul.f32 %v4220, %v4158
  %v4237 = vmul.f32 %v4221, %v4163
  %v4238 = vmul.f32 %v4222, %v4168
  %v4239 = vmul.f32 %v4223, %v4173
  %v4240 = vmul.f32 %v4224, %v4178
  %v4241 = vmul.f32 %v4225, %v4183
  %v4242 = vmul.f32 %v4226, %v4188
  %v4243 = vmul.f32 %v4227, %v4193
  %v4244 = vmul.f32 %v4228, %v4118
  %v4245 = vmul.f32 %v4229, %v4123
  %v4246 = vmul.f32 %v4230, %v4128
  %v4247 = vmul.f32 %v4231, %v4133
  %v4248 = vmul.f32 %v4232, %v4138
  %v4249 = vmul.f32 %v4233, %v4143
  %v4250 = vmul.f32 %v4234, %v4148
  %v4251 = vmul.f32 %v4235, %v4153
  %v4252 = vmul.f32 %v4236, %v4158
  %v4253 = vmul.f32 %v4237, %v4163
  %v4254 = vmul.f32 %v4238, %v4168
  %v4255 = vmul.f32 %v4239, %v4173
  %v4256 = vmul.f32 %v4240, %v4178
  %v4257 = vmul.f32 %v4241, %v4183
  %v4258 = vmul.f32 %v4242, %v4188
  %v4259 = vmul.f32 %v4243, %v4193
  %v4260 = vadd.f32 %v4118, %v4244
  %v4261 = vadd.f32 %v4123, %v4245
  %v4262 = vadd.f32 %v4128, %v4246
  %v4263 = vadd.f32 %v4133, %v4247
  %v4264 = vadd.f32 %v4138, %v4248
  %v4265 = vadd.f32 %v4143, %v4249
  %v4266 = vadd.f32 %v4148, %v4250
  %v4267 = vadd.f32 %v4153, %v4251
  %v4268 = vadd.f32 %v4158, %v4252
  %v4269 = vadd.f32 %v4163, %v4253
  %v4270 = vadd.f32 %v4168, %v4254
  %v4271 = vadd.f32 %v4173, %v4255
  %v4272 = vadd.f32 %v4178, %v4256
  %v4273 = vadd.f32 %v4183, %v4257
  %v4274 = vadd.f32 %v4188, %v4258
  %v4275 = vadd.f32 %v4193, %v4259
  %v4276 = vmul.f32 %v4260, 0.7978846
  %v4277 = vmul.f32 %v4261, 0.7978846
  %v4278 = vmul.f32 %v4262, 0.7978846
  %v4279 = vmul.f32 %v4263, 0.7978846
  %v4280 = vmul.f32 %v4264, 0.7978846
  %v4281 = vmul.f32 %v4265, 0.7978846
  %v4282 = vmul.f32 %v4266, 0.7978846
  %v4283 = vmul.f32 %v4267, 0.7978846
  %v4284 = vmul.f32 %v4268, 0.7978846
  %v4285 = vmul.f32 %v4269, 0.7978846
  %v4286 = vmul.f32 %v4270, 0.7978846
  %v4287 = vmul.f32 %v4271, 0.7978846
  %v4288 = vmul.f32 %v4272, 0.7978846
  %v4289 = vmul.f32 %v4273, 0.7978846
  %v4290 = vmul.f32 %v4274, 0.7978846
  %v4291 = vmul.f32 %v4275, 0.7978846
  %v4292 = vtanh.pop %v4276
  %v4293 = vtanh.pop %v4277
  %v4294 = vtanh.pop %v4278
  %v4295 = vtanh.pop %v4279
  %v4296 = vtanh.pop %v4280
  %v4297 = vtanh.pop %v4281
  %v4298 = vtanh.pop %v4282
  %v4299 = vtanh.pop %v4283
  %v4300 = vtanh.pop %v4284
  %v4301 = vtanh.pop %v4285
  %v4302 = vtanh.pop %v4286
  %v4303 = vtanh.pop %v4287
  %v4304 = vtanh.pop %v4288
  %v4305 = vtanh.pop %v4289
  %v4306 = vtanh.pop %v4290
  %v4307 = vtanh.pop %v4291
  %v4308 = vadd.f32 %v4292, 1.0
  %v4309 = vadd.f32 %v4293, 1.0
  %v4310 = vadd.f32 %v4294, 1.0
  %v4311 = vadd.f32 %v4295, 1.0
  %v4312 = vadd.f32 %v4296, 1.0
  %v4313 = vadd.f32 %v4297, 1.0
  %v4314 = vadd.f32 %v4298, 1.0
  %v4315 = vadd.f32 %v4299, 1.0
  %v4316 = vadd.f32 %v4300, 1.0
  %v4317 = vadd.f32 %v4301, 1.0
  %v4318 = vadd.f32 %v4302, 1.0
  %v4319 = vadd.f32 %v4303, 1.0
  %v4320 = vadd.f32 %v4304, 1.0
  %v4321 = vadd.f32 %v4305, 1.0
  %v4322 = vadd.f32 %v4306, 1.0
  %v4323 = vadd.f32 %v4307, 1.0
  %v4324 = vmul.f32 %v4196, %v4308
  %v4325 = vmul.f32 %v4197, %v4309
  %v4326 = vmul.f32 %v4198, %v4310
  %v4327 = vmul.f32 %v4199, %v4311
  %v4328 = vmul.f32 %v4200, %v4312
  %v4329 = vmul.f32 %v4201, %v4313
  %v4330 = vmul.f32 %v4202, %v4314
  %v4331 = vmul.f32 %v4203, %v4315
  %v4332 = vmul.f32 %v4204, %v4316
  %v4333 = vmul.f32 %v4205, %v4317
  %v4334 = vmul.f32 %v4206, %v4318
  %v4335 = vmul.f32 %v4207, %v4319
  %v4336 = vmul.f32 %v4208, %v4320
  %v4337 = vmul.f32 %v4209, %v4321
  %v4338 = vmul.f32 %v4210, %v4322
  %v4339 = vmul.f32 %v4211, %v4323
  %v4340 = vld [vmem:[%s12] sm:$0xff]
  %v4341 = vld [vmem:[%s12 + $0x8] sm:$0xff]
  %v4342 = vld [vmem:[%s12 + $0x10] sm:$0xff]
  %v4343 = vld [vmem:[%s12 + $0x18] sm:$0xff]
  %v4344 = vld [vmem:[%s12 + $0x20] sm:$0xff]
  %v4345 = vld [vmem:[%s12 + $0x28] sm:$0xff]
  %v4346 = vld [vmem:[%s12 + $0x30] sm:$0xff]
  %v4347 = vld [vmem:[%s12 + $0x38] sm:$0xff]
  %v4348 = vld [vmem:[%s12 + $0x40] sm:$0xff]
  %v4349 = vld [vmem:[%s12 + $0x48] sm:$0xff]
  %v4350 = vld [vmem:[%s12 + $0x50] sm:$0xff]
  %v4351 = vld [vmem:[%s12 + $0x58] sm:$0xff]
  %v4352 = vld [vmem:[%s12 + $0x60] sm:$0xff]
  %v4353 = vld [vmem:[%s12 + $0x68] sm:$0xff]
  %v4354 = vld [vmem:[%s12 + $0x70] sm:$0xff]
  %v4355 = vld [vmem:[%s12 + $0x78] sm:$0xff]
  %v4356 = vld [vmem:[%s13] sm:$0x1]
  %v4358 = vlaneseq
  %v4359 = vshrl.u32 %v4358, 7
  %v4360 = vsub.s32 0, %v4359
  %v4361 = vrot.slane %v4356, %v4360
  %4363 = vmatprep.subr.mxu0 0.0
  %4364 = vmatpush1.msra.mxu0 %v4340
  %4365 = vmatprep.subr.mxu0 0.0
  %4366 = vmatpush1.msra.mxu0 %v4341
  %4367 = vmatprep.subr.mxu0 0.0
  %4368 = vmatpush1.msra.mxu0 %v4342
  %4369 = vmatprep.subr.mxu0 0.0
  %4370 = vmatpush1.msra.mxu0 %v4343
  %4371 = vmatprep.subr.mxu0 0.0
  %4372 = vmatpush1.msra.mxu0 %v4344
  %4373 = vmatprep.subr.mxu0 0.0
  %4374 = vmatpush1.msra.mxu0 %v4345
  %4375 = vmatprep.subr.mxu0 0.0
  %4376 = vmatpush1.msra.mxu0 %v4346
  %4377 = vmatprep.subr.mxu0 0.0
  %4378 = vmatpush1.msra.mxu0 %v4347
  %4379 = vmatprep.subr.mxu0 0.0
  %4380 = vmatpush1.msra.mxu0 %v4348
  %4381 = vmatprep.subr.mxu0 0.0
  %4382 = vmatpush1.msra.mxu0 %v4349
  %4383 = vmatprep.subr.mxu0 0.0
  %4384 = vmatpush1.msra.mxu0 %v4350
  %4385 = vmatprep.subr.mxu0 0.0
  %4386 = vmatpush1.msra.mxu0 %v4351
  %4387 = vmatprep.subr.mxu0 0.0
  %4388 = vmatpush1.msra.mxu0 %v4352
  %4389 = vmatprep.subr.mxu0 0.0
  %4390 = vmatpush1.msra.mxu0 %v4353
  %4391 = vmatprep.subr.mxu0 0.0
  %4392 = vmatpush1.msra.mxu0 %v4354
  %4393 = vmatprep.subr.mxu0 0.0
  %4394 = vmatpush1.msra.mxu0 %v4355
  %4395 = vmatprep.subr.mxu0 0.0
  %4396 = vmatpush1.msra.mxu0 0.0
  %4397 = vmatprep.subr.mxu0 0.0
  %4398 = vmatpush1.msra.mxu0 0.0
  %4399 = vmatprep.subr.mxu0 0.0
  %4400 = vmatpush1.msra.mxu0 0.0
  %4401 = vmatprep.subr.mxu0 0.0
  %4402 = vmatpush1.msra.mxu0 0.0
  %4403 = vmatprep.subr.mxu0 0.0
  %4404 = vmatpush1.msra.mxu0 0.0
  %4405 = vmatprep.subr.mxu0 0.0
  %4406 = vmatpush1.msra.mxu0 0.0
  %4407 = vmatprep.subr.mxu0 0.0
  %4408 = vmatpush1.msra.mxu0 0.0
  %4409 = vmatprep.subr.mxu0 0.0
  %4410 = vmatpush1.msra.mxu0 0.0
  %4411 = vmatprep.subr.mxu0 0.0
  %4412 = vmatpush1.msra.mxu0 0.0
  %4413 = vmatprep.subr.mxu0 0.0
  %4414 = vmatpush1.msra.mxu0 0.0
  %4415 = vmatprep.subr.mxu0 0.0
  %4416 = vmatpush1.msra.mxu0 0.0
  %4417 = vmatprep.subr.mxu0 0.0
  %4418 = vmatpush1.msra.mxu0 0.0
  %4419 = vmatprep.subr.mxu0 0.0
  %4420 = vmatpush1.msra.mxu0 0.0
  %4421 = vmatprep.subr.mxu0 0.0
  %4422 = vmatpush1.msra.mxu0 0.0
  %4423 = vmatprep.subr.mxu0 0.0
  %4424 = vmatpush1.msra.mxu0 0.0
  %4425 = vmatprep.subr.mxu0 0.0
  %4426 = vmatpush1.msra.mxu0 0.0
  %4427 = vmatprep.mubr.f32.mxu0 0.0
  %4428 = vmatmul.mubr.f32.gmra.mrb[0].mxu0 %v4324
  %v4429 = vpop.f32.mrb[0].mxu0
  %v4430 = vadd.f32 %v4361, %v4429
  %v4431 = vpop.f32.mrb[0].mxu0
  %4432 = vmatprep.mubr.f32.mxu0 0.0
  %4433 = vmatmul.mubr.f32.gmra.mrb[0].mxu0 %v4325
  %v4434 = vpop.f32.mrb[0].mxu0
  %v4435 = vadd.f32 %v4361, %v4434
  %v4436 = vpop.f32.mrb[0].mxu0
  %4437 = vmatprep.mubr.f32.mxu0 0.0
  %4438 = vmatmul.mubr.f32.gmra.mrb[0].mxu0 %v4326
  %v4439 = vpop.f32.mrb[0].mxu0
  %v4440 = vadd.f32 %v4361, %v4439
  %v4441 = vpop.f32.mrb[0].mxu0
  %4442 = vmatprep.mubr.f32.mxu0 0.0
  %4443 = vmatmul.mubr.f32.gmra.mrb[0].mxu0 %v4327
  %v4444 = vpop.f32.mrb[0].mxu0
  %v4445 = vadd.f32 %v4361, %v4444
  %v4446 = vpop.f32.mrb[0].mxu0
  %4447 = vmatprep.mubr.f32.mxu0 0.0
  %4448 = vmatmul.mubr.f32.gmra.mrb[0].mxu0 %v4328
  %v4449 = vpop.f32.mrb[0].mxu0
  %v4450 = vadd.f32 %v4361, %v4449
  %v4451 = vpop.f32.mrb[0].mxu0
  %4452 = vmatprep.mubr.f32.mxu0 0.0
  %4453 = vmatmul.mubr.f32.gmra.mrb[0].mxu0 %v4329
  %v4454 = vpop.f32.mrb[0].mxu0
  %v4455 = vadd.f32 %v4361, %v4454
  %v4456 = vpop.f32.mrb[0].mxu0
  %4457 = vmatprep.mubr.f32.mxu0 0.0
  %4458 = vmatmul.mubr.f32.gmra.mrb[0].mxu0 %v4330
  %v4459 = vpop.f32.mrb[0].mxu0
  %v4460 = vadd.f32 %v4361, %v4459
  %v4461 = vpop.f32.mrb[0].mxu0
  %4462 = vmatprep.mubr.f32.mxu0 0.0
  %4463 = vmatmul.mubr.f32.gmra.mrb[0].mxu0 %v4331
  %v4464 = vpop.f32.mrb[0].mxu0
  %v4465 = vadd.f32 %v4361, %v4464
  %v4466 = vpop.f32.mrb[0].mxu0
  %4467 = vmatprep.mubr.f32.mxu0 0.0
  %4468 = vmatmul.mubr.f32.gmra.mrb[0].mxu0 %v4332
  %v4469 = vpop.f32.mrb[0].mxu0
  %v4470 = vadd.f32 %v4361, %v4469
  %v4471 = vpop.f32.mrb[0].mxu0
  %4472 = vmatprep.mubr.f32.mxu0 0.0
  %4473 = vmatmul.mubr.f32.gmra.mrb[0].mxu0 %v4333
  %v4474 = vpop.f32.mrb[0].mxu0
  %v4475 = vadd.f32 %v4361, %v4474
  %v4476 = vpop.f32.mrb[0].mxu0
  %4477 = vmatprep.mubr.f32.mxu0 0.0
  %4478 = vmatmul.mubr.f32.gmra.mrb[0].mxu0 %v4334
  %v4479 = vpop.f32.mrb[0].mxu0
  %v4480 = vadd.f32 %v4361, %v4479
  %v4481 = vpop.f32.mrb[0].mxu0
  %4482 = vmatprep.mubr.f32.mxu0 0.0
  %4483 = vmatmul.mubr.f32.gmra.mrb[0].mxu0 %v4335
  %v4484 = vpop.f32.mrb[0].mxu0
  %v4485 = vadd.f32 %v4361, %v4484
  %v4486 = vpop.f32.mrb[0].mxu0
  %4487 = vmatprep.mubr.f32.mxu0 0.0
  %4488 = vmatmul.mubr.f32.gmra.mrb[0].mxu0 %v4336
  %v4489 = vpop.f32.mrb[0].mxu0
  %v4490 = vadd.f32 %v4361, %v4489
  %v4491 = vpop.f32.mrb[0].mxu0
  %4492 = vmatprep.mubr.f32.mxu0 0.0
  %4493 = vmatmul.mubr.f32.gmra.mrb[0].mxu0 %v4337
  %v4494 = vpop.f32.mrb[0].mxu0
  %v4495 = vadd.f32 %v4361, %v4494
  %v4496 = vpop.f32.mrb[0].mxu0
  %4497 = vmatprep.mubr.f32.mxu0 0.0
  %4498 = vmatmul.mubr.f32.gmra.mrb[0].mxu0 %v4338
  %v4499 = vpop.f32.mrb[0].mxu0
  %v4500 = vadd.f32 %v4361, %v4499
  %v4501 = vpop.f32.mrb[0].mxu0
  %4502 = vmatprep.mubr.f32.mxu0 0.0
  %4503 = vmatmul.mubr.f32.gmra.mrb[0].mxu0 %v4339
  %v4504 = vpop.f32.mrb[0].mxu0
  %v4505 = vadd.f32 %v4361, %v4504
  %v4506 = vpop.f32.mrb[0].mxu0
  %4507 = vdwg.mxu0
  %v4508 = vadd.f32 %v4430, %v3610
  %v4509 = vadd.f32 %v4435, %v3611
  %v4510 = vadd.f32 %v4440, %v3612
  %v4511 = vadd.f32 %v4445, %v3613
  %v4512 = vadd.f32 %v4450, %v3614
  %v4513 = vadd.f32 %v4455, %v3615
  %v4514 = vadd.f32 %v4460, %v3616
  %v4515 = vadd.f32 %v4465, %v3617
  %v4516 = vadd.f32 %v4470, %v3618
  %v4517 = vadd.f32 %v4475, %v3619
  %v4518 = vadd.f32 %v4480, %v3620
  %v4519 = vadd.f32 %v4485, %v3621
  %v4520 = vadd.f32 %v4490, %v3622
  %v4521 = vadd.f32 %v4495, %v3623
  %v4522 = vadd.f32 %v4500, %v3624
  %v4523 = vadd.f32 %v4505, %v3625
  %v4540 = vrot.slane %v4508, 7
  %v4541 = vrot.slane %v4509, 7
  %v4542 = vrot.slane %v4510, 7
  %v4543 = vrot.slane %v4511, 7
  %v4544 = vrot.slane %v4512, 7
  %v4545 = vrot.slane %v4513, 7
  %v4546 = vrot.slane %v4514, 7
  %v4547 = vrot.slane %v4515, 7
  %v4548 = vrot.slane %v4516, 7
  %v4549 = vrot.slane %v4517, 7
  %v4550 = vrot.slane %v4518, 7
  %v4551 = vrot.slane %v4519, 7
  %v4552 = vrot.slane %v4520, 7
  %v4553 = vrot.slane %v4521, 7
  %v4554 = vrot.slane %v4522, 7
  %v4555 = vrot.slane %v4523, 7
  %v4572 = vsel %vm115, %v4540, %v4540
  %v4573 = vsel %vm115, %v4541, %v4541
  %v4574 = vsel %vm115, %v4542, %v4542
  %v4575 = vsel %vm115, %v4543, %v4543
  %v4576 = vsel %vm115, %v4544, %v4544
  %v4577 = vsel %vm115, %v4545, %v4545
  %v4578 = vsel %vm115, %v4546, %v4546
  %v4579 = vsel %vm115, %v4547, %v4547
  %v4580 = vsel %vm115, %v4548, %v4548
  %v4581 = vsel %vm115, %v4549, %v4549
  %v4582 = vsel %vm115, %v4550, %v4550
  %v4583 = vsel %vm115, %v4551, %v4551
  %v4584 = vsel %vm115, %v4552, %v4552
  %v4585 = vsel %vm115, %v4553, %v4553
  %v4586 = vsel %vm115, %v4554, %v4554
  %v4587 = vsel %vm115, %v4555, %v4555
  %v4588 = vsel %vm134, %v4579, 0.0
  %v4589 = vsel %vm135, %v4572, 0.0
  %v4590 = vsel %vm135, %v4573, 0.0
  %v4591 = vsel %vm135, %v4574, 0.0
  %v4592 = vsel %vm135, %v4575, 0.0
  %v4593 = vsel %vm135, %v4576, 0.0
  %v4594 = vsel %vm135, %v4577, 0.0
  %v4595 = vsel %vm135, %v4578, 0.0
  %v4596 = vsel %vm134, %v4587, 0.0
  %v4597 = vsel %vm135, %v4580, 0.0
  %v4598 = vsel %vm135, %v4581, 0.0
  %v4599 = vsel %vm135, %v4582, 0.0
  %v4600 = vsel %vm135, %v4583, 0.0
  %v4601 = vsel %vm135, %v4584, 0.0
  %v4602 = vsel %vm135, %v4585, 0.0
  %v4603 = vsel %vm135, %v4586, 0.0
  %v4604 = vsel 0, %v4515, 0.0
  %v4605 = vsel 1, %v4508, 0.0
  %v4606 = vsel 1, %v4509, 0.0
  %v4607 = vsel 1, %v4510, 0.0
  %v4608 = vsel 1, %v4511, 0.0
  %v4609 = vsel 1, %v4512, 0.0
  %v4610 = vsel 1, %v4513, 0.0
  %v4611 = vsel 1, %v4514, 0.0
  %v4612 = vsel 0, %v4523, 0.0
  %v4613 = vsel 1, %v4516, 0.0
  %v4614 = vsel 1, %v4517, 0.0
  %v4615 = vsel 1, %v4518, 0.0
  %v4616 = vsel 1, %v4519, 0.0
  %v4617 = vsel 1, %v4520, 0.0
  %v4618 = vsel 1, %v4521, 0.0
  %v4619 = vsel 1, %v4522, 0.0
  %v4620 = vrot.slane %v4508, 1
  %v4621 = vrot.slane %v4509, 1
  %v4622 = vrot.slane %v4510, 1
  %v4623 = vrot.slane %v4511, 1
  %v4624 = vrot.slane %v4512, 1
  %v4625 = vrot.slane %v4513, 1
  %v4626 = vrot.slane %v4514, 1
  %v4627 = vrot.slane %v4515, 1
  %v4628 = vrot.slane %v4516, 1
  %v4629 = vrot.slane %v4517, 1
  %v4630 = vrot.slane %v4518, 1
  %v4631 = vrot.slane %v4519, 1
  %v4632 = vrot.slane %v4520, 1
  %v4633 = vrot.slane %v4521, 1
  %v4634 = vrot.slane %v4522, 1
  %v4635 = vrot.slane %v4523, 1
  %v4652 = vsel %vm200, %v4620, %v4620
  %v4653 = vsel %vm200, %v4621, %v4621
  %v4654 = vsel %vm200, %v4622, %v4622
  %v4655 = vsel %vm200, %v4623, %v4623
  %v4656 = vsel %vm200, %v4624, %v4624
  %v4657 = vsel %vm200, %v4625, %v4625
  %v4658 = vsel %vm200, %v4626, %v4626
  %v4659 = vsel %vm200, %v4627, %v4627
  %v4660 = vsel %vm200, %v4628, %v4628
  %v4661 = vsel %vm200, %v4629, %v4629
  %v4662 = vsel %vm200, %v4630, %v4630
  %v4663 = vsel %vm200, %v4631, %v4631
  %v4664 = vsel %vm200, %v4632, %v4632
  %v4665 = vsel %vm200, %v4633, %v4633
  %v4666 = vsel %vm200, %v4634, %v4634
  %v4667 = vsel %vm200, %v4635, %v4635
  %v4668 = vsel %vm219, %v4659, 0.0
  %v4669 = vsel %vm220, %v4652, 0.0
  %v4670 = vsel %vm220, %v4653, 0.0
  %v4671 = vsel %vm220, %v4654, 0.0
  %v4672 = vsel %vm220, %v4655, 0.0
  %v4673 = vsel %vm220, %v4656, 0.0
  %v4674 = vsel %vm220, %v4657, 0.0
  %v4675 = vsel %vm220, %v4658, 0.0
  %v4676 = vsel %vm219, %v4667, 0.0
  %v4677 = vsel %vm220, %v4660, 0.0
  %v4678 = vsel %vm220, %v4661, 0.0
  %v4679 = vsel %vm220, %v4662, 0.0
  %v4680 = vsel %vm220, %v4663, 0.0
  %v4681 = vsel %vm220, %v4664, 0.0
  %v4682 = vsel %vm220, %v4665, 0.0
  %v4683 = vsel %vm220, %v4666, 0.0
  %v4684 = vsel %vm133, %v4572, 0.0
  %v4685 = vsel %vm133, %v4573, 0.0
  %v4686 = vsel %vm133, %v4574, 0.0
  %v4687 = vsel %vm133, %v4575, 0.0
  %v4688 = vsel %vm133, %v4576, 0.0
  %v4689 = vsel %vm133, %v4577, 0.0
  %v4690 = vsel %vm133, %v4578, 0.0
  %v4691 = vsel %vm133, %v4579, 0.0
  %v4692 = vsel %vm133, %v4580, 0.0
  %v4693 = vsel %vm133, %v4581, 0.0
  %v4694 = vsel %vm133, %v4582, 0.0
  %v4695 = vsel %vm133, %v4583, 0.0
  %v4696 = vsel %vm133, %v4584, 0.0
  %v4697 = vsel %vm133, %v4585, 0.0
  %v4698 = vsel %vm133, %v4586, 0.0
  %v4699 = vsel %vm133, %v4587, 0.0
  %v4700 = vsel %vm218, %v4652, 0.0
  %v4701 = vsel %vm218, %v4653, 0.0
  %v4702 = vsel %vm218, %v4654, 0.0
  %v4703 = vsel %vm218, %v4655, 0.0
  %v4704 = vsel %vm218, %v4656, 0.0
  %v4705 = vsel %vm218, %v4657, 0.0
  %v4706 = vsel %vm218, %v4658, 0.0
  %v4707 = vsel %vm218, %v4659, 0.0
  %v4708 = vsel %vm218, %v4660, 0.0
  %v4709 = vsel %vm218, %v4661, 0.0
  %v4710 = vsel %vm218, %v4662, 0.0
  %v4711 = vsel %vm218, %v4663, 0.0
  %v4712 = vsel %vm218, %v4664, 0.0
  %v4713 = vsel %vm218, %v4665, 0.0
  %v4714 = vsel %vm218, %v4666, 0.0
  %v4715 = vsel %vm218, %v4667, 0.0
  %v4716 = vsel %vm135, %v4579, 0.0
  %v4717 = vsel %vm134, %v4572, 0.0
  %v4718 = vsel %vm135, %v4587, 0.0
  %v4719 = vsel %vm134, %v4580, 0.0
  %v4720 = vsel 1, %v4515, 0.0
  %v4721 = vsel 0, %v4508, 0.0
  %v4722 = vsel 1, %v4523, 0.0
  %v4723 = vsel 0, %v4516, 0.0
  %v4724 = vsel %vm220, %v4659, 0.0
  %v4725 = vsel %vm219, %v4652, 0.0
  %v4726 = vsel %vm220, %v4667, 0.0
  %v4727 = vsel %vm219, %v4660, 0.0
  %4744 = vrot.lane.b32.xlu0 %v4604, 32
  %v4745 = vpop.permute.xlu0 %4744
  %4746 = vrot.lane.b32.xlu0 %v4605, 32
  %v4747 = vpop.permute.xlu0 %4746
  %4748 = vrot.lane.b32.xlu0 %v4606, 32
  %v4749 = vpop.permute.xlu0 %4748
  %4750 = vrot.lane.b32.xlu0 %v4607, 32
  %v4751 = vpop.permute.xlu0 %4750
  %4752 = vrot.lane.b32.xlu0 %v4608, 32
  %v4753 = vpop.permute.xlu0 %4752
  %4754 = vrot.lane.b32.xlu0 %v4609, 32
  %v4755 = vpop.permute.xlu0 %4754
  %4756 = vrot.lane.b32.xlu0 %v4610, 32
  %v4757 = vpop.permute.xlu0 %4756
  %4758 = vrot.lane.b32.xlu0 %v4611, 32
  %v4759 = vpop.permute.xlu0 %4758
  %4760 = vrot.lane.b32.xlu0 %v4612, 32
  %v4761 = vpop.permute.xlu0 %4760
  %4762 = vrot.lane.b32.xlu0 %v4613, 32
  %v4763 = vpop.permute.xlu0 %4762
  %4764 = vrot.lane.b32.xlu0 %v4614, 32
  %v4765 = vpop.permute.xlu0 %4764
  %4766 = vrot.lane.b32.xlu0 %v4615, 32
  %v4767 = vpop.permute.xlu0 %4766
  %4768 = vrot.lane.b32.xlu0 %v4616, 32
  %v4769 = vpop.permute.xlu0 %4768
  %4770 = vrot.lane.b32.xlu0 %v4617, 32
  %v4771 = vpop.permute.xlu0 %4770
  %4772 = vrot.lane.b32.xlu0 %v4618, 32
  %v4773 = vpop.permute.xlu0 %4772
  %4774 = vrot.lane.b32.xlu0 %v4619, 32
  %v4775 = vpop.permute.xlu0 %4774
  %4808 = vrot.lane.b32.xlu0 %v4668, 64
  %v4809 = vpop.permute.xlu0 %4808
  %4810 = vrot.lane.b32.xlu0 %v4669, 64
  %v4811 = vpop.permute.xlu0 %4810
  %4812 = vrot.lane.b32.xlu0 %v4670, 64
  %v4813 = vpop.permute.xlu0 %4812
  %4814 = vrot.lane.b32.xlu0 %v4671, 64
  %v4815 = vpop.permute.xlu0 %4814
  %4816 = vrot.lane.b32.xlu0 %v4672, 64
  %v4817 = vpop.permute.xlu0 %4816
  %4818 = vrot.lane.b32.xlu0 %v4673, 64
  %v4819 = vpop.permute.xlu0 %4818
  %4820 = vrot.lane.b32.xlu0 %v4674, 64
  %v4821 = vpop.permute.xlu0 %4820
  %4822 = vrot.lane.b32.xlu0 %v4675, 64
  %v4823 = vpop.permute.xlu0 %4822
  %4824 = vrot.lane.b32.xlu0 %v4676, 64
  %v4825 = vpop.permute.xlu0 %4824
  %4826 = vrot.lane.b32.xlu0 %v4677, 64
  %v4827 = vpop.permute.xlu0 %4826
  %4828 = vrot.lane.b32.xlu0 %v4678, 64
  %v4829 = vpop.permute.xlu0 %4828
  %4830 = vrot.lane.b32.xlu0 %v4679, 64
  %v4831 = vpop.permute.xlu0 %4830
  %4832 = vrot.lane.b32.xlu0 %v4680, 64
  %v4833 = vpop.permute.xlu0 %4832
  %4834 = vrot.lane.b32.xlu0 %v4681, 64
  %v4835 = vpop.permute.xlu0 %4834
  %4836 = vrot.lane.b32.xlu0 %v4682, 64
  %v4837 = vpop.permute.xlu0 %4836
  %4838 = vrot.lane.b32.xlu0 %v4683, 64
  %v4839 = vpop.permute.xlu0 %4838
  %4872 = vrot.lane.b32.xlu0 %v4684, 96
  %v4873 = vpop.permute.xlu0 %4872
  %4874 = vrot.lane.b32.xlu0 %v4685, 96
  %v4875 = vpop.permute.xlu0 %4874
  %4876 = vrot.lane.b32.xlu0 %v4686, 96
  %v4877 = vpop.permute.xlu0 %4876
  %4878 = vrot.lane.b32.xlu0 %v4687, 96
  %v4879 = vpop.permute.xlu0 %4878
  %4880 = vrot.lane.b32.xlu0 %v4688, 96
  %v4881 = vpop.permute.xlu0 %4880
  %4882 = vrot.lane.b32.xlu0 %v4689, 96
  %v4883 = vpop.permute.xlu0 %4882
  %4884 = vrot.lane.b32.xlu0 %v4690, 96
  %v4885 = vpop.permute.xlu0 %4884
  %4886 = vrot.lane.b32.xlu0 %v4691, 96
  %v4887 = vpop.permute.xlu0 %4886
  %4888 = vrot.lane.b32.xlu0 %v4692, 96
  %v4889 = vpop.permute.xlu0 %4888
  %4890 = vrot.lane.b32.xlu0 %v4693, 96
  %v4891 = vpop.permute.xlu0 %4890
  %4892 = vrot.lane.b32.xlu0 %v4694, 96
  %v4893 = vpop.permute.xlu0 %4892
  %4894 = vrot.lane.b32.xlu0 %v4695, 96
  %v4895 = vpop.permute.xlu0 %4894
  %4896 = vrot.lane.b32.xlu0 %v4696, 96
  %v4897 = vpop.permute.xlu0 %4896
  %4898 = vrot.lane.b32.xlu0 %v4697, 96
  %v4899 = vpop.permute.xlu0 %4898
  %4900 = vrot.lane.b32.xlu0 %v4698, 96
  %v4901 = vpop.permute.xlu0 %4900
  %4902 = vrot.lane.b32.xlu0 %v4699, 96
  %v4903 = vpop.permute.xlu0 %4902
  %4936 = vrot.lane.b32.xlu0 %v4700, 32
  %v4937 = vpop.permute.xlu0 %4936
  %4938 = vrot.lane.b32.xlu0 %v4701, 32
  %v4939 = vpop.permute.xlu0 %4938
  %4940 = vrot.lane.b32.xlu0 %v4702, 32
  %v4941 = vpop.permute.xlu0 %4940
  %4942 = vrot.lane.b32.xlu0 %v4703, 32
  %v4943 = vpop.permute.xlu0 %4942
  %4944 = vrot.lane.b32.xlu0 %v4704, 32
  %v4945 = vpop.permute.xlu0 %4944
  %4946 = vrot.lane.b32.xlu0 %v4705, 32
  %v4947 = vpop.permute.xlu0 %4946
  %4948 = vrot.lane.b32.xlu0 %v4706, 32
  %v4949 = vpop.permute.xlu0 %4948
  %4950 = vrot.lane.b32.xlu0 %v4707, 32
  %v4951 = vpop.permute.xlu0 %4950
  %4952 = vrot.lane.b32.xlu0 %v4708, 32
  %v4953 = vpop.permute.xlu0 %4952
  %4954 = vrot.lane.b32.xlu0 %v4709, 32
  %v4955 = vpop.permute.xlu0 %4954
  %4956 = vrot.lane.b32.xlu0 %v4710, 32
  %v4957 = vpop.permute.xlu0 %4956
  %4958 = vrot.lane.b32.xlu0 %v4711, 32
  %v4959 = vpop.permute.xlu0 %4958
  %4960 = vrot.lane.b32.xlu0 %v4712, 32
  %v4961 = vpop.permute.xlu0 %4960
  %4962 = vrot.lane.b32.xlu0 %v4713, 32
  %v4963 = vpop.permute.xlu0 %4962
  %4964 = vrot.lane.b32.xlu0 %v4714, 32
  %v4965 = vpop.permute.xlu0 %4964
  %4966 = vrot.lane.b32.xlu0 %v4715, 32
  %v4967 = vpop.permute.xlu0 %4966
  %5000 = vrot.lane.b32.xlu0 %v4590, 64
  %v5001 = vpop.permute.xlu0 %5000
  %5002 = vrot.lane.b32.xlu0 %v4591, 64
  %v5003 = vpop.permute.xlu0 %5002
  %5004 = vrot.lane.b32.xlu0 %v4592, 64
  %v5005 = vpop.permute.xlu0 %5004
  %5006 = vrot.lane.b32.xlu0 %v4593, 64
  %v5007 = vpop.permute.xlu0 %5006
  %5008 = vrot.lane.b32.xlu0 %v4594, 64
  %v5009 = vpop.permute.xlu0 %5008
  %5010 = vrot.lane.b32.xlu0 %v4595, 64
  %v5011 = vpop.permute.xlu0 %5010
  %5012 = vrot.lane.b32.xlu0 %v4716, 64
  %v5013 = vpop.permute.xlu0 %5012
  %5014 = vrot.lane.b32.xlu0 %v4717, 64
  %v5015 = vpop.permute.xlu0 %5014
  %5016 = vrot.lane.b32.xlu0 %v4598, 64
  %v5017 = vpop.permute.xlu0 %5016
  %5018 = vrot.lane.b32.xlu0 %v4599, 64
  %v5019 = vpop.permute.xlu0 %5018
  %5020 = vrot.lane.b32.xlu0 %v4600, 64
  %v5021 = vpop.permute.xlu0 %5020
  %5022 = vrot.lane.b32.xlu0 %v4601, 64
  %v5023 = vpop.permute.xlu0 %5022
  %5024 = vrot.lane.b32.xlu0 %v4602, 64
  %v5025 = vpop.permute.xlu0 %5024
  %5026 = vrot.lane.b32.xlu0 %v4603, 64
  %v5027 = vpop.permute.xlu0 %5026
  %5028 = vrot.lane.b32.xlu0 %v4718, 64
  %v5029 = vpop.permute.xlu0 %5028
  %5030 = vrot.lane.b32.xlu0 %v4719, 64
  %v5031 = vpop.permute.xlu0 %5030
  %5052 = vrot.lane.b32.xlu0 %v4606, 96
  %v5053 = vpop.permute.xlu0 %5052
  %5054 = vrot.lane.b32.xlu0 %v4607, 96
  %v5055 = vpop.permute.xlu0 %5054
  %5056 = vrot.lane.b32.xlu0 %v4608, 96
  %v5057 = vpop.permute.xlu0 %5056
  %5058 = vrot.lane.b32.xlu0 %v4609, 96
  %v5059 = vpop.permute.xlu0 %5058
  %5060 = vrot.lane.b32.xlu0 %v4610, 96
  %v5061 = vpop.permute.xlu0 %5060
  %5062 = vrot.lane.b32.xlu0 %v4611, 96
  %v5063 = vpop.permute.xlu0 %5062
  %5064 = vrot.lane.b32.xlu0 %v4720, 96
  %v5065 = vpop.permute.xlu0 %5064
  %5066 = vrot.lane.b32.xlu0 %v4721, 96
  %v5067 = vpop.permute.xlu0 %5066
  %5068 = vrot.lane.b32.xlu0 %v4614, 96
  %v5069 = vpop.permute.xlu0 %5068
  %5070 = vrot.lane.b32.xlu0 %v4615, 96
  %v5071 = vpop.permute.xlu0 %5070
  %5072 = vrot.lane.b32.xlu0 %v4616, 96
  %v5073 = vpop.permute.xlu0 %5072
  %5074 = vrot.lane.b32.xlu0 %v4617, 96
  %v5075 = vpop.permute.xlu0 %5074
  %5076 = vrot.lane.b32.xlu0 %v4618, 96
  %v5077 = vpop.permute.xlu0 %5076
  %5078 = vrot.lane.b32.xlu0 %v4619, 96
  %v5079 = vpop.permute.xlu0 %5078
  %5080 = vrot.lane.b32.xlu0 %v4722, 96
  %v5081 = vpop.permute.xlu0 %5080
  %5082 = vrot.lane.b32.xlu0 %v4723, 96
  %v5083 = vpop.permute.xlu0 %5082
  %v5100 = vsel %vm653, %v4588, %v4745
  %v5101 = vsel %vm653, %v4589, %v4747
  %v5102 = vsel %vm653, %v4590, %v4749
  %v5103 = vsel %vm653, %v4591, %v4751
  %v5104 = vsel %vm653, %v4592, %v4753
  %v5105 = vsel %vm653, %v4593, %v4755
  %v5106 = vsel %vm653, %v4594, %v4757
  %v5107 = vsel %vm653, %v4595, %v4759
  %v5108 = vsel %vm653, %v4596, %v4761
  %v5109 = vsel %vm653, %v4597, %v4763
  %v5110 = vsel %vm653, %v4598, %v4765
  %v5111 = vsel %vm653, %v4599, %v4767
  %v5112 = vsel %vm653, %v4600, %v4769
  %v5113 = vsel %vm653, %v4601, %v4771
  %v5114 = vsel %vm653, %v4602, %v4773
  %v5115 = vsel %vm653, %v4603, %v4775
  %v5116 = vsel %vm670, %v5100, %v4809
  %v5117 = vsel %vm670, %v5101, %v4811
  %v5118 = vsel %vm670, %v5102, %v4813
  %v5119 = vsel %vm670, %v5103, %v4815
  %v5120 = vsel %vm670, %v5104, %v4817
  %v5121 = vsel %vm670, %v5105, %v4819
  %v5122 = vsel %vm670, %v5106, %v4821
  %v5123 = vsel %vm670, %v5107, %v4823
  %v5124 = vsel %vm670, %v5108, %v4825
  %v5125 = vsel %vm670, %v5109, %v4827
  %v5126 = vsel %vm670, %v5110, %v4829
  %v5127 = vsel %vm670, %v5111, %v4831
  %v5128 = vsel %vm670, %v5112, %v4833
  %v5129 = vsel %vm670, %v5113, %v4835
  %v5130 = vsel %vm670, %v5114, %v4837
  %v5131 = vsel %vm670, %v5115, %v4839
  %v5132 = vsel %vm687, %v5116, %v4873
  %v5133 = vsel %vm687, %v5117, %v4875
  %v5134 = vsel %vm687, %v5118, %v4877
  %v5135 = vsel %vm687, %v5119, %v4879
  %v5136 = vsel %vm687, %v5120, %v4881
  %v5137 = vsel %vm687, %v5121, %v4883
  %v5138 = vsel %vm687, %v5122, %v4885
  %v5139 = vsel %vm687, %v5123, %v4887
  %v5140 = vsel %vm687, %v5124, %v4889
  %v5141 = vsel %vm687, %v5125, %v4891
  %v5142 = vsel %vm687, %v5126, %v4893
  %v5143 = vsel %vm687, %v5127, %v4895
  %v5144 = vsel %vm687, %v5128, %v4897
  %v5145 = vsel %vm687, %v5129, %v4899
  %v5146 = vsel %vm687, %v5130, %v4901
  %v5147 = vsel %vm687, %v5131, %v4903
  %v5148 = vsel %vm653, %v4508, %v4937
  %v5149 = vsel %vm653, %v4509, %v4939
  %v5150 = vsel %vm653, %v4510, %v4941
  %v5151 = vsel %vm653, %v4511, %v4943
  %v5152 = vsel %vm653, %v4512, %v4945
  %v5153 = vsel %vm653, %v4513, %v4947
  %v5154 = vsel %vm653, %v4514, %v4949
  %v5155 = vsel %vm653, %v4515, %v4951
  %v5156 = vsel %vm653, %v4516, %v4953
  %v5157 = vsel %vm653, %v4517, %v4955
  %v5158 = vsel %vm653, %v4518, %v4957
  %v5159 = vsel %vm653, %v4519, %v4959
  %v5160 = vsel %vm653, %v4520, %v4961
  %v5161 = vsel %vm653, %v4521, %v4963
  %v5162 = vsel %vm653, %v4522, %v4965
  %v5163 = vsel %vm653, %v4523, %v4967
  %v5164 = vsel %vm670, %v5148, %v5001
  %v5165 = vsel %vm670, %v5149, %v5003
  %v5166 = vsel %vm670, %v5150, %v5005
  %v5167 = vsel %vm670, %v5151, %v5007
  %v5168 = vsel %vm670, %v5152, %v5009
  %v5169 = vsel %vm670, %v5153, %v5011
  %v5170 = vsel %vm670, %v5154, %v5013
  %v5171 = vsel %vm670, %v5155, %v5015
  %v5172 = vsel %vm670, %v5156, %v5017
  %v5173 = vsel %vm670, %v5157, %v5019
  %v5174 = vsel %vm670, %v5158, %v5021
  %v5175 = vsel %vm670, %v5159, %v5023
  %v5176 = vsel %vm670, %v5160, %v5025
  %v5177 = vsel %vm670, %v5161, %v5027
  %v5178 = vsel %vm670, %v5162, %v5029
  %v5179 = vsel %vm670, %v5163, %v5031
  %v5180 = vsel %vm687, %v5164, %v5053
  %v5181 = vsel %vm687, %v5165, %v5055
  %v5182 = vsel %vm687, %v5166, %v5057
  %v5183 = vsel %vm687, %v5167, %v5059
  %v5184 = vsel %vm687, %v5168, %v5061
  %v5185 = vsel %vm687, %v5169, %v5063
  %v5186 = vsel %vm687, %v5170, %v5065
  %v5187 = vsel %vm687, %v5171, %v5067
  %v5188 = vsel %vm687, %v5172, %v5069
  %v5189 = vsel %vm687, %v5173, %v5071
  %v5190 = vsel %vm687, %v5174, %v5073
  %v5191 = vsel %vm687, %v5175, %v5075
  %v5192 = vsel %vm687, %v5176, %v5077
  %v5193 = vsel %vm687, %v5177, %v5079
  %v5194 = vsel %vm687, %v5178, %v5081
  %v5195 = vsel %vm687, %v5179, %v5083
  %s5196 = scalar_lea.vmem %s1, 288
  %v5197 = vld [vmem:[%s5196] sm:$0xff]
  %v5198 = vld [vmem:[%s5196 + $0x8] sm:$0xff]
  %v5199 = vld [vmem:[%s5196 + $0x10] sm:$0xff]
  %v5200 = vld [vmem:[%s5196 + $0x18] sm:$0xff]
  %v5201 = vld [vmem:[%s5196 + $0x20] sm:$0xff]
  %v5202 = vld [vmem:[%s5196 + $0x28] sm:$0xff]
  %v5203 = vld [vmem:[%s5196 + $0x30] sm:$0xff]
  %v5204 = vld [vmem:[%s5196 + $0x38] sm:$0xff]
  %v5205 = vld [vmem:[%s5196 + $0x40] sm:$0xff]
  %v5206 = vld [vmem:[%s5196 + $0x48] sm:$0xff]
  %v5207 = vld [vmem:[%s5196 + $0x50] sm:$0xff]
  %v5208 = vld [vmem:[%s5196 + $0x58] sm:$0xff]
  %v5209 = vld [vmem:[%s5196 + $0x60] sm:$0xff]
  %v5210 = vld [vmem:[%s5196 + $0x68] sm:$0xff]
  %v5211 = vld [vmem:[%s5196 + $0x70] sm:$0xff]
  %v5212 = vld [vmem:[%s5196 + $0x78] sm:$0xff]
  %v5213 = vld [vmem:[%s5196 + $0x80] sm:$0xff]
  %v5214 = vld [vmem:[%s5196 + $0x88] sm:$0xff]
  %v5215 = vld [vmem:[%s5196 + $0x90] sm:$0xff]
  %v5216 = vld [vmem:[%s5196 + $0x98] sm:$0xff]
  %v5217 = vld [vmem:[%s5196 + $0xa0] sm:$0xff]
  %v5218 = vld [vmem:[%s5196 + $0xa8] sm:$0xff]
  %v5219 = vld [vmem:[%s5196 + $0xb0] sm:$0xff]
  %v5220 = vld [vmem:[%s5196 + $0xb8] sm:$0xff]
  %v5221 = vld [vmem:[%s5196 + $0xc0] sm:$0xff]
  %v5222 = vld [vmem:[%s5196 + $0xc8] sm:$0xff]
  %v5223 = vld [vmem:[%s5196 + $0xd0] sm:$0xff]
  %v5224 = vld [vmem:[%s5196 + $0xd8] sm:$0xff]
  %v5225 = vld [vmem:[%s5196 + $0xe0] sm:$0xff]
  %v5226 = vld [vmem:[%s5196 + $0xe8] sm:$0xff]
  %v5227 = vld [vmem:[%s5196 + $0xf0] sm:$0xff]
  %v5228 = vld [vmem:[%s5196 + $0xf8] sm:$0xff]
  %v5229 = vld [vmem:[%s5196 + $0x100] sm:$0xff]
  %v5230 = vld [vmem:[%s5196 + $0x108] sm:$0xff]
  %v5231 = vld [vmem:[%s5196 + $0x110] sm:$0xff]
  %v5232 = vld [vmem:[%s5196 + $0x118] sm:$0xff]
  %s5233 = scalar_lea.vmem %s2, 1
  %v5234 = vld [vmem:[%s5233] sm:$0x1]
  %v5236 = vlaneseq
  %v5237 = vshrl.u32 %v5236, 7
  %v5238 = vsub.s32 0, %v5237
  %v5239 = vrot.slane %v5234, %v5238
  %v5241 = vsel %vm653, %v4670, 0
  %v5243 = vsel %vm653, %v4671, 0
  %v5245 = vsel %vm653, %v4672, 0
  %v5247 = vsel %vm653, %v4673, 0
  %v5249 = vsel %vm653, %v4674, 0
  %v5251 = vsel %vm653, %v4675, 0
  %v5254 = vsel %vm653, %v4724, 0
  %v5257 = vsel %vm653, %v4725, 0
  %v5259 = vsel %vm653, %v4678, 0
  %v5261 = vsel %vm653, %v4679, 0
  %v5263 = vsel %vm653, %v4680, 0
  %v5265 = vsel %vm653, %v4681, 0
  %v5267 = vsel %vm653, %v4682, 0
  %v5269 = vsel %vm653, %v4683, 0
  %v5272 = vsel %vm653, %v4726, 0
  %v5275 = vsel %vm653, %v4727, 0
  %5277 = vmatprep.subr.mxu0 0.0
  %5278 = vmatpush1.msra.mxu0 %v5197
  %5279 = vmatprep.subr.mxu0 0.0
  %5280 = vmatpush1.msra.mxu0 %v5198
  %5281 = vmatprep.subr.mxu0 0.0
  %5282 = vmatpush1.msra.mxu0 %v5199
  %5283 = vmatprep.subr.mxu0 0.0
  %5284 = vmatpush1.msra.mxu0 %v5200
  %5285 = vmatprep.subr.mxu0 0.0
  %5286 = vmatpush1.msra.mxu0 %v5201
  %5287 = vmatprep.subr.mxu0 0.0
  %5288 = vmatpush1.msra.mxu0 %v5202
  %5289 = vmatprep.subr.mxu0 0.0
  %5290 = vmatpush1.msra.mxu0 %v5203
  %5291 = vmatprep.subr.mxu0 0.0
  %5292 = vmatpush1.msra.mxu0 %v5204
  %5293 = vmatprep.subr.mxu0 0.0
  %5294 = vmatpush1.msra.mxu0 %v5205
  %5295 = vmatprep.subr.mxu0 0.0
  %5296 = vmatpush1.msra.mxu0 %v5206
  %5297 = vmatprep.subr.mxu0 0.0
  %5298 = vmatpush1.msra.mxu0 %v5207
  %5299 = vmatprep.subr.mxu0 0.0
  %5300 = vmatpush1.msra.mxu0 %v5208
  %5301 = vmatprep.subr.mxu0 0.0
  %5302 = vmatpush1.msra.mxu0 %v5209
  %5303 = vmatprep.subr.mxu0 0.0
  %5304 = vmatpush1.msra.mxu0 %v5210
  %5305 = vmatprep.subr.mxu0 0.0
  %5306 = vmatpush1.msra.mxu0 %v5211
  %5307 = vmatprep.subr.mxu0 0.0
  %5308 = vmatpush1.msra.mxu0 %v5212
  %5309 = vmatprep.subr.mxu0 0.0
  %5310 = vmatpush1.msra.mxu0 %v5213
  %5311 = vmatprep.subr.mxu0 0.0
  %5312 = vmatpush1.msra.mxu0 %v5214
  %5313 = vmatprep.subr.mxu0 0.0
  %5314 = vmatpush1.msra.mxu0 %v5215
  %5315 = vmatprep.subr.mxu0 0.0
  %5316 = vmatpush1.msra.mxu0 %v5216
  %5317 = vmatprep.subr.mxu0 0.0
  %5318 = vmatpush1.msra.mxu0 %v5217
  %5319 = vmatprep.subr.mxu0 0.0
  %5320 = vmatpush1.msra.mxu0 %v5218
  %5321 = vmatprep.subr.mxu0 0.0
  %5322 = vmatpush1.msra.mxu0 %v5219
  %5323 = vmatprep.subr.mxu0 0.0
  %5324 = vmatpush1.msra.mxu0 %v5220
  %5325 = vmatprep.subr.mxu0 0.0
  %5326 = vmatpush1.msra.mxu0 %v5221
  %5327 = vmatprep.subr.mxu0 0.0
  %5328 = vmatpush1.msra.mxu0 %v5222
  %5329 = vmatprep.subr.mxu0 0.0
  %5330 = vmatpush1.msra.mxu0 %v5223
  %5331 = vmatprep.subr.mxu0 0.0
  %5332 = vmatpush1.msra.mxu0 %v5224
  %5333 = vmatprep.subr.mxu0 0.0
  %5334 = vmatpush1.msra.mxu0 %v5225
  %5335 = vmatprep.subr.mxu0 0.0
  %5336 = vmatpush1.msra.mxu0 %v5226
  %5337 = vmatprep.subr.mxu0 0.0
  %5338 = vmatpush1.msra.mxu0 %v5227
  %5339 = vmatprep.subr.mxu0 0.0
  %5340 = vmatpush1.msra.mxu0 %v5228
  %5341 = vmatprep.mubr.f32.mxu0 %v5180
  %5342 = vmatmul.mubr.f32.gmra.mrb[0].mxu0 %v5132
  %v5343 = vpop.f32.mrb[0].mxu0
  %v5344 = vadd.f32 %v5239, %v5343
  %v5345 = vpop.f32.mrb[0].mxu0
  %5346 = vmatprep.mubr.f32.mxu0 %v5181
  %5347 = vmatmul.mubr.f32.gmra.mrb[0].mxu0 %v5133
  %v5348 = vpop.f32.mrb[0].mxu0
  %v5349 = vadd.f32 %v5239, %v5348
  %v5350 = vpop.f32.mrb[0].mxu0
  %5351 = vmatprep.mubr.f32.mxu0 %v5182
  %5352 = vmatmul.mubr.f32.gmra.mrb[0].mxu0 %v5134
  %v5353 = vpop.f32.mrb[0].mxu0
  %v5354 = vadd.f32 %v5239, %v5353
  %v5355 = vpop.f32.mrb[0].mxu0
  %5356 = vmatprep.mubr.f32.mxu0 %v5183
  %5357 = vmatmul.mubr.f32.gmra.mrb[0].mxu0 %v5135
  %v5358 = vpop.f32.mrb[0].mxu0
  %v5359 = vadd.f32 %v5239, %v5358
  %v5360 = vpop.f32.mrb[0].mxu0
  %5361 = vmatprep.mubr.f32.mxu0 %v5184
  %5362 = vmatmul.mubr.f32.gmra.mrb[0].mxu0 %v5136
  %v5363 = vpop.f32.mrb[0].mxu0
  %v5364 = vadd.f32 %v5239, %v5363
  %v5365 = vpop.f32.mrb[0].mxu0
  %5366 = vmatprep.mubr.f32.mxu0 %v5185
  %5367 = vmatmul.mubr.f32.gmra.mrb[0].mxu0 %v5137
  %v5368 = vpop.f32.mrb[0].mxu0
  %v5369 = vadd.f32 %v5239, %v5368
  %v5370 = vpop.f32.mrb[0].mxu0
  %5371 = vmatprep.mubr.f32.mxu0 %v5186
  %5372 = vmatmul.mubr.f32.gmra.mrb[0].mxu0 %v5138
  %v5373 = vpop.f32.mrb[0].mxu0
  %v5374 = vadd.f32 %v5239, %v5373
  %v5375 = vpop.f32.mrb[0].mxu0
  %5376 = vmatprep.mubr.f32.mxu0 %v5187
  %5377 = vmatmul.mubr.f32.gmra.mrb[0].mxu0 %v5139
  %v5378 = vpop.f32.mrb[0].mxu0
  %v5379 = vadd.f32 %v5239, %v5378
  %v5380 = vpop.f32.mrb[0].mxu0
  %5381 = vmatprep.mubr.f32.mxu0 %v5188
  %5382 = vmatmul.mubr.f32.gmra.mrb[0].mxu0 %v5140
  %v5383 = vpop.f32.mrb[0].mxu0
  %v5384 = vadd.f32 %v5239, %v5383
  %v5385 = vpop.f32.mrb[0].mxu0
  %5386 = vmatprep.mubr.f32.mxu0 %v5189
  %5387 = vmatmul.mubr.f32.gmra.mrb[0].mxu0 %v5141
  %v5388 = vpop.f32.mrb[0].mxu0
  %v5389 = vadd.f32 %v5239, %v5388
  %v5390 = vpop.f32.mrb[0].mxu0
  %5391 = vmatprep.mubr.f32.mxu0 %v5190
  %5392 = vmatmul.mubr.f32.gmra.mrb[0].mxu0 %v5142
  %v5393 = vpop.f32.mrb[0].mxu0
  %v5394 = vadd.f32 %v5239, %v5393
  %v5395 = vpop.f32.mrb[0].mxu0
  %5396 = vmatprep.mubr.f32.mxu0 %v5191
  %5397 = vmatmul.mubr.f32.gmra.mrb[0].mxu0 %v5143
  %v5398 = vpop.f32.mrb[0].mxu0
  %v5399 = vadd.f32 %v5239, %v5398
  %v5400 = vpop.f32.mrb[0].mxu0
  %5401 = vmatprep.mubr.f32.mxu0 %v5192
  %5402 = vmatmul.mubr.f32.gmra.mrb[0].mxu0 %v5144
  %v5403 = vpop.f32.mrb[0].mxu0
  %v5404 = vadd.f32 %v5239, %v5403
  %v5405 = vpop.f32.mrb[0].mxu0
  %5406 = vmatprep.mubr.f32.mxu0 %v5193
  %5407 = vmatmul.mubr.f32.gmra.mrb[0].mxu0 %v5145
  %v5408 = vpop.f32.mrb[0].mxu0
  %v5409 = vadd.f32 %v5239, %v5408
  %v5410 = vpop.f32.mrb[0].mxu0
  %5411 = vmatprep.mubr.f32.mxu0 %v5194
  %5412 = vmatmul.mubr.f32.gmra.mrb[0].mxu0 %v5146
  %v5413 = vpop.f32.mrb[0].mxu0
  %v5414 = vadd.f32 %v5239, %v5413
  %v5415 = vpop.f32.mrb[0].mxu0
  %5416 = vmatprep.mubr.f32.mxu0 %v5195
  %5417 = vmatmul.mubr.f32.gmra.mrb[0].mxu0 %v5147
  %v5418 = vpop.f32.mrb[0].mxu0
  %v5419 = vadd.f32 %v5239, %v5418
  %v5420 = vpop.f32.mrb[0].mxu0
  %5421 = vdwg.mxu0
  %5422 = vmatprep.subr.mxu0 0.0
  %5423 = vmatpush1.msra.mxu0 %v5229
  %5424 = vmatprep.subr.mxu0 0.0
  %5425 = vmatpush1.msra.mxu0 %v5230
  %5426 = vmatprep.subr.mxu0 0.0
  %5427 = vmatpush1.msra.mxu0 %v5231
  %5428 = vmatprep.subr.mxu0 0.0
  %5429 = vmatpush1.msra.mxu0 %v5232
  %5430 = vmatprep.subr.mxu0 0.0
  %5431 = vmatpush1.msra.mxu0 0.0
  %5432 = vmatprep.subr.mxu0 0.0
  %5433 = vmatpush1.msra.mxu0 0.0
  %5434 = vmatprep.subr.mxu0 0.0
  %5435 = vmatpush1.msra.mxu0 0.0
  %5436 = vmatprep.subr.mxu0 0.0
  %5437 = vmatpush1.msra.mxu0 0.0
  %5438 = vmatprep.subr.mxu0 0.0
  %5439 = vmatpush1.msra.mxu0 0.0
  %5440 = vmatprep.subr.mxu0 0.0
  %5441 = vmatpush1.msra.mxu0 0.0
  %5442 = vmatprep.subr.mxu0 0.0
  %5443 = vmatpush1.msra.mxu0 0.0
  %5444 = vmatprep.subr.mxu0 0.0
  %5445 = vmatpush1.msra.mxu0 0.0
  %5446 = vmatprep.subr.mxu0 0.0
  %5447 = vmatpush1.msra.mxu0 0.0
  %5448 = vmatprep.subr.mxu0 0.0
  %5449 = vmatpush1.msra.mxu0 0.0
  %5450 = vmatprep.subr.mxu0 0.0
  %5451 = vmatpush1.msra.mxu0 0.0
  %5452 = vmatprep.subr.mxu0 0.0
  %5453 = vmatpush1.msra.mxu0 0.0
  %5454 = vmatprep.subr.mxu0 0.0
  %5455 = vmatpush1.msra.mxu0 0.0
  %5456 = vmatprep.subr.mxu0 0.0
  %5457 = vmatpush1.msra.mxu0 0.0
  %5458 = vmatprep.subr.mxu0 0.0
  %5459 = vmatpush1.msra.mxu0 0.0
  %5460 = vmatprep.subr.mxu0 0.0
  %5461 = vmatpush1.msra.mxu0 0.0
  %5462 = vmatprep.subr.mxu0 0.0
  %5463 = vmatpush1.msra.mxu0 0.0
  %5464 = vmatprep.subr.mxu0 0.0
  %5465 = vmatpush1.msra.mxu0 0.0
  %5466 = vmatprep.subr.mxu0 0.0
  %5467 = vmatpush1.msra.mxu0 0.0
  %5468 = vmatprep.subr.mxu0 0.0
  %5469 = vmatpush1.msra.mxu0 0.0
  %5470 = vmatprep.subr.mxu0 0.0
  %5471 = vmatpush1.msra.mxu0 0.0
  %5472 = vmatprep.subr.mxu0 0.0
  %5473 = vmatpush1.msra.mxu0 0.0
  %5474 = vmatprep.subr.mxu0 0.0
  %5475 = vmatpush1.msra.mxu0 0.0
  %5476 = vmatprep.subr.mxu0 0.0
  %5477 = vmatpush1.msra.mxu0 0.0
  %5478 = vmatprep.subr.mxu0 0.0
  %5479 = vmatpush1.msra.mxu0 0.0
  %5480 = vmatprep.subr.mxu0 0.0
  %5481 = vmatpush1.msra.mxu0 0.0
  %5482 = vmatprep.subr.mxu0 0.0
  %5483 = vmatpush1.msra.mxu0 0.0
  %5484 = vmatprep.subr.mxu0 0.0
  %5485 = vmatpush1.msra.mxu0 0.0
  %5486 = vmatprep.mubr.f32.mxu0 0.0
  %5487 = vmatmul.mubr.f32.gmra.mrb[0].mxu0 %v5241
  %v5488 = vpop.f32.mrb[0].mxu0
  %v5489 = vadd.f32 %v5344, %v5488
  %v5490 = vpop.f32.mrb[0].mxu0
  %5491 = vmatprep.mubr.f32.mxu0 0.0
  %5492 = vmatmul.mubr.f32.gmra.mrb[0].mxu0 %v5243
  %v5493 = vpop.f32.mrb[0].mxu0
  %v5494 = vadd.f32 %v5349, %v5493
  %v5495 = vpop.f32.mrb[0].mxu0
  %5496 = vmatprep.mubr.f32.mxu0 0.0
  %5497 = vmatmul.mubr.f32.gmra.mrb[0].mxu0 %v5245
  %v5498 = vpop.f32.mrb[0].mxu0
  %v5499 = vadd.f32 %v5354, %v5498
  %v5500 = vpop.f32.mrb[0].mxu0
  %5501 = vmatprep.mubr.f32.mxu0 0.0
  %5502 = vmatmul.mubr.f32.gmra.mrb[0].mxu0 %v5247
  %v5503 = vpop.f32.mrb[0].mxu0
  %v5504 = vadd.f32 %v5359, %v5503
  %v5505 = vpop.f32.mrb[0].mxu0
  %5506 = vmatprep.mubr.f32.mxu0 0.0
  %5507 = vmatmul.mubr.f32.gmra.mrb[0].mxu0 %v5249
  %v5508 = vpop.f32.mrb[0].mxu0
  %v5509 = vadd.f32 %v5364, %v5508
  %v5510 = vpop.f32.mrb[0].mxu0
  %5511 = vmatprep.mubr.f32.mxu0 0.0
  %5512 = vmatmul.mubr.f32.gmra.mrb[0].mxu0 %v5251
  %v5513 = vpop.f32.mrb[0].mxu0
  %v5514 = vadd.f32 %v5369, %v5513
  %v5515 = vpop.f32.mrb[0].mxu0
  %5516 = vmatprep.mubr.f32.mxu0 0.0
  %5517 = vmatmul.mubr.f32.gmra.mrb[0].mxu0 %v5254
  %v5518 = vpop.f32.mrb[0].mxu0
  %v5519 = vadd.f32 %v5374, %v5518
  %v5520 = vpop.f32.mrb[0].mxu0
  %5521 = vmatprep.mubr.f32.mxu0 0.0
  %5522 = vmatmul.mubr.f32.gmra.mrb[0].mxu0 %v5257
  %v5523 = vpop.f32.mrb[0].mxu0
  %v5524 = vadd.f32 %v5379, %v5523
  %v5525 = vpop.f32.mrb[0].mxu0
  %5526 = vmatprep.mubr.f32.mxu0 0.0
  %5527 = vmatmul.mubr.f32.gmra.mrb[0].mxu0 %v5259
  %v5528 = vpop.f32.mrb[0].mxu0
  %v5529 = vadd.f32 %v5384, %v5528
  %v5530 = vpop.f32.mrb[0].mxu0
  %5531 = vmatprep.mubr.f32.mxu0 0.0
  %5532 = vmatmul.mubr.f32.gmra.mrb[0].mxu0 %v5261
  %v5533 = vpop.f32.mrb[0].mxu0
  %v5534 = vadd.f32 %v5389, %v5533
  %v5535 = vpop.f32.mrb[0].mxu0
  %5536 = vmatprep.mubr.f32.mxu0 0.0
  %5537 = vmatmul.mubr.f32.gmra.mrb[0].mxu0 %v5263
  %v5538 = vpop.f32.mrb[0].mxu0
  %v5539 = vadd.f32 %v5394, %v5538
  %v5540 = vpop.f32.mrb[0].mxu0
  %5541 = vmatprep.mubr.f32.mxu0 0.0
  %5542 = vmatmul.mubr.f32.gmra.mrb[0].mxu0 %v5265
  %v5543 = vpop.f32.mrb[0].mxu0
  %v5544 = vadd.f32 %v5399, %v5543
  %v5545 = vpop.f32.mrb[0].mxu0
  %5546 = vmatprep.mubr.f32.mxu0 0.0
  %5547 = vmatmul.mubr.f32.gmra.mrb[0].mxu0 %v5267
  %v5548 = vpop.f32.mrb[0].mxu0
  %v5549 = vadd.f32 %v5404, %v5548
  %v5550 = vpop.f32.mrb[0].mxu0
  %5551 = vmatprep.mubr.f32.mxu0 0.0
  %5552 = vmatmul.mubr.f32.gmra.mrb[0].mxu0 %v5269
  %v5553 = vpop.f32.mrb[0].mxu0
  %v5554 = vadd.f32 %v5409, %v5553
  %v5555 = vpop.f32.mrb[0].mxu0
  %5556 = vmatprep.mubr.f32.mxu0 0.0
  %5557 = vmatmul.mubr.f32.gmra.mrb[0].mxu0 %v5272
  %v5558 = vpop.f32.mrb[0].mxu0
  %v5559 = vadd.f32 %v5414, %v5558
  %v5560 = vpop.f32.mrb[0].mxu0
  %5561 = vmatprep.mubr.f32.mxu0 0.0
  %5562 = vmatmul.mubr.f32.gmra.mrb[0].mxu0 %v5275
  %v5563 = vpop.f32.mrb[0].mxu0
  %v5564 = vadd.f32 %v5419, %v5563
  %v5565 = vpop.f32.mrb[0].mxu0
  %5566 = vdwg.mxu0
  %v5567 = vadd.f32 %v5489, %v4508
  %v5568 = vadd.f32 %v5494, %v4509
  %v5569 = vadd.f32 %v5499, %v4510
  %v5570 = vadd.f32 %v5504, %v4511
  %v5571 = vadd.f32 %v5509, %v4512
  %v5572 = vadd.f32 %v5514, %v4513
  %v5573 = vadd.f32 %v5519, %v4514
  %v5574 = vadd.f32 %v5524, %v4515
  %v5575 = vadd.f32 %v5529, %v4516
  %v5576 = vadd.f32 %v5534, %v4517
  %v5577 = vadd.f32 %v5539, %v4518
  %v5578 = vadd.f32 %v5544, %v4519
  %v5579 = vadd.f32 %v5549, %v4520
  %v5580 = vadd.f32 %v5554, %v4521
  %v5581 = vadd.f32 %v5559, %v4522
  %v5582 = vadd.f32 %v5564, %v4523
  %s5583 = scalar_lea.vmem %s3, 1
  %v5584 = vld [vmem:[%s5583] sm:$0x1]
  %s5585 = scalar_lea.vmem %s4, 1
  %v5586 = vld [vmem:[%s5585] sm:$0x1]
  %v5587 = vsel %vm653, %v5567, 0.0
  %5588 = vadd.xlane.f32.xlu0 %v5587
  %v5589 = vpop.xlane.xlu0 %5588
  %v5590 = vsel %vm653, %v5568, 0.0
  %5591 = vadd.xlane.f32.xlu0 %v5590
  %v5592 = vpop.xlane.xlu0 %5591
  %v5593 = vsel %vm653, %v5569, 0.0
  %5594 = vadd.xlane.f32.xlu0 %v5593
  %v5595 = vpop.xlane.xlu0 %5594
  %v5596 = vsel %vm653, %v5570, 0.0
  %5597 = vadd.xlane.f32.xlu0 %v5596
  %v5598 = vpop.xlane.xlu0 %5597
  %v5599 = vsel %vm653, %v5571, 0.0
  %5600 = vadd.xlane.f32.xlu0 %v5599
  %v5601 = vpop.xlane.xlu0 %5600
  %v5602 = vsel %vm653, %v5572, 0.0
  %5603 = vadd.xlane.f32.xlu0 %v5602
  %v5604 = vpop.xlane.xlu0 %5603
  %v5605 = vsel %vm653, %v5573, 0.0
  %5606 = vadd.xlane.f32.xlu0 %v5605
  %v5607 = vpop.xlane.xlu0 %5606
  %v5608 = vsel %vm653, %v5574, 0.0
  %5609 = vadd.xlane.f32.xlu0 %v5608
  %v5610 = vpop.xlane.xlu0 %5609
  %v5611 = vsel %vm653, %v5575, 0.0
  %5612 = vadd.xlane.f32.xlu0 %v5611
  %v5613 = vpop.xlane.xlu0 %5612
  %v5614 = vsel %vm653, %v5576, 0.0
  %5615 = vadd.xlane.f32.xlu0 %v5614
  %v5616 = vpop.xlane.xlu0 %5615
  %v5617 = vsel %vm653, %v5577, 0.0
  %5618 = vadd.xlane.f32.xlu0 %v5617
  %v5619 = vpop.xlane.xlu0 %5618
  %v5620 = vsel %vm653, %v5578, 0.0
  %5621 = vadd.xlane.f32.xlu0 %v5620
  %v5622 = vpop.xlane.xlu0 %5621
  %v5623 = vsel %vm653, %v5579, 0.0
  %5624 = vadd.xlane.f32.xlu0 %v5623
  %v5625 = vpop.xlane.xlu0 %5624
  %v5626 = vsel %vm653, %v5580, 0.0
  %5627 = vadd.xlane.f32.xlu0 %v5626
  %v5628 = vpop.xlane.xlu0 %5627
  %v5629 = vsel %vm653, %v5581, 0.0
  %5630 = vadd.xlane.f32.xlu0 %v5629
  %v5631 = vpop.xlane.xlu0 %5630
  %v5632 = vsel %vm653, %v5582, 0.0
  %5633 = vadd.xlane.f32.xlu0 %v5632
  %v5634 = vpop.xlane.xlu0 %5633
  %v5635 = vmul.f32 %v5589, %v1187
  %v5636 = vmul.f32 %v5592, %v1187
  %v5637 = vmul.f32 %v5595, %v1187
  %v5638 = vmul.f32 %v5598, %v1187
  %v5639 = vmul.f32 %v5601, %v1187
  %v5640 = vmul.f32 %v5604, %v1187
  %v5641 = vmul.f32 %v5607, %v1187
  %v5642 = vmul.f32 %v5610, %v1187
  %v5643 = vmul.f32 %v5613, %v1187
  %v5644 = vmul.f32 %v5616, %v1187
  %v5645 = vmul.f32 %v5619, %v1187
  %v5646 = vmul.f32 %v5622, %v1187
  %v5647 = vmul.f32 %v5625, %v1187
  %v5648 = vmul.f32 %v5628, %v1187
  %v5649 = vmul.f32 %v5631, %v1187
  %v5650 = vmul.f32 %v5634, %v1187
  %v5651 = vsub.f32 %v5567, %v5635
  %v5652 = vsub.f32 %v5568, %v5636
  %v5653 = vsub.f32 %v5569, %v5637
  %v5654 = vsub.f32 %v5570, %v5638
  %v5655 = vsub.f32 %v5571, %v5639
  %v5656 = vsub.f32 %v5572, %v5640
  %v5657 = vsub.f32 %v5573, %v5641
  %v5658 = vsub.f32 %v5574, %v5642
  %v5659 = vsub.f32 %v5575, %v5643
  %v5660 = vsub.f32 %v5576, %v5644
  %v5661 = vsub.f32 %v5577, %v5645
  %v5662 = vsub.f32 %v5578, %v5646
  %v5663 = vsub.f32 %v5579, %v5647
  %v5664 = vsub.f32 %v5580, %v5648
  %v5665 = vsub.f32 %v5581, %v5649
  %v5666 = vsub.f32 %v5582, %v5650
  %v5667 = vmul.f32 %v5651, %v5651
  %v5668 = vmul.f32 %v5652, %v5652
  %v5669 = vmul.f32 %v5653, %v5653
  %v5670 = vmul.f32 %v5654, %v5654
  %v5671 = vmul.f32 %v5655, %v5655
  %v5672 = vmul.f32 %v5656, %v5656
  %v5673 = vmul.f32 %v5657, %v5657
  %v5674 = vmul.f32 %v5658, %v5658
  %v5675 = vmul.f32 %v5659, %v5659
  %v5676 = vmul.f32 %v5660, %v5660
  %v5677 = vmul.f32 %v5661, %v5661
  %v5678 = vmul.f32 %v5662, %v5662
  %v5679 = vmul.f32 %v5663, %v5663
  %v5680 = vmul.f32 %v5664, %v5664
  %v5681 = vmul.f32 %v5665, %v5665
  %v5682 = vmul.f32 %v5666, %v5666
  %v5683 = vsel %vm653, %v5667, 0.0
  %5684 = vadd.xlane.f32.xlu0 %v5683
  %v5685 = vpop.xlane.xlu0 %5684
  %v5686 = vsel %vm653, %v5668, 0.0
  %5687 = vadd.xlane.f32.xlu0 %v5686
  %v5688 = vpop.xlane.xlu0 %5687
  %v5689 = vsel %vm653, %v5669, 0.0
  %5690 = vadd.xlane.f32.xlu0 %v5689
  %v5691 = vpop.xlane.xlu0 %5690
  %v5692 = vsel %vm653, %v5670, 0.0
  %5693 = vadd.xlane.f32.xlu0 %v5692
  %v5694 = vpop.xlane.xlu0 %5693
  %v5695 = vsel %vm653, %v5671, 0.0
  %5696 = vadd.xlane.f32.xlu0 %v5695
  %v5697 = vpop.xlane.xlu0 %5696
  %v5698 = vsel %vm653, %v5672, 0.0
  %5699 = vadd.xlane.f32.xlu0 %v5698
  %v5700 = vpop.xlane.xlu0 %5699
  %v5701 = vsel %vm653, %v5673, 0.0
  %5702 = vadd.xlane.f32.xlu0 %v5701
  %v5703 = vpop.xlane.xlu0 %5702
  %v5704 = vsel %vm653, %v5674, 0.0
  %5705 = vadd.xlane.f32.xlu0 %v5704
  %v5706 = vpop.xlane.xlu0 %5705
  %v5707 = vsel %vm653, %v5675, 0.0
  %5708 = vadd.xlane.f32.xlu0 %v5707
  %v5709 = vpop.xlane.xlu0 %5708
  %v5710 = vsel %vm653, %v5676, 0.0
  %5711 = vadd.xlane.f32.xlu0 %v5710
  %v5712 = vpop.xlane.xlu0 %5711
  %v5713 = vsel %vm653, %v5677, 0.0
  %5714 = vadd.xlane.f32.xlu0 %v5713
  %v5715 = vpop.xlane.xlu0 %5714
  %v5716 = vsel %vm653, %v5678, 0.0
  %5717 = vadd.xlane.f32.xlu0 %v5716
  %v5718 = vpop.xlane.xlu0 %5717
  %v5719 = vsel %vm653, %v5679, 0.0
  %5720 = vadd.xlane.f32.xlu0 %v5719
  %v5721 = vpop.xlane.xlu0 %5720
  %v5722 = vsel %vm653, %v5680, 0.0
  %5723 = vadd.xlane.f32.xlu0 %v5722
  %v5724 = vpop.xlane.xlu0 %5723
  %v5725 = vsel %vm653, %v5681, 0.0
  %5726 = vadd.xlane.f32.xlu0 %v5725
  %v5727 = vpop.xlane.xlu0 %5726
  %v5728 = vsel %vm653, %v5682, 0.0
  %5729 = vadd.xlane.f32.xlu0 %v5728
  %v5730 = vpop.xlane.xlu0 %5729
  %v5731 = vmul.f32 %v5685, %v1187
  %v5732 = vmul.f32 %v5688, %v1187
  %v5733 = vmul.f32 %v5691, %v1187
  %v5734 = vmul.f32 %v5694, %v1187
  %v5735 = vmul.f32 %v5697, %v1187
  %v5736 = vmul.f32 %v5700, %v1187
  %v5737 = vmul.f32 %v5703, %v1187
  %v5738 = vmul.f32 %v5706, %v1187
  %v5739 = vmul.f32 %v5709, %v1187
  %v5740 = vmul.f32 %v5712, %v1187
  %v5741 = vmul.f32 %v5715, %v1187
  %v5742 = vmul.f32 %v5718, %v1187
  %v5743 = vmul.f32 %v5721, %v1187
  %v5744 = vmul.f32 %v5724, %v1187
  %v5745 = vmul.f32 %v5727, %v1187
  %v5746 = vmul.f32 %v5730, %v1187
  %v5747 = vrsqrt.pop %v5731
  %v5748 = vmul.f32 %v5731, %v5747
  %vm5749 = vcmp.eq.f32.partialorder %v5731, inf
  %v5750 = vsel %vm5749, %v5731, %v5748
  %vm5751 = vcmp.eq.f32.partialorder %v5731, 0.0
  %v5752 = vand.u32 %v5731, 2147483648
  %v5753 = vsel %vm5751, %v5752, %v5750
  %v5754 = vrsqrt.pop %v5732
  %v5755 = vmul.f32 %v5732, %v5754
  %vm5756 = vcmp.eq.f32.partialorder %v5732, inf
  %v5757 = vsel %vm5756, %v5732, %v5755
  %vm5758 = vcmp.eq.f32.partialorder %v5732, 0.0
  %v5759 = vand.u32 %v5732, 2147483648
  %v5760 = vsel %vm5758, %v5759, %v5757
  %v5761 = vrsqrt.pop %v5733
  %v5762 = vmul.f32 %v5733, %v5761
  %vm5763 = vcmp.eq.f32.partialorder %v5733, inf
  %v5764 = vsel %vm5763, %v5733, %v5762
  %vm5765 = vcmp.eq.f32.partialorder %v5733, 0.0
  %v5766 = vand.u32 %v5733, 2147483648
  %v5767 = vsel %vm5765, %v5766, %v5764
  %v5768 = vrsqrt.pop %v5734
  %v5769 = vmul.f32 %v5734, %v5768
  %vm5770 = vcmp.eq.f32.partialorder %v5734, inf
  %v5771 = vsel %vm5770, %v5734, %v5769
  %vm5772 = vcmp.eq.f32.partialorder %v5734, 0.0
  %v5773 = vand.u32 %v5734, 2147483648
  %v5774 = vsel %vm5772, %v5773, %v5771
  %v5775 = vrsqrt.pop %v5735
  %v5776 = vmul.f32 %v5735, %v5775
  %vm5777 = vcmp.eq.f32.partialorder %v5735, inf
  %v5778 = vsel %vm5777, %v5735, %v5776
  %vm5779 = vcmp.eq.f32.partialorder %v5735, 0.0
  %v5780 = vand.u32 %v5735, 2147483648
  %v5781 = vsel %vm5779, %v5780, %v5778
  %v5782 = vrsqrt.pop %v5736
  %v5783 = vmul.f32 %v5736, %v5782
  %vm5784 = vcmp.eq.f32.partialorder %v5736, inf
  %v5785 = vsel %vm5784, %v5736, %v5783
  %vm5786 = vcmp.eq.f32.partialorder %v5736, 0.0
  %v5787 = vand.u32 %v5736, 2147483648
  %v5788 = vsel %vm5786, %v5787, %v5785
  %v5789 = vrsqrt.pop %v5737
  %v5790 = vmul.f32 %v5737, %v5789
  %vm5791 = vcmp.eq.f32.partialorder %v5737, inf
  %v5792 = vsel %vm5791, %v5737, %v5790
  %vm5793 = vcmp.eq.f32.partialorder %v5737, 0.0
  %v5794 = vand.u32 %v5737, 2147483648
  %v5795 = vsel %vm5793, %v5794, %v5792
  %v5796 = vrsqrt.pop %v5738
  %v5797 = vmul.f32 %v5738, %v5796
  %vm5798 = vcmp.eq.f32.partialorder %v5738, inf
  %v5799 = vsel %vm5798, %v5738, %v5797
  %vm5800 = vcmp.eq.f32.partialorder %v5738, 0.0
  %v5801 = vand.u32 %v5738, 2147483648
  %v5802 = vsel %vm5800, %v5801, %v5799
  %v5803 = vrsqrt.pop %v5739
  %v5804 = vmul.f32 %v5739, %v5803
  %vm5805 = vcmp.eq.f32.partialorder %v5739, inf
  %v5806 = vsel %vm5805, %v5739, %v5804
  %vm5807 = vcmp.eq.f32.partialorder %v5739, 0.0
  %v5808 = vand.u32 %v5739, 2147483648
  %v5809 = vsel %vm5807, %v5808, %v5806
  %v5810 = vrsqrt.pop %v5740
  %v5811 = vmul.f32 %v5740, %v5810
  %vm5812 = vcmp.eq.f32.partialorder %v5740, inf
  %v5813 = vsel %vm5812, %v5740, %v5811
  %vm5814 = vcmp.eq.f32.partialorder %v5740, 0.0
  %v5815 = vand.u32 %v5740, 2147483648
  %v5816 = vsel %vm5814, %v5815, %v5813
  %v5817 = vrsqrt.pop %v5741
  %v5818 = vmul.f32 %v5741, %v5817
  %vm5819 = vcmp.eq.f32.partialorder %v5741, inf
  %v5820 = vsel %vm5819, %v5741, %v5818
  %vm5821 = vcmp.eq.f32.partialorder %v5741, 0.0
  %v5822 = vand.u32 %v5741, 2147483648
  %v5823 = vsel %vm5821, %v5822, %v5820
  %v5824 = vrsqrt.pop %v5742
  %v5825 = vmul.f32 %v5742, %v5824
  %vm5826 = vcmp.eq.f32.partialorder %v5742, inf
  %v5827 = vsel %vm5826, %v5742, %v5825
  %vm5828 = vcmp.eq.f32.partialorder %v5742, 0.0
  %v5829 = vand.u32 %v5742, 2147483648
  %v5830 = vsel %vm5828, %v5829, %v5827
  %v5831 = vrsqrt.pop %v5743
  %v5832 = vmul.f32 %v5743, %v5831
  %vm5833 = vcmp.eq.f32.partialorder %v5743, inf
  %v5834 = vsel %vm5833, %v5743, %v5832
  %vm5835 = vcmp.eq.f32.partialorder %v5743, 0.0
  %v5836 = vand.u32 %v5743, 2147483648
  %v5837 = vsel %vm5835, %v5836, %v5834
  %v5838 = vrsqrt.pop %v5744
  %v5839 = vmul.f32 %v5744, %v5838
  %vm5840 = vcmp.eq.f32.partialorder %v5744, inf
  %v5841 = vsel %vm5840, %v5744, %v5839
  %vm5842 = vcmp.eq.f32.partialorder %v5744, 0.0
  %v5843 = vand.u32 %v5744, 2147483648
  %v5844 = vsel %vm5842, %v5843, %v5841
  %v5845 = vrsqrt.pop %v5745
  %v5846 = vmul.f32 %v5745, %v5845
  %vm5847 = vcmp.eq.f32.partialorder %v5745, inf
  %v5848 = vsel %vm5847, %v5745, %v5846
  %vm5849 = vcmp.eq.f32.partialorder %v5745, 0.0
  %v5850 = vand.u32 %v5745, 2147483648
  %v5851 = vsel %vm5849, %v5850, %v5848
  %v5852 = vrsqrt.pop %v5746
  %v5853 = vmul.f32 %v5746, %v5852
  %vm5854 = vcmp.eq.f32.partialorder %v5746, inf
  %v5855 = vsel %vm5854, %v5746, %v5853
  %vm5856 = vcmp.eq.f32.partialorder %v5746, 0.0
  %v5857 = vand.u32 %v5746, 2147483648
  %v5858 = vsel %vm5856, %v5857, %v5855
  %v5859 = vadd.f32 %v5753, 1e-05
  %v5860 = vadd.f32 %v5760, 1e-05
  %v5861 = vadd.f32 %v5767, 1e-05
  %v5862 = vadd.f32 %v5774, 1e-05
  %v5863 = vadd.f32 %v5781, 1e-05
  %v5864 = vadd.f32 %v5788, 1e-05
  %v5865 = vadd.f32 %v5795, 1e-05
  %v5866 = vadd.f32 %v5802, 1e-05
  %v5867 = vadd.f32 %v5809, 1e-05
  %v5868 = vadd.f32 %v5816, 1e-05
  %v5869 = vadd.f32 %v5823, 1e-05
  %v5870 = vadd.f32 %v5830, 1e-05
  %v5871 = vadd.f32 %v5837, 1e-05
  %v5872 = vadd.f32 %v5844, 1e-05
  %v5873 = vadd.f32 %v5851, 1e-05
  %v5874 = vadd.f32 %v5858, 1e-05
  %v5875 = vrcp.pop %v5859
  %v5876 = vmul.f32 %v5651, %v5875
  %v5877 = vrcp.pop %v5860
  %v5878 = vmul.f32 %v5652, %v5877
  %v5879 = vrcp.pop %v5861
  %v5880 = vmul.f32 %v5653, %v5879
  %v5881 = vrcp.pop %v5862
  %v5882 = vmul.f32 %v5654, %v5881
  %v5883 = vrcp.pop %v5863
  %v5884 = vmul.f32 %v5655, %v5883
  %v5885 = vrcp.pop %v5864
  %v5886 = vmul.f32 %v5656, %v5885
  %v5887 = vrcp.pop %v5865
  %v5888 = vmul.f32 %v5657, %v5887
  %v5889 = vrcp.pop %v5866
  %v5890 = vmul.f32 %v5658, %v5889
  %v5891 = vrcp.pop %v5867
  %v5892 = vmul.f32 %v5659, %v5891
  %v5893 = vrcp.pop %v5868
  %v5894 = vmul.f32 %v5660, %v5893
  %v5895 = vrcp.pop %v5869
  %v5896 = vmul.f32 %v5661, %v5895
  %v5897 = vrcp.pop %v5870
  %v5898 = vmul.f32 %v5662, %v5897
  %v5899 = vrcp.pop %v5871
  %v5900 = vmul.f32 %v5663, %v5899
  %v5901 = vrcp.pop %v5872
  %v5902 = vmul.f32 %v5664, %v5901
  %v5903 = vrcp.pop %v5873
  %v5904 = vmul.f32 %v5665, %v5903
  %v5905 = vrcp.pop %v5874
  %v5906 = vmul.f32 %v5666, %v5905
  %v5908 = vlaneseq
  %v5909 = vshrl.u32 %v5908, 7
  %v5910 = vsub.s32 0, %v5909
  %v5911 = vrot.slane %v5584, %v5910
  %v5913 = vmul.f32 %v5876, %v5911
  %v5914 = vmul.f32 %v5878, %v5911
  %v5915 = vmul.f32 %v5880, %v5911
  %v5916 = vmul.f32 %v5882, %v5911
  %v5917 = vmul.f32 %v5884, %v5911
  %v5918 = vmul.f32 %v5886, %v5911
  %v5919 = vmul.f32 %v5888, %v5911
  %v5920 = vmul.f32 %v5890, %v5911
  %v5921 = vmul.f32 %v5892, %v5911
  %v5922 = vmul.f32 %v5894, %v5911
  %v5923 = vmul.f32 %v5896, %v5911
  %v5924 = vmul.f32 %v5898, %v5911
  %v5925 = vmul.f32 %v5900, %v5911
  %v5926 = vmul.f32 %v5902, %v5911
  %v5927 = vmul.f32 %v5904, %v5911
  %v5928 = vmul.f32 %v5906, %v5911
  %v5930 = vlaneseq
  %v5931 = vshrl.u32 %v5930, 7
  %v5932 = vsub.s32 0, %v5931
  %v5933 = vrot.slane %v5586, %v5932
  %v5935 = vadd.f32 %v5913, %v5933
  %v5936 = vadd.f32 %v5914, %v5933
  %v5937 = vadd.f32 %v5915, %v5933
  %v5938 = vadd.f32 %v5916, %v5933
  %v5939 = vadd.f32 %v5917, %v5933
  %v5940 = vadd.f32 %v5918, %v5933
  %v5941 = vadd.f32 %v5919, %v5933
  %v5942 = vadd.f32 %v5920, %v5933
  %v5943 = vadd.f32 %v5921, %v5933
  %v5944 = vadd.f32 %v5922, %v5933
  %v5945 = vadd.f32 %v5923, %v5933
  %v5946 = vadd.f32 %v5924, %v5933
  %v5947 = vadd.f32 %v5925, %v5933
  %v5948 = vadd.f32 %v5926, %v5933
  %v5949 = vadd.f32 %v5927, %v5933
  %v5950 = vadd.f32 %v5928, %v5933
  %s5951 = scalar_lea.vmem %s5, 32
  %v5952 = vld [vmem:[%s5951] sm:$0xff]
  %v5953 = vld [vmem:[%s5951 + $0x8] sm:$0xff]
  %v5954 = vld [vmem:[%s5951 + $0x10] sm:$0xff]
  %v5955 = vld [vmem:[%s5951 + $0x18] sm:$0xff]
  %v5957 = vsel %vm653, %v5935, 0
  %v5960 = vsel %vm653, %v5936, 0
  %v5963 = vsel %vm653, %v5937, 0
  %v5966 = vsel %vm653, %v5938, 0
  %v5969 = vsel %vm653, %v5939, 0
  %v5972 = vsel %vm653, %v5940, 0
  %v5975 = vsel %vm653, %v5941, 0
  %v5978 = vsel %vm653, %v5942, 0
  %v5981 = vsel %vm653, %v5943, 0
  %v5984 = vsel %vm653, %v5944, 0
  %v5987 = vsel %vm653, %v5945, 0
  %v5990 = vsel %vm653, %v5946, 0
  %v5993 = vsel %vm653, %v5947, 0
  %v5996 = vsel %vm653, %v5948, 0
  %v5999 = vsel %vm653, %v5949, 0
  %v6002 = vsel %vm653, %v5950, 0
  %6004 = vmatprep.subr.mxu0 0.0
  %6005 = vmatpush1.msra.mxu0 %v5952
  %6006 = vmatprep.subr.mxu0 0.0
  %6007 = vmatpush1.msra.mxu0 %v5953
  %6008 = vmatprep.subr.mxu0 0.0
  %6009 = vmatpush1.msra.mxu0 %v5954
  %6010 = vmatprep.subr.mxu0 0.0
  %6011 = vmatpush1.msra.mxu0 %v5955
  %6012 = vmatprep.subr.mxu0 0.0
  %6013 = vmatpush1.msra.mxu0 0.0
  %6014 = vmatprep.subr.mxu0 0.0
  %6015 = vmatpush1.msra.mxu0 0.0
  %6016 = vmatprep.subr.mxu0 0.0
  %6017 = vmatpush1.msra.mxu0 0.0
  %6018 = vmatprep.subr.mxu0 0.0
  %6019 = vmatpush1.msra.mxu0 0.0
  %6020 = vmatprep.subr.mxu0 0.0
  %6021 = vmatpush1.msra.mxu0 0.0
  %6022 = vmatprep.subr.mxu0 0.0
  %6023 = vmatpush1.msra.mxu0 0.0
  %6024 = vmatprep.subr.mxu0 0.0
  %6025 = vmatpush1.msra.mxu0 0.0
  %6026 = vmatprep.subr.mxu0 0.0
  %6027 = vmatpush1.msra.mxu0 0.0
  %6028 = vmatprep.subr.mxu0 0.0
  %6029 = vmatpush1.msra.mxu0 0.0
  %6030 = vmatprep.subr.mxu0 0.0
  %6031 = vmatpush1.msra.mxu0 0.0
  %6032 = vmatprep.subr.mxu0 0.0
  %6033 = vmatpush1.msra.mxu0 0.0
  %6034 = vmatprep.subr.mxu0 0.0
  %6035 = vmatpush1.msra.mxu0 0.0
  %6036 = vmatprep.subr.mxu0 0.0
  %6037 = vmatpush1.msra.mxu0 0.0
  %6038 = vmatprep.subr.mxu0 0.0
  %6039 = vmatpush1.msra.mxu0 0.0
  %6040 = vmatprep.subr.mxu0 0.0
  %6041 = vmatpush1.msra.mxu0 0.0
  %6042 = vmatprep.subr.mxu0 0.0
  %6043 = vmatpush1.msra.mxu0 0.0
  %6044 = vmatprep.subr.mxu0 0.0
  %6045 = vmatpush1.msra.mxu0 0.0
  %6046 = vmatprep.subr.mxu0 0.0
  %6047 = vmatpush1.msra.mxu0 0.0
  %6048 = vmatprep.subr.mxu0 0.0
  %6049 = vmatpush1.msra.mxu0 0.0
  %6050 = vmatprep.subr.mxu0 0.0
  %6051 = vmatpush1.msra.mxu0 0.0
  %6052 = vmatprep.subr.mxu0 0.0
  %6053 = vmatpush1.msra.mxu0 0.0
  %6054 = vmatprep.subr.mxu0 0.0
  %6055 = vmatpush1.msra.mxu0 0.0
  %6056 = vmatprep.subr.mxu0 0.0
  %6057 = vmatpush1.msra.mxu0 0.0
  %6058 = vmatprep.subr.mxu0 0.0
  %6059 = vmatpush1.msra.mxu0 0.0
  %6060 = vmatprep.subr.mxu0 0.0
  %6061 = vmatpush1.msra.mxu0 0.0
  %6062 = vmatprep.subr.mxu0 0.0
  %6063 = vmatpush1.msra.mxu0 0.0
  %6064 = vmatprep.subr.mxu0 0.0
  %6065 = vmatpush1.msra.mxu0 0.0
  %6066 = vmatprep.subr.mxu0 0.0
  %6067 = vmatpush1.msra.mxu0 0.0
  %6068 = vmatprep.mubr.f32.mxu0 0.0
  %6069 = vmatmul.mubr.f32.gmra.mrb[0].mxu0 %v5957
  %v6070 = vpop.f32.mrb[0].mxu0
  %v6071 = vadd.f32 0.0, %v6070
  %v6072 = vpop.f32.mrb[0].mxu0
  %6073 = vmatprep.mubr.f32.mxu0 0.0
  %6074 = vmatmul.mubr.f32.gmra.mrb[0].mxu0 %v5960
  %v6075 = vpop.f32.mrb[0].mxu0
  %v6076 = vadd.f32 0.0, %v6075
  %v6077 = vpop.f32.mrb[0].mxu0
  %6078 = vmatprep.mubr.f32.mxu0 0.0
  %6079 = vmatmul.mubr.f32.gmra.mrb[0].mxu0 %v5963
  %v6080 = vpop.f32.mrb[0].mxu0
  %v6081 = vadd.f32 0.0, %v6080
  %v6082 = vpop.f32.mrb[0].mxu0
  %6083 = vmatprep.mubr.f32.mxu0 0.0
  %6084 = vmatmul.mubr.f32.gmra.mrb[0].mxu0 %v5966
  %v6085 = vpop.f32.mrb[0].mxu0
  %v6086 = vadd.f32 0.0, %v6085
  %v6087 = vpop.f32.mrb[0].mxu0
  %6088 = vmatprep.mubr.f32.mxu0 0.0
  %6089 = vmatmul.mubr.f32.gmra.mrb[0].mxu0 %v5969
  %v6090 = vpop.f32.mrb[0].mxu0
  %v6091 = vadd.f32 0.0, %v6090
  %v6092 = vpop.f32.mrb[0].mxu0
  %6093 = vmatprep.mubr.f32.mxu0 0.0
  %6094 = vmatmul.mubr.f32.gmra.mrb[0].mxu0 %v5972
  %v6095 = vpop.f32.mrb[0].mxu0
  %v6096 = vadd.f32 0.0, %v6095
  %v6097 = vpop.f32.mrb[0].mxu0
  %6098 = vmatprep.mubr.f32.mxu0 0.0
  %6099 = vmatmul.mubr.f32.gmra.mrb[0].mxu0 %v5975
  %v6100 = vpop.f32.mrb[0].mxu0
  %v6101 = vadd.f32 0.0, %v6100
  %v6102 = vpop.f32.mrb[0].mxu0
  %6103 = vmatprep.mubr.f32.mxu0 0.0
  %6104 = vmatmul.mubr.f32.gmra.mrb[0].mxu0 %v5978
  %v6105 = vpop.f32.mrb[0].mxu0
  %v6106 = vadd.f32 0.0, %v6105
  %v6107 = vpop.f32.mrb[0].mxu0
  %6108 = vmatprep.mubr.f32.mxu0 0.0
  %6109 = vmatmul.mubr.f32.gmra.mrb[0].mxu0 %v5981
  %v6110 = vpop.f32.mrb[0].mxu0
  %v6111 = vadd.f32 0.0, %v6110
  %v6112 = vpop.f32.mrb[0].mxu0
  %6113 = vmatprep.mubr.f32.mxu0 0.0
  %6114 = vmatmul.mubr.f32.gmra.mrb[0].mxu0 %v5984
  %v6115 = vpop.f32.mrb[0].mxu0
  %v6116 = vadd.f32 0.0, %v6115
  %v6117 = vpop.f32.mrb[0].mxu0
  %6118 = vmatprep.mubr.f32.mxu0 0.0
  %6119 = vmatmul.mubr.f32.gmra.mrb[0].mxu0 %v5987
  %v6120 = vpop.f32.mrb[0].mxu0
  %v6121 = vadd.f32 0.0, %v6120
  %v6122 = vpop.f32.mrb[0].mxu0
  %6123 = vmatprep.mubr.f32.mxu0 0.0
  %6124 = vmatmul.mubr.f32.gmra.mrb[0].mxu0 %v5990
  %v6125 = vpop.f32.mrb[0].mxu0
  %v6126 = vadd.f32 0.0, %v6125
  %v6127 = vpop.f32.mrb[0].mxu0
  %6128 = vmatprep.mubr.f32.mxu0 0.0
  %6129 = vmatmul.mubr.f32.gmra.mrb[0].mxu0 %v5993
  %v6130 = vpop.f32.mrb[0].mxu0
  %v6131 = vadd.f32 0.0, %v6130
  %v6132 = vpop.f32.mrb[0].mxu0
  %6133 = vmatprep.mubr.f32.mxu0 0.0
  %6134 = vmatmul.mubr.f32.gmra.mrb[0].mxu0 %v5996
  %v6135 = vpop.f32.mrb[0].mxu0
  %v6136 = vadd.f32 0.0, %v6135
  %v6137 = vpop.f32.mrb[0].mxu0
  %6138 = vmatprep.mubr.f32.mxu0 0.0
  %6139 = vmatmul.mubr.f32.gmra.mrb[0].mxu0 %v5999
  %v6140 = vpop.f32.mrb[0].mxu0
  %v6141 = vadd.f32 0.0, %v6140
  %v6142 = vpop.f32.mrb[0].mxu0
  %6143 = vmatprep.mubr.f32.mxu0 0.0
  %6144 = vmatmul.mubr.f32.gmra.mrb[0].mxu0 %v6002
  %v6145 = vpop.f32.mrb[0].mxu0
  %v6146 = vadd.f32 0.0, %v6145
  %v6147 = vpop.f32.mrb[0].mxu0
  %6148 = vdwg.mxu0
  %6157 = vrot.lane.b32.xlu0 %v6071, 96
  %v6158 = vpop.permute.xlu0 %6157
  %6159 = vrot.lane.b32.xlu0 %v6076, 96
  %v6160 = vpop.permute.xlu0 %6159
  %6161 = vrot.lane.b32.xlu0 %v6081, 96
  %v6162 = vpop.permute.xlu0 %6161
  %6163 = vrot.lane.b32.xlu0 %v6086, 96
  %v6164 = vpop.permute.xlu0 %6163
  %6165 = vrot.lane.b32.xlu0 %v6091, 96
  %v6166 = vpop.permute.xlu0 %6165
  %6167 = vrot.lane.b32.xlu0 %v6096, 96
  %v6168 = vpop.permute.xlu0 %6167
  %6169 = vrot.lane.b32.xlu0 %v6101, 96
  %v6170 = vpop.permute.xlu0 %6169
  %6171 = vrot.lane.b32.xlu0 %v6106, 96
  %v6172 = vpop.permute.xlu0 %6171
  %v6173 = vsel %vm1725, %v6071, 0
  %v6175 = vsel %vm1725, %v6076, 0
  %v6177 = vsel %vm1725, %v6081, 0
  %v6179 = vsel %vm1725, %v6086, 0
  %v6181 = vsel %vm1725, %v6091, 0
  %v6183 = vsel %vm1725, %v6096, 0
  %v6185 = vsel %vm1725, %v6101, 0
  %v6187 = vsel %vm1725, %v6106, 0
  %v6189 = vsel %vm1725, %v6158, 0
  %v6191 = vsel %vm1725, %v6160, 0
  %v6193 = vsel %vm1725, %v6162, 0
  %v6195 = vsel %vm1725, %v6164, 0
  %v6197 = vsel %vm1725, %v6166, 0
  %v6199 = vsel %vm1725, %v6168, 0
  %v6201 = vsel %vm1725, %v6170, 0
  %v6203 = vsel %vm1725, %v6172, 0
  %6205 = vmatprep.subr.mxu0 0.0
  %6206 = vmatpush1.xpose.msra.mxu0 %v6189
  %6207 = vmatprep.subr.mxu0 0.0
  %6208 = vmatpush1.xpose.msra.mxu0 %v6191
  %6209 = vmatprep.subr.mxu0 0.0
  %6210 = vmatpush1.xpose.msra.mxu0 %v6193
  %6211 = vmatprep.subr.mxu0 0.0
  %6212 = vmatpush1.xpose.msra.mxu0 %v6195
  %6213 = vmatprep.subr.mxu0 0.0
  %6214 = vmatpush1.xpose.msra.mxu0 %v6197
  %6215 = vmatprep.subr.mxu0 0.0
  %6216 = vmatpush1.xpose.msra.mxu0 %v6199
  %6217 = vmatprep.subr.mxu0 0.0
  %6218 = vmatpush1.xpose.msra.mxu0 %v6201
  %6219 = vmatprep.subr.mxu0 0.0
  %6220 = vmatpush1.xpose.msra.mxu0 %v6203
  %6221 = vmatprep.subr.mxu0 0.0
  %6222 = vmatpush1.xpose.msra.mxu0 0.0
  %6223 = vmatprep.subr.mxu0 0.0
  %6224 = vmatpush1.xpose.msra.mxu0 0.0
  %6225 = vmatprep.subr.mxu0 0.0
  %6226 = vmatpush1.xpose.msra.mxu0 0.0
  %6227 = vmatprep.subr.mxu0 0.0
  %6228 = vmatpush1.xpose.msra.mxu0 0.0
  %6229 = vmatprep.subr.mxu0 0.0
  %6230 = vmatpush1.xpose.msra.mxu0 0.0
  %6231 = vmatprep.subr.mxu0 0.0
  %6232 = vmatpush1.xpose.msra.mxu0 0.0
  %6233 = vmatprep.subr.mxu0 0.0
  %6234 = vmatpush1.xpose.msra.mxu0 0.0
  %6235 = vmatprep.subr.mxu0 0.0
  %6236 = vmatpush1.xpose.msra.mxu0 0.0
  %6237 = vmatprep.subr.mxu0 0.0
  %6238 = vmatpush1.xpose.msra.mxu0 0.0
  %6239 = vmatprep.subr.mxu0 0.0
  %6240 = vmatpush1.xpose.msra.mxu0 0.0
  %6241 = vmatprep.subr.mxu0 0.0
  %6242 = vmatpush1.xpose.msra.mxu0 0.0
  %6243 = vmatprep.subr.mxu0 0.0
  %6244 = vmatpush1.xpose.msra.mxu0 0.0
  %6245 = vmatprep.subr.mxu0 0.0
  %6246 = vmatpush1.xpose.msra.mxu0 0.0
  %6247 = vmatprep.subr.mxu0 0.0
  %6248 = vmatpush1.xpose.msra.mxu0 0.0
  %6249 = vmatprep.subr.mxu0 0.0
  %6250 = vmatpush1.xpose.msra.mxu0 0.0
  %6251 = vmatprep.subr.mxu0 0.0
  %6252 = vmatpush1.xpose.msra.mxu0 0.0
  %6253 = vmatprep.subr.mxu0 0.0
  %6254 = vmatpush1.xpose.msra.mxu0 0.0
  %6255 = vmatprep.subr.mxu0 0.0
  %6256 = vmatpush1.xpose.msra.mxu0 0.0
  %6257 = vmatprep.subr.mxu0 0.0
  %6258 = vmatpush1.xpose.msra.mxu0 0.0
  %6259 = vmatprep.subr.mxu0 0.0
  %6260 = vmatpush1.xpose.msra.mxu0 0.0
  %6261 = vmatprep.subr.mxu0 0.0
  %6262 = vmatpush1.xpose.msra.mxu0 0.0
  %6263 = vmatprep.subr.mxu0 0.0
  %6264 = vmatpush1.xpose.msra.mxu0 0.0
  %6265 = vmatprep.subr.mxu0 0.0
  %6266 = vmatpush1.xpose.msra.mxu0 0.0
  %6267 = vmatprep.subr.mxu0 0.0
  %6268 = vmatpush1.xpose.msra.mxu0 0.0
  %6269 = vmatprep.mubr.f32.mxu0 0.0
  %6270 = vmatmul.mubr.f32.gmra.mrb[0].mxu0 %v6173
  %v6271 = vpop.f32.mrb[0].mxu0
  %v6272 = vadd.f32 0.0, %v6271
  %v6273 = vpop.f32.mrb[0].mxu0
  %6274 = vmatprep.mubr.f32.mxu0 0.0
  %6275 = vmatmul.mubr.f32.gmra.mrb[0].mxu0 %v6175
  %v6276 = vpop.f32.mrb[0].mxu0
  %v6277 = vadd.f32 0.0, %v6276
  %v6278 = vpop.f32.mrb[0].mxu0
  %6279 = vmatprep.mubr.f32.mxu0 0.0
  %6280 = vmatmul.mubr.f32.gmra.mrb[0].mxu0 %v6177
  %v6281 = vpop.f32.mrb[0].mxu0
  %v6282 = vadd.f32 0.0, %v6281
  %v6283 = vpop.f32.mrb[0].mxu0
  %6284 = vmatprep.mubr.f32.mxu0 0.0
  %6285 = vmatmul.mubr.f32.gmra.mrb[0].mxu0 %v6179
  %v6286 = vpop.f32.mrb[0].mxu0
  %v6287 = vadd.f32 0.0, %v6286
  %v6288 = vpop.f32.mrb[0].mxu0
  %6289 = vmatprep.mubr.f32.mxu0 0.0
  %6290 = vmatmul.mubr.f32.gmra.mrb[0].mxu0 %v6181
  %v6291 = vpop.f32.mrb[0].mxu0
  %v6292 = vadd.f32 0.0, %v6291
  %v6293 = vpop.f32.mrb[0].mxu0
  %6294 = vmatprep.mubr.f32.mxu0 0.0
  %6295 = vmatmul.mubr.f32.gmra.mrb[0].mxu0 %v6183
  %v6296 = vpop.f32.mrb[0].mxu0
  %v6297 = vadd.f32 0.0, %v6296
  %v6298 = vpop.f32.mrb[0].mxu0
  %6299 = vmatprep.mubr.f32.mxu0 0.0
  %6300 = vmatmul.mubr.f32.gmra.mrb[0].mxu0 %v6185
  %v6301 = vpop.f32.mrb[0].mxu0
  %v6302 = vadd.f32 0.0, %v6301
  %v6303 = vpop.f32.mrb[0].mxu0
  %6304 = vmatprep.mubr.f32.mxu0 0.0
  %6305 = vmatmul.mubr.f32.gmra.mrb[0].mxu0 %v6187
  %v6306 = vpop.f32.mrb[0].mxu0
  %v6307 = vadd.f32 0.0, %v6306
  %v6308 = vpop.f32.mrb[0].mxu0
  %6309 = vdwg.mxu0
  %6318 = vrot.lane.b32.xlu0 %v6111, 96
  %v6319 = vpop.permute.xlu0 %6318
  %6320 = vrot.lane.b32.xlu0 %v6116, 96
  %v6321 = vpop.permute.xlu0 %6320
  %6322 = vrot.lane.b32.xlu0 %v6121, 96
  %v6323 = vpop.permute.xlu0 %6322
  %6324 = vrot.lane.b32.xlu0 %v6126, 96
  %v6325 = vpop.permute.xlu0 %6324
  %6326 = vrot.lane.b32.xlu0 %v6131, 96
  %v6327 = vpop.permute.xlu0 %6326
  %6328 = vrot.lane.b32.xlu0 %v6136, 96
  %v6329 = vpop.permute.xlu0 %6328
  %6330 = vrot.lane.b32.xlu0 %v6141, 96
  %v6331 = vpop.permute.xlu0 %6330
  %6332 = vrot.lane.b32.xlu0 %v6146, 96
  %v6333 = vpop.permute.xlu0 %6332
  %v6334 = vsel %vm1725, %v6111, 0
  %v6336 = vsel %vm1725, %v6116, 0
  %v6338 = vsel %vm1725, %v6121, 0
  %v6340 = vsel %vm1725, %v6126, 0
  %v6342 = vsel %vm1725, %v6131, 0
  %v6344 = vsel %vm1725, %v6136, 0
  %v6346 = vsel %vm1725, %v6141, 0
  %v6348 = vsel %vm1725, %v6146, 0
  %v6350 = vsel %vm1725, %v6319, 0
  %v6352 = vsel %vm1725, %v6321, 0
  %v6354 = vsel %vm1725, %v6323, 0
  %v6356 = vsel %vm1725, %v6325, 0
  %v6358 = vsel %vm1725, %v6327, 0
  %v6360 = vsel %vm1725, %v6329, 0
  %v6362 = vsel %vm1725, %v6331, 0
  %v6364 = vsel %vm1725, %v6333, 0
  %6366 = vmatprep.subr.mxu0 0.0
  %6367 = vmatpush1.xpose.msra.mxu0 %v6350
  %6368 = vmatprep.subr.mxu0 0.0
  %6369 = vmatpush1.xpose.msra.mxu0 %v6352
  %6370 = vmatprep.subr.mxu0 0.0
  %6371 = vmatpush1.xpose.msra.mxu0 %v6354
  %6372 = vmatprep.subr.mxu0 0.0
  %6373 = vmatpush1.xpose.msra.mxu0 %v6356
  %6374 = vmatprep.subr.mxu0 0.0
  %6375 = vmatpush1.xpose.msra.mxu0 %v6358
  %6376 = vmatprep.subr.mxu0 0.0
  %6377 = vmatpush1.xpose.msra.mxu0 %v6360
  %6378 = vmatprep.subr.mxu0 0.0
  %6379 = vmatpush1.xpose.msra.mxu0 %v6362
  %6380 = vmatprep.subr.mxu0 0.0
  %6381 = vmatpush1.xpose.msra.mxu0 %v6364
  %6382 = vmatprep.subr.mxu0 0.0
  %6383 = vmatpush1.xpose.msra.mxu0 0.0
  %6384 = vmatprep.subr.mxu0 0.0
  %6385 = vmatpush1.xpose.msra.mxu0 0.0
  %6386 = vmatprep.subr.mxu0 0.0
  %6387 = vmatpush1.xpose.msra.mxu0 0.0
  %6388 = vmatprep.subr.mxu0 0.0
  %6389 = vmatpush1.xpose.msra.mxu0 0.0
  %6390 = vmatprep.subr.mxu0 0.0
  %6391 = vmatpush1.xpose.msra.mxu0 0.0
  %6392 = vmatprep.subr.mxu0 0.0
  %6393 = vmatpush1.xpose.msra.mxu0 0.0
  %6394 = vmatprep.subr.mxu0 0.0
  %6395 = vmatpush1.xpose.msra.mxu0 0.0
  %6396 = vmatprep.subr.mxu0 0.0
  %6397 = vmatpush1.xpose.msra.mxu0 0.0
  %6398 = vmatprep.subr.mxu0 0.0
  %6399 = vmatpush1.xpose.msra.mxu0 0.0
  %6400 = vmatprep.subr.mxu0 0.0
  %6401 = vmatpush1.xpose.msra.mxu0 0.0
  %6402 = vmatprep.subr.mxu0 0.0
  %6403 = vmatpush1.xpose.msra.mxu0 0.0
  %6404 = vmatprep.subr.mxu0 0.0
  %6405 = vmatpush1.xpose.msra.mxu0 0.0
  %6406 = vmatprep.subr.mxu0 0.0
  %6407 = vmatpush1.xpose.msra.mxu0 0.0
  %6408 = vmatprep.subr.mxu0 0.0
  %6409 = vmatpush1.xpose.msra.mxu0 0.0
  %6410 = vmatprep.subr.mxu0 0.0
  %6411 = vmatpush1.xpose.msra.mxu0 0.0
  %6412 = vmatprep.subr.mxu0 0.0
  %6413 = vmatpush1.xpose.msra.mxu0 0.0
  %6414 = vmatprep.subr.mxu0 0.0
  %6415 = vmatpush1.xpose.msra.mxu0 0.0
  %6416 = vmatprep.subr.mxu0 0.0
  %6417 = vmatpush1.xpose.msra.mxu0 0.0
  %6418 = vmatprep.subr.mxu0 0.0
  %6419 = vmatpush1.xpose.msra.mxu0 0.0
  %6420 = vmatprep.subr.mxu0 0.0
  %6421 = vmatpush1.xpose.msra.mxu0 0.0
  %6422 = vmatprep.subr.mxu0 0.0
  %6423 = vmatpush1.xpose.msra.mxu0 0.0
  %6424 = vmatprep.subr.mxu0 0.0
  %6425 = vmatpush1.xpose.msra.mxu0 0.0
  %6426 = vmatprep.subr.mxu0 0.0
  %6427 = vmatpush1.xpose.msra.mxu0 0.0
  %6428 = vmatprep.subr.mxu0 0.0
  %6429 = vmatpush1.xpose.msra.mxu0 0.0
  %6430 = vmatprep.mubr.f32.mxu0 0.0
  %6431 = vmatmul.mubr.f32.gmra.mrb[0].mxu0 %v6334
  %v6432 = vpop.f32.mrb[0].mxu0
  %v6433 = vadd.f32 0.0, %v6432
  %v6434 = vpop.f32.mrb[0].mxu0
  %6435 = vmatprep.mubr.f32.mxu0 0.0
  %6436 = vmatmul.mubr.f32.gmra.mrb[0].mxu0 %v6336
  %v6437 = vpop.f32.mrb[0].mxu0
  %v6438 = vadd.f32 0.0, %v6437
  %v6439 = vpop.f32.mrb[0].mxu0
  %6440 = vmatprep.mubr.f32.mxu0 0.0
  %6441 = vmatmul.mubr.f32.gmra.mrb[0].mxu0 %v6338
  %v6442 = vpop.f32.mrb[0].mxu0
  %v6443 = vadd.f32 0.0, %v6442
  %v6444 = vpop.f32.mrb[0].mxu0
  %6445 = vmatprep.mubr.f32.mxu0 0.0
  %6446 = vmatmul.mubr.f32.gmra.mrb[0].mxu0 %v6340
  %v6447 = vpop.f32.mrb[0].mxu0
  %v6448 = vadd.f32 0.0, %v6447
  %v6449 = vpop.f32.mrb[0].mxu0
  %6450 = vmatprep.mubr.f32.mxu0 0.0
  %6451 = vmatmul.mubr.f32.gmra.mrb[0].mxu0 %v6342
  %v6452 = vpop.f32.mrb[0].mxu0
  %v6453 = vadd.f32 0.0, %v6452
  %v6454 = vpop.f32.mrb[0].mxu0
  %6455 = vmatprep.mubr.f32.mxu0 0.0
  %6456 = vmatmul.mubr.f32.gmra.mrb[0].mxu0 %v6344
  %v6457 = vpop.f32.mrb[0].mxu0
  %v6458 = vadd.f32 0.0, %v6457
  %v6459 = vpop.f32.mrb[0].mxu0
  %6460 = vmatprep.mubr.f32.mxu0 0.0
  %6461 = vmatmul.mubr.f32.gmra.mrb[0].mxu0 %v6346
  %v6462 = vpop.f32.mrb[0].mxu0
  %v6463 = vadd.f32 0.0, %v6462
  %v6464 = vpop.f32.mrb[0].mxu0
  %6465 = vmatprep.mubr.f32.mxu0 0.0
  %6466 = vmatmul.mubr.f32.gmra.mrb[0].mxu0 %v6348
  %v6467 = vpop.f32.mrb[0].mxu0
  %v6468 = vadd.f32 0.0, %v6467
  %v6469 = vpop.f32.mrb[0].mxu0
  %6470 = vdwg.mxu0
  %v6471 = vsel %vm670, %v6272, -inf
  %6472 = vmax.xlane.f32.xlu0 %v6471
  %v6473 = vpop.xlane.xlu0 %6472
  %v6474 = vsel %vm670, %v6277, -inf
  %6475 = vmax.xlane.f32.xlu0 %v6474
  %v6476 = vpop.xlane.xlu0 %6475
  %v6477 = vsel %vm670, %v6282, -inf
  %6478 = vmax.xlane.f32.xlu0 %v6477
  %v6479 = vpop.xlane.xlu0 %6478
  %v6480 = vsel %vm670, %v6287, -inf
  %6481 = vmax.xlane.f32.xlu0 %v6480
  %v6482 = vpop.xlane.xlu0 %6481
  %v6483 = vsel %vm670, %v6292, -inf
  %6484 = vmax.xlane.f32.xlu0 %v6483
  %v6485 = vpop.xlane.xlu0 %6484
  %v6486 = vsel %vm670, %v6297, -inf
  %6487 = vmax.xlane.f32.xlu0 %v6486
  %v6488 = vpop.xlane.xlu0 %6487
  %v6489 = vsel %vm670, %v6302, -inf
  %6490 = vmax.xlane.f32.xlu0 %v6489
  %v6491 = vpop.xlane.xlu0 %6490
  %v6492 = vsel %vm670, %v6307, -inf
  %6493 = vmax.xlane.f32.xlu0 %v6492
  %v6494 = vpop.xlane.xlu0 %6493
  %v6495 = vsel %vm670, %v6433, -inf
  %6496 = vmax.xlane.f32.xlu0 %v6495
  %v6497 = vpop.xlane.xlu0 %6496
  %v6498 = vsel %vm670, %v6438, -inf
  %6499 = vmax.xlane.f32.xlu0 %v6498
  %v6500 = vpop.xlane.xlu0 %6499
  %v6501 = vsel %vm670, %v6443, -inf
  %6502 = vmax.xlane.f32.xlu0 %v6501
  %v6503 = vpop.xlane.xlu0 %6502
  %v6504 = vsel %vm670, %v6448, -inf
  %6505 = vmax.xlane.f32.xlu0 %v6504
  %v6506 = vpop.xlane.xlu0 %6505
  %v6507 = vsel %vm670, %v6453, -inf
  %6508 = vmax.xlane.f32.xlu0 %v6507
  %v6509 = vpop.xlane.xlu0 %6508
  %v6510 = vsel %vm670, %v6458, -inf
  %6511 = vmax.xlane.f32.xlu0 %v6510
  %v6512 = vpop.xlane.xlu0 %6511
  %v6513 = vsel %vm670, %v6463, -inf
  %6514 = vmax.xlane.f32.xlu0 %v6513
  %v6515 = vpop.xlane.xlu0 %6514
  %v6516 = vsel %vm670, %v6468, -inf
  %6517 = vmax.xlane.f32.xlu0 %v6516
  %v6518 = vpop.xlane.xlu0 %6517
  %v6519 = vsub.f32 %v6272, %v6473
  %v6520 = vsub.f32 %v6277, %v6476
  %v6521 = vsub.f32 %v6282, %v6479
  %v6522 = vsub.f32 %v6287, %v6482
  %v6523 = vsub.f32 %v6292, %v6485
  %v6524 = vsub.f32 %v6297, %v6488
  %v6525 = vsub.f32 %v6302, %v6491
  %v6526 = vsub.f32 %v6307, %v6494
  %v6527 = vsub.f32 %v6433, %v6497
  %v6528 = vsub.f32 %v6438, %v6500
  %v6529 = vsub.f32 %v6443, %v6503
  %v6530 = vsub.f32 %v6448, %v6506
  %v6531 = vsub.f32 %v6453, %v6509
  %v6532 = vsub.f32 %v6458, %v6512
  %v6533 = vsub.f32 %v6463, %v6515
  %v6534 = vsub.f32 %v6468, %v6518
  %v6535 = vmul.f32 %v6519, 1.442695
  %v6536 = vpow.pop %v6535
  %v6537 = vmul.f32 %v6520, 1.442695
  %v6538 = vpow.pop %v6537
  %v6539 = vmul.f32 %v6521, 1.442695
  %v6540 = vpow.pop %v6539
  %v6541 = vmul.f32 %v6522, 1.442695
  %v6542 = vpow.pop %v6541
  %v6543 = vmul.f32 %v6523, 1.442695
  %v6544 = vpow.pop %v6543
  %v6545 = vmul.f32 %v6524, 1.442695
  %v6546 = vpow.pop %v6545
  %v6547 = vmul.f32 %v6525, 1.442695
  %v6548 = vpow.pop %v6547
  %v6549 = vmul.f32 %v6526, 1.442695
  %v6550 = vpow.pop %v6549
  %v6551 = vmul.f32 %v6527, 1.442695
  %v6552 = vpow.pop %v6551
  %v6553 = vmul.f32 %v6528, 1.442695
  %v6554 = vpow.pop %v6553
  %v6555 = vmul.f32 %v6529, 1.442695
  %v6556 = vpow.pop %v6555
  %v6557 = vmul.f32 %v6530, 1.442695
  %v6558 = vpow.pop %v6557
  %v6559 = vmul.f32 %v6531, 1.442695
  %v6560 = vpow.pop %v6559
  %v6561 = vmul.f32 %v6532, 1.442695
  %v6562 = vpow.pop %v6561
  %v6563 = vmul.f32 %v6533, 1.442695
  %v6564 = vpow.pop %v6563
  %v6565 = vmul.f32 %v6534, 1.442695
  %v6566 = vpow.pop %v6565
  %6567 = vrot.lane.b32.xlu0 %v6071, 64
  %v6568 = vpop.permute.xlu0 %6567
  %6569 = vrot.lane.b32.xlu0 %v6076, 64
  %v6570 = vpop.permute.xlu0 %6569
  %6571 = vrot.lane.b32.xlu0 %v6081, 64
  %v6572 = vpop.permute.xlu0 %6571
  %6573 = vrot.lane.b32.xlu0 %v6086, 64
  %v6574 = vpop.permute.xlu0 %6573
  %6575 = vrot.lane.b32.xlu0 %v6091, 64
  %v6576 = vpop.permute.xlu0 %6575
  %6577 = vrot.lane.b32.xlu0 %v6096, 64
  %v6578 = vpop.permute.xlu0 %6577
  %6579 = vrot.lane.b32.xlu0 %v6101, 64
  %v6580 = vpop.permute.xlu0 %6579
  %6581 = vrot.lane.b32.xlu0 %v6106, 64
  %v6582 = vpop.permute.xlu0 %6581
  %v6592 = vsel %vm670, %v6536, 0
  %v6595 = vsel %vm670, %v6538, 0
  %v6598 = vsel %vm670, %v6540, 0
  %v6601 = vsel %vm670, %v6542, 0
  %v6604 = vsel %vm670, %v6544, 0
  %v6607 = vsel %vm670, %v6546, 0
  %v6610 = vsel %vm670, %v6548, 0
  %v6613 = vsel %vm670, %v6550, 0
  %6615 = vmatprep.subr.mxu0 0.0
  %6616 = vmatpush1.msra.mxu0 %v6568
  %6617 = vmatprep.subr.mxu0 0.0
  %6618 = vmatpush1.msra.mxu0 %v6570
  %6619 = vmatprep.subr.mxu0 0.0
  %6620 = vmatpush1.msra.mxu0 %v6572
  %6621 = vmatprep.subr.mxu0 0.0
  %6622 = vmatpush1.msra.mxu0 %v6574
  %6623 = vmatprep.subr.mxu0 0.0
  %6624 = vmatpush1.msra.mxu0 %v6576
  %6625 = vmatprep.subr.mxu0 0.0
  %6626 = vmatpush1.msra.mxu0 %v6578
  %6627 = vmatprep.subr.mxu0 0.0
  %6628 = vmatpush1.msra.mxu0 %v6580
  %6629 = vmatprep.subr.mxu0 0.0
  %6630 = vmatpush1.msra.mxu0 %v6582
  %6631 = vmatprep.subr.mxu0 0.0
  %6632 = vmatpush1.msra.mxu0 0.0
  %6633 = vmatprep.subr.mxu0 0.0
  %6634 = vmatpush1.msra.mxu0 0.0
  %6635 = vmatprep.subr.mxu0 0.0
  %6636 = vmatpush1.msra.mxu0 0.0
  %6637 = vmatprep.subr.mxu0 0.0
  %6638 = vmatpush1.msra.mxu0 0.0
  %6639 = vmatprep.subr.mxu0 0.0
  %6640 = vmatpush1.msra.mxu0 0.0
  %6641 = vmatprep.subr.mxu0 0.0
  %6642 = vmatpush1.msra.mxu0 0.0
  %6643 = vmatprep.subr.mxu0 0.0
  %6644 = vmatpush1.msra.mxu0 0.0
  %6645 = vmatprep.subr.mxu0 0.0
  %6646 = vmatpush1.msra.mxu0 0.0
  %6647 = vmatprep.subr.mxu0 0.0
  %6648 = vmatpush1.msra.mxu0 0.0
  %6649 = vmatprep.subr.mxu0 0.0
  %6650 = vmatpush1.msra.mxu0 0.0
  %6651 = vmatprep.subr.mxu0 0.0
  %6652 = vmatpush1.msra.mxu0 0.0
  %6653 = vmatprep.subr.mxu0 0.0
  %6654 = vmatpush1.msra.mxu0 0.0
  %6655 = vmatprep.subr.mxu0 0.0
  %6656 = vmatpush1.msra.mxu0 0.0
  %6657 = vmatprep.subr.mxu0 0.0
  %6658 = vmatpush1.msra.mxu0 0.0
  %6659 = vmatprep.subr.mxu0 0.0
  %6660 = vmatpush1.msra.mxu0 0.0
  %6661 = vmatprep.subr.mxu0 0.0
  %6662 = vmatpush1.msra.mxu0 0.0
  %6663 = vmatprep.subr.mxu0 0.0
  %6664 = vmatpush1.msra.mxu0 0.0
  %6665 = vmatprep.subr.mxu0 0.0
  %6666 = vmatpush1.msra.mxu0 0.0
  %6667 = vmatprep.subr.mxu0 0.0
  %6668 = vmatpush1.msra.mxu0 0.0
  %6669 = vmatprep.subr.mxu0 0.0
  %6670 = vmatpush1.msra.mxu0 0.0
  %6671 = vmatprep.subr.mxu0 0.0
  %6672 = vmatpush1.msra.mxu0 0.0
  %6673 = vmatprep.subr.mxu0 0.0
  %6674 = vmatpush1.msra.mxu0 0.0
  %6675 = vmatprep.subr.mxu0 0.0
  %6676 = vmatpush1.msra.mxu0 0.0
  %6677 = vmatprep.subr.mxu0 0.0
  %6678 = vmatpush1.msra.mxu0 0.0
  %6679 = vmatprep.mubr.f32.mxu0 0.0
  %6680 = vmatmul.mubr.f32.gmra.mrb[0].mxu0 %v6592
  %v6681 = vpop.f32.mrb[0].mxu0
  %v6682 = vadd.f32 0.0, %v6681
  %v6683 = vpop.f32.mrb[0].mxu0
  %6684 = vmatprep.mubr.f32.mxu0 0.0
  %6685 = vmatmul.mubr.f32.gmra.mrb[0].mxu0 %v6595
  %v6686 = vpop.f32.mrb[0].mxu0
  %v6687 = vadd.f32 0.0, %v6686
  %v6688 = vpop.f32.mrb[0].mxu0
  %6689 = vmatprep.mubr.f32.mxu0 0.0
  %6690 = vmatmul.mubr.f32.gmra.mrb[0].mxu0 %v6598
  %v6691 = vpop.f32.mrb[0].mxu0
  %v6692 = vadd.f32 0.0, %v6691
  %v6693 = vpop.f32.mrb[0].mxu0
  %6694 = vmatprep.mubr.f32.mxu0 0.0
  %6695 = vmatmul.mubr.f32.gmra.mrb[0].mxu0 %v6601
  %v6696 = vpop.f32.mrb[0].mxu0
  %v6697 = vadd.f32 0.0, %v6696
  %v6698 = vpop.f32.mrb[0].mxu0
  %6699 = vmatprep.mubr.f32.mxu0 0.0
  %6700 = vmatmul.mubr.f32.gmra.mrb[0].mxu0 %v6604
  %v6701 = vpop.f32.mrb[0].mxu0
  %v6702 = vadd.f32 0.0, %v6701
  %v6703 = vpop.f32.mrb[0].mxu0
  %6704 = vmatprep.mubr.f32.mxu0 0.0
  %6705 = vmatmul.mubr.f32.gmra.mrb[0].mxu0 %v6607
  %v6706 = vpop.f32.mrb[0].mxu0
  %v6707 = vadd.f32 0.0, %v6706
  %v6708 = vpop.f32.mrb[0].mxu0
  %6709 = vmatprep.mubr.f32.mxu0 0.0
  %6710 = vmatmul.mubr.f32.gmra.mrb[0].mxu0 %v6610
  %v6711 = vpop.f32.mrb[0].mxu0
  %v6712 = vadd.f32 0.0, %v6711
  %v6713 = vpop.f32.mrb[0].mxu0
  %6714 = vmatprep.mubr.f32.mxu0 0.0
  %6715 = vmatmul.mubr.f32.gmra.mrb[0].mxu0 %v6613
  %v6716 = vpop.f32.mrb[0].mxu0
  %v6717 = vadd.f32 0.0, %v6716
  %v6718 = vpop.f32.mrb[0].mxu0
  %6719 = vdwg.mxu0
  %6720 = vrot.lane.b32.xlu0 %v6111, 64
  %v6721 = vpop.permute.xlu0 %6720
  %6722 = vrot.lane.b32.xlu0 %v6116, 64
  %v6723 = vpop.permute.xlu0 %6722
  %6724 = vrot.lane.b32.xlu0 %v6121, 64
  %v6725 = vpop.permute.xlu0 %6724
  %6726 = vrot.lane.b32.xlu0 %v6126, 64
  %v6727 = vpop.permute.xlu0 %6726
  %6728 = vrot.lane.b32.xlu0 %v6131, 64
  %v6729 = vpop.permute.xlu0 %6728
  %6730 = vrot.lane.b32.xlu0 %v6136, 64
  %v6731 = vpop.permute.xlu0 %6730
  %6732 = vrot.lane.b32.xlu0 %v6141, 64
  %v6733 = vpop.permute.xlu0 %6732
  %6734 = vrot.lane.b32.xlu0 %v6146, 64
  %v6735 = vpop.permute.xlu0 %6734
  %v6745 = vsel %vm670, %v6552, 0
  %v6748 = vsel %vm670, %v6554, 0
  %v6751 = vsel %vm670, %v6556, 0
  %v6754 = vsel %vm670, %v6558, 0
  %v6757 = vsel %vm670, %v6560, 0
  %v6760 = vsel %vm670, %v6562, 0
  %v6763 = vsel %vm670, %v6564, 0
  %v6766 = vsel %vm670, %v6566, 0
  %6768 = vmatprep.subr.mxu0 0.0
  %6769 = vmatpush1.msra.mxu0 %v6721
  %6770 = vmatprep.subr.mxu0 0.0
  %6771 = vmatpush1.msra.mxu0 %v6723
  %6772 = vmatprep.subr.mxu0 0.0
  %6773 = vmatpush1.msra.mxu0 %v6725
  %6774 = vmatprep.subr.mxu0 0.0
  %6775 = vmatpush1.msra.mxu0 %v6727
  %6776 = vmatprep.subr.mxu0 0.0
  %6777 = vmatpush1.msra.mxu0 %v6729
  %6778 = vmatprep.subr.mxu0 0.0
  %6779 = vmatpush1.msra.mxu0 %v6731
  %6780 = vmatprep.subr.mxu0 0.0
  %6781 = vmatpush1.msra.mxu0 %v6733
  %6782 = vmatprep.subr.mxu0 0.0
  %6783 = vmatpush1.msra.mxu0 %v6735
  %6784 = vmatprep.subr.mxu0 0.0
  %6785 = vmatpush1.msra.mxu0 0.0
  %6786 = vmatprep.subr.mxu0 0.0
  %6787 = vmatpush1.msra.mxu0 0.0
  %6788 = vmatprep.subr.mxu0 0.0
  %6789 = vmatpush1.msra.mxu0 0.0
  %6790 = vmatprep.subr.mxu0 0.0
  %6791 = vmatpush1.msra.mxu0 0.0
  %6792 = vmatprep.subr.mxu0 0.0
  %6793 = vmatpush1.msra.mxu0 0.0
  %6794 = vmatprep.subr.mxu0 0.0
  %6795 = vmatpush1.msra.mxu0 0.0
  %6796 = vmatprep.subr.mxu0 0.0
  %6797 = vmatpush1.msra.mxu0 0.0
  %6798 = vmatprep.subr.mxu0 0.0
  %6799 = vmatpush1.msra.mxu0 0.0
  %6800 = vmatprep.subr.mxu0 0.0
  %6801 = vmatpush1.msra.mxu0 0.0
  %6802 = vmatprep.subr.mxu0 0.0
  %6803 = vmatpush1.msra.mxu0 0.0
  %6804 = vmatprep.subr.mxu0 0.0
  %6805 = vmatpush1.msra.mxu0 0.0
  %6806 = vmatprep.subr.mxu0 0.0
  %6807 = vmatpush1.msra.mxu0 0.0
  %6808 = vmatprep.subr.mxu0 0.0
  %6809 = vmatpush1.msra.mxu0 0.0
  %6810 = vmatprep.subr.mxu0 0.0
  %6811 = vmatpush1.msra.mxu0 0.0
  %6812 = vmatprep.subr.mxu0 0.0
  %6813 = vmatpush1.msra.mxu0 0.0
  %6814 = vmatprep.subr.mxu0 0.0
  %6815 = vmatpush1.msra.mxu0 0.0
  %6816 = vmatprep.subr.mxu0 0.0
  %6817 = vmatpush1.msra.mxu0 0.0
  %6818 = vmatprep.subr.mxu0 0.0
  %6819 = vmatpush1.msra.mxu0 0.0
  %6820 = vmatprep.subr.mxu0 0.0
  %6821 = vmatpush1.msra.mxu0 0.0
  %6822 = vmatprep.subr.mxu0 0.0
  %6823 = vmatpush1.msra.mxu0 0.0
  %6824 = vmatprep.subr.mxu0 0.0
  %6825 = vmatpush1.msra.mxu0 0.0
  %6826 = vmatprep.subr.mxu0 0.0
  %6827 = vmatpush1.msra.mxu0 0.0
  %6828 = vmatprep.subr.mxu0 0.0
  %6829 = vmatpush1.msra.mxu0 0.0
  %6830 = vmatprep.subr.mxu0 0.0
  %6831 = vmatpush1.msra.mxu0 0.0
  %6832 = vmatprep.mubr.f32.mxu0 0.0
  %6833 = vmatmul.mubr.f32.gmra.mrb[0].mxu0 %v6745
  %v6834 = vpop.f32.mrb[0].mxu0
  %v6835 = vadd.f32 0.0, %v6834
  %v6836 = vpop.f32.mrb[0].mxu0
  %6837 = vmatprep.mubr.f32.mxu0 0.0
  %6838 = vmatmul.mubr.f32.gmra.mrb[0].mxu0 %v6748
  %v6839 = vpop.f32.mrb[0].mxu0
  %v6840 = vadd.f32 0.0, %v6839
  %v6841 = vpop.f32.mrb[0].mxu0
  %6842 = vmatprep.mubr.f32.mxu0 0.0
  %6843 = vmatmul.mubr.f32.gmra.mrb[0].mxu0 %v6751
  %v6844 = vpop.f32.mrb[0].mxu0
  %v6845 = vadd.f32 0.0, %v6844
  %v6846 = vpop.f32.mrb[0].mxu0
  %6847 = vmatprep.mubr.f32.mxu0 0.0
  %6848 = vmatmul.mubr.f32.gmra.mrb[0].mxu0 %v6754
  %v6849 = vpop.f32.mrb[0].mxu0
  %v6850 = vadd.f32 0.0, %v6849
  %v6851 = vpop.f32.mrb[0].mxu0
  %6852 = vmatprep.mubr.f32.mxu0 0.0
  %6853 = vmatmul.mubr.f32.gmra.mrb[0].mxu0 %v6757
  %v6854 = vpop.f32.mrb[0].mxu0
  %v6855 = vadd.f32 0.0, %v6854
  %v6856 = vpop.f32.mrb[0].mxu0
  %6857 = vmatprep.mubr.f32.mxu0 0.0
  %6858 = vmatmul.mubr.f32.gmra.mrb[0].mxu0 %v6760
  %v6859 = vpop.f32.mrb[0].mxu0
  %v6860 = vadd.f32 0.0, %v6859
  %v6861 = vpop.f32.mrb[0].mxu0
  %6862 = vmatprep.mubr.f32.mxu0 0.0
  %6863 = vmatmul.mubr.f32.gmra.mrb[0].mxu0 %v6763
  %v6864 = vpop.f32.mrb[0].mxu0
  %v6865 = vadd.f32 0.0, %v6864
  %v6866 = vpop.f32.mrb[0].mxu0
  %6867 = vmatprep.mubr.f32.mxu0 0.0
  %6868 = vmatmul.mubr.f32.gmra.mrb[0].mxu0 %v6766
  %v6869 = vpop.f32.mrb[0].mxu0
  %v6870 = vadd.f32 0.0, %v6869
  %v6871 = vpop.f32.mrb[0].mxu0
  %6872 = vdwg.mxu0
  %v6873 = vsel %vm670, %v6536, 0.0
  %6874 = vadd.xlane.f32.xlu0 %v6873
  %v6875 = vpop.xlane.xlu0 %6874
  %v6876 = vsel %vm670, %v6538, 0.0
  %6877 = vadd.xlane.f32.xlu0 %v6876
  %v6878 = vpop.xlane.xlu0 %6877
  %v6879 = vsel %vm670, %v6540, 0.0
  %6880 = vadd.xlane.f32.xlu0 %v6879
  %v6881 = vpop.xlane.xlu0 %6880
  %v6882 = vsel %vm670, %v6542, 0.0
  %6883 = vadd.xlane.f32.xlu0 %v6882
  %v6884 = vpop.xlane.xlu0 %6883
  %v6885 = vsel %vm670, %v6544, 0.0
  %6886 = vadd.xlane.f32.xlu0 %v6885
  %v6887 = vpop.xlane.xlu0 %6886
  %v6888 = vsel %vm670, %v6546, 0.0
  %6889 = vadd.xlane.f32.xlu0 %v6888
  %v6890 = vpop.xlane.xlu0 %6889
  %v6891 = vsel %vm670, %v6548, 0.0
  %6892 = vadd.xlane.f32.xlu0 %v6891
  %v6893 = vpop.xlane.xlu0 %6892
  %v6894 = vsel %vm670, %v6550, 0.0
  %6895 = vadd.xlane.f32.xlu0 %v6894
  %v6896 = vpop.xlane.xlu0 %6895
  %v6897 = vsel %vm670, %v6552, 0.0
  %6898 = vadd.xlane.f32.xlu0 %v6897
  %v6899 = vpop.xlane.xlu0 %6898
  %v6900 = vsel %vm670, %v6554, 0.0
  %6901 = vadd.xlane.f32.xlu0 %v6900
  %v6902 = vpop.xlane.xlu0 %6901
  %v6903 = vsel %vm670, %v6556, 0.0
  %6904 = vadd.xlane.f32.xlu0 %v6903
  %v6905 = vpop.xlane.xlu0 %6904
  %v6906 = vsel %vm670, %v6558, 0.0
  %6907 = vadd.xlane.f32.xlu0 %v6906
  %v6908 = vpop.xlane.xlu0 %6907
  %v6909 = vsel %vm670, %v6560, 0.0
  %6910 = vadd.xlane.f32.xlu0 %v6909
  %v6911 = vpop.xlane.xlu0 %6910
  %v6912 = vsel %vm670, %v6562, 0.0
  %6913 = vadd.xlane.f32.xlu0 %v6912
  %v6914 = vpop.xlane.xlu0 %6913
  %v6915 = vsel %vm670, %v6564, 0.0
  %6916 = vadd.xlane.f32.xlu0 %v6915
  %v6917 = vpop.xlane.xlu0 %6916
  %v6918 = vsel %vm670, %v6566, 0.0
  %6919 = vadd.xlane.f32.xlu0 %v6918
  %v6920 = vpop.xlane.xlu0 %6919
  %v6921 = vrcp.pop %v6875
  %v6922 = vrcp.pop %v6878
  %v6923 = vrcp.pop %v6881
  %v6924 = vrcp.pop %v6884
  %v6925 = vrcp.pop %v6887
  %v6926 = vrcp.pop %v6890
  %v6927 = vrcp.pop %v6893
  %v6928 = vrcp.pop %v6896
  %v6929 = vrcp.pop %v6899
  %v6930 = vrcp.pop %v6902
  %v6931 = vrcp.pop %v6905
  %v6932 = vrcp.pop %v6908
  %v6933 = vrcp.pop %v6911
  %v6934 = vrcp.pop %v6914
  %v6935 = vrcp.pop %v6917
  %v6936 = vrcp.pop %v6920
  %v6937 = vmul.f32 %v6682, %v6921
  %v6938 = vmul.f32 %v6687, %v6922
  %v6939 = vmul.f32 %v6692, %v6923
  %v6940 = vmul.f32 %v6697, %v6924
  %v6941 = vmul.f32 %v6702, %v6925
  %v6942 = vmul.f32 %v6707, %v6926
  %v6943 = vmul.f32 %v6712, %v6927
  %v6944 = vmul.f32 %v6717, %v6928
  %v6945 = vmul.f32 %v6835, %v6929
  %v6946 = vmul.f32 %v6840, %v6930
  %v6947 = vmul.f32 %v6845, %v6931
  %v6948 = vmul.f32 %v6850, %v6932
  %v6949 = vmul.f32 %v6855, %v6933
  %v6950 = vmul.f32 %v6860, %v6934
  %v6951 = vmul.f32 %v6865, %v6935
  %v6952 = vmul.f32 %v6870, %v6936
  %6953 = vrot.lane.b32.xlu0 %v6071, 112
  %v6954 = vpop.permute.xlu0 %6953
  %6955 = vrot.lane.b32.xlu0 %v6076, 112
  %v6956 = vpop.permute.xlu0 %6955
  %6957 = vrot.lane.b32.xlu0 %v6081, 112
  %v6958 = vpop.permute.xlu0 %6957
  %6959 = vrot.lane.b32.xlu0 %v6086, 112
  %v6960 = vpop.permute.xlu0 %6959
  %6961 = vrot.lane.b32.xlu0 %v6091, 112
  %v6962 = vpop.permute.xlu0 %6961
  %6963 = vrot.lane.b32.xlu0 %v6096, 112
  %v6964 = vpop.permute.xlu0 %6963
  %6965 = vrot.lane.b32.xlu0 %v6101, 112
  %v6966 = vpop.permute.xlu0 %6965
  %6967 = vrot.lane.b32.xlu0 %v6106, 112
  %v6968 = vpop.permute.xlu0 %6967
  %6969 = vrot.lane.b32.xlu0 %v6071, 80
  %v6970 = vpop.permute.xlu0 %6969
  %6971 = vrot.lane.b32.xlu0 %v6076, 80
  %v6972 = vpop.permute.xlu0 %6971
  %6973 = vrot.lane.b32.xlu0 %v6081, 80
  %v6974 = vpop.permute.xlu0 %6973
  %6975 = vrot.lane.b32.xlu0 %v6086, 80
  %v6976 = vpop.permute.xlu0 %6975
  %6977 = vrot.lane.b32.xlu0 %v6091, 80
  %v6978 = vpop.permute.xlu0 %6977
  %6979 = vrot.lane.b32.xlu0 %v6096, 80
  %v6980 = vpop.permute.xlu0 %6979
  %6981 = vrot.lane.b32.xlu0 %v6101, 80
  %v6982 = vpop.permute.xlu0 %6981
  %6983 = vrot.lane.b32.xlu0 %v6106, 80
  %v6984 = vpop.permute.xlu0 %6983
  %v6985 = vsel %vm1725, %v6954, 0
  %v6987 = vsel %vm1725, %v6956, 0
  %v6989 = vsel %vm1725, %v6958, 0
  %v6991 = vsel %vm1725, %v6960, 0
  %v6993 = vsel %vm1725, %v6962, 0
  %v6995 = vsel %vm1725, %v6964, 0
  %v6997 = vsel %vm1725, %v6966, 0
  %v6999 = vsel %vm1725, %v6968, 0
  %v7001 = vsel %vm1725, %v6970, 0
  %v7003 = vsel %vm1725, %v6972, 0
  %v7005 = vsel %vm1725, %v6974, 0
  %v7007 = vsel %vm1725, %v6976, 0
  %v7009 = vsel %vm1725, %v6978, 0
  %v7011 = vsel %vm1725, %v6980, 0
  %v7013 = vsel %vm1725, %v6982, 0
  %v7015 = vsel %vm1725, %v6984, 0
  %7017 = vmatprep.subr.mxu0 0.0
  %7018 = vmatpush1.xpose.msra.mxu0 %v7001
  %7019 = vmatprep.subr.mxu0 0.0
  %7020 = vmatpush1.xpose.msra.mxu0 %v7003
  %7021 = vmatprep.subr.mxu0 0.0
  %7022 = vmatpush1.xpose.msra.mxu0 %v7005
  %7023 = vmatprep.subr.mxu0 0.0
  %7024 = vmatpush1.xpose.msra.mxu0 %v7007
  %7025 = vmatprep.subr.mxu0 0.0
  %7026 = vmatpush1.xpose.msra.mxu0 %v7009
  %7027 = vmatprep.subr.mxu0 0.0
  %7028 = vmatpush1.xpose.msra.mxu0 %v7011
  %7029 = vmatprep.subr.mxu0 0.0
  %7030 = vmatpush1.xpose.msra.mxu0 %v7013
  %7031 = vmatprep.subr.mxu0 0.0
  %7032 = vmatpush1.xpose.msra.mxu0 %v7015
  %7033 = vmatprep.subr.mxu0 0.0
  %7034 = vmatpush1.xpose.msra.mxu0 0.0
  %7035 = vmatprep.subr.mxu0 0.0
  %7036 = vmatpush1.xpose.msra.mxu0 0.0
  %7037 = vmatprep.subr.mxu0 0.0
  %7038 = vmatpush1.xpose.msra.mxu0 0.0
  %7039 = vmatprep.subr.mxu0 0.0
  %7040 = vmatpush1.xpose.msra.mxu0 0.0
  %7041 = vmatprep.subr.mxu0 0.0
  %7042 = vmatpush1.xpose.msra.mxu0 0.0
  %7043 = vmatprep.subr.mxu0 0.0
  %7044 = vmatpush1.xpose.msra.mxu0 0.0
  %7045 = vmatprep.subr.mxu0 0.0
  %7046 = vmatpush1.xpose.msra.mxu0 0.0
  %7047 = vmatprep.subr.mxu0 0.0
  %7048 = vmatpush1.xpose.msra.mxu0 0.0
  %7049 = vmatprep.subr.mxu0 0.0
  %7050 = vmatpush1.xpose.msra.mxu0 0.0
  %7051 = vmatprep.subr.mxu0 0.0
  %7052 = vmatpush1.xpose.msra.mxu0 0.0
  %7053 = vmatprep.subr.mxu0 0.0
  %7054 = vmatpush1.xpose.msra.mxu0 0.0
  %7055 = vmatprep.subr.mxu0 0.0
  %7056 = vmatpush1.xpose.msra.mxu0 0.0
  %7057 = vmatprep.subr.mxu0 0.0
  %7058 = vmatpush1.xpose.msra.mxu0 0.0
  %7059 = vmatprep.subr.mxu0 0.0
  %7060 = vmatpush1.xpose.msra.mxu0 0.0
  %7061 = vmatprep.subr.mxu0 0.0
  %7062 = vmatpush1.xpose.msra.mxu0 0.0
  %7063 = vmatprep.subr.mxu0 0.0
  %7064 = vmatpush1.xpose.msra.mxu0 0.0
  %7065 = vmatprep.subr.mxu0 0.0
  %7066 = vmatpush1.xpose.msra.mxu0 0.0
  %7067 = vmatprep.subr.mxu0 0.0
  %7068 = vmatpush1.xpose.msra.mxu0 0.0
  %7069 = vmatprep.subr.mxu0 0.0
  %7070 = vmatpush1.xpose.msra.mxu0 0.0
  %7071 = vmatprep.subr.mxu0 0.0
  %7072 = vmatpush1.xpose.msra.mxu0 0.0
  %7073 = vmatprep.subr.mxu0 0.0
  %7074 = vmatpush1.xpose.msra.mxu0 0.0
  %7075 = vmatprep.subr.mxu0 0.0
  %7076 = vmatpush1.xpose.msra.mxu0 0.0
  %7077 = vmatprep.subr.mxu0 0.0
  %7078 = vmatpush1.xpose.msra.mxu0 0.0
  %7079 = vmatprep.subr.mxu0 0.0
  %7080 = vmatpush1.xpose.msra.mxu0 0.0
  %7081 = vmatprep.mubr.f32.mxu0 0.0
  %7082 = vmatmul.mubr.f32.gmra.mrb[0].mxu0 %v6985
  %v7083 = vpop.f32.mrb[0].mxu0
  %v7084 = vadd.f32 0.0, %v7083
  %v7085 = vpop.f32.mrb[0].mxu0
  %7086 = vmatprep.mubr.f32.mxu0 0.0
  %7087 = vmatmul.mubr.f32.gmra.mrb[0].mxu0 %v6987
  %v7088 = vpop.f32.mrb[0].mxu0
  %v7089 = vadd.f32 0.0, %v7088
  %v7090 = vpop.f32.mrb[0].mxu0
  %7091 = vmatprep.mubr.f32.mxu0 0.0
  %7092 = vmatmul.mubr.f32.gmra.mrb[0].mxu0 %v6989
  %v7093 = vpop.f32.mrb[0].mxu0
  %v7094 = vadd.f32 0.0, %v7093
  %v7095 = vpop.f32.mrb[0].mxu0
  %7096 = vmatprep.mubr.f32.mxu0 0.0
  %7097 = vmatmul.mubr.f32.gmra.mrb[0].mxu0 %v6991
  %v7098 = vpop.f32.mrb[0].mxu0
  %v7099 = vadd.f32 0.0, %v7098
  %v7100 = vpop.f32.mrb[0].mxu0
  %7101 = vmatprep.mubr.f32.mxu0 0.0
  %7102 = vmatmul.mubr.f32.gmra.mrb[0].mxu0 %v6993
  %v7103 = vpop.f32.mrb[0].mxu0
  %v7104 = vadd.f32 0.0, %v7103
  %v7105 = vpop.f32.mrb[0].mxu0
  %7106 = vmatprep.mubr.f32.mxu0 0.0
  %7107 = vmatmul.mubr.f32.gmra.mrb[0].mxu0 %v6995
  %v7108 = vpop.f32.mrb[0].mxu0
  %v7109 = vadd.f32 0.0, %v7108
  %v7110 = vpop.f32.mrb[0].mxu0
  %7111 = vmatprep.mubr.f32.mxu0 0.0
  %7112 = vmatmul.mubr.f32.gmra.mrb[0].mxu0 %v6997
  %v7113 = vpop.f32.mrb[0].mxu0
  %v7114 = vadd.f32 0.0, %v7113
  %v7115 = vpop.f32.mrb[0].mxu0
  %7116 = vmatprep.mubr.f32.mxu0 0.0
  %7117 = vmatmul.mubr.f32.gmra.mrb[0].mxu0 %v6999
  %v7118 = vpop.f32.mrb[0].mxu0
  %v7119 = vadd.f32 0.0, %v7118
  %v7120 = vpop.f32.mrb[0].mxu0
  %7121 = vdwg.mxu0
  %7122 = vrot.lane.b32.xlu0 %v6111, 112
  %v7123 = vpop.permute.xlu0 %7122
  %7124 = vrot.lane.b32.xlu0 %v6116, 112
  %v7125 = vpop.permute.xlu0 %7124
  %7126 = vrot.lane.b32.xlu0 %v6121, 112
  %v7127 = vpop.permute.xlu0 %7126
  %7128 = vrot.lane.b32.xlu0 %v6126, 112
  %v7129 = vpop.permute.xlu0 %7128
  %7130 = vrot.lane.b32.xlu0 %v6131, 112
  %v7131 = vpop.permute.xlu0 %7130
  %7132 = vrot.lane.b32.xlu0 %v6136, 112
  %v7133 = vpop.permute.xlu0 %7132
  %7134 = vrot.lane.b32.xlu0 %v6141, 112
  %v7135 = vpop.permute.xlu0 %7134
  %7136 = vrot.lane.b32.xlu0 %v6146, 112
  %v7137 = vpop.permute.xlu0 %7136
  %7138 = vrot.lane.b32.xlu0 %v6111, 80
  %v7139 = vpop.permute.xlu0 %7138
  %7140 = vrot.lane.b32.xlu0 %v6116, 80
  %v7141 = vpop.permute.xlu0 %7140
  %7142 = vrot.lane.b32.xlu0 %v6121, 80
  %v7143 = vpop.permute.xlu0 %7142
  %7144 = vrot.lane.b32.xlu0 %v6126, 80
  %v7145 = vpop.permute.xlu0 %7144
  %7146 = vrot.lane.b32.xlu0 %v6131, 80
  %v7147 = vpop.permute.xlu0 %7146
  %7148 = vrot.lane.b32.xlu0 %v6136, 80
  %v7149 = vpop.permute.xlu0 %7148
  %7150 = vrot.lane.b32.xlu0 %v6141, 80
  %v7151 = vpop.permute.xlu0 %7150
  %7152 = vrot.lane.b32.xlu0 %v6146, 80
  %v7153 = vpop.permute.xlu0 %7152
  %v7154 = vsel %vm1725, %v7123, 0
  %v7156 = vsel %vm1725, %v7125, 0
  %v7158 = vsel %vm1725, %v7127, 0
  %v7160 = vsel %vm1725, %v7129, 0
  %v7162 = vsel %vm1725, %v7131, 0
  %v7164 = vsel %vm1725, %v7133, 0
  %v7166 = vsel %vm1725, %v7135, 0
  %v7168 = vsel %vm1725, %v7137, 0
  %v7170 = vsel %vm1725, %v7139, 0
  %v7172 = vsel %vm1725, %v7141, 0
  %v7174 = vsel %vm1725, %v7143, 0
  %v7176 = vsel %vm1725, %v7145, 0
  %v7178 = vsel %vm1725, %v7147, 0
  %v7180 = vsel %vm1725, %v7149, 0
  %v7182 = vsel %vm1725, %v7151, 0
  %v7184 = vsel %vm1725, %v7153, 0
  %7186 = vmatprep.subr.mxu0 0.0
  %7187 = vmatpush1.xpose.msra.mxu0 %v7170
  %7188 = vmatprep.subr.mxu0 0.0
  %7189 = vmatpush1.xpose.msra.mxu0 %v7172
  %7190 = vmatprep.subr.mxu0 0.0
  %7191 = vmatpush1.xpose.msra.mxu0 %v7174
  %7192 = vmatprep.subr.mxu0 0.0
  %7193 = vmatpush1.xpose.msra.mxu0 %v7176
  %7194 = vmatprep.subr.mxu0 0.0
  %7195 = vmatpush1.xpose.msra.mxu0 %v7178
  %7196 = vmatprep.subr.mxu0 0.0
  %7197 = vmatpush1.xpose.msra.mxu0 %v7180
  %7198 = vmatprep.subr.mxu0 0.0
  %7199 = vmatpush1.xpose.msra.mxu0 %v7182
  %7200 = vmatprep.subr.mxu0 0.0
  %7201 = vmatpush1.xpose.msra.mxu0 %v7184
  %7202 = vmatprep.subr.mxu0 0.0
  %7203 = vmatpush1.xpose.msra.mxu0 0.0
  %7204 = vmatprep.subr.mxu0 0.0
  %7205 = vmatpush1.xpose.msra.mxu0 0.0
  %7206 = vmatprep.subr.mxu0 0.0
  %7207 = vmatpush1.xpose.msra.mxu0 0.0
  %7208 = vmatprep.subr.mxu0 0.0
  %7209 = vmatpush1.xpose.msra.mxu0 0.0
  %7210 = vmatprep.subr.mxu0 0.0
  %7211 = vmatpush1.xpose.msra.mxu0 0.0
  %7212 = vmatprep.subr.mxu0 0.0
  %7213 = vmatpush1.xpose.msra.mxu0 0.0
  %7214 = vmatprep.subr.mxu0 0.0
  %7215 = vmatpush1.xpose.msra.mxu0 0.0
  %7216 = vmatprep.subr.mxu0 0.0
  %7217 = vmatpush1.xpose.msra.mxu0 0.0
  %7218 = vmatprep.subr.mxu0 0.0
  %7219 = vmatpush1.xpose.msra.mxu0 0.0
  %7220 = vmatprep.subr.mxu0 0.0
  %7221 = vmatpush1.xpose.msra.mxu0 0.0
  %7222 = vmatprep.subr.mxu0 0.0
  %7223 = vmatpush1.xpose.msra.mxu0 0.0
  %7224 = vmatprep.subr.mxu0 0.0
  %7225 = vmatpush1.xpose.msra.mxu0 0.0
  %7226 = vmatprep.subr.mxu0 0.0
  %7227 = vmatpush1.xpose.msra.mxu0 0.0
  %7228 = vmatprep.subr.mxu0 0.0
  %7229 = vmatpush1.xpose.msra.mxu0 0.0
  %7230 = vmatprep.subr.mxu0 0.0
  %7231 = vmatpush1.xpose.msra.mxu0 0.0
  %7232 = vmatprep.subr.mxu0 0.0
  %7233 = vmatpush1.xpose.msra.mxu0 0.0
  %7234 = vmatprep.subr.mxu0 0.0
  %7235 = vmatpush1.xpose.msra.mxu0 0.0
  %7236 = vmatprep.subr.mxu0 0.0
  %7237 = vmatpush1.xpose.msra.mxu0 0.0
  %7238 = vmatprep.subr.mxu0 0.0
  %7239 = vmatpush1.xpose.msra.mxu0 0.0
  %7240 = vmatprep.subr.mxu0 0.0
  %7241 = vmatpush1.xpose.msra.mxu0 0.0
  %7242 = vmatprep.subr.mxu0 0.0
  %7243 = vmatpush1.xpose.msra.mxu0 0.0
  %7244 = vmatprep.subr.mxu0 0.0
  %7245 = vmatpush1.xpose.msra.mxu0 0.0
  %7246 = vmatprep.subr.mxu0 0.0
  %7247 = vmatpush1.xpose.msra.mxu0 0.0
  %7248 = vmatprep.subr.mxu0 0.0
  %7249 = vmatpush1.xpose.msra.mxu0 0.0
  %7250 = vmatprep.mubr.f32.mxu0 0.0
  %7251 = vmatmul.mubr.f32.gmra.mrb[0].mxu0 %v7154
  %v7252 = vpop.f32.mrb[0].mxu0
  %v7253 = vadd.f32 0.0, %v7252
  %v7254 = vpop.f32.mrb[0].mxu0
  %7255 = vmatprep.mubr.f32.mxu0 0.0
  %7256 = vmatmul.mubr.f32.gmra.mrb[0].mxu0 %v7156
  %v7257 = vpop.f32.mrb[0].mxu0
  %v7258 = vadd.f32 0.0, %v7257
  %v7259 = vpop.f32.mrb[0].mxu0
  %7260 = vmatprep.mubr.f32.mxu0 0.0
  %7261 = vmatmul.mubr.f32.gmra.mrb[0].mxu0 %v7158
  %v7262 = vpop.f32.mrb[0].mxu0
  %v7263 = vadd.f32 0.0, %v7262
  %v7264 = vpop.f32.mrb[0].mxu0
  %7265 = vmatprep.mubr.f32.mxu0 0.0
  %7266 = vmatmul.mubr.f32.gmra.mrb[0].mxu0 %v7160
  %v7267 = vpop.f32.mrb[0].mxu0
  %v7268 = vadd.f32 0.0, %v7267
  %v7269 = vpop.f32.mrb[0].mxu0
  %7270 = vmatprep.mubr.f32.mxu0 0.0
  %7271 = vmatmul.mubr.f32.gmra.mrb[0].mxu0 %v7162
  %v7272 = vpop.f32.mrb[0].mxu0
  %v7273 = vadd.f32 0.0, %v7272
  %v7274 = vpop.f32.mrb[0].mxu0
  %7275 = vmatprep.mubr.f32.mxu0 0.0
  %7276 = vmatmul.mubr.f32.gmra.mrb[0].mxu0 %v7164
  %v7277 = vpop.f32.mrb[0].mxu0
  %v7278 = vadd.f32 0.0, %v7277
  %v7279 = vpop.f32.mrb[0].mxu0
  %7280 = vmatprep.mubr.f32.mxu0 0.0
  %7281 = vmatmul.mubr.f32.gmra.mrb[0].mxu0 %v7166
  %v7282 = vpop.f32.mrb[0].mxu0
  %v7283 = vadd.f32 0.0, %v7282
  %v7284 = vpop.f32.mrb[0].mxu0
  %7285 = vmatprep.mubr.f32.mxu0 0.0
  %7286 = vmatmul.mubr.f32.gmra.mrb[0].mxu0 %v7168
  %v7287 = vpop.f32.mrb[0].mxu0
  %v7288 = vadd.f32 0.0, %v7287
  %v7289 = vpop.f32.mrb[0].mxu0
  %7290 = vdwg.mxu0
  %v7291 = vsel %vm670, %v7084, -inf
  %7292 = vmax.xlane.f32.xlu0 %v7291
  %v7293 = vpop.xlane.xlu0 %7292
  %v7294 = vsel %vm670, %v7089, -inf
  %7295 = vmax.xlane.f32.xlu0 %v7294
  %v7296 = vpop.xlane.xlu0 %7295
  %v7297 = vsel %vm670, %v7094, -inf
  %7298 = vmax.xlane.f32.xlu0 %v7297
  %v7299 = vpop.xlane.xlu0 %7298
  %v7300 = vsel %vm670, %v7099, -inf
  %7301 = vmax.xlane.f32.xlu0 %v7300
  %v7302 = vpop.xlane.xlu0 %7301
  %v7303 = vsel %vm670, %v7104, -inf
  %7304 = vmax.xlane.f32.xlu0 %v7303
  %v7305 = vpop.xlane.xlu0 %7304
  %v7306 = vsel %vm670, %v7109, -inf
  %7307 = vmax.xlane.f32.xlu0 %v7306
  %v7308 = vpop.xlane.xlu0 %7307
  %v7309 = vsel %vm670, %v7114, -inf
  %7310 = vmax.xlane.f32.xlu0 %v7309
  %v7311 = vpop.xlane.xlu0 %7310
  %v7312 = vsel %vm670, %v7119, -inf
  %7313 = vmax.xlane.f32.xlu0 %v7312
  %v7314 = vpop.xlane.xlu0 %7313
  %v7315 = vsel %vm670, %v7253, -inf
  %7316 = vmax.xlane.f32.xlu0 %v7315
  %v7317 = vpop.xlane.xlu0 %7316
  %v7318 = vsel %vm670, %v7258, -inf
  %7319 = vmax.xlane.f32.xlu0 %v7318
  %v7320 = vpop.xlane.xlu0 %7319
  %v7321 = vsel %vm670, %v7263, -inf
  %7322 = vmax.xlane.f32.xlu0 %v7321
  %v7323 = vpop.xlane.xlu0 %7322
  %v7324 = vsel %vm670, %v7268, -inf
  %7325 = vmax.xlane.f32.xlu0 %v7324
  %v7326 = vpop.xlane.xlu0 %7325
  %v7327 = vsel %vm670, %v7273, -inf
  %7328 = vmax.xlane.f32.xlu0 %v7327
  %v7329 = vpop.xlane.xlu0 %7328
  %v7330 = vsel %vm670, %v7278, -inf
  %7331 = vmax.xlane.f32.xlu0 %v7330
  %v7332 = vpop.xlane.xlu0 %7331
  %v7333 = vsel %vm670, %v7283, -inf
  %7334 = vmax.xlane.f32.xlu0 %v7333
  %v7335 = vpop.xlane.xlu0 %7334
  %v7336 = vsel %vm670, %v7288, -inf
  %7337 = vmax.xlane.f32.xlu0 %v7336
  %v7338 = vpop.xlane.xlu0 %7337
  %v7339 = vsub.f32 %v7084, %v7293
  %v7340 = vsub.f32 %v7089, %v7296
  %v7341 = vsub.f32 %v7094, %v7299
  %v7342 = vsub.f32 %v7099, %v7302
  %v7343 = vsub.f32 %v7104, %v7305
  %v7344 = vsub.f32 %v7109, %v7308
  %v7345 = vsub.f32 %v7114, %v7311
  %v7346 = vsub.f32 %v7119, %v7314
  %v7347 = vsub.f32 %v7253, %v7317
  %v7348 = vsub.f32 %v7258, %v7320
  %v7349 = vsub.f32 %v7263, %v7323
  %v7350 = vsub.f32 %v7268, %v7326
  %v7351 = vsub.f32 %v7273, %v7329
  %v7352 = vsub.f32 %v7278, %v7332
  %v7353 = vsub.f32 %v7283, %v7335
  %v7354 = vsub.f32 %v7288, %v7338
  %v7355 = vmul.f32 %v7339, 1.442695
  %v7356 = vpow.pop %v7355
  %v7357 = vmul.f32 %v7340, 1.442695
  %v7358 = vpow.pop %v7357
  %v7359 = vmul.f32 %v7341, 1.442695
  %v7360 = vpow.pop %v7359
  %v7361 = vmul.f32 %v7342, 1.442695
  %v7362 = vpow.pop %v7361
  %v7363 = vmul.f32 %v7343, 1.442695
  %v7364 = vpow.pop %v7363
  %v7365 = vmul.f32 %v7344, 1.442695
  %v7366 = vpow.pop %v7365
  %v7367 = vmul.f32 %v7345, 1.442695
  %v7368 = vpow.pop %v7367
  %v7369 = vmul.f32 %v7346, 1.442695
  %v7370 = vpow.pop %v7369
  %v7371 = vmul.f32 %v7347, 1.442695
  %v7372 = vpow.pop %v7371
  %v7373 = vmul.f32 %v7348, 1.442695
  %v7374 = vpow.pop %v7373
  %v7375 = vmul.f32 %v7349, 1.442695
  %v7376 = vpow.pop %v7375
  %v7377 = vmul.f32 %v7350, 1.442695
  %v7378 = vpow.pop %v7377
  %v7379 = vmul.f32 %v7351, 1.442695
  %v7380 = vpow.pop %v7379
  %v7381 = vmul.f32 %v7352, 1.442695
  %v7382 = vpow.pop %v7381
  %v7383 = vmul.f32 %v7353, 1.442695
  %v7384 = vpow.pop %v7383
  %v7385 = vmul.f32 %v7354, 1.442695
  %v7386 = vpow.pop %v7385
  %7387 = vrot.lane.b32.xlu0 %v6071, 48
  %v7388 = vpop.permute.xlu0 %7387
  %7389 = vrot.lane.b32.xlu0 %v6076, 48
  %v7390 = vpop.permute.xlu0 %7389
  %7391 = vrot.lane.b32.xlu0 %v6081, 48
  %v7392 = vpop.permute.xlu0 %7391
  %7393 = vrot.lane.b32.xlu0 %v6086, 48
  %v7394 = vpop.permute.xlu0 %7393
  %7395 = vrot.lane.b32.xlu0 %v6091, 48
  %v7396 = vpop.permute.xlu0 %7395
  %7397 = vrot.lane.b32.xlu0 %v6096, 48
  %v7398 = vpop.permute.xlu0 %7397
  %7399 = vrot.lane.b32.xlu0 %v6101, 48
  %v7400 = vpop.permute.xlu0 %7399
  %7401 = vrot.lane.b32.xlu0 %v6106, 48
  %v7402 = vpop.permute.xlu0 %7401
  %v7412 = vsel %vm670, %v7356, 0
  %v7415 = vsel %vm670, %v7358, 0
  %v7418 = vsel %vm670, %v7360, 0
  %v7421 = vsel %vm670, %v7362, 0
  %v7424 = vsel %vm670, %v7364, 0
  %v7427 = vsel %vm670, %v7366, 0
  %v7430 = vsel %vm670, %v7368, 0
  %v7433 = vsel %vm670, %v7370, 0
  %7435 = vmatprep.subr.mxu0 0.0
  %7436 = vmatpush1.msra.mxu0 %v7388
  %7437 = vmatprep.subr.mxu0 0.0
  %7438 = vmatpush1.msra.mxu0 %v7390
  %7439 = vmatprep.subr.mxu0 0.0
  %7440 = vmatpush1.msra.mxu0 %v7392
  %7441 = vmatprep.subr.mxu0 0.0
  %7442 = vmatpush1.msra.mxu0 %v7394
  %7443 = vmatprep.subr.mxu0 0.0
  %7444 = vmatpush1.msra.mxu0 %v7396
  %7445 = vmatprep.subr.mxu0 0.0
  %7446 = vmatpush1.msra.mxu0 %v7398
  %7447 = vmatprep.subr.mxu0 0.0
  %7448 = vmatpush1.msra.mxu0 %v7400
  %7449 = vmatprep.subr.mxu0 0.0
  %7450 = vmatpush1.msra.mxu0 %v7402
  %7451 = vmatprep.subr.mxu0 0.0
  %7452 = vmatpush1.msra.mxu0 0.0
  %7453 = vmatprep.subr.mxu0 0.0
  %7454 = vmatpush1.msra.mxu0 0.0
  %7455 = vmatprep.subr.mxu0 0.0
  %7456 = vmatpush1.msra.mxu0 0.0
  %7457 = vmatprep.subr.mxu0 0.0
  %7458 = vmatpush1.msra.mxu0 0.0
  %7459 = vmatprep.subr.mxu0 0.0
  %7460 = vmatpush1.msra.mxu0 0.0
  %7461 = vmatprep.subr.mxu0 0.0
  %7462 = vmatpush1.msra.mxu0 0.0
  %7463 = vmatprep.subr.mxu0 0.0
  %7464 = vmatpush1.msra.mxu0 0.0
  %7465 = vmatprep.subr.mxu0 0.0
  %7466 = vmatpush1.msra.mxu0 0.0
  %7467 = vmatprep.subr.mxu0 0.0
  %7468 = vmatpush1.msra.mxu0 0.0
  %7469 = vmatprep.subr.mxu0 0.0
  %7470 = vmatpush1.msra.mxu0 0.0
  %7471 = vmatprep.subr.mxu0 0.0
  %7472 = vmatpush1.msra.mxu0 0.0
  %7473 = vmatprep.subr.mxu0 0.0
  %7474 = vmatpush1.msra.mxu0 0.0
  %7475 = vmatprep.subr.mxu0 0.0
  %7476 = vmatpush1.msra.mxu0 0.0
  %7477 = vmatprep.subr.mxu0 0.0
  %7478 = vmatpush1.msra.mxu0 0.0
  %7479 = vmatprep.subr.mxu0 0.0
  %7480 = vmatpush1.msra.mxu0 0.0
  %7481 = vmatprep.subr.mxu0 0.0
  %7482 = vmatpush1.msra.mxu0 0.0
  %7483 = vmatprep.subr.mxu0 0.0
  %7484 = vmatpush1.msra.mxu0 0.0
  %7485 = vmatprep.subr.mxu0 0.0
  %7486 = vmatpush1.msra.mxu0 0.0
  %7487 = vmatprep.subr.mxu0 0.0
  %7488 = vmatpush1.msra.mxu0 0.0
  %7489 = vmatprep.subr.mxu0 0.0
  %7490 = vmatpush1.msra.mxu0 0.0
  %7491 = vmatprep.subr.mxu0 0.0
  %7492 = vmatpush1.msra.mxu0 0.0
  %7493 = vmatprep.subr.mxu0 0.0
  %7494 = vmatpush1.msra.mxu0 0.0
  %7495 = vmatprep.subr.mxu0 0.0
  %7496 = vmatpush1.msra.mxu0 0.0
  %7497 = vmatprep.subr.mxu0 0.0
  %7498 = vmatpush1.msra.mxu0 0.0
  %7499 = vmatprep.mubr.f32.mxu0 0.0
  %7500 = vmatmul.mubr.f32.gmra.mrb[0].mxu0 %v7412
  %v7501 = vpop.f32.mrb[0].mxu0
  %v7502 = vadd.f32 0.0, %v7501
  %v7503 = vpop.f32.mrb[0].mxu0
  %7504 = vmatprep.mubr.f32.mxu0 0.0
  %7505 = vmatmul.mubr.f32.gmra.mrb[0].mxu0 %v7415
  %v7506 = vpop.f32.mrb[0].mxu0
  %v7507 = vadd.f32 0.0, %v7506
  %v7508 = vpop.f32.mrb[0].mxu0
  %7509 = vmatprep.mubr.f32.mxu0 0.0
  %7510 = vmatmul.mubr.f32.gmra.mrb[0].mxu0 %v7418
  %v7511 = vpop.f32.mrb[0].mxu0
  %v7512 = vadd.f32 0.0, %v7511
  %v7513 = vpop.f32.mrb[0].mxu0
  %7514 = vmatprep.mubr.f32.mxu0 0.0
  %7515 = vmatmul.mubr.f32.gmra.mrb[0].mxu0 %v7421
  %v7516 = vpop.f32.mrb[0].mxu0
  %v7517 = vadd.f32 0.0, %v7516
  %v7518 = vpop.f32.mrb[0].mxu0
  %7519 = vmatprep.mubr.f32.mxu0 0.0
  %7520 = vmatmul.mubr.f32.gmra.mrb[0].mxu0 %v7424
  %v7521 = vpop.f32.mrb[0].mxu0
  %v7522 = vadd.f32 0.0, %v7521
  %v7523 = vpop.f32.mrb[0].mxu0
  %7524 = vmatprep.mubr.f32.mxu0 0.0
  %7525 = vmatmul.mubr.f32.gmra.mrb[0].mxu0 %v7427
  %v7526 = vpop.f32.mrb[0].mxu0
  %v7527 = vadd.f32 0.0, %v7526
  %v7528 = vpop.f32.mrb[0].mxu0
  %7529 = vmatprep.mubr.f32.mxu0 0.0
  %7530 = vmatmul.mubr.f32.gmra.mrb[0].mxu0 %v7430
  %v7531 = vpop.f32.mrb[0].mxu0
  %v7532 = vadd.f32 0.0, %v7531
  %v7533 = vpop.f32.mrb[0].mxu0
  %7534 = vmatprep.mubr.f32.mxu0 0.0
  %7535 = vmatmul.mubr.f32.gmra.mrb[0].mxu0 %v7433
  %v7536 = vpop.f32.mrb[0].mxu0
  %v7537 = vadd.f32 0.0, %v7536
  %v7538 = vpop.f32.mrb[0].mxu0
  %7539 = vdwg.mxu0
  %7540 = vrot.lane.b32.xlu0 %v6111, 48
  %v7541 = vpop.permute.xlu0 %7540
  %7542 = vrot.lane.b32.xlu0 %v6116, 48
  %v7543 = vpop.permute.xlu0 %7542
  %7544 = vrot.lane.b32.xlu0 %v6121, 48
  %v7545 = vpop.permute.xlu0 %7544
  %7546 = vrot.lane.b32.xlu0 %v6126, 48
  %v7547 = vpop.permute.xlu0 %7546
  %7548 = vrot.lane.b32.xlu0 %v6131, 48
  %v7549 = vpop.permute.xlu0 %7548
  %7550 = vrot.lane.b32.xlu0 %v6136, 48
  %v7551 = vpop.permute.xlu0 %7550
  %7552 = vrot.lane.b32.xlu0 %v6141, 48
  %v7553 = vpop.permute.xlu0 %7552
  %7554 = vrot.lane.b32.xlu0 %v6146, 48
  %v7555 = vpop.permute.xlu0 %7554
  %v7565 = vsel %vm670, %v7372, 0
  %v7568 = vsel %vm670, %v7374, 0
  %v7571 = vsel %vm670, %v7376, 0
  %v7574 = vsel %vm670, %v7378, 0
  %v7577 = vsel %vm670, %v7380, 0
  %v7580 = vsel %vm670, %v7382, 0
  %v7583 = vsel %vm670, %v7384, 0
  %v7586 = vsel %vm670, %v7386, 0
  %7588 = vmatprep.subr.mxu0 0.0
  %7589 = vmatpush1.msra.mxu0 %v7541
  %7590 = vmatprep.subr.mxu0 0.0
  %7591 = vmatpush1.msra.mxu0 %v7543
  %7592 = vmatprep.subr.mxu0 0.0
  %7593 = vmatpush1.msra.mxu0 %v7545
  %7594 = vmatprep.subr.mxu0 0.0
  %7595 = vmatpush1.msra.mxu0 %v7547
  %7596 = vmatprep.subr.mxu0 0.0
  %7597 = vmatpush1.msra.mxu0 %v7549
  %7598 = vmatprep.subr.mxu0 0.0
  %7599 = vmatpush1.msra.mxu0 %v7551
  %7600 = vmatprep.subr.mxu0 0.0
  %7601 = vmatpush1.msra.mxu0 %v7553
  %7602 = vmatprep.subr.mxu0 0.0
  %7603 = vmatpush1.msra.mxu0 %v7555
  %7604 = vmatprep.subr.mxu0 0.0
  %7605 = vmatpush1.msra.mxu0 0.0
  %7606 = vmatprep.subr.mxu0 0.0
  %7607 = vmatpush1.msra.mxu0 0.0
  %7608 = vmatprep.subr.mxu0 0.0
  %7609 = vmatpush1.msra.mxu0 0.0
  %7610 = vmatprep.subr.mxu0 0.0
  %7611 = vmatpush1.msra.mxu0 0.0
  %7612 = vmatprep.subr.mxu0 0.0
  %7613 = vmatpush1.msra.mxu0 0.0
  %7614 = vmatprep.subr.mxu0 0.0
  %7615 = vmatpush1.msra.mxu0 0.0
  %7616 = vmatprep.subr.mxu0 0.0
  %7617 = vmatpush1.msra.mxu0 0.0
  %7618 = vmatprep.subr.mxu0 0.0
  %7619 = vmatpush1.msra.mxu0 0.0
  %7620 = vmatprep.subr.mxu0 0.0
  %7621 = vmatpush1.msra.mxu0 0.0
  %7622 = vmatprep.subr.mxu0 0.0
  %7623 = vmatpush1.msra.mxu0 0.0
  %7624 = vmatprep.subr.mxu0 0.0
  %7625 = vmatpush1.msra.mxu0 0.0
  %7626 = vmatprep.subr.mxu0 0.0
  %7627 = vmatpush1.msra.mxu0 0.0
  %7628 = vmatprep.subr.mxu0 0.0
  %7629 = vmatpush1.msra.mxu0 0.0
  %7630 = vmatprep.subr.mxu0 0.0
  %7631 = vmatpush1.msra.mxu0 0.0
  %7632 = vmatprep.subr.mxu0 0.0
  %7633 = vmatpush1.msra.mxu0 0.0
  %7634 = vmatprep.subr.mxu0 0.0
  %7635 = vmatpush1.msra.mxu0 0.0
  %7636 = vmatprep.subr.mxu0 0.0
  %7637 = vmatpush1.msra.mxu0 0.0
  %7638 = vmatprep.subr.mxu0 0.0
  %7639 = vmatpush1.msra.mxu0 0.0
  %7640 = vmatprep.subr.mxu0 0.0
  %7641 = vmatpush1.msra.mxu0 0.0
  %7642 = vmatprep.subr.mxu0 0.0
  %7643 = vmatpush1.msra.mxu0 0.0
  %7644 = vmatprep.subr.mxu0 0.0
  %7645 = vmatpush1.msra.mxu0 0.0
  %7646 = vmatprep.subr.mxu0 0.0
  %7647 = vmatpush1.msra.mxu0 0.0
  %7648 = vmatprep.subr.mxu0 0.0
  %7649 = vmatpush1.msra.mxu0 0.0
  %7650 = vmatprep.subr.mxu0 0.0
  %7651 = vmatpush1.msra.mxu0 0.0
  %7652 = vmatprep.mubr.f32.mxu0 0.0
  %7653 = vmatmul.mubr.f32.gmra.mrb[0].mxu0 %v7565
  %v7654 = vpop.f32.mrb[0].mxu0
  %v7655 = vadd.f32 0.0, %v7654
  %v7656 = vpop.f32.mrb[0].mxu0
  %7657 = vmatprep.mubr.f32.mxu0 0.0
  %7658 = vmatmul.mubr.f32.gmra.mrb[0].mxu0 %v7568
  %v7659 = vpop.f32.mrb[0].mxu0
  %v7660 = vadd.f32 0.0, %v7659
  %v7661 = vpop.f32.mrb[0].mxu0
  %7662 = vmatprep.mubr.f32.mxu0 0.0
  %7663 = vmatmul.mubr.f32.gmra.mrb[0].mxu0 %v7571
  %v7664 = vpop.f32.mrb[0].mxu0
  %v7665 = vadd.f32 0.0, %v7664
  %v7666 = vpop.f32.mrb[0].mxu0
  %7667 = vmatprep.mubr.f32.mxu0 0.0
  %7668 = vmatmul.mubr.f32.gmra.mrb[0].mxu0 %v7574
  %v7669 = vpop.f32.mrb[0].mxu0
  %v7670 = vadd.f32 0.0, %v7669
  %v7671 = vpop.f32.mrb[0].mxu0
  %7672 = vmatprep.mubr.f32.mxu0 0.0
  %7673 = vmatmul.mubr.f32.gmra.mrb[0].mxu0 %v7577
  %v7674 = vpop.f32.mrb[0].mxu0
  %v7675 = vadd.f32 0.0, %v7674
  %v7676 = vpop.f32.mrb[0].mxu0
  %7677 = vmatprep.mubr.f32.mxu0 0.0
  %7678 = vmatmul.mubr.f32.gmra.mrb[0].mxu0 %v7580
  %v7679 = vpop.f32.mrb[0].mxu0
  %v7680 = vadd.f32 0.0, %v7679
  %v7681 = vpop.f32.mrb[0].mxu0
  %7682 = vmatprep.mubr.f32.mxu0 0.0
  %7683 = vmatmul.mubr.f32.gmra.mrb[0].mxu0 %v7583
  %v7684 = vpop.f32.mrb[0].mxu0
  %v7685 = vadd.f32 0.0, %v7684
  %v7686 = vpop.f32.mrb[0].mxu0
  %7687 = vmatprep.mubr.f32.mxu0 0.0
  %7688 = vmatmul.mubr.f32.gmra.mrb[0].mxu0 %v7586
  %v7689 = vpop.f32.mrb[0].mxu0
  %v7690 = vadd.f32 0.0, %v7689
  %v7691 = vpop.f32.mrb[0].mxu0
  %7692 = vdwg.mxu0
  %v7693 = vsel %vm670, %v7356, 0.0
  %7694 = vadd.xlane.f32.xlu0 %v7693
  %v7695 = vpop.xlane.xlu0 %7694
  %v7696 = vsel %vm670, %v7358, 0.0
  %7697 = vadd.xlane.f32.xlu0 %v7696
  %v7698 = vpop.xlane.xlu0 %7697
  %v7699 = vsel %vm670, %v7360, 0.0
  %7700 = vadd.xlane.f32.xlu0 %v7699
  %v7701 = vpop.xlane.xlu0 %7700
  %v7702 = vsel %vm670, %v7362, 0.0
  %7703 = vadd.xlane.f32.xlu0 %v7702
  %v7704 = vpop.xlane.xlu0 %7703
  %v7705 = vsel %vm670, %v7364, 0.0
  %7706 = vadd.xlane.f32.xlu0 %v7705
  %v7707 = vpop.xlane.xlu0 %7706
  %v7708 = vsel %vm670, %v7366, 0.0
  %7709 = vadd.xlane.f32.xlu0 %v7708
  %v7710 = vpop.xlane.xlu0 %7709
  %v7711 = vsel %vm670, %v7368, 0.0
  %7712 = vadd.xlane.f32.xlu0 %v7711
  %v7713 = vpop.xlane.xlu0 %7712
  %v7714 = vsel %vm670, %v7370, 0.0
  %7715 = vadd.xlane.f32.xlu0 %v7714
  %v7716 = vpop.xlane.xlu0 %7715
  %v7717 = vsel %vm670, %v7372, 0.0
  %7718 = vadd.xlane.f32.xlu0 %v7717
  %v7719 = vpop.xlane.xlu0 %7718
  %v7720 = vsel %vm670, %v7374, 0.0
  %7721 = vadd.xlane.f32.xlu0 %v7720
  %v7722 = vpop.xlane.xlu0 %7721
  %v7723 = vsel %vm670, %v7376, 0.0
  %7724 = vadd.xlane.f32.xlu0 %v7723
  %v7725 = vpop.xlane.xlu0 %7724
  %v7726 = vsel %vm670, %v7378, 0.0
  %7727 = vadd.xlane.f32.xlu0 %v7726
  %v7728 = vpop.xlane.xlu0 %7727
  %v7729 = vsel %vm670, %v7380, 0.0
  %7730 = vadd.xlane.f32.xlu0 %v7729
  %v7731 = vpop.xlane.xlu0 %7730
  %v7732 = vsel %vm670, %v7382, 0.0
  %7733 = vadd.xlane.f32.xlu0 %v7732
  %v7734 = vpop.xlane.xlu0 %7733
  %v7735 = vsel %vm670, %v7384, 0.0
  %7736 = vadd.xlane.f32.xlu0 %v7735
  %v7737 = vpop.xlane.xlu0 %7736
  %v7738 = vsel %vm670, %v7386, 0.0
  %7739 = vadd.xlane.f32.xlu0 %v7738
  %v7740 = vpop.xlane.xlu0 %7739
  %v7741 = vrcp.pop %v7695
  %v7742 = vrcp.pop %v7698
  %v7743 = vrcp.pop %v7701
  %v7744 = vrcp.pop %v7704
  %v7745 = vrcp.pop %v7707
  %v7746 = vrcp.pop %v7710
  %v7747 = vrcp.pop %v7713
  %v7748 = vrcp.pop %v7716
  %v7749 = vrcp.pop %v7719
  %v7750 = vrcp.pop %v7722
  %v7751 = vrcp.pop %v7725
  %v7752 = vrcp.pop %v7728
  %v7753 = vrcp.pop %v7731
  %v7754 = vrcp.pop %v7734
  %v7755 = vrcp.pop %v7737
  %v7756 = vrcp.pop %v7740
  %v7757 = vmul.f32 %v7502, %v7741
  %v7758 = vmul.f32 %v7507, %v7742
  %v7759 = vmul.f32 %v7512, %v7743
  %v7760 = vmul.f32 %v7517, %v7744
  %v7761 = vmul.f32 %v7522, %v7745
  %v7762 = vmul.f32 %v7527, %v7746
  %v7763 = vmul.f32 %v7532, %v7747
  %v7764 = vmul.f32 %v7537, %v7748
  %v7765 = vmul.f32 %v7655, %v7749
  %v7766 = vmul.f32 %v7660, %v7750
  %v7767 = vmul.f32 %v7665, %v7751
  %v7768 = vmul.f32 %v7670, %v7752
  %v7769 = vmul.f32 %v7675, %v7753
  %v7770 = vmul.f32 %v7680, %v7754
  %v7771 = vmul.f32 %v7685, %v7755
  %v7772 = vmul.f32 %v7690, %v7756
  %7789 = vrot.lane.b32.xlu0 %v7757, 16
  %v7790 = vpop.permute.xlu0 %7789
  %7791 = vrot.lane.b32.xlu0 %v7758, 16
  %v7792 = vpop.permute.xlu0 %7791
  %7793 = vrot.lane.b32.xlu0 %v7759, 16
  %v7794 = vpop.permute.xlu0 %7793
  %7795 = vrot.lane.b32.xlu0 %v7760, 16
  %v7796 = vpop.permute.xlu0 %7795
  %7797 = vrot.lane.b32.xlu0 %v7761, 16
  %v7798 = vpop.permute.xlu0 %7797
  %7799 = vrot.lane.b32.xlu0 %v7762, 16
  %v7800 = vpop.permute.xlu0 %7799
  %7801 = vrot.lane.b32.xlu0 %v7763, 16
  %v7802 = vpop.permute.xlu0 %7801
  %7803 = vrot.lane.b32.xlu0 %v7764, 16
  %v7804 = vpop.permute.xlu0 %7803
  %7805 = vrot.lane.b32.xlu0 %v7765, 16
  %v7806 = vpop.permute.xlu0 %7805
  %7807 = vrot.lane.b32.xlu0 %v7766, 16
  %v7808 = vpop.permute.xlu0 %7807
  %7809 = vrot.lane.b32.xlu0 %v7767, 16
  %v7810 = vpop.permute.xlu0 %7809
  %7811 = vrot.lane.b32.xlu0 %v7768, 16
  %v7812 = vpop.permute.xlu0 %7811
  %7813 = vrot.lane.b32.xlu0 %v7769, 16
  %v7814 = vpop.permute.xlu0 %7813
  %7815 = vrot.lane.b32.xlu0 %v7770, 16
  %v7816 = vpop.permute.xlu0 %7815
  %7817 = vrot.lane.b32.xlu0 %v7771, 16
  %v7818 = vpop.permute.xlu0 %7817
  %7819 = vrot.lane.b32.xlu0 %v7772, 16
  %v7820 = vpop.permute.xlu0 %7819
  %v7837 = vsel %vm1725, %v6937, %v7790
  %v7838 = vsel %vm1725, %v6938, %v7792
  %v7839 = vsel %vm1725, %v6939, %v7794
  %v7840 = vsel %vm1725, %v6940, %v7796
  %v7841 = vsel %vm1725, %v6941, %v7798
  %v7842 = vsel %vm1725, %v6942, %v7800
  %v7843 = vsel %vm1725, %v6943, %v7802
  %v7844 = vsel %vm1725, %v6944, %v7804
  %v7845 = vsel %vm1725, %v6945, %v7806
  %v7846 = vsel %vm1725, %v6946, %v7808
  %v7847 = vsel %vm1725, %v6947, %v7810
  %v7848 = vsel %vm1725, %v6948, %v7812
  %v7849 = vsel %vm1725, %v6949, %v7814
  %v7850 = vsel %vm1725, %v6950, %v7816
  %v7851 = vsel %vm1725, %v6951, %v7818
  %v7852 = vsel %vm1725, %v6952, %v7820
  %s7853 = scalar_lea.vmem %s6, 32
  %v7854 = vld [vmem:[%s7853] sm:$0xff]
  %v7855 = vld [vmem:[%s7853 + $0x8] sm:$0xff]
  %v7856 = vld [vmem:[%s7853 + $0x10] sm:$0xff]
  %v7857 = vld [vmem:[%s7853 + $0x18] sm:$0xff]
  %s7858 = scalar_lea.vmem %s7, 1
  %v7859 = vld [vmem:[%s7858] sm:$0x1]
  %v7861 = vlaneseq
  %v7862 = vshrl.u32 %v7861, 7
  %v7863 = vsub.s32 0, %v7862
  %v7864 = vrot.slane %v7859, %v7863
  %v7867 = vsel %vm653, %v7837, 0
  %v7870 = vsel %vm653, %v7838, 0
  %v7873 = vsel %vm653, %v7839, 0
  %v7876 = vsel %vm653, %v7840, 0
  %v7879 = vsel %vm653, %v7841, 0
  %v7882 = vsel %vm653, %v7842, 0
  %v7885 = vsel %vm653, %v7843, 0
  %v7888 = vsel %vm653, %v7844, 0
  %v7891 = vsel %vm653, %v7845, 0
  %v7894 = vsel %vm653, %v7846, 0
  %v7897 = vsel %vm653, %v7847, 0
  %v7900 = vsel %vm653, %v7848, 0
  %v7903 = vsel %vm653, %v7849, 0
  %v7906 = vsel %vm653, %v7850, 0
  %v7909 = vsel %vm653, %v7851, 0
  %v7912 = vsel %vm653, %v7852, 0
  %7914 = vmatprep.subr.mxu0 0.0
  %7915 = vmatpush1.msra.mxu0 %v7854
  %7916 = vmatprep.subr.mxu0 0.0
  %7917 = vmatpush1.msra.mxu0 %v7855
  %7918 = vmatprep.subr.mxu0 0.0
  %7919 = vmatpush1.msra.mxu0 %v7856
  %7920 = vmatprep.subr.mxu0 0.0
  %7921 = vmatpush1.msra.mxu0 %v7857
  %7922 = vmatprep.subr.mxu0 0.0
  %7923 = vmatpush1.msra.mxu0 0.0
  %7924 = vmatprep.subr.mxu0 0.0
  %7925 = vmatpush1.msra.mxu0 0.0
  %7926 = vmatprep.subr.mxu0 0.0
  %7927 = vmatpush1.msra.mxu0 0.0
  %7928 = vmatprep.subr.mxu0 0.0
  %7929 = vmatpush1.msra.mxu0 0.0
  %7930 = vmatprep.subr.mxu0 0.0
  %7931 = vmatpush1.msra.mxu0 0.0
  %7932 = vmatprep.subr.mxu0 0.0
  %7933 = vmatpush1.msra.mxu0 0.0
  %7934 = vmatprep.subr.mxu0 0.0
  %7935 = vmatpush1.msra.mxu0 0.0
  %7936 = vmatprep.subr.mxu0 0.0
  %7937 = vmatpush1.msra.mxu0 0.0
  %7938 = vmatprep.subr.mxu0 0.0
  %7939 = vmatpush1.msra.mxu0 0.0
  %7940 = vmatprep.subr.mxu0 0.0
  %7941 = vmatpush1.msra.mxu0 0.0
  %7942 = vmatprep.subr.mxu0 0.0
  %7943 = vmatpush1.msra.mxu0 0.0
  %7944 = vmatprep.subr.mxu0 0.0
  %7945 = vmatpush1.msra.mxu0 0.0
  %7946 = vmatprep.subr.mxu0 0.0
  %7947 = vmatpush1.msra.mxu0 0.0
  %7948 = vmatprep.subr.mxu0 0.0
  %7949 = vmatpush1.msra.mxu0 0.0
  %7950 = vmatprep.subr.mxu0 0.0
  %7951 = vmatpush1.msra.mxu0 0.0
  %7952 = vmatprep.subr.mxu0 0.0
  %7953 = vmatpush1.msra.mxu0 0.0
  %7954 = vmatprep.subr.mxu0 0.0
  %7955 = vmatpush1.msra.mxu0 0.0
  %7956 = vmatprep.subr.mxu0 0.0
  %7957 = vmatpush1.msra.mxu0 0.0
  %7958 = vmatprep.subr.mxu0 0.0
  %7959 = vmatpush1.msra.mxu0 0.0
  %7960 = vmatprep.subr.mxu0 0.0
  %7961 = vmatpush1.msra.mxu0 0.0
  %7962 = vmatprep.subr.mxu0 0.0
  %7963 = vmatpush1.msra.mxu0 0.0
  %7964 = vmatprep.subr.mxu0 0.0
  %7965 = vmatpush1.msra.mxu0 0.0
  %7966 = vmatprep.subr.mxu0 0.0
  %7967 = vmatpush1.msra.mxu0 0.0
  %7968 = vmatprep.subr.mxu0 0.0
  %7969 = vmatpush1.msra.mxu0 0.0
  %7970 = vmatprep.subr.mxu0 0.0
  %7971 = vmatpush1.msra.mxu0 0.0
  %7972 = vmatprep.subr.mxu0 0.0
  %7973 = vmatpush1.msra.mxu0 0.0
  %7974 = vmatprep.subr.mxu0 0.0
  %7975 = vmatpush1.msra.mxu0 0.0
  %7976 = vmatprep.subr.mxu0 0.0
  %7977 = vmatpush1.msra.mxu0 0.0
  %7978 = vmatprep.mubr.f32.mxu0 0.0
  %7979 = vmatmul.mubr.f32.gmra.mrb[0].mxu0 %v7867
  %v7980 = vpop.f32.mrb[0].mxu0
  %v7981 = vadd.f32 %v7864, %v7980
  %v7982 = vpop.f32.mrb[0].mxu0
  %7983 = vmatprep.mubr.f32.mxu0 0.0
  %7984 = vmatmul.mubr.f32.gmra.mrb[0].mxu0 %v7870
  %v7985 = vpop.f32.mrb[0].mxu0
  %v7986 = vadd.f32 %v7864, %v7985
  %v7987 = vpop.f32.mrb[0].mxu0
  %7988 = vmatprep.mubr.f32.mxu0 0.0
  %7989 = vmatmul.mubr.f32.gmra.mrb[0].mxu0 %v7873
  %v7990 = vpop.f32.mrb[0].mxu0
  %v7991 = vadd.f32 %v7864, %v7990
  %v7992 = vpop.f32.mrb[0].mxu0
  %7993 = vmatprep.mubr.f32.mxu0 0.0
  %7994 = vmatmul.mubr.f32.gmra.mrb[0].mxu0 %v7876
  %v7995 = vpop.f32.mrb[0].mxu0
  %v7996 = vadd.f32 %v7864, %v7995
  %v7997 = vpop.f32.mrb[0].mxu0
  %7998 = vmatprep.mubr.f32.mxu0 0.0
  %7999 = vmatmul.mubr.f32.gmra.mrb[0].mxu0 %v7879
  %v8000 = vpop.f32.mrb[0].mxu0
  %v8001 = vadd.f32 %v7864, %v8000
  %v8002 = vpop.f32.mrb[0].mxu0
  %8003 = vmatprep.mubr.f32.mxu0 0.0
  %8004 = vmatmul.mubr.f32.gmra.mrb[0].mxu0 %v7882
  %v8005 = vpop.f32.mrb[0].mxu0
  %v8006 = vadd.f32 %v7864, %v8005
  %v8007 = vpop.f32.mrb[0].mxu0
  %8008 = vmatprep.mubr.f32.mxu0 0.0
  %8009 = vmatmul.mubr.f32.gmra.mrb[0].mxu0 %v7885
  %v8010 = vpop.f32.mrb[0].mxu0
  %v8011 = vadd.f32 %v7864, %v8010
  %v8012 = vpop.f32.mrb[0].mxu0
  %8013 = vmatprep.mubr.f32.mxu0 0.0
  %8014 = vmatmul.mubr.f32.gmra.mrb[0].mxu0 %v7888
  %v8015 = vpop.f32.mrb[0].mxu0
  %v8016 = vadd.f32 %v7864, %v8015
  %v8017 = vpop.f32.mrb[0].mxu0
  %8018 = vmatprep.mubr.f32.mxu0 0.0
  %8019 = vmatmul.mubr.f32.gmra.mrb[0].mxu0 %v7891
  %v8020 = vpop.f32.mrb[0].mxu0
  %v8021 = vadd.f32 %v7864, %v8020
  %v8022 = vpop.f32.mrb[0].mxu0
  %8023 = vmatprep.mubr.f32.mxu0 0.0
  %8024 = vmatmul.mubr.f32.gmra.mrb[0].mxu0 %v7894
  %v8025 = vpop.f32.mrb[0].mxu0
  %v8026 = vadd.f32 %v7864, %v8025
  %v8027 = vpop.f32.mrb[0].mxu0
  %8028 = vmatprep.mubr.f32.mxu0 0.0
  %8029 = vmatmul.mubr.f32.gmra.mrb[0].mxu0 %v7897
  %v8030 = vpop.f32.mrb[0].mxu0
  %v8031 = vadd.f32 %v7864, %v8030
  %v8032 = vpop.f32.mrb[0].mxu0
  %8033 = vmatprep.mubr.f32.mxu0 0.0
  %8034 = vmatmul.mubr.f32.gmra.mrb[0].mxu0 %v7900
  %v8035 = vpop.f32.mrb[0].mxu0
  %v8036 = vadd.f32 %v7864, %v8035
  %v8037 = vpop.f32.mrb[0].mxu0
  %8038 = vmatprep.mubr.f32.mxu0 0.0
  %8039 = vmatmul.mubr.f32.gmra.mrb[0].mxu0 %v7903
  %v8040 = vpop.f32.mrb[0].mxu0
  %v8041 = vadd.f32 %v7864, %v8040
  %v8042 = vpop.f32.mrb[0].mxu0
  %8043 = vmatprep.mubr.f32.mxu0 0.0
  %8044 = vmatmul.mubr.f32.gmra.mrb[0].mxu0 %v7906
  %v8045 = vpop.f32.mrb[0].mxu0
  %v8046 = vadd.f32 %v7864, %v8045
  %v8047 = vpop.f32.mrb[0].mxu0
  %8048 = vmatprep.mubr.f32.mxu0 0.0
  %8049 = vmatmul.mubr.f32.gmra.mrb[0].mxu0 %v7909
  %v8050 = vpop.f32.mrb[0].mxu0
  %v8051 = vadd.f32 %v7864, %v8050
  %v8052 = vpop.f32.mrb[0].mxu0
  %8053 = vmatprep.mubr.f32.mxu0 0.0
  %8054 = vmatmul.mubr.f32.gmra.mrb[0].mxu0 %v7912
  %v8055 = vpop.f32.mrb[0].mxu0
  %v8056 = vadd.f32 %v7864, %v8055
  %v8057 = vpop.f32.mrb[0].mxu0
  %8058 = vdwg.mxu0
  %8059 = vst.msk [vmem:[%s15] sm:$0xff] %vm653, %v7981
  %8060 = vst.msk [vmem:[%s15 + $0x8] sm:$0xff] %vm653, %v7986
  %8061 = vst.msk [vmem:[%s15 + $0x10] sm:$0xff] %vm653, %v7991
  %8062 = vst.msk [vmem:[%s15 + $0x18] sm:$0xff] %vm653, %v7996
  %8063 = vst.msk [vmem:[%s15 + $0x20] sm:$0xff] %vm653, %v8001
  %8064 = vst.msk [vmem:[%s15 + $0x28] sm:$0xff] %vm653, %v8006
  %8065 = vst.msk [vmem:[%s15 + $0x30] sm:$0xff] %vm653, %v8011
  %8066 = vst.msk [vmem:[%s15 + $0x38] sm:$0xff] %vm653, %v8016
  %8067 = vst.msk [vmem:[%s15 + $0x40] sm:$0xff] %vm653, %v8021
  %8068 = vst.msk [vmem:[%s15 + $0x48] sm:$0xff] %vm653, %v8026
  %8069 = vst.msk [vmem:[%s15 + $0x50] sm:$0xff] %vm653, %v8031
  %8070 = vst.msk [vmem:[%s15 + $0x58] sm:$0xff] %vm653, %v8036
  %8071 = vst.msk [vmem:[%s15 + $0x60] sm:$0xff] %vm653, %v8041
  %8072 = vst.msk [vmem:[%s15 + $0x68] sm:$0xff] %vm653, %v8046
  %8073 = vst.msk [vmem:[%s15 + $0x70] sm:$0xff] %vm653, %v8051
  %8074 = vst.msk [vmem:[%s15 + $0x78] sm:$0xff] %vm653, %v8056
  %v8075 = vadd.f32 %v7981, %v5567
  %v8076 = vadd.f32 %v7986, %v5568
  %v8077 = vadd.f32 %v7991, %v5569
  %v8078 = vadd.f32 %v7996, %v5570
  %v8079 = vadd.f32 %v8001, %v5571
  %v8080 = vadd.f32 %v8006, %v5572
  %v8081 = vadd.f32 %v8011, %v5573
  %v8082 = vadd.f32 %v8016, %v5574
  %v8083 = vadd.f32 %v8021, %v5575
  %v8084 = vadd.f32 %v8026, %v5576
  %v8085 = vadd.f32 %v8031, %v5577
  %v8086 = vadd.f32 %v8036, %v5578
  %v8087 = vadd.f32 %v8041, %v5579
  %v8088 = vadd.f32 %v8046, %v5580
  %v8089 = vadd.f32 %v8051, %v5581
  %v8090 = vadd.f32 %v8056, %v5582
  %s8091 = scalar_lea.vmem %s8, 1
  %v8092 = vld [vmem:[%s8091] sm:$0x1]
  %s8093 = scalar_lea.vmem %s9, 1
  %v8094 = vld [vmem:[%s8093] sm:$0x1]
  %v8095 = vsel %vm653, %v8075, 0.0
  %8096 = vadd.xlane.f32.xlu0 %v8095
  %v8097 = vpop.xlane.xlu0 %8096
  %v8098 = vsel %vm653, %v8076, 0.0
  %8099 = vadd.xlane.f32.xlu0 %v8098
  %v8100 = vpop.xlane.xlu0 %8099
  %v8101 = vsel %vm653, %v8077, 0.0
  %8102 = vadd.xlane.f32.xlu0 %v8101
  %v8103 = vpop.xlane.xlu0 %8102
  %v8104 = vsel %vm653, %v8078, 0.0
  %8105 = vadd.xlane.f32.xlu0 %v8104
  %v8106 = vpop.xlane.xlu0 %8105
  %v8107 = vsel %vm653, %v8079, 0.0
  %8108 = vadd.xlane.f32.xlu0 %v8107
  %v8109 = vpop.xlane.xlu0 %8108
  %v8110 = vsel %vm653, %v8080, 0.0
  %8111 = vadd.xlane.f32.xlu0 %v8110
  %v8112 = vpop.xlane.xlu0 %8111
  %v8113 = vsel %vm653, %v8081, 0.0
  %8114 = vadd.xlane.f32.xlu0 %v8113
  %v8115 = vpop.xlane.xlu0 %8114
  %v8116 = vsel %vm653, %v8082, 0.0
  %8117 = vadd.xlane.f32.xlu0 %v8116
  %v8118 = vpop.xlane.xlu0 %8117
  %v8119 = vsel %vm653, %v8083, 0.0
  %8120 = vadd.xlane.f32.xlu0 %v8119
  %v8121 = vpop.xlane.xlu0 %8120
  %v8122 = vsel %vm653, %v8084, 0.0
  %8123 = vadd.xlane.f32.xlu0 %v8122
  %v8124 = vpop.xlane.xlu0 %8123
  %v8125 = vsel %vm653, %v8085, 0.0
  %8126 = vadd.xlane.f32.xlu0 %v8125
  %v8127 = vpop.xlane.xlu0 %8126
  %v8128 = vsel %vm653, %v8086, 0.0
  %8129 = vadd.xlane.f32.xlu0 %v8128
  %v8130 = vpop.xlane.xlu0 %8129
  %v8131 = vsel %vm653, %v8087, 0.0
  %8132 = vadd.xlane.f32.xlu0 %v8131
  %v8133 = vpop.xlane.xlu0 %8132
  %v8134 = vsel %vm653, %v8088, 0.0
  %8135 = vadd.xlane.f32.xlu0 %v8134
  %v8136 = vpop.xlane.xlu0 %8135
  %v8137 = vsel %vm653, %v8089, 0.0
  %8138 = vadd.xlane.f32.xlu0 %v8137
  %v8139 = vpop.xlane.xlu0 %8138
  %v8140 = vsel %vm653, %v8090, 0.0
  %8141 = vadd.xlane.f32.xlu0 %v8140
  %v8142 = vpop.xlane.xlu0 %8141
  %v8143 = vmul.f32 %v8097, %v1187
  %v8144 = vmul.f32 %v8100, %v1187
  %v8145 = vmul.f32 %v8103, %v1187
  %v8146 = vmul.f32 %v8106, %v1187
  %v8147 = vmul.f32 %v8109, %v1187
  %v8148 = vmul.f32 %v8112, %v1187
  %v8149 = vmul.f32 %v8115, %v1187
  %v8150 = vmul.f32 %v8118, %v1187
  %v8151 = vmul.f32 %v8121, %v1187
  %v8152 = vmul.f32 %v8124, %v1187
  %v8153 = vmul.f32 %v8127, %v1187
  %v8154 = vmul.f32 %v8130, %v1187
  %v8155 = vmul.f32 %v8133, %v1187
  %v8156 = vmul.f32 %v8136, %v1187
  %v8157 = vmul.f32 %v8139, %v1187
  %v8158 = vmul.f32 %v8142, %v1187
  %v8159 = vsub.f32 %v8075, %v8143
  %v8160 = vsub.f32 %v8076, %v8144
  %v8161 = vsub.f32 %v8077, %v8145
  %v8162 = vsub.f32 %v8078, %v8146
  %v8163 = vsub.f32 %v8079, %v8147
  %v8164 = vsub.f32 %v8080, %v8148
  %v8165 = vsub.f32 %v8081, %v8149
  %v8166 = vsub.f32 %v8082, %v8150
  %v8167 = vsub.f32 %v8083, %v8151
  %v8168 = vsub.f32 %v8084, %v8152
  %v8169 = vsub.f32 %v8085, %v8153
  %v8170 = vsub.f32 %v8086, %v8154
  %v8171 = vsub.f32 %v8087, %v8155
  %v8172 = vsub.f32 %v8088, %v8156
  %v8173 = vsub.f32 %v8089, %v8157
  %v8174 = vsub.f32 %v8090, %v8158
  %v8175 = vmul.f32 %v8159, %v8159
  %v8176 = vmul.f32 %v8160, %v8160
  %v8177 = vmul.f32 %v8161, %v8161
  %v8178 = vmul.f32 %v8162, %v8162
  %v8179 = vmul.f32 %v8163, %v8163
  %v8180 = vmul.f32 %v8164, %v8164
  %v8181 = vmul.f32 %v8165, %v8165
  %v8182 = vmul.f32 %v8166, %v8166
  %v8183 = vmul.f32 %v8167, %v8167
  %v8184 = vmul.f32 %v8168, %v8168
  %v8185 = vmul.f32 %v8169, %v8169
  %v8186 = vmul.f32 %v8170, %v8170
  %v8187 = vmul.f32 %v8171, %v8171
  %v8188 = vmul.f32 %v8172, %v8172
  %v8189 = vmul.f32 %v8173, %v8173
  %v8190 = vmul.f32 %v8174, %v8174
  %v8191 = vsel %vm653, %v8175, 0.0
  %8192 = vadd.xlane.f32.xlu0 %v8191
  %v8193 = vpop.xlane.xlu0 %8192
  %v8194 = vsel %vm653, %v8176, 0.0
  %8195 = vadd.xlane.f32.xlu0 %v8194
  %v8196 = vpop.xlane.xlu0 %8195
  %v8197 = vsel %vm653, %v8177, 0.0
  %8198 = vadd.xlane.f32.xlu0 %v8197
  %v8199 = vpop.xlane.xlu0 %8198
  %v8200 = vsel %vm653, %v8178, 0.0
  %8201 = vadd.xlane.f32.xlu0 %v8200
  %v8202 = vpop.xlane.xlu0 %8201
  %v8203 = vsel %vm653, %v8179, 0.0
  %8204 = vadd.xlane.f32.xlu0 %v8203
  %v8205 = vpop.xlane.xlu0 %8204
  %v8206 = vsel %vm653, %v8180, 0.0
  %8207 = vadd.xlane.f32.xlu0 %v8206
  %v8208 = vpop.xlane.xlu0 %8207
  %v8209 = vsel %vm653, %v8181, 0.0
  %8210 = vadd.xlane.f32.xlu0 %v8209
  %v8211 = vpop.xlane.xlu0 %8210
  %v8212 = vsel %vm653, %v8182, 0.0
  %8213 = vadd.xlane.f32.xlu0 %v8212
  %v8214 = vpop.xlane.xlu0 %8213
  %v8215 = vsel %vm653, %v8183, 0.0
  %8216 = vadd.xlane.f32.xlu0 %v8215
  %v8217 = vpop.xlane.xlu0 %8216
  %v8218 = vsel %vm653, %v8184, 0.0
  %8219 = vadd.xlane.f32.xlu0 %v8218
  %v8220 = vpop.xlane.xlu0 %8219
  %v8221 = vsel %vm653, %v8185, 0.0
  %8222 = vadd.xlane.f32.xlu0 %v8221
  %v8223 = vpop.xlane.xlu0 %8222
  %v8224 = vsel %vm653, %v8186, 0.0
  %8225 = vadd.xlane.f32.xlu0 %v8224
  %v8226 = vpop.xlane.xlu0 %8225
  %v8227 = vsel %vm653, %v8187, 0.0
  %8228 = vadd.xlane.f32.xlu0 %v8227
  %v8229 = vpop.xlane.xlu0 %8228
  %v8230 = vsel %vm653, %v8188, 0.0
  %8231 = vadd.xlane.f32.xlu0 %v8230
  %v8232 = vpop.xlane.xlu0 %8231
  %v8233 = vsel %vm653, %v8189, 0.0
  %8234 = vadd.xlane.f32.xlu0 %v8233
  %v8235 = vpop.xlane.xlu0 %8234
  %v8236 = vsel %vm653, %v8190, 0.0
  %8237 = vadd.xlane.f32.xlu0 %v8236
  %v8238 = vpop.xlane.xlu0 %8237
  %v8239 = vmul.f32 %v8193, %v1187
  %v8240 = vmul.f32 %v8196, %v1187
  %v8241 = vmul.f32 %v8199, %v1187
  %v8242 = vmul.f32 %v8202, %v1187
  %v8243 = vmul.f32 %v8205, %v1187
  %v8244 = vmul.f32 %v8208, %v1187
  %v8245 = vmul.f32 %v8211, %v1187
  %v8246 = vmul.f32 %v8214, %v1187
  %v8247 = vmul.f32 %v8217, %v1187
  %v8248 = vmul.f32 %v8220, %v1187
  %v8249 = vmul.f32 %v8223, %v1187
  %v8250 = vmul.f32 %v8226, %v1187
  %v8251 = vmul.f32 %v8229, %v1187
  %v8252 = vmul.f32 %v8232, %v1187
  %v8253 = vmul.f32 %v8235, %v1187
  %v8254 = vmul.f32 %v8238, %v1187
  %v8255 = vrsqrt.pop %v8239
  %v8256 = vmul.f32 %v8239, %v8255
  %vm8257 = vcmp.eq.f32.partialorder %v8239, inf
  %v8258 = vsel %vm8257, %v8239, %v8256
  %vm8259 = vcmp.eq.f32.partialorder %v8239, 0.0
  %v8260 = vand.u32 %v8239, 2147483648
  %v8261 = vsel %vm8259, %v8260, %v8258
  %v8262 = vrsqrt.pop %v8240
  %v8263 = vmul.f32 %v8240, %v8262
  %vm8264 = vcmp.eq.f32.partialorder %v8240, inf
  %v8265 = vsel %vm8264, %v8240, %v8263
  %vm8266 = vcmp.eq.f32.partialorder %v8240, 0.0
  %v8267 = vand.u32 %v8240, 2147483648
  %v8268 = vsel %vm8266, %v8267, %v8265
  %v8269 = vrsqrt.pop %v8241
  %v8270 = vmul.f32 %v8241, %v8269
  %vm8271 = vcmp.eq.f32.partialorder %v8241, inf
  %v8272 = vsel %vm8271, %v8241, %v8270
  %vm8273 = vcmp.eq.f32.partialorder %v8241, 0.0
  %v8274 = vand.u32 %v8241, 2147483648
  %v8275 = vsel %vm8273, %v8274, %v8272
  %v8276 = vrsqrt.pop %v8242
  %v8277 = vmul.f32 %v8242, %v8276
  %vm8278 = vcmp.eq.f32.partialorder %v8242, inf
  %v8279 = vsel %vm8278, %v8242, %v8277
  %vm8280 = vcmp.eq.f32.partialorder %v8242, 0.0
  %v8281 = vand.u32 %v8242, 2147483648
  %v8282 = vsel %vm8280, %v8281, %v8279
  %v8283 = vrsqrt.pop %v8243
  %v8284 = vmul.f32 %v8243, %v8283
  %vm8285 = vcmp.eq.f32.partialorder %v8243, inf
  %v8286 = vsel %vm8285, %v8243, %v8284
  %vm8287 = vcmp.eq.f32.partialorder %v8243, 0.0
  %v8288 = vand.u32 %v8243, 2147483648
  %v8289 = vsel %vm8287, %v8288, %v8286
  %v8290 = vrsqrt.pop %v8244
  %v8291 = vmul.f32 %v8244, %v8290
  %vm8292 = vcmp.eq.f32.partialorder %v8244, inf
  %v8293 = vsel %vm8292, %v8244, %v8291
  %vm8294 = vcmp.eq.f32.partialorder %v8244, 0.0
  %v8295 = vand.u32 %v8244, 2147483648
  %v8296 = vsel %vm8294, %v8295, %v8293
  %v8297 = vrsqrt.pop %v8245
  %v8298 = vmul.f32 %v8245, %v8297
  %vm8299 = vcmp.eq.f32.partialorder %v8245, inf
  %v8300 = vsel %vm8299, %v8245, %v8298
  %vm8301 = vcmp.eq.f32.partialorder %v8245, 0.0
  %v8302 = vand.u32 %v8245, 2147483648
  %v8303 = vsel %vm8301, %v8302, %v8300
  %v8304 = vrsqrt.pop %v8246
  %v8305 = vmul.f32 %v8246, %v8304
  %vm8306 = vcmp.eq.f32.partialorder %v8246, inf
  %v8307 = vsel %vm8306, %v8246, %v8305
  %vm8308 = vcmp.eq.f32.partialorder %v8246, 0.0
  %v8309 = vand.u32 %v8246, 2147483648
  %v8310 = vsel %vm8308, %v8309, %v8307
  %v8311 = vrsqrt.pop %v8247
  %v8312 = vmul.f32 %v8247, %v8311
  %vm8313 = vcmp.eq.f32.partialorder %v8247, inf
  %v8314 = vsel %vm8313, %v8247, %v8312
  %vm8315 = vcmp.eq.f32.partialorder %v8247, 0.0
  %v8316 = vand.u32 %v8247, 2147483648
  %v8317 = vsel %vm8315, %v8316, %v8314
  %v8318 = vrsqrt.pop %v8248
  %v8319 = vmul.f32 %v8248, %v8318
  %vm8320 = vcmp.eq.f32.partialorder %v8248, inf
  %v8321 = vsel %vm8320, %v8248, %v8319
  %vm8322 = vcmp.eq.f32.partialorder %v8248, 0.0
  %v8323 = vand.u32 %v8248, 2147483648
  %v8324 = vsel %vm8322, %v8323, %v8321
  %v8325 = vrsqrt.pop %v8249
  %v8326 = vmul.f32 %v8249, %v8325
  %vm8327 = vcmp.eq.f32.partialorder %v8249, inf
  %v8328 = vsel %vm8327, %v8249, %v8326
  %vm8329 = vcmp.eq.f32.partialorder %v8249, 0.0
  %v8330 = vand.u32 %v8249, 2147483648
  %v8331 = vsel %vm8329, %v8330, %v8328
  %v8332 = vrsqrt.pop %v8250
  %v8333 = vmul.f32 %v8250, %v8332
  %vm8334 = vcmp.eq.f32.partialorder %v8250, inf
  %v8335 = vsel %vm8334, %v8250, %v8333
  %vm8336 = vcmp.eq.f32.partialorder %v8250, 0.0
  %v8337 = vand.u32 %v8250, 2147483648
  %v8338 = vsel %vm8336, %v8337, %v8335
  %v8339 = vrsqrt.pop %v8251
  %v8340 = vmul.f32 %v8251, %v8339
  %vm8341 = vcmp.eq.f32.partialorder %v8251, inf
  %v8342 = vsel %vm8341, %v8251, %v8340
  %vm8343 = vcmp.eq.f32.partialorder %v8251, 0.0
  %v8344 = vand.u32 %v8251, 2147483648
  %v8345 = vsel %vm8343, %v8344, %v8342
  %v8346 = vrsqrt.pop %v8252
  %v8347 = vmul.f32 %v8252, %v8346
  %vm8348 = vcmp.eq.f32.partialorder %v8252, inf
  %v8349 = vsel %vm8348, %v8252, %v8347
  %vm8350 = vcmp.eq.f32.partialorder %v8252, 0.0
  %v8351 = vand.u32 %v8252, 2147483648
  %v8352 = vsel %vm8350, %v8351, %v8349
  %v8353 = vrsqrt.pop %v8253
  %v8354 = vmul.f32 %v8253, %v8353
  %vm8355 = vcmp.eq.f32.partialorder %v8253, inf
  %v8356 = vsel %vm8355, %v8253, %v8354
  %vm8357 = vcmp.eq.f32.partialorder %v8253, 0.0
  %v8358 = vand.u32 %v8253, 2147483648
  %v8359 = vsel %vm8357, %v8358, %v8356
  %v8360 = vrsqrt.pop %v8254
  %v8361 = vmul.f32 %v8254, %v8360
  %vm8362 = vcmp.eq.f32.partialorder %v8254, inf
  %v8363 = vsel %vm8362, %v8254, %v8361
  %vm8364 = vcmp.eq.f32.partialorder %v8254, 0.0
  %v8365 = vand.u32 %v8254, 2147483648
  %v8366 = vsel %vm8364, %v8365, %v8363
  %v8367 = vadd.f32 %v8261, 1e-05
  %v8368 = vadd.f32 %v8268, 1e-05
  %v8369 = vadd.f32 %v8275, 1e-05
  %v8370 = vadd.f32 %v8282, 1e-05
  %v8371 = vadd.f32 %v8289, 1e-05
  %v8372 = vadd.f32 %v8296, 1e-05
  %v8373 = vadd.f32 %v8303, 1e-05
  %v8374 = vadd.f32 %v8310, 1e-05
  %v8375 = vadd.f32 %v8317, 1e-05
  %v8376 = vadd.f32 %v8324, 1e-05
  %v8377 = vadd.f32 %v8331, 1e-05
  %v8378 = vadd.f32 %v8338, 1e-05
  %v8379 = vadd.f32 %v8345, 1e-05
  %v8380 = vadd.f32 %v8352, 1e-05
  %v8381 = vadd.f32 %v8359, 1e-05
  %v8382 = vadd.f32 %v8366, 1e-05
  %v8383 = vrcp.pop %v8367
  %v8384 = vmul.f32 %v8159, %v8383
  %v8385 = vrcp.pop %v8368
  %v8386 = vmul.f32 %v8160, %v8385
  %v8387 = vrcp.pop %v8369
  %v8388 = vmul.f32 %v8161, %v8387
  %v8389 = vrcp.pop %v8370
  %v8390 = vmul.f32 %v8162, %v8389
  %v8391 = vrcp.pop %v8371
  %v8392 = vmul.f32 %v8163, %v8391
  %v8393 = vrcp.pop %v8372
  %v8394 = vmul.f32 %v8164, %v8393
  %v8395 = vrcp.pop %v8373
  %v8396 = vmul.f32 %v8165, %v8395
  %v8397 = vrcp.pop %v8374
  %v8398 = vmul.f32 %v8166, %v8397
  %v8399 = vrcp.pop %v8375
  %v8400 = vmul.f32 %v8167, %v8399
  %v8401 = vrcp.pop %v8376
  %v8402 = vmul.f32 %v8168, %v8401
  %v8403 = vrcp.pop %v8377
  %v8404 = vmul.f32 %v8169, %v8403
  %v8405 = vrcp.pop %v8378
  %v8406 = vmul.f32 %v8170, %v8405
  %v8407 = vrcp.pop %v8379
  %v8408 = vmul.f32 %v8171, %v8407
  %v8409 = vrcp.pop %v8380
  %v8410 = vmul.f32 %v8172, %v8409
  %v8411 = vrcp.pop %v8381
  %v8412 = vmul.f32 %v8173, %v8411
  %v8413 = vrcp.pop %v8382
  %v8414 = vmul.f32 %v8174, %v8413
  %v8416 = vlaneseq
  %v8417 = vshrl.u32 %v8416, 7
  %v8418 = vsub.s32 0, %v8417
  %v8419 = vrot.slane %v8092, %v8418
  %v8421 = vmul.f32 %v8384, %v8419
  %v8422 = vmul.f32 %v8386, %v8419
  %v8423 = vmul.f32 %v8388, %v8419
  %v8424 = vmul.f32 %v8390, %v8419
  %v8425 = vmul.f32 %v8392, %v8419
  %v8426 = vmul.f32 %v8394, %v8419
  %v8427 = vmul.f32 %v8396, %v8419
  %v8428 = vmul.f32 %v8398, %v8419
  %v8429 = vmul.f32 %v8400, %v8419
  %v8430 = vmul.f32 %v8402, %v8419
  %v8431 = vmul.f32 %v8404, %v8419
  %v8432 = vmul.f32 %v8406, %v8419
  %v8433 = vmul.f32 %v8408, %v8419
  %v8434 = vmul.f32 %v8410, %v8419
  %v8435 = vmul.f32 %v8412, %v8419
  %v8436 = vmul.f32 %v8414, %v8419
  %v8438 = vlaneseq
  %v8439 = vshrl.u32 %v8438, 7
  %v8440 = vsub.s32 0, %v8439
  %v8441 = vrot.slane %v8094, %v8440
  %v8443 = vadd.f32 %v8421, %v8441
  %v8444 = vadd.f32 %v8422, %v8441
  %v8445 = vadd.f32 %v8423, %v8441
  %v8446 = vadd.f32 %v8424, %v8441
  %v8447 = vadd.f32 %v8425, %v8441
  %v8448 = vadd.f32 %v8426, %v8441
  %v8449 = vadd.f32 %v8427, %v8441
  %v8450 = vadd.f32 %v8428, %v8441
  %v8451 = vadd.f32 %v8429, %v8441
  %v8452 = vadd.f32 %v8430, %v8441
  %v8453 = vadd.f32 %v8431, %v8441
  %v8454 = vadd.f32 %v8432, %v8441
  %v8455 = vadd.f32 %v8433, %v8441
  %v8456 = vadd.f32 %v8434, %v8441
  %v8457 = vadd.f32 %v8435, %v8441
  %v8458 = vadd.f32 %v8436, %v8441
  %s8459 = scalar_lea.vmem %s10, 32
  %v8460 = vld [vmem:[%s8459] sm:$0xff]
  %v8461 = vld [vmem:[%s8459 + $0x8] sm:$0xff]
  %v8462 = vld [vmem:[%s8459 + $0x10] sm:$0xff]
  %v8463 = vld [vmem:[%s8459 + $0x18] sm:$0xff]
  %s8464 = scalar_lea.vmem %s11, 1
  %v8465 = vld [vmem:[%s8464] sm:$0x1]
  %v8467 = vlaneseq
  %v8468 = vshrl.u32 %v8467, 7
  %v8469 = vsub.s32 0, %v8468
  %v8470 = vrot.slane %v8465, %v8469
  %v8473 = vsel %vm653, %v8443, 0
  %v8476 = vsel %vm653, %v8444, 0
  %v8479 = vsel %vm653, %v8445, 0
  %v8482 = vsel %vm653, %v8446, 0
  %v8485 = vsel %vm653, %v8447, 0
  %v8488 = vsel %vm653, %v8448, 0
  %v8491 = vsel %vm653, %v8449, 0
  %v8494 = vsel %vm653, %v8450, 0
  %v8497 = vsel %vm653, %v8451, 0
  %v8500 = vsel %vm653, %v8452, 0
  %v8503 = vsel %vm653, %v8453, 0
  %v8506 = vsel %vm653, %v8454, 0
  %v8509 = vsel %vm653, %v8455, 0
  %v8512 = vsel %vm653, %v8456, 0
  %v8515 = vsel %vm653, %v8457, 0
  %v8518 = vsel %vm653, %v8458, 0
  %8520 = vmatprep.subr.mxu0 0.0
  %8521 = vmatpush1.msra.mxu0 %v8460
  %8522 = vmatprep.subr.mxu0 0.0
  %8523 = vmatpush1.msra.mxu0 %v8461
  %8524 = vmatprep.subr.mxu0 0.0
  %8525 = vmatpush1.msra.mxu0 %v8462
  %8526 = vmatprep.subr.mxu0 0.0
  %8527 = vmatpush1.msra.mxu0 %v8463
  %8528 = vmatprep.subr.mxu0 0.0
  %8529 = vmatpush1.msra.mxu0 0.0
  %8530 = vmatprep.subr.mxu0 0.0
  %8531 = vmatpush1.msra.mxu0 0.0
  %8532 = vmatprep.subr.mxu0 0.0
  %8533 = vmatpush1.msra.mxu0 0.0
  %8534 = vmatprep.subr.mxu0 0.0
  %8535 = vmatpush1.msra.mxu0 0.0
  %8536 = vmatprep.subr.mxu0 0.0
  %8537 = vmatpush1.msra.mxu0 0.0
  %8538 = vmatprep.subr.mxu0 0.0
  %8539 = vmatpush1.msra.mxu0 0.0
  %8540 = vmatprep.subr.mxu0 0.0
  %8541 = vmatpush1.msra.mxu0 0.0
  %8542 = vmatprep.subr.mxu0 0.0
  %8543 = vmatpush1.msra.mxu0 0.0
  %8544 = vmatprep.subr.mxu0 0.0
  %8545 = vmatpush1.msra.mxu0 0.0
  %8546 = vmatprep.subr.mxu0 0.0
  %8547 = vmatpush1.msra.mxu0 0.0
  %8548 = vmatprep.subr.mxu0 0.0
  %8549 = vmatpush1.msra.mxu0 0.0
  %8550 = vmatprep.subr.mxu0 0.0
  %8551 = vmatpush1.msra.mxu0 0.0
  %8552 = vmatprep.subr.mxu0 0.0
  %8553 = vmatpush1.msra.mxu0 0.0
  %8554 = vmatprep.subr.mxu0 0.0
  %8555 = vmatpush1.msra.mxu0 0.0
  %8556 = vmatprep.subr.mxu0 0.0
  %8557 = vmatpush1.msra.mxu0 0.0
  %8558 = vmatprep.subr.mxu0 0.0
  %8559 = vmatpush1.msra.mxu0 0.0
  %8560 = vmatprep.subr.mxu0 0.0
  %8561 = vmatpush1.msra.mxu0 0.0
  %8562 = vmatprep.subr.mxu0 0.0
  %8563 = vmatpush1.msra.mxu0 0.0
  %8564 = vmatprep.subr.mxu0 0.0
  %8565 = vmatpush1.msra.mxu0 0.0
  %8566 = vmatprep.subr.mxu0 0.0
  %8567 = vmatpush1.msra.mxu0 0.0
  %8568 = vmatprep.subr.mxu0 0.0
  %8569 = vmatpush1.msra.mxu0 0.0
  %8570 = vmatprep.subr.mxu0 0.0
  %8571 = vmatpush1.msra.mxu0 0.0
  %8572 = vmatprep.subr.mxu0 0.0
  %8573 = vmatpush1.msra.mxu0 0.0
  %8574 = vmatprep.subr.mxu0 0.0
  %8575 = vmatpush1.msra.mxu0 0.0
  %8576 = vmatprep.subr.mxu0 0.0
  %8577 = vmatpush1.msra.mxu0 0.0
  %8578 = vmatprep.subr.mxu0 0.0
  %8579 = vmatpush1.msra.mxu0 0.0
  %8580 = vmatprep.subr.mxu0 0.0
  %8581 = vmatpush1.msra.mxu0 0.0
  %8582 = vmatprep.subr.mxu0 0.0
  %8583 = vmatpush1.msra.mxu0 0.0
  %8584 = vmatprep.mubr.f32.mxu0 0.0
  %8585 = vmatmul.mubr.f32.gmra.mrb[0].mxu0 %v8473
  %v8586 = vpop.f32.mrb[0].mxu0
  %v8587 = vadd.f32 %v8470, %v8586
  %v8588 = vpop.f32.mrb[0].mxu0
  %8589 = vmatprep.mubr.f32.mxu0 0.0
  %8590 = vmatmul.mubr.f32.gmra.mrb[0].mxu0 %v8476
  %v8591 = vpop.f32.mrb[0].mxu0
  %v8592 = vadd.f32 %v8470, %v8591
  %v8593 = vpop.f32.mrb[0].mxu0
  %8594 = vmatprep.mubr.f32.mxu0 0.0
  %8595 = vmatmul.mubr.f32.gmra.mrb[0].mxu0 %v8479
  %v8596 = vpop.f32.mrb[0].mxu0
  %v8597 = vadd.f32 %v8470, %v8596
  %v8598 = vpop.f32.mrb[0].mxu0
  %8599 = vmatprep.mubr.f32.mxu0 0.0
  %8600 = vmatmul.mubr.f32.gmra.mrb[0].mxu0 %v8482
  %v8601 = vpop.f32.mrb[0].mxu0
  %v8602 = vadd.f32 %v8470, %v8601
  %v8603 = vpop.f32.mrb[0].mxu0
  %8604 = vmatprep.mubr.f32.mxu0 0.0
  %8605 = vmatmul.mubr.f32.gmra.mrb[0].mxu0 %v8485
  %v8606 = vpop.f32.mrb[0].mxu0
  %v8607 = vadd.f32 %v8470, %v8606
  %v8608 = vpop.f32.mrb[0].mxu0
  %8609 = vmatprep.mubr.f32.mxu0 0.0
  %8610 = vmatmul.mubr.f32.gmra.mrb[0].mxu0 %v8488
  %v8611 = vpop.f32.mrb[0].mxu0
  %v8612 = vadd.f32 %v8470, %v8611
  %v8613 = vpop.f32.mrb[0].mxu0
  %8614 = vmatprep.mubr.f32.mxu0 0.0
  %8615 = vmatmul.mubr.f32.gmra.mrb[0].mxu0 %v8491
  %v8616 = vpop.f32.mrb[0].mxu0
  %v8617 = vadd.f32 %v8470, %v8616
  %v8618 = vpop.f32.mrb[0].mxu0
  %8619 = vmatprep.mubr.f32.mxu0 0.0
  %8620 = vmatmul.mubr.f32.gmra.mrb[0].mxu0 %v8494
  %v8621 = vpop.f32.mrb[0].mxu0
  %v8622 = vadd.f32 %v8470, %v8621
  %v8623 = vpop.f32.mrb[0].mxu0
  %8624 = vmatprep.mubr.f32.mxu0 0.0
  %8625 = vmatmul.mubr.f32.gmra.mrb[0].mxu0 %v8497
  %v8626 = vpop.f32.mrb[0].mxu0
  %v8627 = vadd.f32 %v8470, %v8626
  %v8628 = vpop.f32.mrb[0].mxu0
  %8629 = vmatprep.mubr.f32.mxu0 0.0
  %8630 = vmatmul.mubr.f32.gmra.mrb[0].mxu0 %v8500
  %v8631 = vpop.f32.mrb[0].mxu0
  %v8632 = vadd.f32 %v8470, %v8631
  %v8633 = vpop.f32.mrb[0].mxu0
  %8634 = vmatprep.mubr.f32.mxu0 0.0
  %8635 = vmatmul.mubr.f32.gmra.mrb[0].mxu0 %v8503
  %v8636 = vpop.f32.mrb[0].mxu0
  %v8637 = vadd.f32 %v8470, %v8636
  %v8638 = vpop.f32.mrb[0].mxu0
  %8639 = vmatprep.mubr.f32.mxu0 0.0
  %8640 = vmatmul.mubr.f32.gmra.mrb[0].mxu0 %v8506
  %v8641 = vpop.f32.mrb[0].mxu0
  %v8642 = vadd.f32 %v8470, %v8641
  %v8643 = vpop.f32.mrb[0].mxu0
  %8644 = vmatprep.mubr.f32.mxu0 0.0
  %8645 = vmatmul.mubr.f32.gmra.mrb[0].mxu0 %v8509
  %v8646 = vpop.f32.mrb[0].mxu0
  %v8647 = vadd.f32 %v8470, %v8646
  %v8648 = vpop.f32.mrb[0].mxu0
  %8649 = vmatprep.mubr.f32.mxu0 0.0
  %8650 = vmatmul.mubr.f32.gmra.mrb[0].mxu0 %v8512
  %v8651 = vpop.f32.mrb[0].mxu0
  %v8652 = vadd.f32 %v8470, %v8651
  %v8653 = vpop.f32.mrb[0].mxu0
  %8654 = vmatprep.mubr.f32.mxu0 0.0
  %8655 = vmatmul.mubr.f32.gmra.mrb[0].mxu0 %v8515
  %v8656 = vpop.f32.mrb[0].mxu0
  %v8657 = vadd.f32 %v8470, %v8656
  %v8658 = vpop.f32.mrb[0].mxu0
  %8659 = vmatprep.mubr.f32.mxu0 0.0
  %8660 = vmatmul.mubr.f32.gmra.mrb[0].mxu0 %v8518
  %v8661 = vpop.f32.mrb[0].mxu0
  %v8662 = vadd.f32 %v8470, %v8661
  %v8663 = vpop.f32.mrb[0].mxu0
  %8664 = vdwg.mxu0
  %v8665 = vmul.f32 %v8587, 0.5
  %v8666 = vmul.f32 %v8592, 0.5
  %v8667 = vmul.f32 %v8597, 0.5
  %v8668 = vmul.f32 %v8602, 0.5
  %v8669 = vmul.f32 %v8607, 0.5
  %v8670 = vmul.f32 %v8612, 0.5
  %v8671 = vmul.f32 %v8617, 0.5
  %v8672 = vmul.f32 %v8622, 0.5
  %v8673 = vmul.f32 %v8627, 0.5
  %v8674 = vmul.f32 %v8632, 0.5
  %v8675 = vmul.f32 %v8637, 0.5
  %v8676 = vmul.f32 %v8642, 0.5
  %v8677 = vmul.f32 %v8647, 0.5
  %v8678 = vmul.f32 %v8652, 0.5
  %v8679 = vmul.f32 %v8657, 0.5
  %v8680 = vmul.f32 %v8662, 0.5
  %v8681 = vmul.f32 %v8587, 0.044715
  %v8682 = vmul.f32 %v8592, 0.044715
  %v8683 = vmul.f32 %v8597, 0.044715
  %v8684 = vmul.f32 %v8602, 0.044715
  %v8685 = vmul.f32 %v8607, 0.044715
  %v8686 = vmul.f32 %v8612, 0.044715
  %v8687 = vmul.f32 %v8617, 0.044715
  %v8688 = vmul.f32 %v8622, 0.044715
  %v8689 = vmul.f32 %v8627, 0.044715
  %v8690 = vmul.f32 %v8632, 0.044715
  %v8691 = vmul.f32 %v8637, 0.044715
  %v8692 = vmul.f32 %v8642, 0.044715
  %v8693 = vmul.f32 %v8647, 0.044715
  %v8694 = vmul.f32 %v8652, 0.044715
  %v8695 = vmul.f32 %v8657, 0.044715
  %v8696 = vmul.f32 %v8662, 0.044715
  %v8697 = vmul.f32 %v8681, %v8587
  %v8698 = vmul.f32 %v8682, %v8592
  %v8699 = vmul.f32 %v8683, %v8597
  %v8700 = vmul.f32 %v8684, %v8602
  %v8701 = vmul.f32 %v8685, %v8607
  %v8702 = vmul.f32 %v8686, %v8612
  %v8703 = vmul.f32 %v8687, %v8617
  %v8704 = vmul.f32 %v8688, %v8622
  %v8705 = vmul.f32 %v8689, %v8627
  %v8706 = vmul.f32 %v8690, %v8632
  %v8707 = vmul.f32 %v8691, %v8637
  %v8708 = vmul.f32 %v8692, %v8642
  %v8709 = vmul.f32 %v8693, %v8647
  %v8710 = vmul.f32 %v8694, %v8652
  %v8711 = vmul.f32 %v8695, %v8657
  %v8712 = vmul.f32 %v8696, %v8662
  %v8713 = vmul.f32 %v8697, %v8587
  %v8714 = vmul.f32 %v8698, %v8592
  %v8715 = vmul.f32 %v8699, %v8597
  %v8716 = vmul.f32 %v8700, %v8602
  %v8717 = vmul.f32 %v8701, %v8607
  %v8718 = vmul.f32 %v8702, %v8612
  %v8719 = vmul.f32 %v8703, %v8617
  %v8720 = vmul.f32 %v8704, %v8622
  %v8721 = vmul.f32 %v8705, %v8627
  %v8722 = vmul.f32 %v8706, %v8632
  %v8723 = vmul.f32 %v8707, %v8637
  %v8724 = vmul.f32 %v8708, %v8642
  %v8725 = vmul.f32 %v8709, %v8647
  %v8726 = vmul.f32 %v8710, %v8652
  %v8727 = vmul.f32 %v8711, %v8657
  %v8728 = vmul.f32 %v8712, %v8662
  %v8729 = vadd.f32 %v8587, %v8713
  %v8730 = vadd.f32 %v8592, %v8714
  %v8731 = vadd.f32 %v8597, %v8715
  %v8732 = vadd.f32 %v8602, %v8716
  %v8733 = vadd.f32 %v8607, %v8717
  %v8734 = vadd.f32 %v8612, %v8718
  %v8735 = vadd.f32 %v8617, %v8719
  %v8736 = vadd.f32 %v8622, %v8720
  %v8737 = vadd.f32 %v8627, %v8721
  %v8738 = vadd.f32 %v8632, %v8722
  %v8739 = vadd.f32 %v8637, %v8723
  %v8740 = vadd.f32 %v8642, %v8724
  %v8741 = vadd.f32 %v8647, %v8725
  %v8742 = vadd.f32 %v8652, %v8726
  %v8743 = vadd.f32 %v8657, %v8727
  %v8744 = vadd.f32 %v8662, %v8728
  %v8745 = vmul.f32 %v8729, 0.7978846
  %v8746 = vmul.f32 %v8730, 0.7978846
  %v8747 = vmul.f32 %v8731, 0.7978846
  %v8748 = vmul.f32 %v8732, 0.7978846
  %v8749 = vmul.f32 %v8733, 0.7978846
  %v8750 = vmul.f32 %v8734, 0.7978846
  %v8751 = vmul.f32 %v8735, 0.7978846
  %v8752 = vmul.f32 %v8736, 0.7978846
  %v8753 = vmul.f32 %v8737, 0.7978846
  %v8754 = vmul.f32 %v8738, 0.7978846
  %v8755 = vmul.f32 %v8739, 0.7978846
  %v8756 = vmul.f32 %v8740, 0.7978846
  %v8757 = vmul.f32 %v8741, 0.7978846
  %v8758 = vmul.f32 %v8742, 0.7978846
  %v8759 = vmul.f32 %v8743, 0.7978846
  %v8760 = vmul.f32 %v8744, 0.7978846
  %v8761 = vtanh.pop %v8745
  %v8762 = vtanh.pop %v8746
  %v8763 = vtanh.pop %v8747
  %v8764 = vtanh.pop %v8748
  %v8765 = vtanh.pop %v8749
  %v8766 = vtanh.pop %v8750
  %v8767 = vtanh.pop %v8751
  %v8768 = vtanh.pop %v8752
  %v8769 = vtanh.pop %v8753
  %v8770 = vtanh.pop %v8754
  %v8771 = vtanh.pop %v8755
  %v8772 = vtanh.pop %v8756
  %v8773 = vtanh.pop %v8757
  %v8774 = vtanh.pop %v8758
  %v8775 = vtanh.pop %v8759
  %v8776 = vtanh.pop %v8760
  %v8777 = vadd.f32 %v8761, 1.0
  %v8778 = vadd.f32 %v8762, 1.0
  %v8779 = vadd.f32 %v8763, 1.0
  %v8780 = vadd.f32 %v8764, 1.0
  %v8781 = vadd.f32 %v8765, 1.0
  %v8782 = vadd.f32 %v8766, 1.0
  %v8783 = vadd.f32 %v8767, 1.0
  %v8784 = vadd.f32 %v8768, 1.0
  %v8785 = vadd.f32 %v8769, 1.0
  %v8786 = vadd.f32 %v8770, 1.0
  %v8787 = vadd.f32 %v8771, 1.0
  %v8788 = vadd.f32 %v8772, 1.0
  %v8789 = vadd.f32 %v8773, 1.0
  %v8790 = vadd.f32 %v8774, 1.0
  %v8791 = vadd.f32 %v8775, 1.0
  %v8792 = vadd.f32 %v8776, 1.0
  %v8793 = vmul.f32 %v8665, %v8777
  %v8794 = vmul.f32 %v8666, %v8778
  %v8795 = vmul.f32 %v8667, %v8779
  %v8796 = vmul.f32 %v8668, %v8780
  %v8797 = vmul.f32 %v8669, %v8781
  %v8798 = vmul.f32 %v8670, %v8782
  %v8799 = vmul.f32 %v8671, %v8783
  %v8800 = vmul.f32 %v8672, %v8784
  %v8801 = vmul.f32 %v8673, %v8785
  %v8802 = vmul.f32 %v8674, %v8786
  %v8803 = vmul.f32 %v8675, %v8787
  %v8804 = vmul.f32 %v8676, %v8788
  %v8805 = vmul.f32 %v8677, %v8789
  %v8806 = vmul.f32 %v8678, %v8790
  %v8807 = vmul.f32 %v8679, %v8791
  %v8808 = vmul.f32 %v8680, %v8792
  %s8809 = scalar_lea.vmem %s12, 128
  %v8810 = vld [vmem:[%s8809] sm:$0xff]
  %v8811 = vld [vmem:[%s8809 + $0x8] sm:$0xff]
  %v8812 = vld [vmem:[%s8809 + $0x10] sm:$0xff]
  %v8813 = vld [vmem:[%s8809 + $0x18] sm:$0xff]
  %v8814 = vld [vmem:[%s8809 + $0x20] sm:$0xff]
  %v8815 = vld [vmem:[%s8809 + $0x28] sm:$0xff]
  %v8816 = vld [vmem:[%s8809 + $0x30] sm:$0xff]
  %v8817 = vld [vmem:[%s8809 + $0x38] sm:$0xff]
  %v8818 = vld [vmem:[%s8809 + $0x40] sm:$0xff]
  %v8819 = vld [vmem:[%s8809 + $0x48] sm:$0xff]
  %v8820 = vld [vmem:[%s8809 + $0x50] sm:$0xff]
  %v8821 = vld [vmem:[%s8809 + $0x58] sm:$0xff]
  %v8822 = vld [vmem:[%s8809 + $0x60] sm:$0xff]
  %v8823 = vld [vmem:[%s8809 + $0x68] sm:$0xff]
  %v8824 = vld [vmem:[%s8809 + $0x70] sm:$0xff]
  %v8825 = vld [vmem:[%s8809 + $0x78] sm:$0xff]
  %s8826 = scalar_lea.vmem %s13, 1
  %v8827 = vld [vmem:[%s8826] sm:$0x1]
  %v8829 = vlaneseq
  %v8830 = vshrl.u32 %v8829, 7
  %v8831 = vsub.s32 0, %v8830
  %v8832 = vrot.slane %v8827, %v8831
  %8834 = vmatprep.subr.mxu0 0.0
  %8835 = vmatpush1.msra.mxu0 %v8810
  %8836 = vmatprep.subr.mxu0 0.0
  %8837 = vmatpush1.msra.mxu0 %v8811
  %8838 = vmatprep.subr.mxu0 0.0
  %8839 = vmatpush1.msra.mxu0 %v8812
  %8840 = vmatprep.subr.mxu0 0.0
  %8841 = vmatpush1.msra.mxu0 %v8813
  %8842 = vmatprep.subr.mxu0 0.0
  %8843 = vmatpush1.msra.mxu0 %v8814
  %8844 = vmatprep.subr.mxu0 0.0
  %8845 = vmatpush1.msra.mxu0 %v8815
  %8846 = vmatprep.subr.mxu0 0.0
  %8847 = vmatpush1.msra.mxu0 %v8816
  %8848 = vmatprep.subr.mxu0 0.0
  %8849 = vmatpush1.msra.mxu0 %v8817
  %8850 = vmatprep.subr.mxu0 0.0
  %8851 = vmatpush1.msra.mxu0 %v8818
  %8852 = vmatprep.subr.mxu0 0.0
  %8853 = vmatpush1.msra.mxu0 %v8819
  %8854 = vmatprep.subr.mxu0 0.0
  %8855 = vmatpush1.msra.mxu0 %v8820
  %8856 = vmatprep.subr.mxu0 0.0
  %8857 = vmatpush1.msra.mxu0 %v8821
  %8858 = vmatprep.subr.mxu0 0.0
  %8859 = vmatpush1.msra.mxu0 %v8822
  %8860 = vmatprep.subr.mxu0 0.0
  %8861 = vmatpush1.msra.mxu0 %v8823
  %8862 = vmatprep.subr.mxu0 0.0
  %8863 = vmatpush1.msra.mxu0 %v8824
  %8864 = vmatprep.subr.mxu0 0.0
  %8865 = vmatpush1.msra.mxu0 %v8825
  %8866 = vmatprep.subr.mxu0 0.0
  %8867 = vmatpush1.msra.mxu0 0.0
  %8868 = vmatprep.subr.mxu0 0.0
  %8869 = vmatpush1.msra.mxu0 0.0
  %8870 = vmatprep.subr.mxu0 0.0
  %8871 = vmatpush1.msra.mxu0 0.0
  %8872 = vmatprep.subr.mxu0 0.0
  %8873 = vmatpush1.msra.mxu0 0.0
  %8874 = vmatprep.subr.mxu0 0.0
  %8875 = vmatpush1.msra.mxu0 0.0
  %8876 = vmatprep.subr.mxu0 0.0
  %8877 = vmatpush1.msra.mxu0 0.0
  %8878 = vmatprep.subr.mxu0 0.0
  %8879 = vmatpush1.msra.mxu0 0.0
  %8880 = vmatprep.subr.mxu0 0.0
  %8881 = vmatpush1.msra.mxu0 0.0
  %8882 = vmatprep.subr.mxu0 0.0
  %8883 = vmatpush1.msra.mxu0 0.0
  %8884 = vmatprep.subr.mxu0 0.0
  %8885 = vmatpush1.msra.mxu0 0.0
  %8886 = vmatprep.subr.mxu0 0.0
  %8887 = vmatpush1.msra.mxu0 0.0
  %8888 = vmatprep.subr.mxu0 0.0
  %8889 = vmatpush1.msra.mxu0 0.0
  %8890 = vmatprep.subr.mxu0 0.0
  %8891 = vmatpush1.msra.mxu0 0.0
  %8892 = vmatprep.subr.mxu0 0.0
  %8893 = vmatpush1.msra.mxu0 0.0
  %8894 = vmatprep.subr.mxu0 0.0
  %8895 = vmatpush1.msra.mxu0 0.0
  %8896 = vmatprep.subr.mxu0 0.0
  %8897 = vmatpush1.msra.mxu0 0.0
  %8898 = vmatprep.mubr.f32.mxu0 0.0
  %8899 = vmatmul.mubr.f32.gmra.mrb[0].mxu0 %v8793
  %v8900 = vpop.f32.mrb[0].mxu0
  %v8901 = vadd.f32 %v8832, %v8900
  %v8902 = vpop.f32.mrb[0].mxu0
  %8903 = vmatprep.mubr.f32.mxu0 0.0
  %8904 = vmatmul.mubr.f32.gmra.mrb[0].mxu0 %v8794
  %v8905 = vpop.f32.mrb[0].mxu0
  %v8906 = vadd.f32 %v8832, %v8905
  %v8907 = vpop.f32.mrb[0].mxu0
  %8908 = vmatprep.mubr.f32.mxu0 0.0
  %8909 = vmatmul.mubr.f32.gmra.mrb[0].mxu0 %v8795
  %v8910 = vpop.f32.mrb[0].mxu0
  %v8911 = vadd.f32 %v8832, %v8910
  %v8912 = vpop.f32.mrb[0].mxu0
  %8913 = vmatprep.mubr.f32.mxu0 0.0
  %8914 = vmatmul.mubr.f32.gmra.mrb[0].mxu0 %v8796
  %v8915 = vpop.f32.mrb[0].mxu0
  %v8916 = vadd.f32 %v8832, %v8915
  %v8917 = vpop.f32.mrb[0].mxu0
  %8918 = vmatprep.mubr.f32.mxu0 0.0
  %8919 = vmatmul.mubr.f32.gmra.mrb[0].mxu0 %v8797
  %v8920 = vpop.f32.mrb[0].mxu0
  %v8921 = vadd.f32 %v8832, %v8920
  %v8922 = vpop.f32.mrb[0].mxu0
  %8923 = vmatprep.mubr.f32.mxu0 0.0
  %8924 = vmatmul.mubr.f32.gmra.mrb[0].mxu0 %v8798
  %v8925 = vpop.f32.mrb[0].mxu0
  %v8926 = vadd.f32 %v8832, %v8925
  %v8927 = vpop.f32.mrb[0].mxu0
  %8928 = vmatprep.mubr.f32.mxu0 0.0
  %8929 = vmatmul.mubr.f32.gmra.mrb[0].mxu0 %v8799
  %v8930 = vpop.f32.mrb[0].mxu0
  %v8931 = vadd.f32 %v8832, %v8930
  %v8932 = vpop.f32.mrb[0].mxu0
  %8933 = vmatprep.mubr.f32.mxu0 0.0
  %8934 = vmatmul.mubr.f32.gmra.mrb[0].mxu0 %v8800
  %v8935 = vpop.f32.mrb[0].mxu0
  %v8936 = vadd.f32 %v8832, %v8935
  %v8937 = vpop.f32.mrb[0].mxu0
  %8938 = vmatprep.mubr.f32.mxu0 0.0
  %8939 = vmatmul.mubr.f32.gmra.mrb[0].mxu0 %v8801
  %v8940 = vpop.f32.mrb[0].mxu0
  %v8941 = vadd.f32 %v8832, %v8940
  %v8942 = vpop.f32.mrb[0].mxu0
  %8943 = vmatprep.mubr.f32.mxu0 0.0
  %8944 = vmatmul.mubr.f32.gmra.mrb[0].mxu0 %v8802
  %v8945 = vpop.f32.mrb[0].mxu0
  %v8946 = vadd.f32 %v8832, %v8945
  %v8947 = vpop.f32.mrb[0].mxu0
  %8948 = vmatprep.mubr.f32.mxu0 0.0
  %8949 = vmatmul.mubr.f32.gmra.mrb[0].mxu0 %v8803
  %v8950 = vpop.f32.mrb[0].mxu0
  %v8951 = vadd.f32 %v8832, %v8950
  %v8952 = vpop.f32.mrb[0].mxu0
  %8953 = vmatprep.mubr.f32.mxu0 0.0
  %8954 = vmatmul.mubr.f32.gmra.mrb[0].mxu0 %v8804
  %v8955 = vpop.f32.mrb[0].mxu0
  %v8956 = vadd.f32 %v8832, %v8955
  %v8957 = vpop.f32.mrb[0].mxu0
  %8958 = vmatprep.mubr.f32.mxu0 0.0
  %8959 = vmatmul.mubr.f32.gmra.mrb[0].mxu0 %v8805
  %v8960 = vpop.f32.mrb[0].mxu0
  %v8961 = vadd.f32 %v8832, %v8960
  %v8962 = vpop.f32.mrb[0].mxu0
  %8963 = vmatprep.mubr.f32.mxu0 0.0
  %8964 = vmatmul.mubr.f32.gmra.mrb[0].mxu0 %v8806
  %v8965 = vpop.f32.mrb[0].mxu0
  %v8966 = vadd.f32 %v8832, %v8965
  %v8967 = vpop.f32.mrb[0].mxu0
  %8968 = vmatprep.mubr.f32.mxu0 0.0
  %8969 = vmatmul.mubr.f32.gmra.mrb[0].mxu0 %v8807
  %v8970 = vpop.f32.mrb[0].mxu0
  %v8971 = vadd.f32 %v8832, %v8970
  %v8972 = vpop.f32.mrb[0].mxu0
  %8973 = vmatprep.mubr.f32.mxu0 0.0
  %8974 = vmatmul.mubr.f32.gmra.mrb[0].mxu0 %v8808
  %v8975 = vpop.f32.mrb[0].mxu0
  %v8976 = vadd.f32 %v8832, %v8975
  %v8977 = vpop.f32.mrb[0].mxu0
  %8978 = vdwg.mxu0
  %v8979 = vadd.f32 %v8901, %v8075
  %v8980 = vadd.f32 %v8906, %v8076
  %v8981 = vadd.f32 %v8911, %v8077
  %v8982 = vadd.f32 %v8916, %v8078
  %v8983 = vadd.f32 %v8921, %v8079
  %v8984 = vadd.f32 %v8926, %v8080
  %v8985 = vadd.f32 %v8931, %v8081
  %v8986 = vadd.f32 %v8936, %v8082
  %v8987 = vadd.f32 %v8941, %v8083
  %v8988 = vadd.f32 %v8946, %v8084
  %v8989 = vadd.f32 %v8951, %v8085
  %v8990 = vadd.f32 %v8956, %v8086
  %v8991 = vadd.f32 %v8961, %v8087
  %v8992 = vadd.f32 %v8966, %v8088
  %v8993 = vadd.f32 %v8971, %v8089
  %v8994 = vadd.f32 %v8976, %v8090
  %8995 = vst.msk [vmem:[%s14] sm:$0xff] %vm653, %v8979
  %8996 = vst.msk [vmem:[%s14 + $0x8] sm:$0xff] %vm653, %v8980
  %8997 = vst.msk [vmem:[%s14 + $0x10] sm:$0xff] %vm653, %v8981
  %8998 = vst.msk [vmem:[%s14 + $0x18] sm:$0xff] %vm653, %v8982
  %8999 = vst.msk [vmem:[%s14 + $0x20] sm:$0xff] %vm653, %v8983
  %9000 = vst.msk [vmem:[%s14 + $0x28] sm:$0xff] %vm653, %v8984
  %9001 = vst.msk [vmem:[%s14 + $0x30] sm:$0xff] %vm653, %v8985
  %9002 = vst.msk [vmem:[%s14 + $0x38] sm:$0xff] %vm653, %v8986
  %9003 = vst.msk [vmem:[%s14 + $0x40] sm:$0xff] %vm653, %v8987
  %9004 = vst.msk [vmem:[%s14 + $0x48] sm:$0xff] %vm653, %v8988
  %9005 = vst.msk [vmem:[%s14 + $0x50] sm:$0xff] %vm653, %v8989
  %9006 = vst.msk [vmem:[%s14 + $0x58] sm:$0xff] %vm653, %v8990
  %9007 = vst.msk [vmem:[%s14 + $0x60] sm:$0xff] %vm653, %v8991
  %9008 = vst.msk [vmem:[%s14 + $0x68] sm:$0xff] %vm653, %v8992
  %9009 = vst.msk [vmem:[%s14 + $0x70] sm:$0xff] %vm653, %v8993
  %9010 = vst.msk [vmem:[%s14 + $0x78] sm:$0xff] %vm653, %v8994
  // Predicated region
  $region58: #{tpu_custom_call.1} parent=0 // pred_check
    _
  $region59: #{tpu_custom_call.1} parent=0 // pred_check_branch
    %9012 = sbr.rel (0) target = $region61
  $region60: #{tpu_custom_call.1} parent=0 // pred_region
    _
  $region61: #{tpu_custom_call.1} parent=0 // pred_fallthru
    _
  // Predicated region
  $region62: #{tpu_custom_call.1} parent=0 // pred_check
    _
  $region63: #{tpu_custom_call.1} parent=0 // pred_check_branch
    %9014 = sbr.rel (0) target = $region65
  $region64: #{tpu_custom_call.1} parent=0 // pred_region
    _
  $region65: #{tpu_custom_call.1} parent=0 // pred_fallthru
    _
  // Predicated region
  $region66: #{tpu_custom_call.1} parent=0 // pred_check
    _
  $region67: #{tpu_custom_call.1} parent=0 // pred_check_branch
    %9016 = sbr.rel (0) target = $region69
  $region68: #{tpu_custom_call.1} parent=0 // pred_region
    _
  $region69: #{tpu_custom_call.1} parent=0 // pred_fallthru
    _
  // Predicated region
  $region70: #{tpu_custom_call.1} parent=0 // pred_check
    _
  $region71: #{tpu_custom_call.1} parent=0 // pred_check_branch
    %9018 = sbr.rel (0) target = $region73
  $region72: #{tpu_custom_call.1} parent=0 // pred_region
    _
  $region73: #{tpu_custom_call.1} parent=0 // pred_fallthru
    _

</llo_original>
